<compile_context>
chip_gen: v7x
topology: tpu7x:2x2x1
jax: 0.10.0
libtpu: 0.0.40
codegen_flags: <defaults>
</compile_context>

<pallas_src>
import functools

import jax
import jax.numpy as jnp
from jax import lax
from jax.experimental import pallas as pl
from jax.experimental.pallas import tpu as pltpu


# ---------------------------------------------------------------------------
# small helpers
# ---------------------------------------------------------------------------
def _round_up(x, m):
    return ((x + m - 1) // m) * m


def _pad_axis_to(a, axis, target):
    pad = target - a.shape[axis]
    if pad <= 0:
        return a
    widths = [(0, 0)] * a.ndim
    widths[axis] = (0, pad)
    return jnp.pad(a, widths)


def _pick_cout_tile(cout):
    # Split very wide output-channel dims into lane-dense tiles so the grid has
    # more parallel steps (megacore) and per-step VMEM stays small.
    if cout <= 1024 or cout % 128 != 0:
        return cout
    for cand in (1024, 896, 768, 640, 512, 384, 256, 128):
        if cout % cand == 0:
            return cand
    return cout


# ---------------------------------------------------------------------------
# Pallas kernel: stride-1 conv on a pre-padded NHWC tile.
# Taps are folded into the contraction: im2col once into a VMEM scratch,
# then a single (Hout*Wout, KH*KW*Cin) x (KH*KW*Cin, Cout_tile) MXU matmul.
# ---------------------------------------------------------------------------
def _conv_kernel(KH, KW, Hout, Wout, Cin, input_relu):
    def kernel(x_ref, w_ref, b_ref, o_ref, col_ref):
        x = x_ref[0]                                    # (Hp, Wp, Cin) bf16
        if input_relu:
            x = jnp.maximum(x, 0.0)
        # im2col is recomputed on every (n, j) grid step: a `j == 0` guard would
        # be unsafe if the parallel Cout axis gets sharded across TensorCores,
        # and the fill is cheap next to the K = KH*KW*Cin matmul.  (With the
        # module's channel counts the Cout axis never tiles anyway.)
        for ky in range(KH):
            for kx in range(KW):
                t = ky * KW + kx
                col_ref[:, t * Cin:(t + 1) * Cin] = (
                    x[ky:ky + Hout, kx:kx + Wout, :].reshape(Hout * Wout, Cin))
        acc = jnp.dot(col_ref[...], w_ref[...],
                      preferred_element_type=jnp.float32)
        acc = acc + b_ref[...]                          # f32 bias add
        o_ref[0] = acc.reshape(Hout, Wout, acc.shape[-1]).astype(o_ref.dtype)
    return kernel


def conv2d_nhwc(x, w_flat, b, *, KH, KW, padding, input_relu=False,
                out_dtype=jnp.bfloat16):
    """x: (N,H,W,Cin) bf16; w_flat: (KH*KW*Cin, Cout) bf16; b: (Cout,) f32."""
    N, H, W, Cin = x.shape
    K, Cout = w_flat.shape
    assert K == KH * KW * Cin
    xp = jnp.pad(x, ((0, 0), (padding, padding), (padding, padding), (0, 0)))
    Hp, Wp = H + 2 * padding, W + 2 * padding
    Hout, Wout = Hp - KH + 1, Wp - KW + 1
    tc = _pick_cout_tile(Cout)
    nj = Cout // tc
    b2 = b.reshape(1, Cout).astype(jnp.float32)

    kernel = _conv_kernel(KH, KW, Hout, Wout, Cin, input_relu)
    out_bytes = N * Hout * Wout * Cout * jnp.dtype(out_dtype).itemsize
    cost = pl.CostEstimate(
        flops=2 * N * Hout * Wout * K * Cout,
        transcendentals=0,
        bytes_accessed=int(N * Hp * Wp * Cin * 2 + K * Cout * 2
                           + Cout * 4 + out_bytes))

    return pl.pallas_call(
        kernel,
        out_shape=jax.ShapeDtypeStruct((N, Hout, Wout, Cout), out_dtype),
        grid=(N, nj),
        in_specs=[
            pl.BlockSpec((1, Hp, Wp, Cin), lambda n, j: (n, 0, 0, 0)),
            pl.BlockSpec((K, tc), lambda n, j: (0, j)),
            pl.BlockSpec((1, tc), lambda n, j: (0, j)),
        ],
        out_specs=pl.BlockSpec((1, Hout, Wout, tc), lambda n, j: (n, 0, 0, j)),
        scratch_shapes=[pltpu.VMEM((Hout * Wout, K), jnp.bfloat16)],
        compiler_params=pltpu.CompilerParams(
            dimension_semantics=("parallel", "parallel")),
        cost_estimate=cost,
    )(xp, w_flat, b2)


# ---------------------------------------------------------------------------
# Fused ResBlock kernel: ReLU -> conv3x3(C->R) -> ReLU -> conv1x1(R->C) -> +skip
# The intermediate activation lives entirely in VMEM / vregs (no HBM roundtrip).
# ---------------------------------------------------------------------------
def _resblock_kernel(H, W, C, R):
    def kernel(xp_ref, w1_ref, b1_ref, w2_ref, b2_ref, o_ref, col_ref):
        xp = xp_ref[0]                                  # (H+2, W+2, C) bf16
        xr = jnp.maximum(xp, 0.0)                       # relu(pad(h)) == pad(relu(h))
        for ky in range(3):
            for kx in range(3):
                t = ky * 3 + kx
                col_ref[:, t * C:(t + 1) * C] = (
                    xr[ky:ky + H, kx:kx + W, :].reshape(H * W, C))
        t1 = jnp.dot(col_ref[...], w1_ref[...], preferred_element_type=jnp.float32)
        t1 = jnp.maximum(t1 + b1_ref[...], 0.0).astype(jnp.bfloat16)
        y = jnp.dot(t1, w2_ref[...], preferred_element_type=jnp.float32)
        y = y + b2_ref[...]
        # residual: the un-ReLU'd interior of the padded input, added in f32
        y = y + xp[1:1 + H, 1:1 + W, :].reshape(H * W, C).astype(jnp.float32)
        o_ref[0] = y.reshape(H, W, C).astype(o_ref.dtype)
    return kernel


def resblock_fused(h, w1_flat, b1, w2, b2):
    """h: (N,H,W,C) bf16; w1_flat: (9*C, R) bf16; w2: (R, C) bf16; b*: f32."""
    N, H, W, C = h.shape
    R = w1_flat.shape[1]
    hp = jnp.pad(h, ((0, 0), (1, 1), (1, 1), (0, 0)))
    cost = pl.CostEstimate(
        flops=2 * N * H * W * (9 * C * R + R * C),
        transcendentals=0,
        bytes_accessed=int(hp.size * 2 + w1_flat.size * 2 + w2.size * 2
                           + (R + C) * 4 + N * H * W * C * 2))
    return pl.pallas_call(
        _resblock_kernel(H, W, C, R),
        out_shape=jax.ShapeDtypeStruct((N, H, W, C), jnp.bfloat16),
        grid=(N,),
        in_specs=[
            pl.BlockSpec((1, H + 2, W + 2, C), lambda n: (n, 0, 0, 0)),
            pl.BlockSpec((9 * C, R), lambda n: (0, 0)),
            pl.BlockSpec((1, R), lambda n: (0, 0)),
            pl.BlockSpec((R, C), lambda n: (0, 0)),
            pl.BlockSpec((1, C), lambda n: (0, 0)),
        ],
        out_specs=pl.BlockSpec((1, H, W, C), lambda n: (n, 0, 0, 0)),
        scratch_shapes=[pltpu.VMEM((H * W, 9 * C), jnp.bfloat16)],
        compiler_params=pltpu.CompilerParams(dimension_semantics=("parallel",)),
        cost_estimate=cost,
    )(hp, w1_flat, b1.reshape(1, R).astype(jnp.float32),
      w2, b2.reshape(1, C).astype(jnp.float32))


# ---------------------------------------------------------------------------
# ConvTranspose2d(k=4, s=2, p=1) + preceding ReLU via EXACT sub-pixel phases:
#   y[n, 2h+py, 2w+px, co] = b[co]
#     + sum_{ci,dy,dx} pad(h,1)[n, h+py+dy, w+px+dx, ci] * Wt[ci, co, 3-py-2dy, 3-px-2dx]
# i.e. 4 independent 2x2 stride-1 convs -> 4 MXU matmuls with K = 4*Cin each
# (no padded taps).  Output is stored phase-major (N, 4, H*W, Cout) so every
# store is a fully dense (H*W, Cout) slab; depth-to-space happens in the wrapper.
# ---------------------------------------------------------------------------
def _deconv_kernel(H, W, Cin):
    def kernel(xp_ref, w_ref, b_ref, o_ref, col_ref):
        xp = xp_ref[0]                                  # (H+2, W+2, Cin) bf16
        xr = jnp.maximum(xp, 0.0)                       # fused preceding nn.ReLU
        for p in range(4):                              # static unroll: 4 phases
            py, px = p // 2, p % 2
            for dy in range(2):
                for dx in range(2):
                    t = dy * 2 + dx
                    col_ref[:, t * Cin:(t + 1) * Cin] = (
                        xr[py + dy:py + dy + H, px + dx:px + dx + W, :]
                        .reshape(H * W, Cin))
            acc = jnp.dot(col_ref[...], w_ref[p],
                          preferred_element_type=jnp.float32)
            o_ref[0, p] = (acc + b_ref[...]).astype(o_ref.dtype)
    return kernel


def _deconv_phase_weights(w_t):
    """PyTorch (Cin, Cout, 4, 4) -> per-phase flat weights (4, 4*Cin, Cout)."""
    Cin, Cout, _, _ = w_t.shape
    Wp = jnp.zeros((4, 2, 2, Cin, Cout), w_t.dtype)
    for py in range(2):
        for px in range(2):
            for dy in range(2):
                for dx in range(2):
                    Wp = Wp.at[2 * py + px, dy, dx, :, :].set(
                        w_t[:, :, 3 - py - 2 * dy, 3 - px - 2 * dx])
    return Wp.reshape(4, 4 * Cin, Cout)


def conv_transpose2d_nhwc(h, w_t, b, *, stride, padding):
    """h: (N,H,W,Cin) bf16; w_t: (Cin, Cout, 4, 4) PyTorch layout; b: (Cout,)."""
    N, H, W, Cin = h.shape
    _, Cout, KH, KW = w_t.shape
    assert stride == 2 and padding == 1 and KH == 4 and KW == 4, (
        "only the module's k=4, s=2, p=1 upsampling config is implemented")
    w_phase = _deconv_phase_weights(w_t).astype(jnp.bfloat16)   # (4, 4*Cin, Cout)
    hp = jnp.pad(h, ((0, 0), (1, 1), (1, 1), (0, 0)))
    tc = _pick_cout_tile(Cout)
    nj = Cout // tc
    b2 = b.reshape(1, Cout).astype(jnp.float32)
    cost = pl.CostEstimate(
        flops=2 * N * H * W * 16 * Cin * Cout,          # exact tap count
        transcendentals=0,
        bytes_accessed=int(hp.size * 2 + w_phase.size * 2 + Cout * 4
                           + N * 4 * H * W * Cout * 4))

    z = pl.pallas_call(
        _deconv_kernel(H, W, Cin),
        out_shape=jax.ShapeDtypeStruct((N, 4, H * W, Cout), jnp.float32),
        grid=(N, nj),
        in_specs=[
            pl.BlockSpec((1, H + 2, W + 2, Cin), lambda n, j: (n, 0, 0, 0)),
            pl.BlockSpec((4, 4 * Cin, tc), lambda n, j: (0, 0, j)),
            pl.BlockSpec((1, tc), lambda n, j: (0, j)),
        ],
        out_specs=pl.BlockSpec((1, 4, H * W, tc), lambda n, j: (n, 0, 0, j)),
        scratch_shapes=[pltpu.VMEM((H * W, 4 * Cin), jnp.bfloat16)],
        compiler_params=pltpu.CompilerParams(
            dimension_semantics=("parallel", "parallel")),
        cost_estimate=cost,
    )(hp, w_phase, b2)

    # depth-to-space: (n, 2*py+px, h*W+w, co) -> (n, 2h+py, 2w+px, co)
    z = z.reshape(N, 2, 2, H, W, Cout)
    z = jnp.transpose(z, (0, 3, 1, 4, 2, 5))
    return z.reshape(N, 2 * H, 2 * W, Cout)


# ---------------------------------------------------------------------------
# RosinalityDecoder forward (resolution_factor=2, groups=1, non-local kernels)
# ---------------------------------------------------------------------------
def decoder_forward(x, params, n_res_block):
    """x: (N,H,W,in_channel) f32 NHWC. Returns (N, 2H, 2W, out_channel) f32."""
    x = x.astype(jnp.bfloat16)
    Cin = x.shape[-1]
    Cin_p = _round_up(Cin, 128)                      # lane-dense input channels
    x = _pad_axis_to(x, 3, Cin_p)
    w0 = _pad_axis_to(params["w0"], 2, Cin_p).astype(jnp.bfloat16)
    w0_flat = w0.reshape(9 * Cin_p, w0.shape[-1])
    h = conv2d_nhwc(x, w0_flat, params["b0"], KH=3, KW=3, padding=1)

    for i in range(n_res_block):
        p = params["res"][i]
        C = h.shape[-1]
        R = p["w1"].shape[-1]
        Rp = _round_up(R, 128)                       # zero-pad hidden width: exact
        w1 = _pad_axis_to(p["w1"], 3, Rp).astype(jnp.bfloat16).reshape(9 * C, Rp)
        b1 = _pad_axis_to(p["b1"], 0, Rp)
        w2 = _pad_axis_to(p["w2"][0, 0], 0, Rp).astype(jnp.bfloat16)   # (Rp, C)
        h = resblock_fused(h, w1, b1, w2, p["b2"])

    # trailing nn.ReLU is fused into the transpose-conv kernel
    return conv_transpose2d_nhwc(h, params["wt"], params["bt"],
                                 stride=2, padding=1)


# ---------------------------------------------------------------------------
# Pure-JAX (XLA) reference mirroring the same bf16 cast points
# ---------------------------------------------------------------------------
def ref_forward(x, params, n_res_block):
    f32 = jnp.float32
    bf16 = jnp.bfloat16

    def conv(x, w, b, pad):
        y = lax.conv_general_dilated(
            x, w, (1, 1), [(pad, pad), (pad, pad)],
            dimension_numbers=("NHWC", "HWIO", "NHWC"),
            preferred_element_type=f32)
        return y + b.reshape(1, 1, 1, -1).astype(f32)

    x = x.astype(bf16)
    h = conv(x, params["w0"].astype(bf16), params["b0"], 1).astype(bf16)
    for i in range(n_res_block):
        p = params["res"][i]
        t = jax.nn.relu(h)
        t = conv(t, p["w1"].astype(bf16), p["b1"], 1)
        t = jax.nn.relu(t).astype(bf16)
        t = conv(t, p["w2"].astype(bf16), p["b2"], 0)
        h = (h.astype(f32) + t).astype(bf16)
    h = jax.nn.relu(h)
    w_t = params["wt"].astype(bf16)
    w_conv = jnp.transpose(w_t[:, :, ::-1, ::-1], (2, 3, 0, 1))
    y = lax.conv_general_dilated(
        h, w_conv, (1, 1), [(2, 2), (2, 2)], lhs_dilation=(2, 2),
        dimension_numbers=("NHWC", "HWIO", "NHWC"),
        preferred_element_type=f32)
    return y + params["bt"].reshape(1, 1, 1, -1)


# ---------------------------------------------------------------------------
# Deterministic parameter initialisation (shapes follow the module __init__)
# ---------------------------------------------------------------------------
def init_params(key, in_channel, channel, n_res_channel, out_channel,
                n_res_block, up_k):
    ks = jax.random.split(key, 4 + 4 * n_res_block)
    s = 0.1
    params = {
        "w0": s * jax.random.normal(ks[0], (3, 3, in_channel, channel), jnp.float32),
        "b0": s * jax.random.normal(ks[1], (channel,), jnp.float32),
        "res": [],
    }
    for i in range(n_res_block):
        k1, k2, k3, k4 = ks[2 + 4 * i: 6 + 4 * i]
        params["res"].append(dict(
            w1=s * jax.random.normal(k1, (3, 3, channel, n_res_channel), jnp.float32),
            b1=s * jax.random.normal(k2, (n_res_channel,), jnp.float32),
            w2=s * jax.random.normal(k3, (1, 1, n_res_channel, channel), jnp.float32),
            b2=s * jax.random.normal(k4, (channel,), jnp.float32),
        ))
    kt1, kt2 = ks[2 + 4 * n_res_block: 4 + 4 * n_res_block]
    # PyTorch ConvTranspose2d weight layout: (Cin, Cout, KH, KW)
    params["wt"] = s * jax.random.normal(kt1, (channel, out_channel, up_k, up_k),
                                         jnp.float32)
    params["bt"] = s * jax.random.normal(kt2, (out_channel,), jnp.float32)
    return params


if __name__ == "__main__":
    # Module-default channel counts, small spatial / batch.
    N, H, W = 2, 8, 8
    in_channel, channel, n_res_channel, out_channel = 64, 128, 32, 768
    n_res_block = 2
    stride = 2
    up_k = 2 * stride          # use_local_kernels=False -> kernel_size = 4

    key = jax.random.PRNGKey(0)
    kx, kp = jax.random.split(key)
    x = jax.random.normal(kx, (N, H, W, in_channel), jnp.float32)   # NHWC
    params = init_params(kp, in_channel, channel, n_res_channel, out_channel,
                         n_res_block, up_k)

    fwd = jax.jit(functools.partial(decoder_forward, n_res_block=n_res_block))
    y = jax.block_until_ready(fwd(x, params))
    assert y.shape == (N, 2 * H, 2 * W, out_channel), y.shape

    ref = jax.jit(functools.partial(ref_forward, n_res_block=n_res_block))
    y_ref = jax.block_until_ready(ref(x, params))
    max_err = float(jnp.max(jnp.abs(y - y_ref)))
    assert jnp.allclose(y, y_ref, atol=2e-3, rtol=2e-3), max_err

    print("KERNEL_OK")
</pallas_src>

<mosaic_0001>
module attributes {stable_mosaic.version = 11 : i64} {
  func.func @kernel(%arg0: i32, %arg1: i32, %arg2: memref<1x10x10x128xbf16, #tpu.memory_space<vmem>>, %arg3: memref<1152x128xbf16, #tpu.memory_space<vmem>>, %arg4: memref<1x128xf32, #tpu.memory_space<vmem>>, %arg5: memref<1x8x8x128xbf16, #tpu.memory_space<vmem>>, %arg6: memref<64x1152xbf16, #tpu.memory_space<vmem>>) attributes {dimension_semantics = [#tpu.dimension_semantics<parallel>, #tpu.dimension_semantics<parallel>], iteration_bounds = array<i64: 2, 1>, scalar_prefetch = 0 : i64, scratch_operands = 1 : i64, tpu.core_type = #tpu.core_type<tc>, window_params = [{transform_indices = @transform_0, window_bounds = array<i64: 1, 10, 10, 128>}, {transform_indices = @transform_1, window_bounds = array<i64: 1152, 128>}, {transform_indices = @transform_2, window_bounds = array<i64: 1, 128>}, {transform_indices = @transform_3, window_bounds = array<i64: 1, 8, 8, 128>}]} {
    %c0 = arith.constant 0 : index
    %c0_0 = arith.constant 0 : index
    %c0_1 = arith.constant 0 : index
    %c0_2 = arith.constant 0 : index
    %0 = vector.load %arg2[%c0, %c0_0, %c0_1, %c0_2] : memref<1x10x10x128xbf16, #tpu.memory_space<vmem>>, vector<1x10x10x128xbf16>
    %1 = vector.shape_cast %0 : vector<1x10x10x128xbf16> to vector<10x10x128xbf16>
    %2 = vector.extract_strided_slice %1 {offsets = [0, 0, 0], sizes = [8, 8, 128], strides = [1, 1, 1]} : vector<10x10x128xbf16> to vector<8x8x128xbf16>
    %3 = vector.shape_cast %2 : vector<8x8x128xbf16> to vector<64x128xbf16>
    %c0_3 = arith.constant 0 : index
    %c0_4 = arith.constant 0 : index
    %4 = vector.load %arg6[%c0_3, %c0_4] : memref<64x1152xbf16, #tpu.memory_space<vmem>>, vector<64x128xbf16>
    tpu.vector_store %arg6[%c0_3, %c0_4], %3 {strides = array<i32>} : memref<64x1152xbf16, #tpu.memory_space<vmem>>, vector<64x128xbf16>,
    %5 = vector.extract_strided_slice %1 {offsets = [0, 1, 0], sizes = [8, 8, 128], strides = [1, 1, 1]} : vector<10x10x128xbf16> to vector<8x8x128xbf16>
    %6 = vector.shape_cast %5 : vector<8x8x128xbf16> to vector<64x128xbf16>
    %c0_5 = arith.constant 0 : index
    %c128 = arith.constant 128 : index
    %7 = vector.load %arg6[%c0_5, %c128] : memref<64x1152xbf16, #tpu.memory_space<vmem>>, vector<64x128xbf16>
    tpu.vector_store %arg6[%c0_5, %c128], %6 {strides = array<i32>} : memref<64x1152xbf16, #tpu.memory_space<vmem>>, vector<64x128xbf16>,
    %8 = vector.extract_strided_slice %1 {offsets = [0, 2, 0], sizes = [8, 8, 128], strides = [1, 1, 1]} : vector<10x10x128xbf16> to vector<8x8x128xbf16>
    %9 = vector.shape_cast %8 : vector<8x8x128xbf16> to vector<64x128xbf16>
    %c0_6 = arith.constant 0 : index
    %c256 = arith.constant 256 : index
    %10 = vector.load %arg6[%c0_6, %c256] : memref<64x1152xbf16, #tpu.memory_space<vmem>>, vector<64x128xbf16>
    tpu.vector_store %arg6[%c0_6, %c256], %9 {strides = array<i32>} : memref<64x1152xbf16, #tpu.memory_space<vmem>>, vector<64x128xbf16>,
    %11 = vector.extract_strided_slice %1 {offsets = [1, 0, 0], sizes = [8, 8, 128], strides = [1, 1, 1]} : vector<10x10x128xbf16> to vector<8x8x128xbf16>
    %12 = vector.shape_cast %11 : vector<8x8x128xbf16> to vector<64x128xbf16>
    %c0_7 = arith.constant 0 : index
    %c384 = arith.constant 384 : index
    %13 = vector.load %arg6[%c0_7, %c384] : memref<64x1152xbf16, #tpu.memory_space<vmem>>, vector<64x128xbf16>
    tpu.vector_store %arg6[%c0_7, %c384], %12 {strides = array<i32>} : memref<64x1152xbf16, #tpu.memory_space<vmem>>, vector<64x128xbf16>,
    %14 = vector.extract_strided_slice %1 {offsets = [1, 1, 0], sizes = [8, 8, 128], strides = [1, 1, 1]} : vector<10x10x128xbf16> to vector<8x8x128xbf16>
    %15 = vector.shape_cast %14 : vector<8x8x128xbf16> to vector<64x128xbf16>
    %c0_8 = arith.constant 0 : index
    %c512 = arith.constant 512 : index
    %16 = vector.load %arg6[%c0_8, %c512] : memref<64x1152xbf16, #tpu.memory_space<vmem>>, vector<64x128xbf16>
    tpu.vector_store %arg6[%c0_8, %c512], %15 {strides = array<i32>} : memref<64x1152xbf16, #tpu.memory_space<vmem>>, vector<64x128xbf16>,
    %17 = vector.extract_strided_slice %1 {offsets = [1, 2, 0], sizes = [8, 8, 128], strides = [1, 1, 1]} : vector<10x10x128xbf16> to vector<8x8x128xbf16>
    %18 = vector.shape_cast %17 : vector<8x8x128xbf16> to vector<64x128xbf16>
    %c0_9 = arith.constant 0 : index
    %c640 = arith.constant 640 : index
    %19 = vector.load %arg6[%c0_9, %c640] : memref<64x1152xbf16, #tpu.memory_space<vmem>>, vector<64x128xbf16>
    tpu.vector_store %arg6[%c0_9, %c640], %18 {strides = array<i32>} : memref<64x1152xbf16, #tpu.memory_space<vmem>>, vector<64x128xbf16>,
    %20 = vector.extract_strided_slice %1 {offsets = [2, 0, 0], sizes = [8, 8, 128], strides = [1, 1, 1]} : vector<10x10x128xbf16> to vector<8x8x128xbf16>
    %21 = vector.shape_cast %20 : vector<8x8x128xbf16> to vector<64x128xbf16>
    %c0_10 = arith.constant 0 : index
    %c768 = arith.constant 768 : index
    %22 = vector.load %arg6[%c0_10, %c768] : memref<64x1152xbf16, #tpu.memory_space<vmem>>, vector<64x128xbf16>
    tpu.vector_store %arg6[%c0_10, %c768], %21 {strides = array<i32>} : memref<64x1152xbf16, #tpu.memory_space<vmem>>, vector<64x128xbf16>,
    %23 = vector.extract_strided_slice %1 {offsets = [2, 1, 0], sizes = [8, 8, 128], strides = [1, 1, 1]} : vector<10x10x128xbf16> to vector<8x8x128xbf16>
    %24 = vector.shape_cast %23 : vector<8x8x128xbf16> to vector<64x128xbf16>
    %c0_11 = arith.constant 0 : index
    %c896 = arith.constant 896 : index
    %25 = vector.load %arg6[%c0_11, %c896] : memref<64x1152xbf16, #tpu.memory_space<vmem>>, vector<64x128xbf16>
    tpu.vector_store %arg6[%c0_11, %c896], %24 {strides = array<i32>} : memref<64x1152xbf16, #tpu.memory_space<vmem>>, vector<64x128xbf16>,
    %26 = vector.extract_strided_slice %1 {offsets = [2, 2, 0], sizes = [8, 8, 128], strides = [1, 1, 1]} : vector<10x10x128xbf16> to vector<8x8x128xbf16>
    %27 = vector.shape_cast %26 : vector<8x8x128xbf16> to vector<64x128xbf16>
    %c0_12 = arith.constant 0 : index
    %c1024 = arith.constant 1024 : index
    %28 = vector.load %arg6[%c0_12, %c1024] : memref<64x1152xbf16, #tpu.memory_space<vmem>>, vector<64x128xbf16>
    tpu.vector_store %arg6[%c0_12, %c1024], %27 {strides = array<i32>} : memref<64x1152xbf16, #tpu.memory_space<vmem>>, vector<64x128xbf16>,
    %c0_13 = arith.constant 0 : index
    %c0_14 = arith.constant 0 : index
    %29 = vector.load %arg6[%c0_13, %c0_14] : memref<64x1152xbf16, #tpu.memory_space<vmem>>, vector<64x1152xbf16>
    %c0_15 = arith.constant 0 : index
    %c0_16 = arith.constant 0 : index
    %30 = vector.load %arg3[%c0_15, %c0_16] : memref<1152x128xbf16, #tpu.memory_space<vmem>>, vector<1152x128xbf16>
    %cst = arith.constant dense<0.000000e+00> : vector<64x128xf32>
    %31 = tpu.matmul %29, %30, %cst {dimension_numbers = #tpu.dot_dimension_numbers<[1], [0], [0], [1], [0, 0, 1, 1], [], []>} : vector<64x1152xbf16>, vector<1152x128xbf16>, vector<64x128xf32> -> vector<64x128xf32>
    %c0_17 = arith.constant 0 : index
    %c0_18 = arith.constant 0 : index
    %32 = vector.load %arg4[%c0_17, %c0_18] : memref<1x128xf32, #tpu.memory_space<vmem>>, vector<1x128xf32>
    %33 = vector.broadcast %32 : vector<1x128xf32> to vector<64x128xf32>
    %34 = arith.addf %31, %33 : vector<64x128xf32>
    %35 = vector.shape_cast %34 : vector<64x128xf32> to vector<8x8x128xf32>
    %36 = arith.truncf %35 : vector<8x8x128xf32> to vector<8x8x128xbf16>
    %c0_19 = arith.constant 0 : index
    %c0_20 = arith.constant 0 : index
    %c0_21 = arith.constant 0 : index
    %c0_22 = arith.constant 0 : index
    %37 = vector.load %arg5[%c0_19, %c0_20, %c0_21, %c0_22] : memref<1x8x8x128xbf16, #tpu.memory_space<vmem>>, vector<1x8x8x128xbf16>
    %38 = vector.shape_cast %37 : vector<1x8x8x128xbf16> to vector<8x8x128xbf16>
    %39 = vector.shape_cast %36 : vector<8x8x128xbf16> to vector<1x8x8x128xbf16>
    tpu.vector_store %arg5[%c0_19, %c0_20, %c0_21, %c0_22], %39 {strides = array<i32>} : memref<1x8x8x128xbf16, #tpu.memory_space<vmem>>, vector<1x8x8x128xbf16>,
    return
  }
  func.func @transform_0(%arg0: i32, %arg1: i32) -> (i32, i32, i32, i32) {
    %c0_i32 = arith.constant 0 : i32
    %c0_i32_0 = arith.constant 0 : i32
    %c0_i32_1 = arith.constant 0 : i32
    %c0_i32_2 = arith.constant 0 : i32
    return %arg0, %c0_i32, %c0_i32_0, %c0_i32_1 : i32, i32, i32, i32
  }
  func.func @transform_1(%arg0: i32, %arg1: i32) -> (i32, i32) {
    %c0_i32 = arith.constant 0 : i32
    %c0_i32_0 = arith.constant 0 : i32
    return %c0_i32, %arg1 : i32, i32
  }
  func.func @transform_2(%arg0: i32, %arg1: i32) -> (i32, i32) {
    %c0_i32 = arith.constant 0 : i32
    %c0_i32_0 = arith.constant 0 : i32
    return %c0_i32, %arg1 : i32, i32
  }
  func.func @transform_3(%arg0: i32, %arg1: i32) -> (i32, i32, i32, i32) {
    %c0_i32 = arith.constant 0 : i32
    %c0_i32_0 = arith.constant 0 : i32
    %c0_i32_1 = arith.constant 0 : i32
    return %arg0, %c0_i32, %c0_i32_0, %arg1 : i32, i32, i32, i32
  }
}

module attributes {stable_mosaic.version = 11 : i64} {
  func.func @kernel(%arg0: i32, %arg1: memref<1x10x10x128xbf16, #tpu.memory_space<vmem>>, %arg2: memref<1152x128xbf16, #tpu.memory_space<vmem>>, %arg3: memref<1x128xf32, #tpu.memory_space<vmem>>, %arg4: memref<128x128xbf16, #tpu.memory_space<vmem>>, %arg5: memref<1x128xf32, #tpu.memory_space<vmem>>, %arg6: memref<1x8x8x128xbf16, #tpu.memory_space<vmem>>, %arg7: memref<64x1152xbf16, #tpu.memory_space<vmem>>) attributes {dimension_semantics = [#tpu.dimension_semantics<parallel>], iteration_bounds = array<i64: 2>, scalar_prefetch = 0 : i64, scratch_operands = 1 : i64, tpu.core_type = #tpu.core_type<tc>, window_params = [{transform_indices = @transform_0, window_bounds = array<i64: 1, 10, 10, 128>}, {pipeline_mode = #tpu.pipeline_mode<synchronous>, transform_indices = @transform_1, window_bounds = array<i64: 1152, 128>}, {pipeline_mode = #tpu.pipeline_mode<synchronous>, transform_indices = @transform_2, window_bounds = array<i64: 1, 128>}, {pipeline_mode = #tpu.pipeline_mode<synchronous>, transform_indices = @transform_3, window_bounds = array<i64: 128, 128>}, {pipeline_mode = #tpu.pipeline_mode<synchronous>, transform_indices = @transform_4, window_bounds = array<i64: 1, 128>}, {transform_indices = @transform_5, window_bounds = array<i64: 1, 8, 8, 128>}]} {
    %c0 = arith.constant 0 : index
    %c0_0 = arith.constant 0 : index
    %c0_1 = arith.constant 0 : index
    %c0_2 = arith.constant 0 : index
    %0 = vector.load %arg1[%c0, %c0_0, %c0_1, %c0_2] : memref<1x10x10x128xbf16, #tpu.memory_space<vmem>>, vector<1x10x10x128xbf16>
    %1 = vector.shape_cast %0 : vector<1x10x10x128xbf16> to vector<10x10x128xbf16>
    %cst = arith.constant 0.000000e+00 : bf16
    %2 = vector.broadcast %cst : bf16 to vector<10x10x128xbf16>
    %3 = arith.maximumf %1, %2 : vector<10x10x128xbf16>
    %4 = vector.extract_strided_slice %3 {offsets = [0, 0, 0], sizes = [8, 8, 128], strides = [1, 1, 1]} : vector<10x10x128xbf16> to vector<8x8x128xbf16>
    %5 = vector.shape_cast %4 : vector<8x8x128xbf16> to vector<64x128xbf16>
    %c0_3 = arith.constant 0 : index
    %c0_4 = arith.constant 0 : index
    %6 = vector.load %arg7[%c0_3, %c0_4] : memref<64x1152xbf16, #tpu.memory_space<vmem>>, vector<64x128xbf16>
    tpu.vector_store %arg7[%c0_3, %c0_4], %5 {strides = array<i32>} : memref<64x1152xbf16, #tpu.memory_space<vmem>>, vector<64x128xbf16>,
    %7 = vector.extract_strided_slice %3 {offsets = [0, 1, 0], sizes = [8, 8, 128], strides = [1, 1, 1]} : vector<10x10x128xbf16> to vector<8x8x128xbf16>
    %8 = vector.shape_cast %7 : vector<8x8x128xbf16> to vector<64x128xbf16>
    %c0_5 = arith.constant 0 : index
    %c128 = arith.constant 128 : index
    %9 = vector.load %arg7[%c0_5, %c128] : memref<64x1152xbf16, #tpu.memory_space<vmem>>, vector<64x128xbf16>
    tpu.vector_store %arg7[%c0_5, %c128], %8 {strides = array<i32>} : memref<64x1152xbf16, #tpu.memory_space<vmem>>, vector<64x128xbf16>,
    %10 = vector.extract_strided_slice %3 {offsets = [0, 2, 0], sizes = [8, 8, 128], strides = [1, 1, 1]} : vector<10x10x128xbf16> to vector<8x8x128xbf16>
    %11 = vector.shape_cast %10 : vector<8x8x128xbf16> to vector<64x128xbf16>
    %c0_6 = arith.constant 0 : index
    %c256 = arith.constant 256 : index
    %12 = vector.load %arg7[%c0_6, %c256] : memref<64x1152xbf16, #tpu.memory_space<vmem>>, vector<64x128xbf16>
    tpu.vector_store %arg7[%c0_6, %c256], %11 {strides = array<i32>} : memref<64x1152xbf16, #tpu.memory_space<vmem>>, vector<64x128xbf16>,
    %13 = vector.extract_strided_slice %3 {offsets = [1, 0, 0], sizes = [8, 8, 128], strides = [1, 1, 1]} : vector<10x10x128xbf16> to vector<8x8x128xbf16>
    %14 = vector.shape_cast %13 : vector<8x8x128xbf16> to vector<64x128xbf16>
    %c0_7 = arith.constant 0 : index
    %c384 = arith.constant 384 : index
    %15 = vector.load %arg7[%c0_7, %c384] : memref<64x1152xbf16, #tpu.memory_space<vmem>>, vector<64x128xbf16>
    tpu.vector_store %arg7[%c0_7, %c384], %14 {strides = array<i32>} : memref<64x1152xbf16, #tpu.memory_space<vmem>>, vector<64x128xbf16>,
    %16 = vector.extract_strided_slice %3 {offsets = [1, 1, 0], sizes = [8, 8, 128], strides = [1, 1, 1]} : vector<10x10x128xbf16> to vector<8x8x128xbf16>
    %17 = vector.shape_cast %16 : vector<8x8x128xbf16> to vector<64x128xbf16>
    %c0_8 = arith.constant 0 : index
    %c512 = arith.constant 512 : index
    %18 = vector.load %arg7[%c0_8, %c512] : memref<64x1152xbf16, #tpu.memory_space<vmem>>, vector<64x128xbf16>
    tpu.vector_store %arg7[%c0_8, %c512], %17 {strides = array<i32>} : memref<64x1152xbf16, #tpu.memory_space<vmem>>, vector<64x128xbf16>,
    %19 = vector.extract_strided_slice %3 {offsets = [1, 2, 0], sizes = [8, 8, 128], strides = [1, 1, 1]} : vector<10x10x128xbf16> to vector<8x8x128xbf16>
    %20 = vector.shape_cast %19 : vector<8x8x128xbf16> to vector<64x128xbf16>
    %c0_9 = arith.constant 0 : index
    %c640 = arith.constant 640 : index
    %21 = vector.load %arg7[%c0_9, %c640] : memref<64x1152xbf16, #tpu.memory_space<vmem>>, vector<64x128xbf16>
    tpu.vector_store %arg7[%c0_9, %c640], %20 {strides = array<i32>} : memref<64x1152xbf16, #tpu.memory_space<vmem>>, vector<64x128xbf16>,
    %22 = vector.extract_strided_slice %3 {offsets = [2, 0, 0], sizes = [8, 8, 128], strides = [1, 1, 1]} : vector<10x10x128xbf16> to vector<8x8x128xbf16>
    %23 = vector.shape_cast %22 : vector<8x8x128xbf16> to vector<64x128xbf16>
    %c0_10 = arith.constant 0 : index
    %c768 = arith.constant 768 : index
    %24 = vector.load %arg7[%c0_10, %c768] : memref<64x1152xbf16, #tpu.memory_space<vmem>>, vector<64x128xbf16>
    tpu.vector_store %arg7[%c0_10, %c768], %23 {strides = array<i32>} : memref<64x1152xbf16, #tpu.memory_space<vmem>>, vector<64x128xbf16>,
    %25 = vector.extract_strided_slice %3 {offsets = [2, 1, 0], sizes = [8, 8, 128], strides = [1, 1, 1]} : vector<10x10x128xbf16> to vector<8x8x128xbf16>
    %26 = vector.shape_cast %25 : vector<8x8x128xbf16> to vector<64x128xbf16>
    %c0_11 = arith.constant 0 : index
    %c896 = arith.constant 896 : index
    %27 = vector.load %arg7[%c0_11, %c896] : memref<64x1152xbf16, #tpu.memory_space<vmem>>, vector<64x128xbf16>
    tpu.vector_store %arg7[%c0_11, %c896], %26 {strides = array<i32>} : memref<64x1152xbf16, #tpu.memory_space<vmem>>, vector<64x128xbf16>,
    %28 = vector.extract_strided_slice %3 {offsets = [2, 2, 0], sizes = [8, 8, 128], strides = [1, 1, 1]} : vector<10x10x128xbf16> to vector<8x8x128xbf16>
    %29 = vector.shape_cast %28 : vector<8x8x128xbf16> to vector<64x128xbf16>
    %c0_12 = arith.constant 0 : index
    %c1024 = arith.constant 1024 : index
    %30 = vector.load %arg7[%c0_12, %c1024] : memref<64x1152xbf16, #tpu.memory_space<vmem>>, vector<64x128xbf16>
    tpu.vector_store %arg7[%c0_12, %c1024], %29 {strides = array<i32>} : memref<64x1152xbf16, #tpu.memory_space<vmem>>, vector<64x128xbf16>,
    %c0_13 = arith.constant 0 : index
    %c0_14 = arith.constant 0 : index
    %31 = vector.load %arg7[%c0_13, %c0_14] : memref<64x1152xbf16, #tpu.memory_space<vmem>>, vector<64x1152xbf16>
    %c0_15 = arith.constant 0 : index
    %c0_16 = arith.constant 0 : index
    %32 = vector.load %arg2[%c0_15, %c0_16] : memref<1152x128xbf16, #tpu.memory_space<vmem>>, vector<1152x128xbf16>
    %cst_17 = arith.constant dense<0.000000e+00> : vector<64x128xf32>
    %33 = tpu.matmul %31, %32, %cst_17 {dimension_numbers = #tpu.dot_dimension_numbers<[1], [0], [0], [1], [0, 0, 1, 1], [], []>} : vector<64x1152xbf16>, vector<1152x128xbf16>, vector<64x128xf32> -> vector<64x128xf32>
    %c0_18 = arith.constant 0 : index
    %c0_19 = arith.constant 0 : index
    %34 = vector.load %arg3[%c0_18, %c0_19] : memref<1x128xf32, #tpu.memory_space<vmem>>, vector<1x128xf32>
    %35 = vector.broadcast %34 : vector<1x128xf32> to vector<64x128xf32>
    %36 = arith.addf %33, %35 : vector<64x128xf32>
    %cst_20 = arith.constant 0.000000e+00 : f32
    %37 = vector.broadcast %cst_20 : f32 to vector<64x128xf32>
    %38 = arith.maximumf %36, %37 : vector<64x128xf32>
    %39 = arith.truncf %38 : vector<64x128xf32> to vector<64x128xbf16>
    %c0_21 = arith.constant 0 : index
    %c0_22 = arith.constant 0 : index
    %40 = vector.load %arg4[%c0_21, %c0_22] : memref<128x128xbf16, #tpu.memory_space<vmem>>, vector<128x128xbf16>
    %cst_23 = arith.constant dense<0.000000e+00> : vector<64x128xf32>
    %41 = tpu.matmul %39, %40, %cst_23 {dimension_numbers = #tpu.dot_dimension_numbers<[1], [0], [0], [1], [0, 0, 1, 1], [], []>} : vector<64x128xbf16>, vector<128x128xbf16>, vector<64x128xf32> -> vector<64x128xf32>
    %c0_24 = arith.constant 0 : index
    %c0_25 = arith.constant 0 : index
    %42 = vector.load %arg5[%c0_24, %c0_25] : memref<1x128xf32, #tpu.memory_space<vmem>>, vector<1x128xf32>
    %43 = vector.broadcast %42 : vector<1x128xf32> to vector<64x128xf32>
    %44 = arith.addf %41, %43 : vector<64x128xf32>
    %45 = vector.extract_strided_slice %1 {offsets = [1, 1, 0], sizes = [8, 8, 128], strides = [1, 1, 1]} : vector<10x10x128xbf16> to vector<8x8x128xbf16>
    %46 = vector.shape_cast %45 : vector<8x8x128xbf16> to vector<64x128xbf16>
    %47 = arith.extf %46 : vector<64x128xbf16> to vector<64x128xf32>
    %48 = arith.addf %44, %47 : vector<64x128xf32>
    %49 = vector.shape_cast %48 : vector<64x128xf32> to vector<8x8x128xf32>
    %50 = arith.truncf %49 : vector<8x8x128xf32> to vector<8x8x128xbf16>
    %c0_26 = arith.constant 0 : index
    %c0_27 = arith.constant 0 : index
    %c0_28 = arith.constant 0 : index
    %c0_29 = arith.constant 0 : index
    %51 = vector.load %arg6[%c0_26, %c0_27, %c0_28, %c0_29] : memref<1x8x8x128xbf16, #tpu.memory_space<vmem>>, vector<1x8x8x128xbf16>
    %52 = vector.shape_cast %51 : vector<1x8x8x128xbf16> to vector<8x8x128xbf16>
    %53 = vector.shape_cast %50 : vector<8x8x128xbf16> to vector<1x8x8x128xbf16>
    tpu.vector_store %arg6[%c0_26, %c0_27, %c0_28, %c0_29], %53 {strides = array<i32>} : memref<1x8x8x128xbf16, #tpu.memory_space<vmem>>, vector<1x8x8x128xbf16>,
    return
  }
  func.func @transform_0(%arg0: i32) -> (i32, i32, i32, i32) {
    %c0_i32 = arith.constant 0 : i32
    %c0_i32_0 = arith.constant 0 : i32
    %c0_i32_1 = arith.constant 0 : i32
    %c0_i32_2 = arith.constant 0 : i32
    return %arg0, %c0_i32, %c0_i32_0, %c0_i32_1 : i32, i32, i32, i32
  }
  func.func @transform_1(%arg0: i32) -> (i32, i32) {
    %c0_i32 = arith.constant 0 : i32
    %c0_i32_0 = arith.constant 0 : i32
    %c0_i32_1 = arith.constant 0 : i32
    return %c0_i32, %c0_i32_0 : i32, i32
  }
  func.func @transform_2(%arg0: i32) -> (i32, i32) {
    %c0_i32 = arith.constant 0 : i32
    %c0_i32_0 = arith.constant 0 : i32
    %c0_i32_1 = arith.constant 0 : i32
    return %c0_i32, %c0_i32_0 : i32, i32
  }
  func.func @transform_3(%arg0: i32) -> (i32, i32) {
    %c0_i32 = arith.constant 0 : i32
    %c0_i32_0 = arith.constant 0 : i32
    %c0_i32_1 = arith.constant 0 : i32
    return %c0_i32, %c0_i32_0 : i32, i32
  }
  func.func @transform_4(%arg0: i32) -> (i32, i32) {
    %c0_i32 = arith.constant 0 : i32
    %c0_i32_0 = arith.constant 0 : i32
    %c0_i32_1 = arith.constant 0 : i32
    return %c0_i32, %c0_i32_0 : i32, i32
  }
  func.func @transform_5(%arg0: i32) -> (i32, i32, i32, i32) {
    %c0_i32 = arith.constant 0 : i32
    %c0_i32_0 = arith.constant 0 : i32
    %c0_i32_1 = arith.constant 0 : i32
    %c0_i32_2 = arith.constant 0 : i32
    return %arg0, %c0_i32, %c0_i32_0, %c0_i32_1 : i32, i32, i32, i32
  }
}

module attributes {stable_mosaic.version = 11 : i64} {
  func.func @kernel(%arg0: i32, %arg1: i32, %arg2: memref<1x10x10x128xbf16, #tpu.memory_space<vmem>>, %arg3: memref<4x512x768xbf16, #tpu.memory_space<vmem>>, %arg4: memref<1x768xf32, #tpu.memory_space<vmem>>, %arg5: memref<1x4x64x768xf32, #tpu.memory_space<vmem>>, %arg6: memref<64x512xbf16, #tpu.memory_space<vmem>>) attributes {dimension_semantics = [#tpu.dimension_semantics<parallel>, #tpu.dimension_semantics<parallel>], iteration_bounds = array<i64: 2, 1>, scalar_prefetch = 0 : i64, scratch_operands = 1 : i64, tpu.core_type = #tpu.core_type<tc>, window_params = [{transform_indices = @transform_0, window_bounds = array<i64: 1, 10, 10, 128>}, {transform_indices = @transform_1, window_bounds = array<i64: 4, 512, 768>}, {transform_indices = @transform_2, window_bounds = array<i64: 1, 768>}, {transform_indices = @transform_3, window_bounds = array<i64: 1, 4, 64, 768>}]} {
    %c0 = arith.constant 0 : index
    %c0_0 = arith.constant 0 : index
    %c0_1 = arith.constant 0 : index
    %c0_2 = arith.constant 0 : index
    %0 = vector.load %arg2[%c0, %c0_0, %c0_1, %c0_2] : memref<1x10x10x128xbf16, #tpu.memory_space<vmem>>, vector<1x10x10x128xbf16>
    %1 = vector.shape_cast %0 : vector<1x10x10x128xbf16> to vector<10x10x128xbf16>
    %cst = arith.constant 0.000000e+00 : bf16
    %2 = vector.broadcast %cst : bf16 to vector<10x10x128xbf16>
    %3 = arith.maximumf %1, %2 : vector<10x10x128xbf16>
    %4 = vector.extract_strided_slice %3 {offsets = [0, 0, 0], sizes = [8, 8, 128], strides = [1, 1, 1]} : vector<10x10x128xbf16> to vector<8x8x128xbf16>
    %5 = vector.shape_cast %4 : vector<8x8x128xbf16> to vector<64x128xbf16>
    %c0_3 = arith.constant 0 : index
    %c0_4 = arith.constant 0 : index
    %6 = vector.load %arg6[%c0_3, %c0_4] : memref<64x512xbf16, #tpu.memory_space<vmem>>, vector<64x128xbf16>
    tpu.vector_store %arg6[%c0_3, %c0_4], %5 {strides = array<i32>} : memref<64x512xbf16, #tpu.memory_space<vmem>>, vector<64x128xbf16>,
    %7 = vector.extract_strided_slice %3 {offsets = [0, 1, 0], sizes = [8, 8, 128], strides = [1, 1, 1]} : vector<10x10x128xbf16> to vector<8x8x128xbf16>
    %8 = vector.shape_cast %7 : vector<8x8x128xbf16> to vector<64x128xbf16>
    %c0_5 = arith.constant 0 : index
    %c128 = arith.constant 128 : index
    %9 = vector.load %arg6[%c0_5, %c128] : memref<64x512xbf16, #tpu.memory_space<vmem>>, vector<64x128xbf16>
    tpu.vector_store %arg6[%c0_5, %c128], %8 {strides = array<i32>} : memref<64x512xbf16, #tpu.memory_space<vmem>>, vector<64x128xbf16>,
    %10 = vector.extract_strided_slice %3 {offsets = [1, 0, 0], sizes = [8, 8, 128], strides = [1, 1, 1]} : vector<10x10x128xbf16> to vector<8x8x128xbf16>
    %11 = vector.shape_cast %10 : vector<8x8x128xbf16> to vector<64x128xbf16>
    %c0_6 = arith.constant 0 : index
    %c256 = arith.constant 256 : index
    %12 = vector.load %arg6[%c0_6, %c256] : memref<64x512xbf16, #tpu.memory_space<vmem>>, vector<64x128xbf16>
    tpu.vector_store %arg6[%c0_6, %c256], %11 {strides = array<i32>} : memref<64x512xbf16, #tpu.memory_space<vmem>>, vector<64x128xbf16>,
    %13 = vector.extract_strided_slice %3 {offsets = [1, 1, 0], sizes = [8, 8, 128], strides = [1, 1, 1]} : vector<10x10x128xbf16> to vector<8x8x128xbf16>
    %14 = vector.shape_cast %13 : vector<8x8x128xbf16> to vector<64x128xbf16>
    %c0_7 = arith.constant 0 : index
    %c384 = arith.constant 384 : index
    %15 = vector.load %arg6[%c0_7, %c384] : memref<64x512xbf16, #tpu.memory_space<vmem>>, vector<64x128xbf16>
    tpu.vector_store %arg6[%c0_7, %c384], %14 {strides = array<i32>} : memref<64x512xbf16, #tpu.memory_space<vmem>>, vector<64x128xbf16>,
    %c0_8 = arith.constant 0 : index
    %c0_9 = arith.constant 0 : index
    %16 = vector.load %arg6[%c0_8, %c0_9] : memref<64x512xbf16, #tpu.memory_space<vmem>>, vector<64x512xbf16>
    %c0_10 = arith.constant 0 : index
    %c0_11 = arith.constant 0 : index
    %c0_12 = arith.constant 0 : index
    %17 = vector.load %arg3[%c0_10, %c0_11, %c0_12] : memref<4x512x768xbf16, #tpu.memory_space<vmem>>, vector<1x512x768xbf16>
    %18 = vector.shape_cast %17 : vector<1x512x768xbf16> to vector<512x768xbf16>
    %cst_13 = arith.constant dense<0.000000e+00> : vector<64x768xf32>
    %19 = tpu.matmul %16, %18, %cst_13 {dimension_numbers = #tpu.dot_dimension_numbers<[1], [0], [0], [1], [0, 0, 1, 1], [], []>} : vector<64x512xbf16>, vector<512x768xbf16>, vector<64x768xf32> -> vector<64x768xf32>
    %c0_14 = arith.constant 0 : index
    %c0_15 = arith.constant 0 : index
    %20 = vector.load %arg4[%c0_14, %c0_15] : memref<1x768xf32, #tpu.memory_space<vmem>>, vector<1x768xf32>
    %21 = vector.broadcast %20 : vector<1x768xf32> to vector<64x768xf32>
    %22 = arith.addf %19, %21 : vector<64x768xf32>
    %c0_16 = arith.constant 0 : index
    %c0_17 = arith.constant 0 : index
    %c0_18 = arith.constant 0 : index
    %c0_19 = arith.constant 0 : index
    %23 = vector.load %arg5[%c0_16, %c0_17, %c0_18, %c0_19] : memref<1x4x64x768xf32, #tpu.memory_space<vmem>>, vector<1x1x64x768xf32>
    %24 = vector.shape_cast %23 : vector<1x1x64x768xf32> to vector<64x768xf32>
    %25 = vector.shape_cast %22 : vector<64x768xf32> to vector<1x1x64x768xf32>
    tpu.vector_store %arg5[%c0_16, %c0_17, %c0_18, %c0_19], %25 {strides = array<i32>} : memref<1x4x64x768xf32, #tpu.memory_space<vmem>>, vector<1x1x64x768xf32>,
    %26 = vector.extract_strided_slice %3 {offsets = [0, 1, 0], sizes = [8, 8, 128], strides = [1, 1, 1]} : vector<10x10x128xbf16> to vector<8x8x128xbf16>
    %27 = vector.shape_cast %26 : vector<8x8x128xbf16> to vector<64x128xbf16>
    %c0_20 = arith.constant 0 : index
    %c0_21 = arith.constant 0 : index
    %28 = vector.load %arg6[%c0_20, %c0_21] : memref<64x512xbf16, #tpu.memory_space<vmem>>, vector<64x128xbf16>
    tpu.vector_store %arg6[%c0_20, %c0_21], %27 {strides = array<i32>} : memref<64x512xbf16, #tpu.memory_space<vmem>>, vector<64x128xbf16>,
    %29 = vector.extract_strided_slice %3 {offsets = [0, 2, 0], sizes = [8, 8, 128], strides = [1, 1, 1]} : vector<10x10x128xbf16> to vector<8x8x128xbf16>
    %30 = vector.shape_cast %29 : vector<8x8x128xbf16> to vector<64x128xbf16>
    %c0_22 = arith.constant 0 : index
    %c128_23 = arith.constant 128 : index
    %31 = vector.load %arg6[%c0_22, %c128_23] : memref<64x512xbf16, #tpu.memory_space<vmem>>, vector<64x128xbf16>
    tpu.vector_store %arg6[%c0_22, %c128_23], %30 {strides = array<i32>} : memref<64x512xbf16, #tpu.memory_space<vmem>>, vector<64x128xbf16>,
    %32 = vector.extract_strided_slice %3 {offsets = [1, 1, 0], sizes = [8, 8, 128], strides = [1, 1, 1]} : vector<10x10x128xbf16> to vector<8x8x128xbf16>
    %33 = vector.shape_cast %32 : vector<8x8x128xbf16> to vector<64x128xbf16>
    %c0_24 = arith.constant 0 : index
    %c256_25 = arith.constant 256 : index
    %34 = vector.load %arg6[%c0_24, %c256_25] : memref<64x512xbf16, #tpu.memory_space<vmem>>, vector<64x128xbf16>
    tpu.vector_store %arg6[%c0_24, %c256_25], %33 {strides = array<i32>} : memref<64x512xbf16, #tpu.memory_space<vmem>>, vector<64x128xbf16>,
    %35 = vector.extract_strided_slice %3 {offsets = [1, 2, 0], sizes = [8, 8, 128], strides = [1, 1, 1]} : vector<10x10x128xbf16> to vector<8x8x128xbf16>
    %36 = vector.shape_cast %35 : vector<8x8x128xbf16> to vector<64x128xbf16>
    %c0_26 = arith.constant 0 : index
    %c384_27 = arith.constant 384 : index
    %37 = vector.load %arg6[%c0_26, %c384_27] : memref<64x512xbf16, #tpu.memory_space<vmem>>, vector<64x128xbf16>
    tpu.vector_store %arg6[%c0_26, %c384_27], %36 {strides = array<i32>} : memref<64x512xbf16, #tpu.memory_space<vmem>>, vector<64x128xbf16>,
    %c0_28 = arith.constant 0 : index
    %c0_29 = arith.constant 0 : index
    %38 = vector.load %arg6[%c0_28, %c0_29] : memref<64x512xbf16, #tpu.memory_space<vmem>>, vector<64x512xbf16>
    %c1 = arith.constant 1 : index
    %c0_30 = arith.constant 0 : index
    %c0_31 = arith.constant 0 : index
    %39 = vector.load %arg3[%c1, %c0_30, %c0_31] : memref<4x512x768xbf16, #tpu.memory_space<vmem>>, vector<1x512x768xbf16>
    %40 = vector.shape_cast %39 : vector<1x512x768xbf16> to vector<512x768xbf16>
    %cst_32 = arith.constant dense<0.000000e+00> : vector<64x768xf32>
    %41 = tpu.matmul %38, %40, %cst_32 {dimension_numbers = #tpu.dot_dimension_numbers<[1], [0], [0], [1], [0, 0, 1, 1], [], []>} : vector<64x512xbf16>, vector<512x768xbf16>, vector<64x768xf32> -> vector<64x768xf32>
    %c0_33 = arith.constant 0 : index
    %c0_34 = arith.constant 0 : index
    %42 = vector.load %arg4[%c0_33, %c0_34] : memref<1x768xf32, #tpu.memory_space<vmem>>, vector<1x768xf32>
    %43 = vector.broadcast %42 : vector<1x768xf32> to vector<64x768xf32>
    %44 = arith.addf %41, %43 : vector<64x768xf32>
    %c0_35 = arith.constant 0 : index
    %c1_36 = arith.constant 1 : index
    %c0_37 = arith.constant 0 : index
    %c0_38 = arith.constant 0 : index
    %45 = vector.load %arg5[%c0_35, %c1_36, %c0_37, %c0_38] : memref<1x4x64x768xf32, #tpu.memory_space<vmem>>, vector<1x1x64x768xf32>
    %46 = vector.shape_cast %45 : vector<1x1x64x768xf32> to vector<64x768xf32>
    %47 = vector.shape_cast %44 : vector<64x768xf32> to vector<1x1x64x768xf32>
    tpu.vector_store %arg5[%c0_35, %c1_36, %c0_37, %c0_38], %47 {strides = array<i32>} : memref<1x4x64x768xf32, #tpu.memory_space<vmem>>, vector<1x1x64x768xf32>,
    %48 = vector.extract_strided_slice %3 {offsets = [1, 0, 0], sizes = [8, 8, 128], strides = [1, 1, 1]} : vector<10x10x128xbf16> to vector<8x8x128xbf16>
    %49 = vector.shape_cast %48 : vector<8x8x128xbf16> to vector<64x128xbf16>
    %c0_39 = arith.constant 0 : index
    %c0_40 = arith.constant 0 : index
    %50 = vector.load %arg6[%c0_39, %c0_40] : memref<64x512xbf16, #tpu.memory_space<vmem>>, vector<64x128xbf16>
    tpu.vector_store %arg6[%c0_39, %c0_40], %49 {strides = array<i32>} : memref<64x512xbf16, #tpu.memory_space<vmem>>, vector<64x128xbf16>,
    %51 = vector.extract_strided_slice %3 {offsets = [1, 1, 0], sizes = [8, 8, 128], strides = [1, 1, 1]} : vector<10x10x128xbf16> to vector<8x8x128xbf16>
    %52 = vector.shape_cast %51 : vector<8x8x128xbf16> to vector<64x128xbf16>
    %c0_41 = arith.constant 0 : index
    %c128_42 = arith.constant 128 : index
    %53 = vector.load %arg6[%c0_41, %c128_42] : memref<64x512xbf16, #tpu.memory_space<vmem>>, vector<64x128xbf16>
    tpu.vector_store %arg6[%c0_41, %c128_42], %52 {strides = array<i32>} : memref<64x512xbf16, #tpu.memory_space<vmem>>, vector<64x128xbf16>,
    %54 = vector.extract_strided_slice %3 {offsets = [2, 0, 0], sizes = [8, 8, 128], strides = [1, 1, 1]} : vector<10x10x128xbf16> to vector<8x8x128xbf16>
    %55 = vector.shape_cast %54 : vector<8x8x128xbf16> to vector<64x128xbf16>
    %c0_43 = arith.constant 0 : index
    %c256_44 = arith.constant 256 : index
    %56 = vector.load %arg6[%c0_43, %c256_44] : memref<64x512xbf16, #tpu.memory_space<vmem>>, vector<64x128xbf16>
    tpu.vector_store %arg6[%c0_43, %c256_44], %55 {strides = array<i32>} : memref<64x512xbf16, #tpu.memory_space<vmem>>, vector<64x128xbf16>,
    %57 = vector.extract_strided_slice %3 {offsets = [2, 1, 0], sizes = [8, 8, 128], strides = [1, 1, 1]} : vector<10x10x128xbf16> to vector<8x8x128xbf16>
    %58 = vector.shape_cast %57 : vector<8x8x128xbf16> to vector<64x128xbf16>
    %c0_45 = arith.constant 0 : index
    %c384_46 = arith.constant 384 : index
    %59 = vector.load %arg6[%c0_45, %c384_46] : memref<64x512xbf16, #tpu.memory_space<vmem>>, vector<64x128xbf16>
    tpu.vector_store %arg6[%c0_45, %c384_46], %58 {strides = array<i32>} : memref<64x512xbf16, #tpu.memory_space<vmem>>, vector<64x128xbf16>,
    %c0_47 = arith.constant 0 : index
    %c0_48 = arith.constant 0 : index
    %60 = vector.load %arg6[%c0_47, %c0_48] : memref<64x512xbf16, #tpu.memory_space<vmem>>, vector<64x512xbf16>
    %c2 = arith.constant 2 : index
    %c0_49 = arith.constant 0 : index
    %c0_50 = arith.constant 0 : index
    %61 = vector.load %arg3[%c2, %c0_49, %c0_50] : memref<4x512x768xbf16, #tpu.memory_space<vmem>>, vector<1x512x768xbf16>
    %62 = vector.shape_cast %61 : vector<1x512x768xbf16> to vector<512x768xbf16>
    %cst_51 = arith.constant dense<0.000000e+00> : vector<64x768xf32>
    %63 = tpu.matmul %60, %62, %cst_51 {dimension_numbers = #tpu.dot_dimension_numbers<[1], [0], [0], [1], [0, 0, 1, 1], [], []>} : vector<64x512xbf16>, vector<512x768xbf16>, vector<64x768xf32> -> vector<64x768xf32>
    %c0_52 = arith.constant 0 : index
    %c0_53 = arith.constant 0 : index
    %64 = vector.load %arg4[%c0_52, %c0_53] : memref<1x768xf32, #tpu.memory_space<vmem>>, vector<1x768xf32>
    %65 = vector.broadcast %64 : vector<1x768xf32> to vector<64x768xf32>
    %66 = arith.addf %63, %65 : vector<64x768xf32>
    %c0_54 = arith.constant 0 : index
    %c2_55 = arith.constant 2 : index
    %c0_56 = arith.constant 0 : index
    %c0_57 = arith.constant 0 : index
    %67 = vector.load %arg5[%c0_54, %c2_55, %c0_56, %c0_57] : memref<1x4x64x768xf32, #tpu.memory_space<vmem>>, vector<1x1x64x768xf32>
    %68 = vector.shape_cast %67 : vector<1x1x64x768xf32> to vector<64x768xf32>
    %69 = vector.shape_cast %66 : vector<64x768xf32> to vector<1x1x64x768xf32>
    tpu.vector_store %arg5[%c0_54, %c2_55, %c0_56, %c0_57], %69 {strides = array<i32>} : memref<1x4x64x768xf32, #tpu.memory_space<vmem>>, vector<1x1x64x768xf32>,
    %70 = vector.extract_strided_slice %3 {offsets = [1, 1, 0], sizes = [8, 8, 128], strides = [1, 1, 1]} : vector<10x10x128xbf16> to vector<8x8x128xbf16>
    %71 = vector.shape_cast %70 : vector<8x8x128xbf16> to vector<64x128xbf16>
    %c0_58 = arith.constant 0 : index
    %c0_59 = arith.constant 0 : index
    %72 = vector.load %arg6[%c0_58, %c0_59] : memref<64x512xbf16, #tpu.memory_space<vmem>>, vector<64x128xbf16>
    tpu.vector_store %arg6[%c0_58, %c0_59], %71 {strides = array<i32>} : memref<64x512xbf16, #tpu.memory_space<vmem>>, vector<64x128xbf16>,
    %73 = vector.extract_strided_slice %3 {offsets = [1, 2, 0], sizes = [8, 8, 128], strides = [1, 1, 1]} : vector<10x10x128xbf16> to vector<8x8x128xbf16>
    %74 = vector.shape_cast %73 : vector<8x8x128xbf16> to vector<64x128xbf16>
    %c0_60 = arith.constant 0 : index
    %c128_61 = arith.constant 128 : index
    %75 = vector.load %arg6[%c0_60, %c128_61] : memref<64x512xbf16, #tpu.memory_space<vmem>>, vector<64x128xbf16>
    tpu.vector_store %arg6[%c0_60, %c128_61], %74 {strides = array<i32>} : memref<64x512xbf16, #tpu.memory_space<vmem>>, vector<64x128xbf16>,
    %76 = vector.extract_strided_slice %3 {offsets = [2, 1, 0], sizes = [8, 8, 128], strides = [1, 1, 1]} : vector<10x10x128xbf16> to vector<8x8x128xbf16>
    %77 = vector.shape_cast %76 : vector<8x8x128xbf16> to vector<64x128xbf16>
    %c0_62 = arith.constant 0 : index
    %c256_63 = arith.constant 256 : index
    %78 = vector.load %arg6[%c0_62, %c256_63] : memref<64x512xbf16, #tpu.memory_space<vmem>>, vector<64x128xbf16>
    tpu.vector_store %arg6[%c0_62, %c256_63], %77 {strides = array<i32>} : memref<64x512xbf16, #tpu.memory_space<vmem>>, vector<64x128xbf16>,
    %79 = vector.extract_strided_slice %3 {offsets = [2, 2, 0], sizes = [8, 8, 128], strides = [1, 1, 1]} : vector<10x10x128xbf16> to vector<8x8x128xbf16>
    %80 = vector.shape_cast %79 : vector<8x8x128xbf16> to vector<64x128xbf16>
    %c0_64 = arith.constant 0 : index
    %c384_65 = arith.constant 384 : index
    %81 = vector.load %arg6[%c0_64, %c384_65] : memref<64x512xbf16, #tpu.memory_space<vmem>>, vector<64x128xbf16>
    tpu.vector_store %arg6[%c0_64, %c384_65], %80 {strides = array<i32>} : memref<64x512xbf16, #tpu.memory_space<vmem>>, vector<64x128xbf16>,
    %c0_66 = arith.constant 0 : index
    %c0_67 = arith.constant 0 : index
    %82 = vector.load %arg6[%c0_66, %c0_67] : memref<64x512xbf16, #tpu.memory_space<vmem>>, vector<64x512xbf16>
    %c3 = arith.constant 3 : index
    %c0_68 = arith.constant 0 : index
    %c0_69 = arith.constant 0 : index
    %83 = vector.load %arg3[%c3, %c0_68, %c0_69] : memref<4x512x768xbf16, #tpu.memory_space<vmem>>, vector<1x512x768xbf16>
    %84 = vector.shape_cast %83 : vector<1x512x768xbf16> to vector<512x768xbf16>
    %cst_70 = arith.constant dense<0.000000e+00> : vector<64x768xf32>
    %85 = tpu.matmul %82, %84, %cst_70 {dimension_numbers = #tpu.dot_dimension_numbers<[1], [0], [0], [1], [0, 0, 1, 1], [], []>} : vector<64x512xbf16>, vector<512x768xbf16>, vector<64x768xf32> -> vector<64x768xf32>
    %c0_71 = arith.constant 0 : index
    %c0_72 = arith.constant 0 : index
    %86 = vector.load %arg4[%c0_71, %c0_72] : memref<1x768xf32, #tpu.memory_space<vmem>>, vector<1x768xf32>
    %87 = vector.broadcast %86 : vector<1x768xf32> to vector<64x768xf32>
    %88 = arith.addf %85, %87 : vector<64x768xf32>
    %c0_73 = arith.constant 0 : index
    %c3_74 = arith.constant 3 : index
    %c0_75 = arith.constant 0 : index
    %c0_76 = arith.constant 0 : index
    %89 = vector.load %arg5[%c0_73, %c3_74, %c0_75, %c0_76] : memref<1x4x64x768xf32, #tpu.memory_space<vmem>>, vector<1x1x64x768xf32>
    %90 = vector.shape_cast %89 : vector<1x1x64x768xf32> to vector<64x768xf32>
    %91 = vector.shape_cast %88 : vector<64x768xf32> to vector<1x1x64x768xf32>
    tpu.vector_store %arg5[%c0_73, %c3_74, %c0_75, %c0_76], %91 {strides = array<i32>} : memref<1x4x64x768xf32, #tpu.memory_space<vmem>>, vector<1x1x64x768xf32>,
    return
  }
  func.func @transform_0(%arg0: i32, %arg1: i32) -> (i32, i32, i32, i32) {
    %c0_i32 = arith.constant 0 : i32
    %c0_i32_0 = arith.constant 0 : i32
    %c0_i32_1 = arith.constant 0 : i32
    %c0_i32_2 = arith.constant 0 : i32
    return %arg0, %c0_i32, %c0_i32_0, %c0_i32_1 : i32, i32, i32, i32
  }
  func.func @transform_1(%arg0: i32, %arg1: i32) -> (i32, i32, i32) {
    %c0_i32 = arith.constant 0 : i32
    %c0_i32_0 = arith.constant 0 : i32
    %c0_i32_1 = arith.constant 0 : i32
    return %c0_i32, %c0_i32_0, %arg1 : i32, i32, i32
  }
  func.func @transform_2(%arg0: i32, %arg1: i32) -> (i32, i32) {
    %c0_i32 = arith.constant 0 : i32
    %c0_i32_0 = arith.constant 0 : i32
    return %c0_i32, %arg1 : i32, i32
  }
  func.func @transform_3(%arg0: i32, %arg1: i32) -> (i32, i32, i32, i32) {
    %c0_i32 = arith.constant 0 : i32
    %c0_i32_0 = arith.constant 0 : i32
    %c0_i32_1 = arith.constant 0 : i32
    return %arg0, %c0_i32, %c0_i32_0, %arg1 : i32, i32, i32, i32
  }
}

</mosaic_0001>

<llo_original>
// kernel: decoder_forward.4
$region0: #{decoder_forward.4}
  #allocation0 [shape = 'u32[]', space=smem, size = 0x4, offset = 0x4, fixed_abs, tag = 'smem constant byte address 0x4 - core index']
  #allocation1 [shape = 'u32[144,128]{1,0:T(1,128)}', space=vmem, size = 0x12000, scoped, tag = 'internal scratch']
  #allocation2 [shape = 'bf16[64,1152]{1,0:T(16,128)(2,1)}', space=vmem, size = 0x24000, scoped, tag = 'scratch operand']
  %s0 = inlined_call_operand.vmem [shape: bf16[2,10,10,128], index: 0, kind: input, shape index: {}]
  %s1 = inlined_call_operand.vmem [shape: bf16[1152,128], index: 1, kind: input, shape index: {}]
  %s2 = inlined_call_operand.vmem [shape: f32[1,128], index: 2, kind: input, shape index: {}]
  %s3 = inlined_call_operand.vmem [shape: bf16[2,8,8,128], index: 3, kind: output, shape index: {}]
  %s4 = sld [smem:[#allocation0]]
  $region45: #{decoder_forward.4} parent=0
    _
  %s6 = ssub.s32 1, %s4
  %s7 = scalar_select 0, %s6, %s4
  loop: start=0, step=1, limit=4
  $region2: #{decoder_forward.4} parent=0 // loop_pre_header
    _
  $region3: #{decoder_forward.4} parent=0 // loop_header
    %s9 = sphi 0, %s13
    %p10 = scmp.ge.s32.totalorder %s9, 4
    %s16 = sphi 0, %s28
    %s17 = sphi 0, %s24
    %s18 = sphi 0, %s16
    %s19 = sphi 0, %s17
    %s20 = sphi 0, %s18
    %s21 = sphi 0, %s19
    %s31 = sphi 0, %s33
    %s34 = sphi 0, %s31
    %s35 = sphi 0, %s34
    %s51 = sphi 0, %s35
    %s57 = sphi 0, %s59
    %s60 = sphi 0, %s57
    %s61 = sphi 0, %s60
    %s77 = sphi 0, %s61
    %s83 = sphi 0, %s85
    %s86 = sphi 0, %s83
    %s87 = sphi 0, %s86
    %s103 = sphi 0, %s87
    %s111 = sphi 0, %s113
    %s114 = sphi 0, %s111
    %s115 = sphi 0, %s114
    %s131 = sphi 0, %s115
  $region4: #{decoder_forward.4} parent=0 // loop_header_branch
    %12 = sbr.rel (%p10) target = $region8
  $region5: #{decoder_forward.4} parent=0 // loop_body
    %s14 = ssub.s32 %s9, 1
    %s15 = ssub.s32 %s9, 2
    %s22 = sadd.s32 1, %s17
    %p23 = scmp.ge.s32.totalorder %s22, 1
    %s24 = scalar_select %p23, 0, %s22
    %s25 = sadd.s32 1, %s16
    %s26 = scalar_select %p23, %s25, %s16
    %p27 = scmp.ge.s32.totalorder %s26, 2
    %s28 = scalar_select %p27, 0, %s26
    %s29 = ssub.s32 %s16, %s28
    %p30 = scmp.eq.s32.totalorder %s29, 0
    %s32 = sadd.s32 %s31, 1
    %s33 = scalar_select %p30, %s31, %s32
    %p36 = pneg %p30
    %p37 = scmp.eq.s32.totalorder %s9, 1
    %p38 = por %p36, %p37
    %p39 = scmp.ne.s32.totalorder %s31, %s34
    %p40 = scmp.eq.s32.totalorder %s9, 0
    %p41 = por %p39, %p40
    %p42 = scmp.ne.s32.totalorder %s31, %s34
    %p43 = scmp.eq.s32.totalorder %s14, 1
    %p44 = por %p42, %p43
    %p45 = scmp.ne.s32.totalorder %s34, %s35
    %p46 = scmp.eq.s32.totalorder %s14, 0
    %p47 = por %p45, %p46
    %p48 = scmp.ne.s32.totalorder %s34, %s35
    %p49 = scmp.eq.s32.totalorder %s15, 1
    %p50 = por %p48, %p49
    %p52 = scmp.ne.s32.totalorder %s35, %s51
    %p53 = scmp.eq.s32.totalorder %s15, 0
    %p54 = por %p52, %p53
    %s55 = ssub.s32 %s17, %s24
    %p56 = scmp.eq.s32.totalorder %s55, 0
    %s58 = sadd.s32 %s57, 1
    %s59 = scalar_select %p56, %s57, %s58
    %p62 = pneg %p56
    %p63 = scmp.eq.s32.totalorder %s9, 1
    %p64 = por %p62, %p63
    %p65 = scmp.ne.s32.totalorder %s57, %s60
    %p66 = scmp.eq.s32.totalorder %s9, 0
    %p67 = por %p65, %p66
    %p68 = scmp.ne.s32.totalorder %s57, %s60
    %p69 = scmp.eq.s32.totalorder %s14, 1
    %p70 = por %p68, %p69
    %p71 = scmp.ne.s32.totalorder %s60, %s61
    %p72 = scmp.eq.s32.totalorder %s14, 0
    %p73 = por %p71, %p72
    %p74 = scmp.ne.s32.totalorder %s60, %s61
    %p75 = scmp.eq.s32.totalorder %s15, 1
    %p76 = por %p74, %p75
    %p78 = scmp.ne.s32.totalorder %s61, %s77
    %p79 = scmp.eq.s32.totalorder %s15, 0
    %p80 = por %p78, %p79
    %s81 = ssub.s32 %s17, %s24
    %p82 = scmp.eq.s32.totalorder %s81, 0
    %s84 = sadd.s32 %s83, 1
    %s85 = scalar_select %p82, %s83, %s84
    %p88 = pneg %p82
    %p89 = scmp.eq.s32.totalorder %s9, 1
    %p90 = por %p88, %p89
    %p91 = scmp.ne.s32.totalorder %s83, %s86
    %p92 = scmp.eq.s32.totalorder %s9, 0
    %p93 = por %p91, %p92
    %p94 = scmp.ne.s32.totalorder %s83, %s86
    %p95 = scmp.eq.s32.totalorder %s14, 1
    %p96 = por %p94, %p95
    %p97 = scmp.ne.s32.totalorder %s86, %s87
    %p98 = scmp.eq.s32.totalorder %s14, 0
    %p99 = por %p97, %p98
    %p100 = scmp.ne.s32.totalorder %s86, %s87
    %p101 = scmp.eq.s32.totalorder %s15, 1
    %p102 = por %p100, %p101
    %p104 = scmp.ne.s32.totalorder %s87, %s103
    %p105 = scmp.eq.s32.totalorder %s15, 0
    %p106 = por %p104, %p105
    %s107 = ssub.s32 %s16, %s28
    %s108 = ssub.s32 %s17, %s24
    %s109 = sor.u32 %s107, %s108
    %p110 = scmp.eq.s32.totalorder %s109, 0
    %s112 = sadd.s32 %s111, 1
    %s113 = scalar_select %p110, %s111, %s112
    %p116 = pneg %p110
    %p117 = scmp.eq.s32.totalorder %s9, 1
    %p118 = por %p116, %p117
    %p119 = scmp.ne.s32.totalorder %s111, %s114
    %p120 = scmp.eq.s32.totalorder %s9, 0
    %p121 = por %p119, %p120
    %p122 = scmp.ne.s32.totalorder %s111, %s114
    %p123 = scmp.eq.s32.totalorder %s14, 1
    %p124 = por %p122, %p123
    %p125 = scmp.ne.s32.totalorder %s114, %s115
    %p126 = scmp.eq.s32.totalorder %s14, 0
    %p127 = por %p125, %p126
    %p128 = scmp.ne.s32.totalorder %s114, %s115
    %p129 = scmp.eq.s32.totalorder %s15, 1
    %p130 = por %p128, %p129
    %p132 = scmp.ne.s32.totalorder %s115, %s131
    %p133 = scmp.eq.s32.totalorder %s15, 0
    %p134 = por %p132, %p133
    %p135 = scmp.le.s32.totalorder 1, %s9
    %p136 = scmp.lt.s32.totalorder %s9, 3
    %p137 = pnand %p135, %p136
    %p138 = pneg %p137
    // Predicated region
    $region9: #{decoder_forward.4} parent=5 // pred_check
      _
    $region10: #{decoder_forward.4} parent=5 // pred_check_branch
      %140 = sbr.rel (%p137) target = $region12
    $region11: #{decoder_forward.4} parent=5 // pred_region
      %s141 = ssub.s32 %s9, 1
      // Predicated region
      $region13: #{decoder_forward.4} parent=11 // pred_check
        %p142 = pneg %p73
      $region14: #{decoder_forward.4} parent=11 // pred_check_branch
        %144 = sbr.rel (%p142) target = $region16
      $region15: #{decoder_forward.4} parent=11 // pred_region
        %p145 = scmp.lt.s32.totalorder %s19, 0
        %s146 = scalar_select %p145, %s19, 0
        %s147 = smul.addr %s146, 4
        %s148 = scalar_lea.vmem %s1, %s147
      $region16: #{decoder_forward.4} parent=11 // pred_fallthru
        _
      // Predicated region
      $region17: #{decoder_forward.4} parent=11 // pred_check
        %p149 = pneg %p99
      $region18: #{decoder_forward.4} parent=11 // pred_check_branch
        %151 = sbr.rel (%p149) target = $region20
      $region19: #{decoder_forward.4} parent=11 // pred_region
        %p152 = scmp.lt.s32.totalorder %s19, 0
        %s153 = scalar_select %p152, %s19, 0
        %s154 = scalar_lea.vmem %s2, %s153
      $region20: #{decoder_forward.4} parent=11 // pred_fallthru
        _
    $region12: #{decoder_forward.4} parent=5 // pred_fallthru
      _
    %p155 = scmp.lt.s32.totalorder %s9, 2
    // Predicated region
    $region21: #{decoder_forward.4} parent=5 // pred_check
      %p156 = pneg %p155
    $region22: #{decoder_forward.4} parent=5 // pred_check_branch
      %158 = sbr.rel (%p156) target = $region24
    $region23: #{decoder_forward.4} parent=5 // pred_region
      // Predicated region
      $region25: #{decoder_forward.4} parent=23 // pred_check
        %p159 = pneg %p41
      $region26: #{decoder_forward.4} parent=23 // pred_check_branch
        %161 = sbr.rel (%p159) target = $region28
      $region27: #{decoder_forward.4} parent=23 // pred_region
        %p162 = scmp.lt.s32.totalorder %s16, 1
        %s163 = scalar_select %p162, %s16, 1
        %s164 = smul.addr %s163, 20
        %s165 = smul.addr %s164, 4
        %s166 = scalar_lea.vmem %s0, %s165
      $region28: #{decoder_forward.4} parent=23 // pred_fallthru
        _
    $region24: #{decoder_forward.4} parent=5 // pred_fallthru
      _
    %p167 = scmp.le.s32.totalorder 1, %s9
    %p168 = scmp.lt.s32.totalorder %s9, 3
    %p169 = pnand %p167, %p168
    %p170 = pneg %p169
    // Predicated region
    $region29: #{decoder_forward.4} parent=5 // pred_check
      _
    $region30: #{decoder_forward.4} parent=5 // pred_check_branch
      %172 = sbr.rel (%p169) target = $region32
    $region31: #{decoder_forward.4} parent=5 // pred_region
      %s173 = ssub.s32 %s9, 1
      %p174 = scmp.lt.s32.totalorder %s18, 1
      %s175 = scalar_select %p174, %s18, 1
      %s176 = smul.addr %s175, 20
      %s177 = smul.addr %s176, 4
      %s178 = scalar_lea.vmem %s0, %s177
      %p179 = pneg %p47
      %p180 = pneg %p44
      %p181 = scmp.lt.s32.totalorder %s19, 0
      %s182 = scalar_select %p181, %s19, 0
      %s183 = smul.addr %s182, 4
      %s184 = scalar_lea.vmem %s1, %s183
      %p185 = pneg %p73
      %p186 = pneg %p70
      %p187 = scmp.lt.s32.totalorder %s19, 0
      %s188 = scalar_select %p187, %s19, 0
      %s189 = scalar_lea.vmem %s2, %s188
      %p190 = pneg %p99
      %p191 = pneg %p96
      %p192 = pneg %p127
      %p193 = pneg %p124
      %p194 = scmp.lt.s32.totalorder %s18, 1
      %s195 = scalar_select %p194, %s18, 1
      %p196 = scmp.lt.s32.totalorder %s19, 0
      %s197 = scalar_select %p196, %s19, 0
      %s198 = smul.addr %s195, 8
      %s199 = sadd.s32 %s197, %s198
      %s200 = smul.addr %s199, 4
      %s201 = scalar_lea.vmem %s3, %s200
      %p202 = scmp.lt.s32.totalorder %s18, 1
      %s203 = scalar_select %p202, %s18, 1
      %s204 = smul.addr %s203, 20
      %s205 = smul.addr %s204, 4
      %s206 = scalar_lea.vmem %s0, %s205
      %p207 = scmp.lt.s32.totalorder %s19, 0
      %s208 = scalar_select %p207, %s19, 0
      %s209 = smul.addr %s208, 4
      %s210 = scalar_lea.vmem %s1, %s209
      %p211 = scmp.lt.s32.totalorder %s19, 0
      %s212 = scalar_select %p211, %s19, 0
      %s213 = scalar_lea.vmem %s2, %s212
      %p214 = scmp.lt.s32.totalorder %s18, 1
      %s215 = scalar_select %p214, %s18, 1
      %p216 = scmp.lt.s32.totalorder %s19, 0
      %s217 = scalar_select %p216, %s19, 0
      %s218 = smul.addr %s215, 8
      %s219 = sadd.s32 %s217, %s218
      %s220 = smul.addr %s219, 4
      %s221 = scalar_lea.vmem %s3, %s220
      %v223 = vld [vmem:[%s206] sm:$0xf]
      %v224 = vld [vmem:[%s206 + $0x4] sm:$0x1]
      %v225 = vld [vmem:[%s206 + $0x8] sm:$0xf]
      %v226 = vld [vmem:[%s206 + $0xc] sm:$0x1]
      %v227 = vld [vmem:[%s206 + $0x10] sm:$0xf]
      %v228 = vld [vmem:[%s206 + $0x14] sm:$0x1]
      %v229 = vld [vmem:[%s206 + $0x18] sm:$0xf]
      %v230 = vld [vmem:[%s206 + $0x1c] sm:$0x1]
      %v231 = vld [vmem:[%s206 + $0x20] sm:$0xf]
      %v232 = vld [vmem:[%s206 + $0x24] sm:$0x1]
      %v233 = vld [vmem:[%s206 + $0x28] sm:$0xf]
      %v234 = vld [vmem:[%s206 + $0x2c] sm:$0x1]
      %v235 = vld [vmem:[%s206 + $0x30] sm:$0xf]
      %v236 = vld [vmem:[%s206 + $0x34] sm:$0x1]
      %v237 = vld [vmem:[%s206 + $0x38] sm:$0xf]
      %v238 = vld [vmem:[%s206 + $0x3c] sm:$0x1]
      %v239 = vld [vmem:[%s206 + $0x40] sm:$0xf]
      %v240 = vld [vmem:[%s206 + $0x44] sm:$0x1]
      %v241 = vld [vmem:[%s206 + $0x48] sm:$0xf]
      %v242 = vld [vmem:[%s206 + $0x4c] sm:$0x1]
      %v251 = vunpack.c.l.b16 %v223
      %v252 = vunpack.c.l.b16 %v225
      %v253 = vunpack.c.l.b16 %v227
      %v254 = vunpack.c.l.b16 %v229
      %v255 = vunpack.c.l.b16 %v231
      %v256 = vunpack.c.l.b16 %v233
      %v257 = vunpack.c.l.b16 %v235
      %v258 = vunpack.c.l.b16 %v237
      %v259 = vpack.c.b16 %v252, %v251
      %v260 = vpack.c.b16 %v254, %v253
      %v261 = vpack.c.b16 %v256, %v255
      %v262 = vpack.c.b16 %v258, %v257
      %267 = vst [vmem:[#allocation2] sm:$0xff] %v259
      %268 = vst [vmem:[#allocation2 + $0x48] sm:$0xff] %v260
      %269 = vst [vmem:[#allocation2 + $0x90] sm:$0xff] %v261
      %270 = vst [vmem:[#allocation2 + $0xd8] sm:$0xff] %v262
      %vm271 = vsmask.f32 3328
      %vm272 = vsmask.f32 7440
      %vm273 = vmor %vm271, %vm272
      %v275 = vshrl.u32 %v223, 16
      %v277 = vrot.slane %v275, 4
      %v278 = vshll.u32 %v223, 16
      %v280 = vrot.slane %v278, 5
      %v281 = vor.u32 %v277, %v280
      %v282 = vrot.slane %v281, 4
      %v284 = vshll.u32 %v224, 16
      %v286 = vrot.slane %v284, 5
      %v287 = vsel %vm273, %v282, %v286
      %v289 = vshrl.u32 %v225, 16
      %v291 = vrot.slane %v289, 4
      %v292 = vshll.u32 %v225, 16
      %v294 = vrot.slane %v292, 5
      %v295 = vor.u32 %v291, %v294
      %v296 = vrot.slane %v295, 4
      %v298 = vshll.u32 %v226, 16
      %v300 = vrot.slane %v298, 5
      %v301 = vsel %vm273, %v296, %v300
      %v303 = vshrl.u32 %v227, 16
      %v305 = vrot.slane %v303, 4
      %v306 = vshll.u32 %v227, 16
      %v308 = vrot.slane %v306, 5
      %v309 = vor.u32 %v305, %v308
      %v310 = vrot.slane %v309, 4
      %v312 = vshll.u32 %v228, 16
      %v314 = vrot.slane %v312, 5
      %v315 = vsel %vm273, %v310, %v314
      %v317 = vshrl.u32 %v229, 16
      %v319 = vrot.slane %v317, 4
      %v320 = vshll.u32 %v229, 16
      %v322 = vrot.slane %v320, 5
      %v323 = vor.u32 %v319, %v322
      %v324 = vrot.slane %v323, 4
      %v326 = vshll.u32 %v230, 16
      %v328 = vrot.slane %v326, 5
      %v329 = vsel %vm273, %v324, %v328
      %v331 = vshrl.u32 %v231, 16
      %v333 = vrot.slane %v331, 4
      %v334 = vshll.u32 %v231, 16
      %v336 = vrot.slane %v334, 5
      %v337 = vor.u32 %v333, %v336
      %v338 = vrot.slane %v337, 4
      %v340 = vshll.u32 %v232, 16
      %v342 = vrot.slane %v340, 5
      %v343 = vsel %vm273, %v338, %v342
      %v345 = vshrl.u32 %v233, 16
      %v347 = vrot.slane %v345, 4
      %v348 = vshll.u32 %v233, 16
      %v350 = vrot.slane %v348, 5
      %v351 = vor.u32 %v347, %v350
      %v352 = vrot.slane %v351, 4
      %v354 = vshll.u32 %v234, 16
      %v356 = vrot.slane %v354, 5
      %v357 = vsel %vm273, %v352, %v356
      %v359 = vshrl.u32 %v235, 16
      %v361 = vrot.slane %v359, 4
      %v362 = vshll.u32 %v235, 16
      %v364 = vrot.slane %v362, 5
      %v365 = vor.u32 %v361, %v364
      %v366 = vrot.slane %v365, 4
      %v368 = vshll.u32 %v236, 16
      %v370 = vrot.slane %v368, 5
      %v371 = vsel %vm273, %v366, %v370
      %v373 = vshrl.u32 %v237, 16
      %v375 = vrot.slane %v373, 4
      %v376 = vshll.u32 %v237, 16
      %v378 = vrot.slane %v376, 5
      %v379 = vor.u32 %v375, %v378
      %v380 = vrot.slane %v379, 4
      %v382 = vshll.u32 %v238, 16
      %v384 = vrot.slane %v382, 5
      %v385 = vsel %vm273, %v380, %v384
      %v386 = vunpack.c.l.b16 %v287
      %v387 = vunpack.c.l.b16 %v301
      %v388 = vunpack.c.l.b16 %v315
      %v389 = vunpack.c.l.b16 %v329
      %v390 = vunpack.c.l.b16 %v343
      %v391 = vunpack.c.l.b16 %v357
      %v392 = vunpack.c.l.b16 %v371
      %v393 = vunpack.c.l.b16 %v385
      %v394 = vpack.c.b16 %v387, %v386
      %v395 = vpack.c.b16 %v389, %v388
      %v396 = vpack.c.b16 %v391, %v390
      %v397 = vpack.c.b16 %v393, %v392
      %402 = vst [vmem:[#allocation2 + $0x8] sm:$0xff] %v394
      %403 = vst [vmem:[#allocation2 + $0x50] sm:$0xff] %v395
      %404 = vst [vmem:[#allocation2 + $0x98] sm:$0xff] %v396
      %405 = vst [vmem:[#allocation2 + $0xe0] sm:$0xff] %v397
      %vm414 = vcmask 1042432
      %vm415 = vcmask 1046532
      %vm416 = vmor %vm414, %vm415
      %v417 = vrot.slane %v223, 5
      %v418 = vrot.slane %v417, 4
      %v419 = vrot.slane %v224, 5
      %v420 = vsel %vm416, %v418, %v419
      %v421 = vrot.slane %v225, 5
      %v422 = vrot.slane %v421, 4
      %v423 = vrot.slane %v226, 5
      %v424 = vsel %vm416, %v422, %v423
      %v425 = vrot.slane %v227, 5
      %v426 = vrot.slane %v425, 4
      %v427 = vrot.slane %v228, 5
      %v428 = vsel %vm416, %v426, %v427
      %v429 = vrot.slane %v229, 5
      %v430 = vrot.slane %v429, 4
      %v431 = vrot.slane %v230, 5
      %v432 = vsel %vm416, %v430, %v431
      %v433 = vrot.slane %v231, 5
      %v434 = vrot.slane %v433, 4
      %v435 = vrot.slane %v232, 5
      %v436 = vsel %vm416, %v434, %v435
      %v437 = vrot.slane %v233, 5
      %v438 = vrot.slane %v437, 4
      %v439 = vrot.slane %v234, 5
      %v440 = vsel %vm416, %v438, %v439
      %v441 = vrot.slane %v235, 5
      %v442 = vrot.slane %v441, 4
      %v443 = vrot.slane %v236, 5
      %v444 = vsel %vm416, %v442, %v443
      %v445 = vrot.slane %v237, 5
      %v446 = vrot.slane %v445, 4
      %v447 = vrot.slane %v238, 5
      %v448 = vsel %vm416, %v446, %v447
      %v449 = vunpack.c.l.b16 %v420
      %v450 = vunpack.c.l.b16 %v424
      %v451 = vunpack.c.l.b16 %v428
      %v452 = vunpack.c.l.b16 %v432
      %v453 = vunpack.c.l.b16 %v436
      %v454 = vunpack.c.l.b16 %v440
      %v455 = vunpack.c.l.b16 %v444
      %v456 = vunpack.c.l.b16 %v448
      %v457 = vpack.c.b16 %v450, %v449
      %v458 = vpack.c.b16 %v452, %v451
      %v459 = vpack.c.b16 %v454, %v453
      %v460 = vpack.c.b16 %v456, %v455
      %465 = vst [vmem:[#allocation2 + $0x10] sm:$0xff] %v457
      %466 = vst [vmem:[#allocation2 + $0x58] sm:$0xff] %v458
      %467 = vst [vmem:[#allocation2 + $0xa0] sm:$0xff] %v459
      %468 = vst [vmem:[#allocation2 + $0xe8] sm:$0xff] %v460
      %v470 = vunpack.c.l.b16 %v239
      %v471 = vpack.c.b16 %v253, %v252
      %v472 = vpack.c.b16 %v255, %v254
      %v473 = vpack.c.b16 %v257, %v256
      %v474 = vpack.c.b16 %v470, %v258
      %479 = vst [vmem:[#allocation2 + $0x18] sm:$0xff] %v471
      %480 = vst [vmem:[#allocation2 + $0x60] sm:$0xff] %v472
      %481 = vst [vmem:[#allocation2 + $0xa8] sm:$0xff] %v473
      %482 = vst [vmem:[#allocation2 + $0xf0] sm:$0xff] %v474
      %v484 = vshrl.u32 %v239, 16
      %v486 = vrot.slane %v484, 4
      %v487 = vshll.u32 %v239, 16
      %v489 = vrot.slane %v487, 5
      %v490 = vor.u32 %v486, %v489
      %v491 = vrot.slane %v490, 4
      %v493 = vshll.u32 %v240, 16
      %v495 = vrot.slane %v493, 5
      %v496 = vsel %vm273, %v491, %v495
      %v497 = vunpack.c.l.b16 %v496
      %v498 = vpack.c.b16 %v388, %v387
      %v499 = vpack.c.b16 %v390, %v389
      %v500 = vpack.c.b16 %v392, %v391
      %v501 = vpack.c.b16 %v497, %v393
      %506 = vst [vmem:[#allocation2 + $0x20] sm:$0xff] %v498
      %507 = vst [vmem:[#allocation2 + $0x68] sm:$0xff] %v499
      %508 = vst [vmem:[#allocation2 + $0xb0] sm:$0xff] %v500
      %509 = vst [vmem:[#allocation2 + $0xf8] sm:$0xff] %v501
      %v511 = vrot.slane %v239, 5
      %v512 = vrot.slane %v511, 4
      %v513 = vrot.slane %v240, 5
      %v514 = vsel %vm416, %v512, %v513
      %v515 = vunpack.c.l.b16 %v514
      %v516 = vpack.c.b16 %v451, %v450
      %v517 = vpack.c.b16 %v453, %v452
      %v518 = vpack.c.b16 %v455, %v454
      %v519 = vpack.c.b16 %v515, %v456
      %524 = vst [vmem:[#allocation2 + $0x28] sm:$0xff] %v516
      %525 = vst [vmem:[#allocation2 + $0x70] sm:$0xff] %v517
      %526 = vst [vmem:[#allocation2 + $0xb8] sm:$0xff] %v518
      %527 = vst [vmem:[#allocation2 + $0x100] sm:$0xff] %v519
      %v529 = vunpack.c.l.b16 %v241
      %v530 = vpack.c.b16 %v529, %v470
      %532 = vst [vmem:[#allocation2 + $0x30] sm:$0xff] %v260
      %533 = vst [vmem:[#allocation2 + $0x78] sm:$0xff] %v261
      %534 = vst [vmem:[#allocation2 + $0xc0] sm:$0xff] %v262
      %535 = vst [vmem:[#allocation2 + $0x108] sm:$0xff] %v530
      %v537 = vshrl.u32 %v241, 16
      %v539 = vrot.slane %v537, 4
      %v540 = vshll.u32 %v241, 16
      %v542 = vrot.slane %v540, 5
      %v543 = vor.u32 %v539, %v542
      %v544 = vrot.slane %v543, 4
      %v546 = vshll.u32 %v242, 16
      %v548 = vrot.slane %v546, 5
      %v549 = vsel %vm273, %v544, %v548
      %v550 = vunpack.c.l.b16 %v549
      %v551 = vpack.c.b16 %v550, %v497
      %553 = vst [vmem:[#allocation2 + $0x38] sm:$0xff] %v395
      %554 = vst [vmem:[#allocation2 + $0x80] sm:$0xff] %v396
      %555 = vst [vmem:[#allocation2 + $0xc8] sm:$0xff] %v397
      %556 = vst [vmem:[#allocation2 + $0x110] sm:$0xff] %v551
      %v558 = vrot.slane %v241, 5
      %v559 = vrot.slane %v558, 4
      %v560 = vrot.slane %v242, 5
      %v561 = vsel %vm416, %v559, %v560
      %v562 = vunpack.c.l.b16 %v561
      %v563 = vpack.c.b16 %v562, %v515
      %565 = vst [vmem:[#allocation2 + $0x40] sm:$0xff] %v458
      %566 = vst [vmem:[#allocation2 + $0x88] sm:$0xff] %v459
      %567 = vst [vmem:[#allocation2 + $0xd0] sm:$0xff] %v460
      %568 = vst [vmem:[#allocation2 + $0x118] sm:$0xff] %v563
      %v569 = vld [vmem:[#allocation2] sm:$0xff]
      %v570 = vld [vmem:[#allocation2 + $0x8] sm:$0xff]
      %v571 = vld [vmem:[#allocation2 + $0x10] sm:$0xff]
      %v572 = vld [vmem:[#allocation2 + $0x18] sm:$0xff]
      %v573 = vld [vmem:[#allocation2 + $0x20] sm:$0xff]
      %v574 = vld [vmem:[#allocation2 + $0x28] sm:$0xff]
      %v575 = vld [vmem:[#allocation2 + $0x30] sm:$0xff]
      %v576 = vld [vmem:[#allocation2 + $0x38] sm:$0xff]
      %v577 = vld [vmem:[#allocation2 + $0x40] sm:$0xff]
      %v578 = vld [vmem:[#allocation2 + $0x48] sm:$0xff]
      %v579 = vld [vmem:[#allocation2 + $0x50] sm:$0xff]
      %v580 = vld [vmem:[#allocation2 + $0x58] sm:$0xff]
      %v581 = vld [vmem:[#allocation2 + $0x60] sm:$0xff]
      %v582 = vld [vmem:[#allocation2 + $0x68] sm:$0xff]
      %v583 = vld [vmem:[#allocation2 + $0x70] sm:$0xff]
      %v584 = vld [vmem:[#allocation2 + $0x78] sm:$0xff]
      %v585 = vld [vmem:[#allocation2 + $0x80] sm:$0xff]
      %v586 = vld [vmem:[#allocation2 + $0x88] sm:$0xff]
      %v587 = vld [vmem:[#allocation2 + $0x90] sm:$0xff]
      %v588 = vld [vmem:[#allocation2 + $0x98] sm:$0xff]
      %v589 = vld [vmem:[#allocation2 + $0xa0] sm:$0xff]
      %v590 = vld [vmem:[#allocation2 + $0xa8] sm:$0xff]
      %v591 = vld [vmem:[#allocation2 + $0xb0] sm:$0xff]
      %v592 = vld [vmem:[#allocation2 + $0xb8] sm:$0xff]
      %v593 = vld [vmem:[#allocation2 + $0xc0] sm:$0xff]
      %v594 = vld [vmem:[#allocation2 + $0xc8] sm:$0xff]
      %v595 = vld [vmem:[#allocation2 + $0xd0] sm:$0xff]
      %v596 = vld [vmem:[#allocation2 + $0xd8] sm:$0xff]
      %v597 = vld [vmem:[#allocation2 + $0xe0] sm:$0xff]
      %v598 = vld [vmem:[#allocation2 + $0xe8] sm:$0xff]
      %v599 = vld [vmem:[#allocation2 + $0xf0] sm:$0xff]
      %v600 = vld [vmem:[#allocation2 + $0xf8] sm:$0xff]
      %v601 = vld [vmem:[#allocation2 + $0x100] sm:$0xff]
      %v602 = vld [vmem:[#allocation2 + $0x108] sm:$0xff]
      %v603 = vld [vmem:[#allocation2 + $0x110] sm:$0xff]
      %v604 = vld [vmem:[#allocation2 + $0x118] sm:$0xff]
      %v605 = vld [vmem:[%s210] sm:$0xf]
      %v606 = vld [vmem:[%s210 + $0x4] sm:$0xf]
      %v607 = vld [vmem:[%s210 + $0x8] sm:$0xf]
      %v608 = vld [vmem:[%s210 + $0xc] sm:$0xf]
      %v609 = vld [vmem:[%s210 + $0x10] sm:$0xf]
      %v610 = vld [vmem:[%s210 + $0x14] sm:$0xf]
      %v611 = vld [vmem:[%s210 + $0x18] sm:$0xf]
      %v612 = vld [vmem:[%s210 + $0x1c] sm:$0xf]
      %v613 = vld [vmem:[%s210 + $0x20] sm:$0xf]
      %v614 = vld [vmem:[%s210 + $0x24] sm:$0xf]
      %v615 = vld [vmem:[%s210 + $0x28] sm:$0xf]
      %v616 = vld [vmem:[%s210 + $0x2c] sm:$0xf]
      %v617 = vld [vmem:[%s210 + $0x30] sm:$0xf]
      %v618 = vld [vmem:[%s210 + $0x34] sm:$0xf]
      %v619 = vld [vmem:[%s210 + $0x38] sm:$0xf]
      %v620 = vld [vmem:[%s210 + $0x3c] sm:$0xf]
      %v621 = vld [vmem:[%s210 + $0x40] sm:$0xf]
      %v622 = vld [vmem:[%s210 + $0x44] sm:$0xf]
      %v623 = vld [vmem:[%s210 + $0x48] sm:$0xf]
      %v624 = vld [vmem:[%s210 + $0x4c] sm:$0xf]
      %v625 = vld [vmem:[%s210 + $0x50] sm:$0xf]
      %v626 = vld [vmem:[%s210 + $0x54] sm:$0xf]
      %v627 = vld [vmem:[%s210 + $0x58] sm:$0xf]
      %v628 = vld [vmem:[%s210 + $0x5c] sm:$0xf]
      %v629 = vld [vmem:[%s210 + $0x60] sm:$0xf]
      %v630 = vld [vmem:[%s210 + $0x64] sm:$0xf]
      %v631 = vld [vmem:[%s210 + $0x68] sm:$0xf]
      %v632 = vld [vmem:[%s210 + $0x6c] sm:$0xf]
      %v633 = vld [vmem:[%s210 + $0x70] sm:$0xf]
      %v634 = vld [vmem:[%s210 + $0x74] sm:$0xf]
      %v635 = vld [vmem:[%s210 + $0x78] sm:$0xf]
      %v636 = vld [vmem:[%s210 + $0x7c] sm:$0xf]
      %v637 = vld [vmem:[%s210 + $0x80] sm:$0xf]
      %v638 = vld [vmem:[%s210 + $0x84] sm:$0xf]
      %v639 = vld [vmem:[%s210 + $0x88] sm:$0xf]
      %v640 = vld [vmem:[%s210 + $0x8c] sm:$0xf]
      %v641 = vld [vmem:[%s210 + $0x90] sm:$0xf]
      %v642 = vld [vmem:[%s210 + $0x94] sm:$0xf]
      %v643 = vld [vmem:[%s210 + $0x98] sm:$0xf]
      %v644 = vld [vmem:[%s210 + $0x9c] sm:$0xf]
      %v645 = vld [vmem:[%s210 + $0xa0] sm:$0xf]
      %v646 = vld [vmem:[%s210 + $0xa4] sm:$0xf]
      %v647 = vld [vmem:[%s210 + $0xa8] sm:$0xf]
      %v648 = vld [vmem:[%s210 + $0xac] sm:$0xf]
      %v649 = vld [vmem:[%s210 + $0xb0] sm:$0xf]
      %v650 = vld [vmem:[%s210 + $0xb4] sm:$0xf]
      %v651 = vld [vmem:[%s210 + $0xb8] sm:$0xf]
      %v652 = vld [vmem:[%s210 + $0xbc] sm:$0xf]
      %v653 = vld [vmem:[%s210 + $0xc0] sm:$0xf]
      %v654 = vld [vmem:[%s210 + $0xc4] sm:$0xf]
      %v655 = vld [vmem:[%s210 + $0xc8] sm:$0xf]
      %v656 = vld [vmem:[%s210 + $0xcc] sm:$0xf]
      %v657 = vld [vmem:[%s210 + $0xd0] sm:$0xf]
      %v658 = vld [vmem:[%s210 + $0xd4] sm:$0xf]
      %v659 = vld [vmem:[%s210 + $0xd8] sm:$0xf]
      %v660 = vld [vmem:[%s210 + $0xdc] sm:$0xf]
      %v661 = vld [vmem:[%s210 + $0xe0] sm:$0xf]
      %v662 = vld [vmem:[%s210 + $0xe4] sm:$0xf]
      %v663 = vld [vmem:[%s210 + $0xe8] sm:$0xf]
      %v664 = vld [vmem:[%s210 + $0xec] sm:$0xf]
      %v665 = vld [vmem:[%s210 + $0xf0] sm:$0xf]
      %v666 = vld [vmem:[%s210 + $0xf4] sm:$0xf]
      %v667 = vld [vmem:[%s210 + $0xf8] sm:$0xf]
      %v668 = vld [vmem:[%s210 + $0xfc] sm:$0xf]
      %v669 = vld [vmem:[%s210 + $0x100] sm:$0xf]
      %v670 = vld [vmem:[%s210 + $0x104] sm:$0xf]
      %v671 = vld [vmem:[%s210 + $0x108] sm:$0xf]
      %v672 = vld [vmem:[%s210 + $0x10c] sm:$0xf]
      %v673 = vld [vmem:[%s210 + $0x110] sm:$0xf]
      %v674 = vld [vmem:[%s210 + $0x114] sm:$0xf]
      %v675 = vld [vmem:[%s210 + $0x118] sm:$0xf]
      %v676 = vld [vmem:[%s210 + $0x11c] sm:$0xf]
      %v677 = vld [vmem:[%s210 + $0x120] sm:$0xf]
      %v678 = vld [vmem:[%s210 + $0x124] sm:$0xf]
      %v679 = vld [vmem:[%s210 + $0x128] sm:$0xf]
      %v680 = vld [vmem:[%s210 + $0x12c] sm:$0xf]
      %v681 = vld [vmem:[%s210 + $0x130] sm:$0xf]
      %v682 = vld [vmem:[%s210 + $0x134] sm:$0xf]
      %v683 = vld [vmem:[%s210 + $0x138] sm:$0xf]
      %v684 = vld [vmem:[%s210 + $0x13c] sm:$0xf]
      %v685 = vld [vmem:[%s210 + $0x140] sm:$0xf]
      %v686 = vld [vmem:[%s210 + $0x144] sm:$0xf]
      %v687 = vld [vmem:[%s210 + $0x148] sm:$0xf]
      %v688 = vld [vmem:[%s210 + $0x14c] sm:$0xf]
      %v689 = vld [vmem:[%s210 + $0x150] sm:$0xf]
      %v690 = vld [vmem:[%s210 + $0x154] sm:$0xf]
      %v691 = vld [vmem:[%s210 + $0x158] sm:$0xf]
      %v692 = vld [vmem:[%s210 + $0x15c] sm:$0xf]
      %v693 = vld [vmem:[%s210 + $0x160] sm:$0xf]
      %v694 = vld [vmem:[%s210 + $0x164] sm:$0xf]
      %v695 = vld [vmem:[%s210 + $0x168] sm:$0xf]
      %v696 = vld [vmem:[%s210 + $0x16c] sm:$0xf]
      %v697 = vld [vmem:[%s210 + $0x170] sm:$0xf]
      %v698 = vld [vmem:[%s210 + $0x174] sm:$0xf]
      %v699 = vld [vmem:[%s210 + $0x178] sm:$0xf]
      %v700 = vld [vmem:[%s210 + $0x17c] sm:$0xf]
      %v701 = vld [vmem:[%s210 + $0x180] sm:$0xf]
      %v702 = vld [vmem:[%s210 + $0x184] sm:$0xf]
      %v703 = vld [vmem:[%s210 + $0x188] sm:$0xf]
      %v704 = vld [vmem:[%s210 + $0x18c] sm:$0xf]
      %v705 = vld [vmem:[%s210 + $0x190] sm:$0xf]
      %v706 = vld [vmem:[%s210 + $0x194] sm:$0xf]
      %v707 = vld [vmem:[%s210 + $0x198] sm:$0xf]
      %v708 = vld [vmem:[%s210 + $0x19c] sm:$0xf]
      %v709 = vld [vmem:[%s210 + $0x1a0] sm:$0xf]
      %v710 = vld [vmem:[%s210 + $0x1a4] sm:$0xf]
      %v711 = vld [vmem:[%s210 + $0x1a8] sm:$0xf]
      %v712 = vld [vmem:[%s210 + $0x1ac] sm:$0xf]
      %v713 = vld [vmem:[%s210 + $0x1b0] sm:$0xf]
      %v714 = vld [vmem:[%s210 + $0x1b4] sm:$0xf]
      %v715 = vld [vmem:[%s210 + $0x1b8] sm:$0xf]
      %v716 = vld [vmem:[%s210 + $0x1bc] sm:$0xf]
      %v717 = vld [vmem:[%s210 + $0x1c0] sm:$0xf]
      %v718 = vld [vmem:[%s210 + $0x1c4] sm:$0xf]
      %v719 = vld [vmem:[%s210 + $0x1c8] sm:$0xf]
      %v720 = vld [vmem:[%s210 + $0x1cc] sm:$0xf]
      %v721 = vld [vmem:[%s210 + $0x1d0] sm:$0xf]
      %v722 = vld [vmem:[%s210 + $0x1d4] sm:$0xf]
      %v723 = vld [vmem:[%s210 + $0x1d8] sm:$0xf]
      %v724 = vld [vmem:[%s210 + $0x1dc] sm:$0xf]
      %v725 = vld [vmem:[%s210 + $0x1e0] sm:$0xf]
      %v726 = vld [vmem:[%s210 + $0x1e4] sm:$0xf]
      %v727 = vld [vmem:[%s210 + $0x1e8] sm:$0xf]
      %v728 = vld [vmem:[%s210 + $0x1ec] sm:$0xf]
      %v729 = vld [vmem:[%s210 + $0x1f0] sm:$0xf]
      %v730 = vld [vmem:[%s210 + $0x1f4] sm:$0xf]
      %v731 = vld [vmem:[%s210 + $0x1f8] sm:$0xf]
      %v732 = vld [vmem:[%s210 + $0x1fc] sm:$0xf]
      %v733 = vld [vmem:[%s210 + $0x200] sm:$0xf]
      %v734 = vld [vmem:[%s210 + $0x204] sm:$0xf]
      %v735 = vld [vmem:[%s210 + $0x208] sm:$0xf]
      %v736 = vld [vmem:[%s210 + $0x20c] sm:$0xf]
      %v737 = vld [vmem:[%s210 + $0x210] sm:$0xf]
      %v738 = vld [vmem:[%s210 + $0x214] sm:$0xf]
      %v739 = vld [vmem:[%s210 + $0x218] sm:$0xf]
      %v740 = vld [vmem:[%s210 + $0x21c] sm:$0xf]
      %v741 = vld [vmem:[%s210 + $0x220] sm:$0xf]
      %v742 = vld [vmem:[%s210 + $0x224] sm:$0xf]
      %v743 = vld [vmem:[%s210 + $0x228] sm:$0xf]
      %v744 = vld [vmem:[%s210 + $0x22c] sm:$0xf]
      %v745 = vld [vmem:[%s210 + $0x230] sm:$0xf]
      %v746 = vld [vmem:[%s210 + $0x234] sm:$0xf]
      %v747 = vld [vmem:[%s210 + $0x238] sm:$0xf]
      %v748 = vld [vmem:[%s210 + $0x23c] sm:$0xf]
      %v749 = vld [vmem:[%s213] sm:$0x1]
      %v751 = vlaneseq
      %v752 = vshrl.u32 %v751, 7
      %v753 = vsub.s32 0, %v752
      %v754 = vrot.slane %v749, %v753
      %v900 = vunpack.c.l.b16 %v605
      %v901 = vunpack.c.l.b16 %v606
      %v902 = vunpack.c.l.b16 %v607
      %v903 = vunpack.c.l.b16 %v608
      %v904 = vunpack.c.l.b16 %v609
      %v905 = vunpack.c.l.b16 %v610
      %v906 = vunpack.c.l.b16 %v611
      %v907 = vunpack.c.l.b16 %v612
      %v908 = vunpack.c.l.b16 %v613
      %v909 = vunpack.c.l.b16 %v614
      %v910 = vunpack.c.l.b16 %v615
      %v911 = vunpack.c.l.b16 %v616
      %v912 = vunpack.c.l.b16 %v617
      %v913 = vunpack.c.l.b16 %v618
      %v914 = vunpack.c.l.b16 %v619
      %v915 = vunpack.c.l.b16 %v620
      %v916 = vunpack.c.l.b16 %v621
      %v917 = vunpack.c.l.b16 %v622
      %v918 = vunpack.c.l.b16 %v623
      %v919 = vunpack.c.l.b16 %v624
      %v920 = vunpack.c.l.b16 %v625
      %v921 = vunpack.c.l.b16 %v626
      %v922 = vunpack.c.l.b16 %v627
      %v923 = vunpack.c.l.b16 %v628
      %v924 = vunpack.c.l.b16 %v629
      %v925 = vunpack.c.l.b16 %v630
      %v926 = vunpack.c.l.b16 %v631
      %v927 = vunpack.c.l.b16 %v632
      %v928 = vunpack.c.l.b16 %v633
      %v929 = vunpack.c.l.b16 %v634
      %v930 = vunpack.c.l.b16 %v635
      %v931 = vunpack.c.l.b16 %v636
      %v932 = vunpack.c.l.b16 %v637
      %v933 = vunpack.c.l.b16 %v638
      %v934 = vunpack.c.l.b16 %v639
      %v935 = vunpack.c.l.b16 %v640
      %v936 = vunpack.c.l.b16 %v641
      %v937 = vunpack.c.l.b16 %v642
      %v938 = vunpack.c.l.b16 %v643
      %v939 = vunpack.c.l.b16 %v644
      %v940 = vunpack.c.l.b16 %v645
      %v941 = vunpack.c.l.b16 %v646
      %v942 = vunpack.c.l.b16 %v647
      %v943 = vunpack.c.l.b16 %v648
      %v944 = vunpack.c.l.b16 %v649
      %v945 = vunpack.c.l.b16 %v650
      %v946 = vunpack.c.l.b16 %v651
      %v947 = vunpack.c.l.b16 %v652
      %v948 = vunpack.c.l.b16 %v653
      %v949 = vunpack.c.l.b16 %v654
      %v950 = vunpack.c.l.b16 %v655
      %v951 = vunpack.c.l.b16 %v656
      %v952 = vunpack.c.l.b16 %v657
      %v953 = vunpack.c.l.b16 %v658
      %v954 = vunpack.c.l.b16 %v659
      %v955 = vunpack.c.l.b16 %v660
      %v956 = vunpack.c.l.b16 %v661
      %v957 = vunpack.c.l.b16 %v662
      %v958 = vunpack.c.l.b16 %v663
      %v959 = vunpack.c.l.b16 %v664
      %v960 = vunpack.c.l.b16 %v665
      %v961 = vunpack.c.l.b16 %v666
      %v962 = vunpack.c.l.b16 %v667
      %v963 = vunpack.c.l.b16 %v668
      %v964 = vunpack.c.l.b16 %v669
      %v965 = vunpack.c.l.b16 %v670
      %v966 = vunpack.c.l.b16 %v671
      %v967 = vunpack.c.l.b16 %v672
      %v968 = vunpack.c.l.b16 %v673
      %v969 = vunpack.c.l.b16 %v674
      %v970 = vunpack.c.l.b16 %v675
      %v971 = vunpack.c.l.b16 %v676
      %v972 = vunpack.c.l.b16 %v677
      %v973 = vunpack.c.l.b16 %v678
      %v974 = vunpack.c.l.b16 %v679
      %v975 = vunpack.c.l.b16 %v680
      %v976 = vunpack.c.l.b16 %v681
      %v977 = vunpack.c.l.b16 %v682
      %v978 = vunpack.c.l.b16 %v683
      %v979 = vunpack.c.l.b16 %v684
      %v980 = vunpack.c.l.b16 %v685
      %v981 = vunpack.c.l.b16 %v686
      %v982 = vunpack.c.l.b16 %v687
      %v983 = vunpack.c.l.b16 %v688
      %v984 = vunpack.c.l.b16 %v689
      %v985 = vunpack.c.l.b16 %v690
      %v986 = vunpack.c.l.b16 %v691
      %v987 = vunpack.c.l.b16 %v692
      %v988 = vunpack.c.l.b16 %v693
      %v989 = vunpack.c.l.b16 %v694
      %v990 = vunpack.c.l.b16 %v695
      %v991 = vunpack.c.l.b16 %v696
      %v992 = vunpack.c.l.b16 %v697
      %v993 = vunpack.c.l.b16 %v698
      %v994 = vunpack.c.l.b16 %v699
      %v995 = vunpack.c.l.b16 %v700
      %v996 = vunpack.c.l.b16 %v701
      %v997 = vunpack.c.l.b16 %v702
      %v998 = vunpack.c.l.b16 %v703
      %v999 = vunpack.c.l.b16 %v704
      %v1000 = vunpack.c.l.b16 %v705
      %v1001 = vunpack.c.l.b16 %v706
      %v1002 = vunpack.c.l.b16 %v707
      %v1003 = vunpack.c.l.b16 %v708
      %v1004 = vunpack.c.l.b16 %v709
      %v1005 = vunpack.c.l.b16 %v710
      %v1006 = vunpack.c.l.b16 %v711
      %v1007 = vunpack.c.l.b16 %v712
      %v1008 = vunpack.c.l.b16 %v713
      %v1009 = vunpack.c.l.b16 %v714
      %v1010 = vunpack.c.l.b16 %v715
      %v1011 = vunpack.c.l.b16 %v716
      %v1012 = vunpack.c.l.b16 %v717
      %v1013 = vunpack.c.l.b16 %v718
      %v1014 = vunpack.c.l.b16 %v719
      %v1015 = vunpack.c.l.b16 %v720
      %v1016 = vunpack.c.l.b16 %v721
      %v1017 = vunpack.c.l.b16 %v722
      %v1018 = vunpack.c.l.b16 %v723
      %v1019 = vunpack.c.l.b16 %v724
      %v1020 = vunpack.c.l.b16 %v725
      %v1021 = vunpack.c.l.b16 %v726
      %v1022 = vunpack.c.l.b16 %v727
      %v1023 = vunpack.c.l.b16 %v728
      %v1024 = vunpack.c.l.b16 %v729
      %v1025 = vunpack.c.l.b16 %v730
      %v1026 = vunpack.c.l.b16 %v731
      %v1027 = vunpack.c.l.b16 %v732
      %v1028 = vunpack.c.l.b16 %v733
      %v1029 = vunpack.c.l.b16 %v734
      %v1030 = vunpack.c.l.b16 %v735
      %v1031 = vunpack.c.l.b16 %v736
      %v1032 = vunpack.c.l.b16 %v737
      %v1033 = vunpack.c.l.b16 %v738
      %v1034 = vunpack.c.l.b16 %v739
      %v1035 = vunpack.c.l.b16 %v740
      %v1036 = vunpack.c.l.b16 %v741
      %v1037 = vunpack.c.l.b16 %v742
      %v1038 = vunpack.c.l.b16 %v743
      %v1039 = vunpack.c.l.b16 %v744
      %v1040 = vunpack.c.l.b16 %v745
      %v1041 = vunpack.c.l.b16 %v746
      %v1042 = vunpack.c.l.b16 %v747
      %v1043 = vunpack.c.l.b16 %v748
      %v1044 = vpack.c.b16 %v901, %v900
      %v1045 = vpack.c.b16 %v903, %v902
      %v1046 = vpack.c.b16 %v905, %v904
      %v1047 = vpack.c.b16 %v907, %v906
      %v1048 = vpack.c.b16 %v909, %v908
      %v1049 = vpack.c.b16 %v911, %v910
      %v1050 = vpack.c.b16 %v913, %v912
      %v1051 = vpack.c.b16 %v915, %v914
      %v1052 = vpack.c.b16 %v917, %v916
      %v1053 = vpack.c.b16 %v919, %v918
      %v1054 = vpack.c.b16 %v921, %v920
      %v1055 = vpack.c.b16 %v923, %v922
      %v1056 = vpack.c.b16 %v925, %v924
      %v1057 = vpack.c.b16 %v927, %v926
      %v1058 = vpack.c.b16 %v929, %v928
      %v1059 = vpack.c.b16 %v931, %v930
      %v1060 = vpack.c.b16 %v933, %v932
      %v1061 = vpack.c.b16 %v935, %v934
      %v1062 = vpack.c.b16 %v937, %v936
      %v1063 = vpack.c.b16 %v939, %v938
      %v1064 = vpack.c.b16 %v941, %v940
      %v1065 = vpack.c.b16 %v943, %v942
      %v1066 = vpack.c.b16 %v945, %v944
      %v1067 = vpack.c.b16 %v947, %v946
      %v1068 = vpack.c.b16 %v949, %v948
      %v1069 = vpack.c.b16 %v951, %v950
      %v1070 = vpack.c.b16 %v953, %v952
      %v1071 = vpack.c.b16 %v955, %v954
      %v1072 = vpack.c.b16 %v957, %v956
      %v1073 = vpack.c.b16 %v959, %v958
      %v1074 = vpack.c.b16 %v961, %v960
      %v1075 = vpack.c.b16 %v963, %v962
      %v1076 = vpack.c.b16 %v965, %v964
      %v1077 = vpack.c.b16 %v967, %v966
      %v1078 = vpack.c.b16 %v969, %v968
      %v1079 = vpack.c.b16 %v971, %v970
      %v1080 = vpack.c.b16 %v973, %v972
      %v1081 = vpack.c.b16 %v975, %v974
      %v1082 = vpack.c.b16 %v977, %v976
      %v1083 = vpack.c.b16 %v979, %v978
      %v1084 = vpack.c.b16 %v981, %v980
      %v1085 = vpack.c.b16 %v983, %v982
      %v1086 = vpack.c.b16 %v985, %v984
      %v1087 = vpack.c.b16 %v987, %v986
      %v1088 = vpack.c.b16 %v989, %v988
      %v1089 = vpack.c.b16 %v991, %v990
      %v1090 = vpack.c.b16 %v993, %v992
      %v1091 = vpack.c.b16 %v995, %v994
      %v1092 = vpack.c.b16 %v997, %v996
      %v1093 = vpack.c.b16 %v999, %v998
      %v1094 = vpack.c.b16 %v1001, %v1000
      %v1095 = vpack.c.b16 %v1003, %v1002
      %v1096 = vpack.c.b16 %v1005, %v1004
      %v1097 = vpack.c.b16 %v1007, %v1006
      %v1098 = vpack.c.b16 %v1009, %v1008
      %v1099 = vpack.c.b16 %v1011, %v1010
      %v1100 = vpack.c.b16 %v1013, %v1012
      %v1101 = vpack.c.b16 %v1015, %v1014
      %v1102 = vpack.c.b16 %v1017, %v1016
      %v1103 = vpack.c.b16 %v1019, %v1018
      %v1104 = vpack.c.b16 %v1021, %v1020
      %v1105 = vpack.c.b16 %v1023, %v1022
      %v1106 = vpack.c.b16 %v1025, %v1024
      %v1107 = vpack.c.b16 %v1027, %v1026
      %v1108 = vpack.c.b16 %v1029, %v1028
      %v1109 = vpack.c.b16 %v1031, %v1030
      %v1110 = vpack.c.b16 %v1033, %v1032
      %v1111 = vpack.c.b16 %v1035, %v1034
      %v1112 = vpack.c.b16 %v1037, %v1036
      %v1113 = vpack.c.b16 %v1039, %v1038
      %v1114 = vpack.c.b16 %v1041, %v1040
      %v1115 = vpack.c.b16 %v1043, %v1042
      %1188 = vmatprep.subr.bf16.mxu0 0
      %1189 = vmatpush1.bf16.msra.mxu0 %v1044
      %1190 = vmatprep.subr.bf16.mxu0 0
      %1191 = vmatpush1.bf16.msra.mxu0 %v1045
      %1192 = vmatprep.subr.bf16.mxu0 0
      %1193 = vmatpush1.bf16.msra.mxu0 %v1046
      %1194 = vmatprep.subr.bf16.mxu0 0
      %1195 = vmatpush1.bf16.msra.mxu0 %v1047
      %1196 = vmatprep.subr.bf16.mxu0 0
      %1197 = vmatpush1.bf16.msra.mxu0 %v1048
      %1198 = vmatprep.subr.bf16.mxu0 0
      %1199 = vmatpush1.bf16.msra.mxu0 %v1049
      %1200 = vmatprep.subr.bf16.mxu0 0
      %1201 = vmatpush1.bf16.msra.mxu0 %v1050
      %1202 = vmatprep.subr.bf16.mxu0 0
      %1203 = vmatpush1.bf16.msra.mxu0 %v1051
      %1204 = vmatprep.subr.bf16.mxu0 0
      %1205 = vmatpush1.bf16.msra.mxu0 %v1052
      %1206 = vmatprep.subr.bf16.mxu0 0
      %1207 = vmatpush1.bf16.msra.mxu0 %v1053
      %1208 = vmatprep.subr.bf16.mxu0 0
      %1209 = vmatpush1.bf16.msra.mxu0 %v1054
      %1210 = vmatprep.subr.bf16.mxu0 0
      %1211 = vmatpush1.bf16.msra.mxu0 %v1055
      %1212 = vmatprep.subr.bf16.mxu0 0
      %1213 = vmatpush1.bf16.msra.mxu0 %v1056
      %1214 = vmatprep.subr.bf16.mxu0 0
      %1215 = vmatpush1.bf16.msra.mxu0 %v1057
      %1216 = vmatprep.subr.bf16.mxu0 0
      %1217 = vmatpush1.bf16.msra.mxu0 %v1058
      %1218 = vmatprep.subr.bf16.mxu0 0
      %1219 = vmatpush1.bf16.msra.mxu0 %v1059
      %1220 = vmatprep.mubr.bf16.mxu0 %v570
      %1221 = vmatmul.mubr.bf16.gmra.mrb[0].mxu0 %v569
      %v1222 = vpop.f32.mrb[0].mxu0
      %v1223 = vadd.f32 %v754, %v1222
      %v1224 = vpop.f32.mrb[0].mxu0
      %v1225 = vpop.f32.mrb[0].mxu0
      %v1226 = vadd.f32 %v754, %v1225
      %v1227 = vpop.f32.mrb[0].mxu0
      %1228 = vmatprep.mubr.bf16.mxu0 %v579
      %1229 = vmatmul.mubr.bf16.gmra.mrb[0].mxu0 %v578
      %v1230 = vpop.f32.mrb[0].mxu0
      %v1231 = vadd.f32 %v754, %v1230
      %v1232 = vpop.f32.mrb[0].mxu0
      %v1233 = vpop.f32.mrb[0].mxu0
      %v1234 = vadd.f32 %v754, %v1233
      %v1235 = vpop.f32.mrb[0].mxu0
      %1236 = vmatprep.mubr.bf16.mxu0 %v588
      %1237 = vmatmul.mubr.bf16.gmra.mrb[0].mxu0 %v587
      %v1238 = vpop.f32.mrb[0].mxu0
      %v1239 = vadd.f32 %v754, %v1238
      %v1240 = vpop.f32.mrb[0].mxu0
      %v1241 = vpop.f32.mrb[0].mxu0
      %v1242 = vadd.f32 %v754, %v1241
      %v1243 = vpop.f32.mrb[0].mxu0
      %1244 = vmatprep.mubr.bf16.mxu0 %v597
      %1245 = vmatmul.mubr.bf16.gmra.mrb[0].mxu0 %v596
      %v1246 = vpop.f32.mrb[0].mxu0
      %v1247 = vadd.f32 %v754, %v1246
      %v1248 = vpop.f32.mrb[0].mxu0
      %v1249 = vpop.f32.mrb[0].mxu0
      %v1250 = vadd.f32 %v754, %v1249
      %v1251 = vpop.f32.mrb[0].mxu0
      %1252 = vdwg.mxu0
      %1253 = vmatprep.subr.bf16.mxu0 0
      %1254 = vmatpush1.bf16.msra.mxu0 %v1060
      %1255 = vmatprep.subr.bf16.mxu0 0
      %1256 = vmatpush1.bf16.msra.mxu0 %v1061
      %1257 = vmatprep.subr.bf16.mxu0 0
      %1258 = vmatpush1.bf16.msra.mxu0 %v1062
      %1259 = vmatprep.subr.bf16.mxu0 0
      %1260 = vmatpush1.bf16.msra.mxu0 %v1063
      %1261 = vmatprep.subr.bf16.mxu0 0
      %1262 = vmatpush1.bf16.msra.mxu0 %v1064
      %1263 = vmatprep.subr.bf16.mxu0 0
      %1264 = vmatpush1.bf16.msra.mxu0 %v1065
      %1265 = vmatprep.subr.bf16.mxu0 0
      %1266 = vmatpush1.bf16.msra.mxu0 %v1066
      %1267 = vmatprep.subr.bf16.mxu0 0
      %1268 = vmatpush1.bf16.msra.mxu0 %v1067
      %1269 = vmatprep.subr.bf16.mxu0 0
      %1270 = vmatpush1.bf16.msra.mxu0 %v1068
      %1271 = vmatprep.subr.bf16.mxu0 0
      %1272 = vmatpush1.bf16.msra.mxu0 %v1069
      %1273 = vmatprep.subr.bf16.mxu0 0
      %1274 = vmatpush1.bf16.msra.mxu0 %v1070
      %1275 = vmatprep.subr.bf16.mxu0 0
      %1276 = vmatpush1.bf16.msra.mxu0 %v1071
      %1277 = vmatprep.subr.bf16.mxu0 0
      %1278 = vmatpush1.bf16.msra.mxu0 %v1072
      %1279 = vmatprep.subr.bf16.mxu0 0
      %1280 = vmatpush1.bf16.msra.mxu0 %v1073
      %1281 = vmatprep.subr.bf16.mxu0 0
      %1282 = vmatpush1.bf16.msra.mxu0 %v1074
      %1283 = vmatprep.subr.bf16.mxu0 0
      %1284 = vmatpush1.bf16.msra.mxu0 %v1075
      %1285 = vmatprep.mubr.bf16.mxu0 %v572
      %1286 = vmatmul.mubr.bf16.gmra.mrb[0].mxu0 %v571
      %v1287 = vpop.f32.mrb[0].mxu0
      %v1288 = vadd.f32 %v1223, %v1287
      %v1289 = vpop.f32.mrb[0].mxu0
      %v1290 = vpop.f32.mrb[0].mxu0
      %v1291 = vadd.f32 %v1226, %v1290
      %v1292 = vpop.f32.mrb[0].mxu0
      %1293 = vmatprep.mubr.bf16.mxu0 %v581
      %1294 = vmatmul.mubr.bf16.gmra.mrb[0].mxu0 %v580
      %v1295 = vpop.f32.mrb[0].mxu0
      %v1296 = vadd.f32 %v1231, %v1295
      %v1297 = vpop.f32.mrb[0].mxu0
      %v1298 = vpop.f32.mrb[0].mxu0
      %v1299 = vadd.f32 %v1234, %v1298
      %v1300 = vpop.f32.mrb[0].mxu0
      %1301 = vmatprep.mubr.bf16.mxu0 %v590
      %1302 = vmatmul.mubr.bf16.gmra.mrb[0].mxu0 %v589
      %v1303 = vpop.f32.mrb[0].mxu0
      %v1304 = vadd.f32 %v1239, %v1303
      %v1305 = vpop.f32.mrb[0].mxu0
      %v1306 = vpop.f32.mrb[0].mxu0
      %v1307 = vadd.f32 %v1242, %v1306
      %v1308 = vpop.f32.mrb[0].mxu0
      %1309 = vmatprep.mubr.bf16.mxu0 %v599
      %1310 = vmatmul.mubr.bf16.gmra.mrb[0].mxu0 %v598
      %v1311 = vpop.f32.mrb[0].mxu0
      %v1312 = vadd.f32 %v1247, %v1311
      %v1313 = vpop.f32.mrb[0].mxu0
      %v1314 = vpop.f32.mrb[0].mxu0
      %v1315 = vadd.f32 %v1250, %v1314
      %v1316 = vpop.f32.mrb[0].mxu0
      %1317 = vdwg.mxu0
      %1318 = vmatprep.subr.bf16.mxu0 0
      %1319 = vmatpush1.bf16.msra.mxu0 %v1076
      %1320 = vmatprep.subr.bf16.mxu0 0
      %1321 = vmatpush1.bf16.msra.mxu0 %v1077
      %1322 = vmatprep.subr.bf16.mxu0 0
      %1323 = vmatpush1.bf16.msra.mxu0 %v1078
      %1324 = vmatprep.subr.bf16.mxu0 0
      %1325 = vmatpush1.bf16.msra.mxu0 %v1079
      %1326 = vmatprep.subr.bf16.mxu0 0
      %1327 = vmatpush1.bf16.msra.mxu0 %v1080
      %1328 = vmatprep.subr.bf16.mxu0 0
      %1329 = vmatpush1.bf16.msra.mxu0 %v1081
      %1330 = vmatprep.subr.bf16.mxu0 0
      %1331 = vmatpush1.bf16.msra.mxu0 %v1082
      %1332 = vmatprep.subr.bf16.mxu0 0
      %1333 = vmatpush1.bf16.msra.mxu0 %v1083
      %1334 = vmatprep.subr.bf16.mxu0 0
      %1335 = vmatpush1.bf16.msra.mxu0 %v1084
      %1336 = vmatprep.subr.bf16.mxu0 0
      %1337 = vmatpush1.bf16.msra.mxu0 %v1085
      %1338 = vmatprep.subr.bf16.mxu0 0
      %1339 = vmatpush1.bf16.msra.mxu0 %v1086
      %1340 = vmatprep.subr.bf16.mxu0 0
      %1341 = vmatpush1.bf16.msra.mxu0 %v1087
      %1342 = vmatprep.subr.bf16.mxu0 0
      %1343 = vmatpush1.bf16.msra.mxu0 %v1088
      %1344 = vmatprep.subr.bf16.mxu0 0
      %1345 = vmatpush1.bf16.msra.mxu0 %v1089
      %1346 = vmatprep.subr.bf16.mxu0 0
      %1347 = vmatpush1.bf16.msra.mxu0 %v1090
      %1348 = vmatprep.subr.bf16.mxu0 0
      %1349 = vmatpush1.bf16.msra.mxu0 %v1091
      %1350 = vmatprep.mubr.bf16.mxu0 %v574
      %1351 = vmatmul.mubr.bf16.gmra.mrb[0].mxu0 %v573
      %v1352 = vpop.f32.mrb[0].mxu0
      %v1353 = vadd.f32 %v1288, %v1352
      %v1354 = vpop.f32.mrb[0].mxu0
      %v1355 = vpop.f32.mrb[0].mxu0
      %v1356 = vadd.f32 %v1291, %v1355
      %v1357 = vpop.f32.mrb[0].mxu0
      %1358 = vmatprep.mubr.bf16.mxu0 %v583
      %1359 = vmatmul.mubr.bf16.gmra.mrb[0].mxu0 %v582
      %v1360 = vpop.f32.mrb[0].mxu0
      %v1361 = vadd.f32 %v1296, %v1360
      %v1362 = vpop.f32.mrb[0].mxu0
      %v1363 = vpop.f32.mrb[0].mxu0
      %v1364 = vadd.f32 %v1299, %v1363
      %v1365 = vpop.f32.mrb[0].mxu0
      %1366 = vmatprep.mubr.bf16.mxu0 %v592
      %1367 = vmatmul.mubr.bf16.gmra.mrb[0].mxu0 %v591
      %v1368 = vpop.f32.mrb[0].mxu0
      %v1369 = vadd.f32 %v1304, %v1368
      %v1370 = vpop.f32.mrb[0].mxu0
      %v1371 = vpop.f32.mrb[0].mxu0
      %v1372 = vadd.f32 %v1307, %v1371
      %v1373 = vpop.f32.mrb[0].mxu0
      %1374 = vmatprep.mubr.bf16.mxu0 %v601
      %1375 = vmatmul.mubr.bf16.gmra.mrb[0].mxu0 %v600
      %v1376 = vpop.f32.mrb[0].mxu0
      %v1377 = vadd.f32 %v1312, %v1376
      %v1378 = vpop.f32.mrb[0].mxu0
      %v1379 = vpop.f32.mrb[0].mxu0
      %v1380 = vadd.f32 %v1315, %v1379
      %v1381 = vpop.f32.mrb[0].mxu0
      %1382 = vdwg.mxu0
      %1383 = vmatprep.subr.bf16.mxu0 0
      %1384 = vmatpush1.bf16.msra.mxu0 %v1092
      %1385 = vmatprep.subr.bf16.mxu0 0
      %1386 = vmatpush1.bf16.msra.mxu0 %v1093
      %1387 = vmatprep.subr.bf16.mxu0 0
      %1388 = vmatpush1.bf16.msra.mxu0 %v1094
      %1389 = vmatprep.subr.bf16.mxu0 0
      %1390 = vmatpush1.bf16.msra.mxu0 %v1095
      %1391 = vmatprep.subr.bf16.mxu0 0
      %1392 = vmatpush1.bf16.msra.mxu0 %v1096
      %1393 = vmatprep.subr.bf16.mxu0 0
      %1394 = vmatpush1.bf16.msra.mxu0 %v1097
      %1395 = vmatprep.subr.bf16.mxu0 0
      %1396 = vmatpush1.bf16.msra.mxu0 %v1098
      %1397 = vmatprep.subr.bf16.mxu0 0
      %1398 = vmatpush1.bf16.msra.mxu0 %v1099
      %1399 = vmatprep.subr.bf16.mxu0 0
      %1400 = vmatpush1.bf16.msra.mxu0 %v1100
      %1401 = vmatprep.subr.bf16.mxu0 0
      %1402 = vmatpush1.bf16.msra.mxu0 %v1101
      %1403 = vmatprep.subr.bf16.mxu0 0
      %1404 = vmatpush1.bf16.msra.mxu0 %v1102
      %1405 = vmatprep.subr.bf16.mxu0 0
      %1406 = vmatpush1.bf16.msra.mxu0 %v1103
      %1407 = vmatprep.subr.bf16.mxu0 0
      %1408 = vmatpush1.bf16.msra.mxu0 %v1104
      %1409 = vmatprep.subr.bf16.mxu0 0
      %1410 = vmatpush1.bf16.msra.mxu0 %v1105
      %1411 = vmatprep.subr.bf16.mxu0 0
      %1412 = vmatpush1.bf16.msra.mxu0 %v1106
      %1413 = vmatprep.subr.bf16.mxu0 0
      %1414 = vmatpush1.bf16.msra.mxu0 %v1107
      %1415 = vmatprep.mubr.bf16.mxu0 %v576
      %1416 = vmatmul.mubr.bf16.gmra.mrb[0].mxu0 %v575
      %v1417 = vpop.f32.mrb[0].mxu0
      %v1418 = vadd.f32 %v1353, %v1417
      %v1419 = vpop.f32.mrb[0].mxu0
      %v1420 = vpop.f32.mrb[0].mxu0
      %v1421 = vadd.f32 %v1356, %v1420
      %v1422 = vpop.f32.mrb[0].mxu0
      %1423 = vmatprep.mubr.bf16.mxu0 %v585
      %1424 = vmatmul.mubr.bf16.gmra.mrb[0].mxu0 %v584
      %v1425 = vpop.f32.mrb[0].mxu0
      %v1426 = vadd.f32 %v1361, %v1425
      %v1427 = vpop.f32.mrb[0].mxu0
      %v1428 = vpop.f32.mrb[0].mxu0
      %v1429 = vadd.f32 %v1364, %v1428
      %v1430 = vpop.f32.mrb[0].mxu0
      %1431 = vmatprep.mubr.bf16.mxu0 %v594
      %1432 = vmatmul.mubr.bf16.gmra.mrb[0].mxu0 %v593
      %v1433 = vpop.f32.mrb[0].mxu0
      %v1434 = vadd.f32 %v1369, %v1433
      %v1435 = vpop.f32.mrb[0].mxu0
      %v1436 = vpop.f32.mrb[0].mxu0
      %v1437 = vadd.f32 %v1372, %v1436
      %v1438 = vpop.f32.mrb[0].mxu0
      %1439 = vmatprep.mubr.bf16.mxu0 %v603
      %1440 = vmatmul.mubr.bf16.gmra.mrb[0].mxu0 %v602
      %v1441 = vpop.f32.mrb[0].mxu0
      %v1442 = vadd.f32 %v1377, %v1441
      %v1443 = vpop.f32.mrb[0].mxu0
      %v1444 = vpop.f32.mrb[0].mxu0
      %v1445 = vadd.f32 %v1380, %v1444
      %v1446 = vpop.f32.mrb[0].mxu0
      %1447 = vdwg.mxu0
      %1448 = vmatprep.subr.bf16.mxu0 0
      %1449 = vmatpush1.bf16.msra.mxu0 %v1108
      %1450 = vmatprep.subr.bf16.mxu0 0
      %1451 = vmatpush1.bf16.msra.mxu0 %v1109
      %1452 = vmatprep.subr.bf16.mxu0 0
      %1453 = vmatpush1.bf16.msra.mxu0 %v1110
      %1454 = vmatprep.subr.bf16.mxu0 0
      %1455 = vmatpush1.bf16.msra.mxu0 %v1111
      %1456 = vmatprep.subr.bf16.mxu0 0
      %1457 = vmatpush1.bf16.msra.mxu0 %v1112
      %1458 = vmatprep.subr.bf16.mxu0 0
      %1459 = vmatpush1.bf16.msra.mxu0 %v1113
      %1460 = vmatprep.subr.bf16.mxu0 0
      %1461 = vmatpush1.bf16.msra.mxu0 %v1114
      %1462 = vmatprep.subr.bf16.mxu0 0
      %1463 = vmatpush1.bf16.msra.mxu0 %v1115
      %1464 = vmatprep.subr.bf16.mxu0 0
      %1465 = vmatpush1.bf16.msra.mxu0 0
      %1466 = vmatprep.subr.bf16.mxu0 0
      %1467 = vmatpush1.bf16.msra.mxu0 0
      %1468 = vmatprep.subr.bf16.mxu0 0
      %1469 = vmatpush1.bf16.msra.mxu0 0
      %1470 = vmatprep.subr.bf16.mxu0 0
      %1471 = vmatpush1.bf16.msra.mxu0 0
      %1472 = vmatprep.subr.bf16.mxu0 0
      %1473 = vmatpush1.bf16.msra.mxu0 0
      %1474 = vmatprep.subr.bf16.mxu0 0
      %1475 = vmatpush1.bf16.msra.mxu0 0
      %1476 = vmatprep.subr.bf16.mxu0 0
      %1477 = vmatpush1.bf16.msra.mxu0 0
      %1478 = vmatprep.subr.bf16.mxu0 0
      %1479 = vmatpush1.bf16.msra.mxu0 0
      %1480 = vmatprep.mubr.bf16.mxu0 0
      %1481 = vmatmul.mubr.bf16.gmra.mrb[0].mxu0 %v577
      %v1482 = vpop.f32.mrb[0].mxu0
      %v1483 = vadd.f32 %v1418, %v1482
      %v1484 = vpop.f32.mrb[0].mxu0
      %v1485 = vpop.f32.mrb[0].mxu0
      %v1486 = vadd.f32 %v1421, %v1485
      %v1487 = vpop.f32.mrb[0].mxu0
      %1488 = vmatprep.mubr.bf16.mxu0 0
      %1489 = vmatmul.mubr.bf16.gmra.mrb[0].mxu0 %v586
      %v1490 = vpop.f32.mrb[0].mxu0
      %v1491 = vadd.f32 %v1426, %v1490
      %v1492 = vpop.f32.mrb[0].mxu0
      %v1493 = vpop.f32.mrb[0].mxu0
      %v1494 = vadd.f32 %v1429, %v1493
      %v1495 = vpop.f32.mrb[0].mxu0
      %1496 = vmatprep.mubr.bf16.mxu0 0
      %1497 = vmatmul.mubr.bf16.gmra.mrb[0].mxu0 %v595
      %v1498 = vpop.f32.mrb[0].mxu0
      %v1499 = vadd.f32 %v1434, %v1498
      %v1500 = vpop.f32.mrb[0].mxu0
      %v1501 = vpop.f32.mrb[0].mxu0
      %v1502 = vadd.f32 %v1437, %v1501
      %v1503 = vpop.f32.mrb[0].mxu0
      %1504 = vmatprep.mubr.bf16.mxu0 0
      %1505 = vmatmul.mubr.bf16.gmra.mrb[0].mxu0 %v604
      %v1506 = vpop.f32.mrb[0].mxu0
      %v1507 = vadd.f32 %v1442, %v1506
      %v1508 = vpop.f32.mrb[0].mxu0
      %v1509 = vpop.f32.mrb[0].mxu0
      %v1510 = vadd.f32 %v1445, %v1509
      %v1511 = vpop.f32.mrb[0].mxu0
      %1512 = vdwg.mxu0
      %v1513 = vpack.c.bf16 %v1483, %v1483
      %v1514 = vpack.c.bf16 %v1486, %v1486
      %v1515 = vpack.c.bf16 %v1491, %v1491
      %v1516 = vpack.c.bf16 %v1494, %v1494
      %v1517 = vpack.c.bf16 %v1499, %v1499
      %v1518 = vpack.c.bf16 %v1502, %v1502
      %v1519 = vpack.c.bf16 %v1507, %v1507
      %v1520 = vpack.c.bf16 %v1510, %v1510
      %1521 = vst [vmem:[%s221] sm:$0xf] %v1513
      %1522 = vst [vmem:[%s221 + $0x4] sm:$0xf] %v1514
      %1523 = vst [vmem:[%s221 + $0x8] sm:$0xf] %v1515
      %1524 = vst [vmem:[%s221 + $0xc] sm:$0xf] %v1516
      %1525 = vst [vmem:[%s221 + $0x10] sm:$0xf] %v1517
      %1526 = vst [vmem:[%s221 + $0x14] sm:$0xf] %v1518
      %1527 = vst [vmem:[%s221 + $0x18] sm:$0xf] %v1519
      %1528 = vst [vmem:[%s221 + $0x1c] sm:$0xf] %v1520
      %p1529 = scmp.lt.s32.totalorder %s18, 1
      %s1530 = scalar_select %p1529, %s18, 1
      %p1531 = scmp.lt.s32.totalorder %s19, 0
      %s1532 = scalar_select %p1531, %s19, 0
      %s1533 = smul.addr %s1530, 8
      %s1534 = sadd.s32 %s1532, %s1533
      %s1535 = smul.addr %s1534, 4
      %s1536 = scalar_lea.vmem %s3, %s1535
      // Predicated region
      $region33: #{decoder_forward.4} parent=31 // pred_check
        %p1537 = pneg %p124
      $region34: #{decoder_forward.4} parent=31 // pred_check_branch
        %1539 = sbr.rel (%p1537) target = $region36
      $region35: #{decoder_forward.4} parent=31 // pred_region
        _
      $region36: #{decoder_forward.4} parent=31 // pred_fallthru
        _
    $region32: #{decoder_forward.4} parent=5 // pred_fallthru
      _
    %p1540 = scmp.le.s32.totalorder 2, %s9
    // Predicated region
    $region37: #{decoder_forward.4} parent=5 // pred_check
      %p1541 = pneg %p1540
    $region38: #{decoder_forward.4} parent=5 // pred_check_branch
      %1543 = sbr.rel (%p1541) target = $region40
    $region39: #{decoder_forward.4} parent=5 // pred_region
      %s1544 = ssub.s32 %s9, 2
      // Predicated region
      $region41: #{decoder_forward.4} parent=39 // pred_check
        %p1545 = pneg %p130
      $region42: #{decoder_forward.4} parent=39 // pred_check_branch
        %1547 = sbr.rel (%p1545) target = $region44
      $region43: #{decoder_forward.4} parent=39 // pred_region
        %p1548 = scmp.lt.s32.totalorder %s20, 1
        %s1549 = scalar_select %p1548, %s20, 1
        %p1550 = scmp.lt.s32.totalorder %s21, 0
        %s1551 = scalar_select %p1550, %s21, 0
        %s1552 = smul.addr %s1549, 8
        %s1553 = sadd.s32 %s1551, %s1552
        %s1554 = smul.addr %s1553, 4
        %s1555 = scalar_lea.vmem %s3, %s1554
      $region44: #{decoder_forward.4} parent=39 // pred_fallthru
        _
    $region40: #{decoder_forward.4} parent=5 // pred_fallthru
      _
  $region6: #{decoder_forward.4} parent=0 // loop_footer
    %s13 = sadd.s32 1, %s9
  $region7: #{decoder_forward.4} parent=0 // loop_footer_branch
    %8 = sbr.rel target = $region3
  $region8: #{decoder_forward.4} parent=0 // loop_exit
    _

// kernel: decoder_forward.5
$region0: #{decoder_forward.5}
  #allocation0 [shape = 'u32[]', space=smem, size = 0x4, offset = 0x4, fixed_abs, tag = 'smem constant byte address 0x4 - core index']
  #allocation1 [shape = 'u32[144,128]{1,0:T(1,128)}', space=vmem, size = 0x12000, scoped, tag = 'internal scratch']
  #allocation2 [shape = 'bf16[64,1152]{1,0:T(16,128)(2,1)}', space=vmem, size = 0x24000, scoped, tag = 'scratch operand']
  %s0 = inlined_call_operand.vmem [shape: bf16[2,10,10,128], index: 0, kind: input, shape index: {}]
  %s1 = inlined_call_operand.vmem [shape: bf16[1152,128], index: 1, kind: input, shape index: {}]
  %s2 = inlined_call_operand.vmem [shape: f32[1,128], index: 2, kind: input, shape index: {}]
  %s3 = inlined_call_operand.vmem [shape: bf16[128,128], index: 3, kind: input, shape index: {}]
  %s4 = inlined_call_operand.vmem [shape: f32[1,128], index: 4, kind: input, shape index: {}]
  %s5 = inlined_call_operand.vmem [shape: bf16[2,8,8,128], index: 5, kind: output, shape index: {}]
  %s6 = sld [smem:[#allocation0]]
  $region53: #{decoder_forward.5} parent=0
    _
  %s8 = ssub.s32 1, %s6
  %s9 = scalar_select 0, %s8, %s6
  loop: start=0, step=1, limit=4
  $region2: #{decoder_forward.5} parent=0 // loop_pre_header
    _
  $region3: #{decoder_forward.5} parent=0 // loop_header
    %s11 = sphi 0, %s15
    %p12 = scmp.ge.s32.totalorder %s11, 4
    %s21 = sphi 0, %s23
    %s24 = sphi 0, %s21
    %s25 = sphi 0, %s24
    %s41 = sphi 0, %s25
    %s45 = sphi 0, %s45
    %s47 = sphi 0, %s45
    %s48 = sphi 0, %s47
    %s62 = sphi 0, %s48
    %s66 = sphi 0, %s66
    %s68 = sphi 0, %s66
    %s69 = sphi 0, %s68
    %s83 = sphi 0, %s69
    %s87 = sphi 0, %s87
    %s89 = sphi 0, %s87
    %s90 = sphi 0, %s89
    %s104 = sphi 0, %s90
    %s108 = sphi 0, %s108
    %s110 = sphi 0, %s108
    %s111 = sphi 0, %s110
    %s125 = sphi 0, %s111
    %s131 = sphi 0, %s133
    %s134 = sphi 0, %s131
    %s135 = sphi 0, %s134
    %s151 = sphi 0, %s135
  $region4: #{decoder_forward.5} parent=0 // loop_header_branch
    %14 = sbr.rel (%p12) target = $region8
  $region5: #{decoder_forward.5} parent=0 // loop_body
    %s16 = ssub.s32 %s11, 1
    %s17 = ssub.s32 %s11, 2
    %s18 = sadd.s32 %s11, 1
    %s19 = ssub.s32 %s11, %s18
    %p20 = scmp.eq.s32.totalorder %s19, 0
    %s22 = sadd.s32 %s21, 1
    %s23 = scalar_select %p20, %s21, %s22
    %p26 = pneg %p20
    %p27 = scmp.eq.s32.totalorder %s11, 1
    %p28 = por %p26, %p27
    %p29 = scmp.ne.s32.totalorder %s21, %s24
    %p30 = scmp.eq.s32.totalorder %s11, 0
    %p31 = por %p29, %p30
    %p32 = scmp.ne.s32.totalorder %s21, %s24
    %p33 = scmp.eq.s32.totalorder %s16, 1
    %p34 = por %p32, %p33
    %p35 = scmp.ne.s32.totalorder %s24, %s25
    %p36 = scmp.eq.s32.totalorder %s16, 0
    %p37 = por %p35, %p36
    %p38 = scmp.ne.s32.totalorder %s24, %s25
    %p39 = scmp.eq.s32.totalorder %s17, 1
    %p40 = por %p38, %p39
    %p42 = scmp.ne.s32.totalorder %s25, %s41
    %p43 = scmp.eq.s32.totalorder %s17, 0
    %p44 = por %p42, %p43
    %s46 = sadd.s32 %s45, 1
    %p49 = scmp.eq.s32.totalorder %s11, 1
    %p50 = scmp.ne.s32.totalorder %s45, %s47
    %p51 = scmp.eq.s32.totalorder %s11, 0
    %p52 = por %p50, %p51
    %p53 = scmp.ne.s32.totalorder %s45, %s47
    %p54 = scmp.eq.s32.totalorder %s16, 1
    %p55 = por %p53, %p54
    %p56 = scmp.ne.s32.totalorder %s47, %s48
    %p57 = scmp.eq.s32.totalorder %s16, 0
    %p58 = por %p56, %p57
    %p59 = scmp.ne.s32.totalorder %s47, %s48
    %p60 = scmp.eq.s32.totalorder %s17, 1
    %p61 = por %p59, %p60
    %p63 = scmp.ne.s32.totalorder %s48, %s62
    %p64 = scmp.eq.s32.totalorder %s17, 0
    %p65 = por %p63, %p64
    %s67 = sadd.s32 %s66, 1
    %p70 = scmp.eq.s32.totalorder %s11, 1
    %p71 = scmp.ne.s32.totalorder %s66, %s68
    %p72 = scmp.eq.s32.totalorder %s11, 0
    %p73 = por %p71, %p72
    %p74 = scmp.ne.s32.totalorder %s66, %s68
    %p75 = scmp.eq.s32.totalorder %s16, 1
    %p76 = por %p74, %p75
    %p77 = scmp.ne.s32.totalorder %s68, %s69
    %p78 = scmp.eq.s32.totalorder %s16, 0
    %p79 = por %p77, %p78
    %p80 = scmp.ne.s32.totalorder %s68, %s69
    %p81 = scmp.eq.s32.totalorder %s17, 1
    %p82 = por %p80, %p81
    %p84 = scmp.ne.s32.totalorder %s69, %s83
    %p85 = scmp.eq.s32.totalorder %s17, 0
    %p86 = por %p84, %p85
    %s88 = sadd.s32 %s87, 1
    %p91 = scmp.eq.s32.totalorder %s11, 1
    %p92 = scmp.ne.s32.totalorder %s87, %s89
    %p93 = scmp.eq.s32.totalorder %s11, 0
    %p94 = por %p92, %p93
    %p95 = scmp.ne.s32.totalorder %s87, %s89
    %p96 = scmp.eq.s32.totalorder %s16, 1
    %p97 = por %p95, %p96
    %p98 = scmp.ne.s32.totalorder %s89, %s90
    %p99 = scmp.eq.s32.totalorder %s16, 0
    %p100 = por %p98, %p99
    %p101 = scmp.ne.s32.totalorder %s89, %s90
    %p102 = scmp.eq.s32.totalorder %s17, 1
    %p103 = por %p101, %p102
    %p105 = scmp.ne.s32.totalorder %s90, %s104
    %p106 = scmp.eq.s32.totalorder %s17, 0
    %p107 = por %p105, %p106
    %s109 = sadd.s32 %s108, 1
    %p112 = scmp.eq.s32.totalorder %s11, 1
    %p113 = scmp.ne.s32.totalorder %s108, %s110
    %p114 = scmp.eq.s32.totalorder %s11, 0
    %p115 = por %p113, %p114
    %p116 = scmp.ne.s32.totalorder %s108, %s110
    %p117 = scmp.eq.s32.totalorder %s16, 1
    %p118 = por %p116, %p117
    %p119 = scmp.ne.s32.totalorder %s110, %s111
    %p120 = scmp.eq.s32.totalorder %s16, 0
    %p121 = por %p119, %p120
    %p122 = scmp.ne.s32.totalorder %s110, %s111
    %p123 = scmp.eq.s32.totalorder %s17, 1
    %p124 = por %p122, %p123
    %p126 = scmp.ne.s32.totalorder %s111, %s125
    %p127 = scmp.eq.s32.totalorder %s17, 0
    %p128 = por %p126, %p127
    %s129 = ssub.s32 %s11, %s18
    %p130 = scmp.eq.s32.totalorder %s129, 0
    %s132 = sadd.s32 %s131, 1
    %s133 = scalar_select %p130, %s131, %s132
    %p136 = pneg %p130
    %p137 = scmp.eq.s32.totalorder %s11, 1
    %p138 = por %p136, %p137
    %p139 = scmp.ne.s32.totalorder %s131, %s134
    %p140 = scmp.eq.s32.totalorder %s11, 0
    %p141 = por %p139, %p140
    %p142 = scmp.ne.s32.totalorder %s131, %s134
    %p143 = scmp.eq.s32.totalorder %s16, 1
    %p144 = por %p142, %p143
    %p145 = scmp.ne.s32.totalorder %s134, %s135
    %p146 = scmp.eq.s32.totalorder %s16, 0
    %p147 = por %p145, %p146
    %p148 = scmp.ne.s32.totalorder %s134, %s135
    %p149 = scmp.eq.s32.totalorder %s17, 1
    %p150 = por %p148, %p149
    %p152 = scmp.ne.s32.totalorder %s135, %s151
    %p153 = scmp.eq.s32.totalorder %s17, 0
    %p154 = por %p152, %p153
    %p155 = scmp.le.s32.totalorder 1, %s11
    %p156 = scmp.lt.s32.totalorder %s11, 3
    %p157 = pnand %p155, %p156
    %p158 = pneg %p157
    // Predicated region
    $region9: #{decoder_forward.5} parent=5 // pred_check
      _
    $region10: #{decoder_forward.5} parent=5 // pred_check_branch
      %160 = sbr.rel (%p157) target = $region12
    $region11: #{decoder_forward.5} parent=5 // pred_region
      %s161 = ssub.s32 %s11, 1
      // Predicated region
      $region13: #{decoder_forward.5} parent=11 // pred_check
        %p162 = pneg %p58
      $region14: #{decoder_forward.5} parent=11 // pred_check_branch
        %164 = sbr.rel (%p162) target = $region16
      $region15: #{decoder_forward.5} parent=11 // pred_region
        _
      $region16: #{decoder_forward.5} parent=11 // pred_fallthru
        _
      // Predicated region
      $region17: #{decoder_forward.5} parent=11 // pred_check
        %p165 = pneg %p79
      $region18: #{decoder_forward.5} parent=11 // pred_check_branch
        %167 = sbr.rel (%p165) target = $region20
      $region19: #{decoder_forward.5} parent=11 // pred_region
        _
      $region20: #{decoder_forward.5} parent=11 // pred_fallthru
        _
      // Predicated region
      $region21: #{decoder_forward.5} parent=11 // pred_check
        %p168 = pneg %p100
      $region22: #{decoder_forward.5} parent=11 // pred_check_branch
        %170 = sbr.rel (%p168) target = $region24
      $region23: #{decoder_forward.5} parent=11 // pred_region
        _
      $region24: #{decoder_forward.5} parent=11 // pred_fallthru
        _
      // Predicated region
      $region25: #{decoder_forward.5} parent=11 // pred_check
        %p171 = pneg %p121
      $region26: #{decoder_forward.5} parent=11 // pred_check_branch
        %173 = sbr.rel (%p171) target = $region28
      $region27: #{decoder_forward.5} parent=11 // pred_region
        _
      $region28: #{decoder_forward.5} parent=11 // pred_fallthru
        _
    $region12: #{decoder_forward.5} parent=5 // pred_fallthru
      _
    %p174 = scmp.lt.s32.totalorder %s11, 2
    // Predicated region
    $region29: #{decoder_forward.5} parent=5 // pred_check
      %p175 = pneg %p174
    $region30: #{decoder_forward.5} parent=5 // pred_check_branch
      %177 = sbr.rel (%p175) target = $region32
    $region31: #{decoder_forward.5} parent=5 // pred_region
      // Predicated region
      $region33: #{decoder_forward.5} parent=31 // pred_check
        %p178 = pneg %p31
      $region34: #{decoder_forward.5} parent=31 // pred_check_branch
        %180 = sbr.rel (%p178) target = $region36
      $region35: #{decoder_forward.5} parent=31 // pred_region
        %p181 = scmp.lt.s32.totalorder %s11, 1
        %s182 = scalar_select %p181, %s11, 1
        %s183 = smul.addr %s182, 20
        %s184 = smul.addr %s183, 4
        %s185 = scalar_lea.vmem %s0, %s184
      $region36: #{decoder_forward.5} parent=31 // pred_fallthru
        _
    $region32: #{decoder_forward.5} parent=5 // pred_fallthru
      _
    %p186 = scmp.le.s32.totalorder 1, %s11
    %p187 = scmp.lt.s32.totalorder %s11, 3
    %p188 = pnand %p186, %p187
    %p189 = pneg %p188
    // Predicated region
    $region37: #{decoder_forward.5} parent=5 // pred_check
      _
    $region38: #{decoder_forward.5} parent=5 // pred_check_branch
      %191 = sbr.rel (%p188) target = $region40
    $region39: #{decoder_forward.5} parent=5 // pred_region
      %s192 = ssub.s32 %s11, 1
      %p193 = scmp.lt.s32.totalorder %s16, 1
      %s194 = scalar_select %p193, %s16, 1
      %s195 = smul.addr %s194, 20
      %s196 = smul.addr %s195, 4
      %s197 = scalar_lea.vmem %s0, %s196
      %p198 = pneg %p37
      %p199 = pneg %p34
      %p200 = pneg %p58
      %p201 = pneg %p55
      %p202 = pneg %p79
      %p203 = pneg %p76
      %p204 = pneg %p100
      %p205 = pneg %p97
      %p206 = pneg %p121
      %p207 = pneg %p118
      %p208 = pneg %p147
      %p209 = pneg %p144
      %p210 = scmp.lt.s32.totalorder %s16, 1
      %s211 = scalar_select %p210, %s16, 1
      %s212 = smul.addr %s211, 8
      %s213 = smul.addr %s212, 4
      %s214 = scalar_lea.vmem %s5, %s213
      %p215 = scmp.lt.s32.totalorder %s16, 1
      %s216 = scalar_select %p215, %s16, 1
      %s217 = smul.addr %s216, 20
      %s218 = smul.addr %s217, 4
      %s219 = scalar_lea.vmem %s0, %s218
      %p220 = scmp.lt.s32.totalorder %s16, 1
      %s221 = scalar_select %p220, %s16, 1
      %s222 = smul.addr %s221, 8
      %s223 = smul.addr %s222, 4
      %s224 = scalar_lea.vmem %s5, %s223
      %v226 = vld [vmem:[%s219] sm:$0xf]
      %v227 = vld [vmem:[%s219 + $0x4] sm:$0x1]
      %v228 = vld [vmem:[%s219 + $0x8] sm:$0xf]
      %v229 = vld [vmem:[%s219 + $0xc] sm:$0x1]
      %v230 = vld [vmem:[%s219 + $0x10] sm:$0xf]
      %v231 = vld [vmem:[%s219 + $0x14] sm:$0x1]
      %v232 = vld [vmem:[%s219 + $0x18] sm:$0xf]
      %v233 = vld [vmem:[%s219 + $0x1c] sm:$0x1]
      %v234 = vld [vmem:[%s219 + $0x20] sm:$0xf]
      %v235 = vld [vmem:[%s219 + $0x24] sm:$0x1]
      %v236 = vld [vmem:[%s219 + $0x28] sm:$0xf]
      %v237 = vld [vmem:[%s219 + $0x2c] sm:$0x1]
      %v238 = vld [vmem:[%s219 + $0x30] sm:$0xf]
      %v239 = vld [vmem:[%s219 + $0x34] sm:$0x1]
      %v240 = vld [vmem:[%s219 + $0x38] sm:$0xf]
      %v241 = vld [vmem:[%s219 + $0x3c] sm:$0x1]
      %v242 = vld [vmem:[%s219 + $0x40] sm:$0xf]
      %v243 = vld [vmem:[%s219 + $0x44] sm:$0x1]
      %v244 = vld [vmem:[%s219 + $0x48] sm:$0xf]
      %v245 = vld [vmem:[%s219 + $0x4c] sm:$0x1]
      %v246 = vmax.bf16 %v226, 0
      %v247 = vmax.bf16 %v227, 0
      %v248 = vmax.bf16 %v228, 0
      %v249 = vmax.bf16 %v229, 0
      %v250 = vmax.bf16 %v230, 0
      %v251 = vmax.bf16 %v231, 0
      %v252 = vmax.bf16 %v232, 0
      %v253 = vmax.bf16 %v233, 0
      %v254 = vmax.bf16 %v234, 0
      %v255 = vmax.bf16 %v235, 0
      %v256 = vmax.bf16 %v236, 0
      %v257 = vmax.bf16 %v237, 0
      %v258 = vmax.bf16 %v238, 0
      %v259 = vmax.bf16 %v239, 0
      %v260 = vmax.bf16 %v240, 0
      %v261 = vmax.bf16 %v241, 0
      %v262 = vmax.bf16 %v242, 0
      %v263 = vmax.bf16 %v243, 0
      %v264 = vmax.bf16 %v244, 0
      %v265 = vmax.bf16 %v245, 0
      %v274 = vunpack.c.l.b16 %v246
      %v275 = vunpack.c.l.b16 %v248
      %v276 = vunpack.c.l.b16 %v250
      %v277 = vunpack.c.l.b16 %v252
      %v278 = vunpack.c.l.b16 %v254
      %v279 = vunpack.c.l.b16 %v256
      %v280 = vunpack.c.l.b16 %v258
      %v281 = vunpack.c.l.b16 %v260
      %v282 = vpack.c.b16 %v275, %v274
      %v283 = vpack.c.b16 %v277, %v276
      %v284 = vpack.c.b16 %v279, %v278
      %v285 = vpack.c.b16 %v281, %v280
      %290 = vst [vmem:[#allocation2] sm:$0xff] %v282
      %291 = vst [vmem:[#allocation2 + $0x48] sm:$0xff] %v283
      %292 = vst [vmem:[#allocation2 + $0x90] sm:$0xff] %v284
      %293 = vst [vmem:[#allocation2 + $0xd8] sm:$0xff] %v285
      %vm294 = vsmask.f32 3328
      %vm295 = vsmask.f32 7440
      %vm296 = vmor %vm294, %vm295
      %v298 = vshrl.u32 %v246, 16
      %v300 = vrot.slane %v298, 4
      %v301 = vshll.u32 %v246, 16
      %v303 = vrot.slane %v301, 5
      %v304 = vor.u32 %v300, %v303
      %v305 = vrot.slane %v304, 4
      %v307 = vshll.u32 %v247, 16
      %v309 = vrot.slane %v307, 5
      %v310 = vsel %vm296, %v305, %v309
      %v312 = vshrl.u32 %v248, 16
      %v314 = vrot.slane %v312, 4
      %v315 = vshll.u32 %v248, 16
      %v317 = vrot.slane %v315, 5
      %v318 = vor.u32 %v314, %v317
      %v319 = vrot.slane %v318, 4
      %v321 = vshll.u32 %v249, 16
      %v323 = vrot.slane %v321, 5
      %v324 = vsel %vm296, %v319, %v323
      %v326 = vshrl.u32 %v250, 16
      %v328 = vrot.slane %v326, 4
      %v329 = vshll.u32 %v250, 16
      %v331 = vrot.slane %v329, 5
      %v332 = vor.u32 %v328, %v331
      %v333 = vrot.slane %v332, 4
      %v335 = vshll.u32 %v251, 16
      %v337 = vrot.slane %v335, 5
      %v338 = vsel %vm296, %v333, %v337
      %v340 = vshrl.u32 %v252, 16
      %v342 = vrot.slane %v340, 4
      %v343 = vshll.u32 %v252, 16
      %v345 = vrot.slane %v343, 5
      %v346 = vor.u32 %v342, %v345
      %v347 = vrot.slane %v346, 4
      %v349 = vshll.u32 %v253, 16
      %v351 = vrot.slane %v349, 5
      %v352 = vsel %vm296, %v347, %v351
      %v354 = vshrl.u32 %v254, 16
      %v356 = vrot.slane %v354, 4
      %v357 = vshll.u32 %v254, 16
      %v359 = vrot.slane %v357, 5
      %v360 = vor.u32 %v356, %v359
      %v361 = vrot.slane %v360, 4
      %v363 = vshll.u32 %v255, 16
      %v365 = vrot.slane %v363, 5
      %v366 = vsel %vm296, %v361, %v365
      %v368 = vshrl.u32 %v256, 16
      %v370 = vrot.slane %v368, 4
      %v371 = vshll.u32 %v256, 16
      %v373 = vrot.slane %v371, 5
      %v374 = vor.u32 %v370, %v373
      %v375 = vrot.slane %v374, 4
      %v377 = vshll.u32 %v257, 16
      %v379 = vrot.slane %v377, 5
      %v380 = vsel %vm296, %v375, %v379
      %v382 = vshrl.u32 %v258, 16
      %v384 = vrot.slane %v382, 4
      %v385 = vshll.u32 %v258, 16
      %v387 = vrot.slane %v385, 5
      %v388 = vor.u32 %v384, %v387
      %v389 = vrot.slane %v388, 4
      %v391 = vshll.u32 %v259, 16
      %v393 = vrot.slane %v391, 5
      %v394 = vsel %vm296, %v389, %v393
      %v396 = vshrl.u32 %v260, 16
      %v398 = vrot.slane %v396, 4
      %v399 = vshll.u32 %v260, 16
      %v401 = vrot.slane %v399, 5
      %v402 = vor.u32 %v398, %v401
      %v403 = vrot.slane %v402, 4
      %v405 = vshll.u32 %v261, 16
      %v407 = vrot.slane %v405, 5
      %v408 = vsel %vm296, %v403, %v407
      %v409 = vunpack.c.l.b16 %v310
      %v410 = vunpack.c.l.b16 %v324
      %v411 = vunpack.c.l.b16 %v338
      %v412 = vunpack.c.l.b16 %v352
      %v413 = vunpack.c.l.b16 %v366
      %v414 = vunpack.c.l.b16 %v380
      %v415 = vunpack.c.l.b16 %v394
      %v416 = vunpack.c.l.b16 %v408
      %v417 = vpack.c.b16 %v410, %v409
      %v418 = vpack.c.b16 %v412, %v411
      %v419 = vpack.c.b16 %v414, %v413
      %v420 = vpack.c.b16 %v416, %v415
      %425 = vst [vmem:[#allocation2 + $0x8] sm:$0xff] %v417
      %426 = vst [vmem:[#allocation2 + $0x50] sm:$0xff] %v418
      %427 = vst [vmem:[#allocation2 + $0x98] sm:$0xff] %v419
      %428 = vst [vmem:[#allocation2 + $0xe0] sm:$0xff] %v420
      %vm437 = vcmask 1042432
      %vm438 = vcmask 1046532
      %vm439 = vmor %vm437, %vm438
      %v440 = vrot.slane %v246, 5
      %v441 = vrot.slane %v440, 4
      %v442 = vrot.slane %v247, 5
      %v443 = vsel %vm439, %v441, %v442
      %v444 = vrot.slane %v248, 5
      %v445 = vrot.slane %v444, 4
      %v446 = vrot.slane %v249, 5
      %v447 = vsel %vm439, %v445, %v446
      %v448 = vrot.slane %v250, 5
      %v449 = vrot.slane %v448, 4
      %v450 = vrot.slane %v251, 5
      %v451 = vsel %vm439, %v449, %v450
      %v452 = vrot.slane %v252, 5
      %v453 = vrot.slane %v452, 4
      %v454 = vrot.slane %v253, 5
      %v455 = vsel %vm439, %v453, %v454
      %v456 = vrot.slane %v254, 5
      %v457 = vrot.slane %v456, 4
      %v458 = vrot.slane %v255, 5
      %v459 = vsel %vm439, %v457, %v458
      %v460 = vrot.slane %v256, 5
      %v461 = vrot.slane %v460, 4
      %v462 = vrot.slane %v257, 5
      %v463 = vsel %vm439, %v461, %v462
      %v464 = vrot.slane %v258, 5
      %v465 = vrot.slane %v464, 4
      %v466 = vrot.slane %v259, 5
      %v467 = vsel %vm439, %v465, %v466
      %v468 = vrot.slane %v260, 5
      %v469 = vrot.slane %v468, 4
      %v470 = vrot.slane %v261, 5
      %v471 = vsel %vm439, %v469, %v470
      %v472 = vunpack.c.l.b16 %v443
      %v473 = vunpack.c.l.b16 %v447
      %v474 = vunpack.c.l.b16 %v451
      %v475 = vunpack.c.l.b16 %v455
      %v476 = vunpack.c.l.b16 %v459
      %v477 = vunpack.c.l.b16 %v463
      %v478 = vunpack.c.l.b16 %v467
      %v479 = vunpack.c.l.b16 %v471
      %v480 = vpack.c.b16 %v473, %v472
      %v481 = vpack.c.b16 %v475, %v474
      %v482 = vpack.c.b16 %v477, %v476
      %v483 = vpack.c.b16 %v479, %v478
      %488 = vst [vmem:[#allocation2 + $0x10] sm:$0xff] %v480
      %489 = vst [vmem:[#allocation2 + $0x58] sm:$0xff] %v481
      %490 = vst [vmem:[#allocation2 + $0xa0] sm:$0xff] %v482
      %491 = vst [vmem:[#allocation2 + $0xe8] sm:$0xff] %v483
      %v493 = vunpack.c.l.b16 %v262
      %v494 = vpack.c.b16 %v276, %v275
      %v495 = vpack.c.b16 %v278, %v277
      %v496 = vpack.c.b16 %v280, %v279
      %v497 = vpack.c.b16 %v493, %v281
      %502 = vst [vmem:[#allocation2 + $0x18] sm:$0xff] %v494
      %503 = vst [vmem:[#allocation2 + $0x60] sm:$0xff] %v495
      %504 = vst [vmem:[#allocation2 + $0xa8] sm:$0xff] %v496
      %505 = vst [vmem:[#allocation2 + $0xf0] sm:$0xff] %v497
      %v507 = vshrl.u32 %v262, 16
      %v509 = vrot.slane %v507, 4
      %v510 = vshll.u32 %v262, 16
      %v512 = vrot.slane %v510, 5
      %v513 = vor.u32 %v509, %v512
      %v514 = vrot.slane %v513, 4
      %v516 = vshll.u32 %v263, 16
      %v518 = vrot.slane %v516, 5
      %v519 = vsel %vm296, %v514, %v518
      %v520 = vunpack.c.l.b16 %v519
      %v521 = vpack.c.b16 %v411, %v410
      %v522 = vpack.c.b16 %v413, %v412
      %v523 = vpack.c.b16 %v415, %v414
      %v524 = vpack.c.b16 %v520, %v416
      %529 = vst [vmem:[#allocation2 + $0x20] sm:$0xff] %v521
      %530 = vst [vmem:[#allocation2 + $0x68] sm:$0xff] %v522
      %531 = vst [vmem:[#allocation2 + $0xb0] sm:$0xff] %v523
      %532 = vst [vmem:[#allocation2 + $0xf8] sm:$0xff] %v524
      %v534 = vrot.slane %v262, 5
      %v535 = vrot.slane %v534, 4
      %v536 = vrot.slane %v263, 5
      %v537 = vsel %vm439, %v535, %v536
      %v538 = vunpack.c.l.b16 %v537
      %v539 = vpack.c.b16 %v474, %v473
      %v540 = vpack.c.b16 %v476, %v475
      %v541 = vpack.c.b16 %v478, %v477
      %v542 = vpack.c.b16 %v538, %v479
      %547 = vst [vmem:[#allocation2 + $0x28] sm:$0xff] %v539
      %548 = vst [vmem:[#allocation2 + $0x70] sm:$0xff] %v540
      %549 = vst [vmem:[#allocation2 + $0xb8] sm:$0xff] %v541
      %550 = vst [vmem:[#allocation2 + $0x100] sm:$0xff] %v542
      %v552 = vunpack.c.l.b16 %v264
      %v553 = vpack.c.b16 %v552, %v493
      %555 = vst [vmem:[#allocation2 + $0x30] sm:$0xff] %v283
      %556 = vst [vmem:[#allocation2 + $0x78] sm:$0xff] %v284
      %557 = vst [vmem:[#allocation2 + $0xc0] sm:$0xff] %v285
      %558 = vst [vmem:[#allocation2 + $0x108] sm:$0xff] %v553
      %v560 = vshrl.u32 %v264, 16
      %v562 = vrot.slane %v560, 4
      %v563 = vshll.u32 %v264, 16
      %v565 = vrot.slane %v563, 5
      %v566 = vor.u32 %v562, %v565
      %v567 = vrot.slane %v566, 4
      %v569 = vshll.u32 %v265, 16
      %v571 = vrot.slane %v569, 5
      %v572 = vsel %vm296, %v567, %v571
      %v573 = vunpack.c.l.b16 %v572
      %v574 = vpack.c.b16 %v573, %v520
      %576 = vst [vmem:[#allocation2 + $0x38] sm:$0xff] %v418
      %577 = vst [vmem:[#allocation2 + $0x80] sm:$0xff] %v419
      %578 = vst [vmem:[#allocation2 + $0xc8] sm:$0xff] %v420
      %579 = vst [vmem:[#allocation2 + $0x110] sm:$0xff] %v574
      %v581 = vrot.slane %v264, 5
      %v582 = vrot.slane %v581, 4
      %v583 = vrot.slane %v265, 5
      %v584 = vsel %vm439, %v582, %v583
      %v585 = vunpack.c.l.b16 %v584
      %v586 = vpack.c.b16 %v585, %v538
      %588 = vst [vmem:[#allocation2 + $0x40] sm:$0xff] %v481
      %589 = vst [vmem:[#allocation2 + $0x88] sm:$0xff] %v482
      %590 = vst [vmem:[#allocation2 + $0xd0] sm:$0xff] %v483
      %591 = vst [vmem:[#allocation2 + $0x118] sm:$0xff] %v586
      %v592 = vld [vmem:[#allocation2] sm:$0xff]
      %v593 = vld [vmem:[#allocation2 + $0x8] sm:$0xff]
      %v594 = vld [vmem:[#allocation2 + $0x10] sm:$0xff]
      %v595 = vld [vmem:[#allocation2 + $0x18] sm:$0xff]
      %v596 = vld [vmem:[#allocation2 + $0x20] sm:$0xff]
      %v597 = vld [vmem:[#allocation2 + $0x28] sm:$0xff]
      %v598 = vld [vmem:[#allocation2 + $0x30] sm:$0xff]
      %v599 = vld [vmem:[#allocation2 + $0x38] sm:$0xff]
      %v600 = vld [vmem:[#allocation2 + $0x40] sm:$0xff]
      %v601 = vld [vmem:[#allocation2 + $0x48] sm:$0xff]
      %v602 = vld [vmem:[#allocation2 + $0x50] sm:$0xff]
      %v603 = vld [vmem:[#allocation2 + $0x58] sm:$0xff]
      %v604 = vld [vmem:[#allocation2 + $0x60] sm:$0xff]
      %v605 = vld [vmem:[#allocation2 + $0x68] sm:$0xff]
      %v606 = vld [vmem:[#allocation2 + $0x70] sm:$0xff]
      %v607 = vld [vmem:[#allocation2 + $0x78] sm:$0xff]
      %v608 = vld [vmem:[#allocation2 + $0x80] sm:$0xff]
      %v609 = vld [vmem:[#allocation2 + $0x88] sm:$0xff]
      %v610 = vld [vmem:[#allocation2 + $0x90] sm:$0xff]
      %v611 = vld [vmem:[#allocation2 + $0x98] sm:$0xff]
      %v612 = vld [vmem:[#allocation2 + $0xa0] sm:$0xff]
      %v613 = vld [vmem:[#allocation2 + $0xa8] sm:$0xff]
      %v614 = vld [vmem:[#allocation2 + $0xb0] sm:$0xff]
      %v615 = vld [vmem:[#allocation2 + $0xb8] sm:$0xff]
      %v616 = vld [vmem:[#allocation2 + $0xc0] sm:$0xff]
      %v617 = vld [vmem:[#allocation2 + $0xc8] sm:$0xff]
      %v618 = vld [vmem:[#allocation2 + $0xd0] sm:$0xff]
      %v619 = vld [vmem:[#allocation2 + $0xd8] sm:$0xff]
      %v620 = vld [vmem:[#allocation2 + $0xe0] sm:$0xff]
      %v621 = vld [vmem:[#allocation2 + $0xe8] sm:$0xff]
      %v622 = vld [vmem:[#allocation2 + $0xf0] sm:$0xff]
      %v623 = vld [vmem:[#allocation2 + $0xf8] sm:$0xff]
      %v624 = vld [vmem:[#allocation2 + $0x100] sm:$0xff]
      %v625 = vld [vmem:[#allocation2 + $0x108] sm:$0xff]
      %v626 = vld [vmem:[#allocation2 + $0x110] sm:$0xff]
      %v627 = vld [vmem:[#allocation2 + $0x118] sm:$0xff]
      %v628 = vld [vmem:[%s1] sm:$0xf]
      %v629 = vld [vmem:[%s1 + $0x4] sm:$0xf]
      %v630 = vld [vmem:[%s1 + $0x8] sm:$0xf]
      %v631 = vld [vmem:[%s1 + $0xc] sm:$0xf]
      %v632 = vld [vmem:[%s1 + $0x10] sm:$0xf]
      %v633 = vld [vmem:[%s1 + $0x14] sm:$0xf]
      %v634 = vld [vmem:[%s1 + $0x18] sm:$0xf]
      %v635 = vld [vmem:[%s1 + $0x1c] sm:$0xf]
      %v636 = vld [vmem:[%s1 + $0x20] sm:$0xf]
      %v637 = vld [vmem:[%s1 + $0x24] sm:$0xf]
      %v638 = vld [vmem:[%s1 + $0x28] sm:$0xf]
      %v639 = vld [vmem:[%s1 + $0x2c] sm:$0xf]
      %v640 = vld [vmem:[%s1 + $0x30] sm:$0xf]
      %v641 = vld [vmem:[%s1 + $0x34] sm:$0xf]
      %v642 = vld [vmem:[%s1 + $0x38] sm:$0xf]
      %v643 = vld [vmem:[%s1 + $0x3c] sm:$0xf]
      %v644 = vld [vmem:[%s1 + $0x40] sm:$0xf]
      %v645 = vld [vmem:[%s1 + $0x44] sm:$0xf]
      %v646 = vld [vmem:[%s1 + $0x48] sm:$0xf]
      %v647 = vld [vmem:[%s1 + $0x4c] sm:$0xf]
      %v648 = vld [vmem:[%s1 + $0x50] sm:$0xf]
      %v649 = vld [vmem:[%s1 + $0x54] sm:$0xf]
      %v650 = vld [vmem:[%s1 + $0x58] sm:$0xf]
      %v651 = vld [vmem:[%s1 + $0x5c] sm:$0xf]
      %v652 = vld [vmem:[%s1 + $0x60] sm:$0xf]
      %v653 = vld [vmem:[%s1 + $0x64] sm:$0xf]
      %v654 = vld [vmem:[%s1 + $0x68] sm:$0xf]
      %v655 = vld [vmem:[%s1 + $0x6c] sm:$0xf]
      %v656 = vld [vmem:[%s1 + $0x70] sm:$0xf]
      %v657 = vld [vmem:[%s1 + $0x74] sm:$0xf]
      %v658 = vld [vmem:[%s1 + $0x78] sm:$0xf]
      %v659 = vld [vmem:[%s1 + $0x7c] sm:$0xf]
      %v660 = vld [vmem:[%s1 + $0x80] sm:$0xf]
      %v661 = vld [vmem:[%s1 + $0x84] sm:$0xf]
      %v662 = vld [vmem:[%s1 + $0x88] sm:$0xf]
      %v663 = vld [vmem:[%s1 + $0x8c] sm:$0xf]
      %v664 = vld [vmem:[%s1 + $0x90] sm:$0xf]
      %v665 = vld [vmem:[%s1 + $0x94] sm:$0xf]
      %v666 = vld [vmem:[%s1 + $0x98] sm:$0xf]
      %v667 = vld [vmem:[%s1 + $0x9c] sm:$0xf]
      %v668 = vld [vmem:[%s1 + $0xa0] sm:$0xf]
      %v669 = vld [vmem:[%s1 + $0xa4] sm:$0xf]
      %v670 = vld [vmem:[%s1 + $0xa8] sm:$0xf]
      %v671 = vld [vmem:[%s1 + $0xac] sm:$0xf]
      %v672 = vld [vmem:[%s1 + $0xb0] sm:$0xf]
      %v673 = vld [vmem:[%s1 + $0xb4] sm:$0xf]
      %v674 = vld [vmem:[%s1 + $0xb8] sm:$0xf]
      %v675 = vld [vmem:[%s1 + $0xbc] sm:$0xf]
      %v676 = vld [vmem:[%s1 + $0xc0] sm:$0xf]
      %v677 = vld [vmem:[%s1 + $0xc4] sm:$0xf]
      %v678 = vld [vmem:[%s1 + $0xc8] sm:$0xf]
      %v679 = vld [vmem:[%s1 + $0xcc] sm:$0xf]
      %v680 = vld [vmem:[%s1 + $0xd0] sm:$0xf]
      %v681 = vld [vmem:[%s1 + $0xd4] sm:$0xf]
      %v682 = vld [vmem:[%s1 + $0xd8] sm:$0xf]
      %v683 = vld [vmem:[%s1 + $0xdc] sm:$0xf]
      %v684 = vld [vmem:[%s1 + $0xe0] sm:$0xf]
      %v685 = vld [vmem:[%s1 + $0xe4] sm:$0xf]
      %v686 = vld [vmem:[%s1 + $0xe8] sm:$0xf]
      %v687 = vld [vmem:[%s1 + $0xec] sm:$0xf]
      %v688 = vld [vmem:[%s1 + $0xf0] sm:$0xf]
      %v689 = vld [vmem:[%s1 + $0xf4] sm:$0xf]
      %v690 = vld [vmem:[%s1 + $0xf8] sm:$0xf]
      %v691 = vld [vmem:[%s1 + $0xfc] sm:$0xf]
      %v692 = vld [vmem:[%s1 + $0x100] sm:$0xf]
      %v693 = vld [vmem:[%s1 + $0x104] sm:$0xf]
      %v694 = vld [vmem:[%s1 + $0x108] sm:$0xf]
      %v695 = vld [vmem:[%s1 + $0x10c] sm:$0xf]
      %v696 = vld [vmem:[%s1 + $0x110] sm:$0xf]
      %v697 = vld [vmem:[%s1 + $0x114] sm:$0xf]
      %v698 = vld [vmem:[%s1 + $0x118] sm:$0xf]
      %v699 = vld [vmem:[%s1 + $0x11c] sm:$0xf]
      %v700 = vld [vmem:[%s1 + $0x120] sm:$0xf]
      %v701 = vld [vmem:[%s1 + $0x124] sm:$0xf]
      %v702 = vld [vmem:[%s1 + $0x128] sm:$0xf]
      %v703 = vld [vmem:[%s1 + $0x12c] sm:$0xf]
      %v704 = vld [vmem:[%s1 + $0x130] sm:$0xf]
      %v705 = vld [vmem:[%s1 + $0x134] sm:$0xf]
      %v706 = vld [vmem:[%s1 + $0x138] sm:$0xf]
      %v707 = vld [vmem:[%s1 + $0x13c] sm:$0xf]
      %v708 = vld [vmem:[%s1 + $0x140] sm:$0xf]
      %v709 = vld [vmem:[%s1 + $0x144] sm:$0xf]
      %v710 = vld [vmem:[%s1 + $0x148] sm:$0xf]
      %v711 = vld [vmem:[%s1 + $0x14c] sm:$0xf]
      %v712 = vld [vmem:[%s1 + $0x150] sm:$0xf]
      %v713 = vld [vmem:[%s1 + $0x154] sm:$0xf]
      %v714 = vld [vmem:[%s1 + $0x158] sm:$0xf]
      %v715 = vld [vmem:[%s1 + $0x15c] sm:$0xf]
      %v716 = vld [vmem:[%s1 + $0x160] sm:$0xf]
      %v717 = vld [vmem:[%s1 + $0x164] sm:$0xf]
      %v718 = vld [vmem:[%s1 + $0x168] sm:$0xf]
      %v719 = vld [vmem:[%s1 + $0x16c] sm:$0xf]
      %v720 = vld [vmem:[%s1 + $0x170] sm:$0xf]
      %v721 = vld [vmem:[%s1 + $0x174] sm:$0xf]
      %v722 = vld [vmem:[%s1 + $0x178] sm:$0xf]
      %v723 = vld [vmem:[%s1 + $0x17c] sm:$0xf]
      %v724 = vld [vmem:[%s1 + $0x180] sm:$0xf]
      %v725 = vld [vmem:[%s1 + $0x184] sm:$0xf]
      %v726 = vld [vmem:[%s1 + $0x188] sm:$0xf]
      %v727 = vld [vmem:[%s1 + $0x18c] sm:$0xf]
      %v728 = vld [vmem:[%s1 + $0x190] sm:$0xf]
      %v729 = vld [vmem:[%s1 + $0x194] sm:$0xf]
      %v730 = vld [vmem:[%s1 + $0x198] sm:$0xf]
      %v731 = vld [vmem:[%s1 + $0x19c] sm:$0xf]
      %v732 = vld [vmem:[%s1 + $0x1a0] sm:$0xf]
      %v733 = vld [vmem:[%s1 + $0x1a4] sm:$0xf]
      %v734 = vld [vmem:[%s1 + $0x1a8] sm:$0xf]
      %v735 = vld [vmem:[%s1 + $0x1ac] sm:$0xf]
      %v736 = vld [vmem:[%s1 + $0x1b0] sm:$0xf]
      %v737 = vld [vmem:[%s1 + $0x1b4] sm:$0xf]
      %v738 = vld [vmem:[%s1 + $0x1b8] sm:$0xf]
      %v739 = vld [vmem:[%s1 + $0x1bc] sm:$0xf]
      %v740 = vld [vmem:[%s1 + $0x1c0] sm:$0xf]
      %v741 = vld [vmem:[%s1 + $0x1c4] sm:$0xf]
      %v742 = vld [vmem:[%s1 + $0x1c8] sm:$0xf]
      %v743 = vld [vmem:[%s1 + $0x1cc] sm:$0xf]
      %v744 = vld [vmem:[%s1 + $0x1d0] sm:$0xf]
      %v745 = vld [vmem:[%s1 + $0x1d4] sm:$0xf]
      %v746 = vld [vmem:[%s1 + $0x1d8] sm:$0xf]
      %v747 = vld [vmem:[%s1 + $0x1dc] sm:$0xf]
      %v748 = vld [vmem:[%s1 + $0x1e0] sm:$0xf]
      %v749 = vld [vmem:[%s1 + $0x1e4] sm:$0xf]
      %v750 = vld [vmem:[%s1 + $0x1e8] sm:$0xf]
      %v751 = vld [vmem:[%s1 + $0x1ec] sm:$0xf]
      %v752 = vld [vmem:[%s1 + $0x1f0] sm:$0xf]
      %v753 = vld [vmem:[%s1 + $0x1f4] sm:$0xf]
      %v754 = vld [vmem:[%s1 + $0x1f8] sm:$0xf]
      %v755 = vld [vmem:[%s1 + $0x1fc] sm:$0xf]
      %v756 = vld [vmem:[%s1 + $0x200] sm:$0xf]
      %v757 = vld [vmem:[%s1 + $0x204] sm:$0xf]
      %v758 = vld [vmem:[%s1 + $0x208] sm:$0xf]
      %v759 = vld [vmem:[%s1 + $0x20c] sm:$0xf]
      %v760 = vld [vmem:[%s1 + $0x210] sm:$0xf]
      %v761 = vld [vmem:[%s1 + $0x214] sm:$0xf]
      %v762 = vld [vmem:[%s1 + $0x218] sm:$0xf]
      %v763 = vld [vmem:[%s1 + $0x21c] sm:$0xf]
      %v764 = vld [vmem:[%s1 + $0x220] sm:$0xf]
      %v765 = vld [vmem:[%s1 + $0x224] sm:$0xf]
      %v766 = vld [vmem:[%s1 + $0x228] sm:$0xf]
      %v767 = vld [vmem:[%s1 + $0x22c] sm:$0xf]
      %v768 = vld [vmem:[%s1 + $0x230] sm:$0xf]
      %v769 = vld [vmem:[%s1 + $0x234] sm:$0xf]
      %v770 = vld [vmem:[%s1 + $0x238] sm:$0xf]
      %v771 = vld [vmem:[%s1 + $0x23c] sm:$0xf]
      %v772 = vld [vmem:[%s2] sm:$0x1]
      %v774 = vlaneseq
      %v775 = vshrl.u32 %v774, 7
      %v776 = vsub.s32 0, %v775
      %v777 = vrot.slane %v772, %v776
      %v923 = vunpack.c.l.b16 %v628
      %v924 = vunpack.c.l.b16 %v629
      %v925 = vunpack.c.l.b16 %v630
      %v926 = vunpack.c.l.b16 %v631
      %v927 = vunpack.c.l.b16 %v632
      %v928 = vunpack.c.l.b16 %v633
      %v929 = vunpack.c.l.b16 %v634
      %v930 = vunpack.c.l.b16 %v635
      %v931 = vunpack.c.l.b16 %v636
      %v932 = vunpack.c.l.b16 %v637
      %v933 = vunpack.c.l.b16 %v638
      %v934 = vunpack.c.l.b16 %v639
      %v935 = vunpack.c.l.b16 %v640
      %v936 = vunpack.c.l.b16 %v641
      %v937 = vunpack.c.l.b16 %v642
      %v938 = vunpack.c.l.b16 %v643
      %v939 = vunpack.c.l.b16 %v644
      %v940 = vunpack.c.l.b16 %v645
      %v941 = vunpack.c.l.b16 %v646
      %v942 = vunpack.c.l.b16 %v647
      %v943 = vunpack.c.l.b16 %v648
      %v944 = vunpack.c.l.b16 %v649
      %v945 = vunpack.c.l.b16 %v650
      %v946 = vunpack.c.l.b16 %v651
      %v947 = vunpack.c.l.b16 %v652
      %v948 = vunpack.c.l.b16 %v653
      %v949 = vunpack.c.l.b16 %v654
      %v950 = vunpack.c.l.b16 %v655
      %v951 = vunpack.c.l.b16 %v656
      %v952 = vunpack.c.l.b16 %v657
      %v953 = vunpack.c.l.b16 %v658
      %v954 = vunpack.c.l.b16 %v659
      %v955 = vunpack.c.l.b16 %v660
      %v956 = vunpack.c.l.b16 %v661
      %v957 = vunpack.c.l.b16 %v662
      %v958 = vunpack.c.l.b16 %v663
      %v959 = vunpack.c.l.b16 %v664
      %v960 = vunpack.c.l.b16 %v665
      %v961 = vunpack.c.l.b16 %v666
      %v962 = vunpack.c.l.b16 %v667
      %v963 = vunpack.c.l.b16 %v668
      %v964 = vunpack.c.l.b16 %v669
      %v965 = vunpack.c.l.b16 %v670
      %v966 = vunpack.c.l.b16 %v671
      %v967 = vunpack.c.l.b16 %v672
      %v968 = vunpack.c.l.b16 %v673
      %v969 = vunpack.c.l.b16 %v674
      %v970 = vunpack.c.l.b16 %v675
      %v971 = vunpack.c.l.b16 %v676
      %v972 = vunpack.c.l.b16 %v677
      %v973 = vunpack.c.l.b16 %v678
      %v974 = vunpack.c.l.b16 %v679
      %v975 = vunpack.c.l.b16 %v680
      %v976 = vunpack.c.l.b16 %v681
      %v977 = vunpack.c.l.b16 %v682
      %v978 = vunpack.c.l.b16 %v683
      %v979 = vunpack.c.l.b16 %v684
      %v980 = vunpack.c.l.b16 %v685
      %v981 = vunpack.c.l.b16 %v686
      %v982 = vunpack.c.l.b16 %v687
      %v983 = vunpack.c.l.b16 %v688
      %v984 = vunpack.c.l.b16 %v689
      %v985 = vunpack.c.l.b16 %v690
      %v986 = vunpack.c.l.b16 %v691
      %v987 = vunpack.c.l.b16 %v692
      %v988 = vunpack.c.l.b16 %v693
      %v989 = vunpack.c.l.b16 %v694
      %v990 = vunpack.c.l.b16 %v695
      %v991 = vunpack.c.l.b16 %v696
      %v992 = vunpack.c.l.b16 %v697
      %v993 = vunpack.c.l.b16 %v698
      %v994 = vunpack.c.l.b16 %v699
      %v995 = vunpack.c.l.b16 %v700
      %v996 = vunpack.c.l.b16 %v701
      %v997 = vunpack.c.l.b16 %v702
      %v998 = vunpack.c.l.b16 %v703
      %v999 = vunpack.c.l.b16 %v704
      %v1000 = vunpack.c.l.b16 %v705
      %v1001 = vunpack.c.l.b16 %v706
      %v1002 = vunpack.c.l.b16 %v707
      %v1003 = vunpack.c.l.b16 %v708
      %v1004 = vunpack.c.l.b16 %v709
      %v1005 = vunpack.c.l.b16 %v710
      %v1006 = vunpack.c.l.b16 %v711
      %v1007 = vunpack.c.l.b16 %v712
      %v1008 = vunpack.c.l.b16 %v713
      %v1009 = vunpack.c.l.b16 %v714
      %v1010 = vunpack.c.l.b16 %v715
      %v1011 = vunpack.c.l.b16 %v716
      %v1012 = vunpack.c.l.b16 %v717
      %v1013 = vunpack.c.l.b16 %v718
      %v1014 = vunpack.c.l.b16 %v719
      %v1015 = vunpack.c.l.b16 %v720
      %v1016 = vunpack.c.l.b16 %v721
      %v1017 = vunpack.c.l.b16 %v722
      %v1018 = vunpack.c.l.b16 %v723
      %v1019 = vunpack.c.l.b16 %v724
      %v1020 = vunpack.c.l.b16 %v725
      %v1021 = vunpack.c.l.b16 %v726
      %v1022 = vunpack.c.l.b16 %v727
      %v1023 = vunpack.c.l.b16 %v728
      %v1024 = vunpack.c.l.b16 %v729
      %v1025 = vunpack.c.l.b16 %v730
      %v1026 = vunpack.c.l.b16 %v731
      %v1027 = vunpack.c.l.b16 %v732
      %v1028 = vunpack.c.l.b16 %v733
      %v1029 = vunpack.c.l.b16 %v734
      %v1030 = vunpack.c.l.b16 %v735
      %v1031 = vunpack.c.l.b16 %v736
      %v1032 = vunpack.c.l.b16 %v737
      %v1033 = vunpack.c.l.b16 %v738
      %v1034 = vunpack.c.l.b16 %v739
      %v1035 = vunpack.c.l.b16 %v740
      %v1036 = vunpack.c.l.b16 %v741
      %v1037 = vunpack.c.l.b16 %v742
      %v1038 = vunpack.c.l.b16 %v743
      %v1039 = vunpack.c.l.b16 %v744
      %v1040 = vunpack.c.l.b16 %v745
      %v1041 = vunpack.c.l.b16 %v746
      %v1042 = vunpack.c.l.b16 %v747
      %v1043 = vunpack.c.l.b16 %v748
      %v1044 = vunpack.c.l.b16 %v749
      %v1045 = vunpack.c.l.b16 %v750
      %v1046 = vunpack.c.l.b16 %v751
      %v1047 = vunpack.c.l.b16 %v752
      %v1048 = vunpack.c.l.b16 %v753
      %v1049 = vunpack.c.l.b16 %v754
      %v1050 = vunpack.c.l.b16 %v755
      %v1051 = vunpack.c.l.b16 %v756
      %v1052 = vunpack.c.l.b16 %v757
      %v1053 = vunpack.c.l.b16 %v758
      %v1054 = vunpack.c.l.b16 %v759
      %v1055 = vunpack.c.l.b16 %v760
      %v1056 = vunpack.c.l.b16 %v761
      %v1057 = vunpack.c.l.b16 %v762
      %v1058 = vunpack.c.l.b16 %v763
      %v1059 = vunpack.c.l.b16 %v764
      %v1060 = vunpack.c.l.b16 %v765
      %v1061 = vunpack.c.l.b16 %v766
      %v1062 = vunpack.c.l.b16 %v767
      %v1063 = vunpack.c.l.b16 %v768
      %v1064 = vunpack.c.l.b16 %v769
      %v1065 = vunpack.c.l.b16 %v770
      %v1066 = vunpack.c.l.b16 %v771
      %v1067 = vpack.c.b16 %v924, %v923
      %v1068 = vpack.c.b16 %v926, %v925
      %v1069 = vpack.c.b16 %v928, %v927
      %v1070 = vpack.c.b16 %v930, %v929
      %v1071 = vpack.c.b16 %v932, %v931
      %v1072 = vpack.c.b16 %v934, %v933
      %v1073 = vpack.c.b16 %v936, %v935
      %v1074 = vpack.c.b16 %v938, %v937
      %v1075 = vpack.c.b16 %v940, %v939
      %v1076 = vpack.c.b16 %v942, %v941
      %v1077 = vpack.c.b16 %v944, %v943
      %v1078 = vpack.c.b16 %v946, %v945
      %v1079 = vpack.c.b16 %v948, %v947
      %v1080 = vpack.c.b16 %v950, %v949
      %v1081 = vpack.c.b16 %v952, %v951
      %v1082 = vpack.c.b16 %v954, %v953
      %v1083 = vpack.c.b16 %v956, %v955
      %v1084 = vpack.c.b16 %v958, %v957
      %v1085 = vpack.c.b16 %v960, %v959
      %v1086 = vpack.c.b16 %v962, %v961
      %v1087 = vpack.c.b16 %v964, %v963
      %v1088 = vpack.c.b16 %v966, %v965
      %v1089 = vpack.c.b16 %v968, %v967
      %v1090 = vpack.c.b16 %v970, %v969
      %v1091 = vpack.c.b16 %v972, %v971
      %v1092 = vpack.c.b16 %v974, %v973
      %v1093 = vpack.c.b16 %v976, %v975
      %v1094 = vpack.c.b16 %v978, %v977
      %v1095 = vpack.c.b16 %v980, %v979
      %v1096 = vpack.c.b16 %v982, %v981
      %v1097 = vpack.c.b16 %v984, %v983
      %v1098 = vpack.c.b16 %v986, %v985
      %v1099 = vpack.c.b16 %v988, %v987
      %v1100 = vpack.c.b16 %v990, %v989
      %v1101 = vpack.c.b16 %v992, %v991
      %v1102 = vpack.c.b16 %v994, %v993
      %v1103 = vpack.c.b16 %v996, %v995
      %v1104 = vpack.c.b16 %v998, %v997
      %v1105 = vpack.c.b16 %v1000, %v999
      %v1106 = vpack.c.b16 %v1002, %v1001
      %v1107 = vpack.c.b16 %v1004, %v1003
      %v1108 = vpack.c.b16 %v1006, %v1005
      %v1109 = vpack.c.b16 %v1008, %v1007
      %v1110 = vpack.c.b16 %v1010, %v1009
      %v1111 = vpack.c.b16 %v1012, %v1011
      %v1112 = vpack.c.b16 %v1014, %v1013
      %v1113 = vpack.c.b16 %v1016, %v1015
      %v1114 = vpack.c.b16 %v1018, %v1017
      %v1115 = vpack.c.b16 %v1020, %v1019
      %v1116 = vpack.c.b16 %v1022, %v1021
      %v1117 = vpack.c.b16 %v1024, %v1023
      %v1118 = vpack.c.b16 %v1026, %v1025
      %v1119 = vpack.c.b16 %v1028, %v1027
      %v1120 = vpack.c.b16 %v1030, %v1029
      %v1121 = vpack.c.b16 %v1032, %v1031
      %v1122 = vpack.c.b16 %v1034, %v1033
      %v1123 = vpack.c.b16 %v1036, %v1035
      %v1124 = vpack.c.b16 %v1038, %v1037
      %v1125 = vpack.c.b16 %v1040, %v1039
      %v1126 = vpack.c.b16 %v1042, %v1041
      %v1127 = vpack.c.b16 %v1044, %v1043
      %v1128 = vpack.c.b16 %v1046, %v1045
      %v1129 = vpack.c.b16 %v1048, %v1047
      %v1130 = vpack.c.b16 %v1050, %v1049
      %v1131 = vpack.c.b16 %v1052, %v1051
      %v1132 = vpack.c.b16 %v1054, %v1053
      %v1133 = vpack.c.b16 %v1056, %v1055
      %v1134 = vpack.c.b16 %v1058, %v1057
      %v1135 = vpack.c.b16 %v1060, %v1059
      %v1136 = vpack.c.b16 %v1062, %v1061
      %v1137 = vpack.c.b16 %v1064, %v1063
      %v1138 = vpack.c.b16 %v1066, %v1065
      %1211 = vmatprep.subr.bf16.mxu0 0
      %1212 = vmatpush1.bf16.msra.mxu0 %v1067
      %1213 = vmatprep.subr.bf16.mxu0 0
      %1214 = vmatpush1.bf16.msra.mxu0 %v1068
      %1215 = vmatprep.subr.bf16.mxu0 0
      %1216 = vmatpush1.bf16.msra.mxu0 %v1069
      %1217 = vmatprep.subr.bf16.mxu0 0
      %1218 = vmatpush1.bf16.msra.mxu0 %v1070
      %1219 = vmatprep.subr.bf16.mxu0 0
      %1220 = vmatpush1.bf16.msra.mxu0 %v1071
      %1221 = vmatprep.subr.bf16.mxu0 0
      %1222 = vmatpush1.bf16.msra.mxu0 %v1072
      %1223 = vmatprep.subr.bf16.mxu0 0
      %1224 = vmatpush1.bf16.msra.mxu0 %v1073
      %1225 = vmatprep.subr.bf16.mxu0 0
      %1226 = vmatpush1.bf16.msra.mxu0 %v1074
      %1227 = vmatprep.subr.bf16.mxu0 0
      %1228 = vmatpush1.bf16.msra.mxu0 %v1075
      %1229 = vmatprep.subr.bf16.mxu0 0
      %1230 = vmatpush1.bf16.msra.mxu0 %v1076
      %1231 = vmatprep.subr.bf16.mxu0 0
      %1232 = vmatpush1.bf16.msra.mxu0 %v1077
      %1233 = vmatprep.subr.bf16.mxu0 0
      %1234 = vmatpush1.bf16.msra.mxu0 %v1078
      %1235 = vmatprep.subr.bf16.mxu0 0
      %1236 = vmatpush1.bf16.msra.mxu0 %v1079
      %1237 = vmatprep.subr.bf16.mxu0 0
      %1238 = vmatpush1.bf16.msra.mxu0 %v1080
      %1239 = vmatprep.subr.bf16.mxu0 0
      %1240 = vmatpush1.bf16.msra.mxu0 %v1081
      %1241 = vmatprep.subr.bf16.mxu0 0
      %1242 = vmatpush1.bf16.msra.mxu0 %v1082
      %1243 = vmatprep.mubr.bf16.mxu0 %v593
      %1244 = vmatmul.mubr.bf16.gmra.mrb[0].mxu0 %v592
      %v1245 = vpop.f32.mrb[0].mxu0
      %v1246 = vadd.f32 %v777, %v1245
      %v1247 = vpop.f32.mrb[0].mxu0
      %v1248 = vpop.f32.mrb[0].mxu0
      %v1249 = vadd.f32 %v777, %v1248
      %v1250 = vpop.f32.mrb[0].mxu0
      %1251 = vmatprep.mubr.bf16.mxu0 %v602
      %1252 = vmatmul.mubr.bf16.gmra.mrb[0].mxu0 %v601
      %v1253 = vpop.f32.mrb[0].mxu0
      %v1254 = vadd.f32 %v777, %v1253
      %v1255 = vpop.f32.mrb[0].mxu0
      %v1256 = vpop.f32.mrb[0].mxu0
      %v1257 = vadd.f32 %v777, %v1256
      %v1258 = vpop.f32.mrb[0].mxu0
      %1259 = vmatprep.mubr.bf16.mxu0 %v611
      %1260 = vmatmul.mubr.bf16.gmra.mrb[0].mxu0 %v610
      %v1261 = vpop.f32.mrb[0].mxu0
      %v1262 = vadd.f32 %v777, %v1261
      %v1263 = vpop.f32.mrb[0].mxu0
      %v1264 = vpop.f32.mrb[0].mxu0
      %v1265 = vadd.f32 %v777, %v1264
      %v1266 = vpop.f32.mrb[0].mxu0
      %1267 = vmatprep.mubr.bf16.mxu0 %v620
      %1268 = vmatmul.mubr.bf16.gmra.mrb[0].mxu0 %v619
      %v1269 = vpop.f32.mrb[0].mxu0
      %v1270 = vadd.f32 %v777, %v1269
      %v1271 = vpop.f32.mrb[0].mxu0
      %v1272 = vpop.f32.mrb[0].mxu0
      %v1273 = vadd.f32 %v777, %v1272
      %v1274 = vpop.f32.mrb[0].mxu0
      %1275 = vdwg.mxu0
      %1276 = vmatprep.subr.bf16.mxu0 0
      %1277 = vmatpush1.bf16.msra.mxu0 %v1083
      %1278 = vmatprep.subr.bf16.mxu0 0
      %1279 = vmatpush1.bf16.msra.mxu0 %v1084
      %1280 = vmatprep.subr.bf16.mxu0 0
      %1281 = vmatpush1.bf16.msra.mxu0 %v1085
      %1282 = vmatprep.subr.bf16.mxu0 0
      %1283 = vmatpush1.bf16.msra.mxu0 %v1086
      %1284 = vmatprep.subr.bf16.mxu0 0
      %1285 = vmatpush1.bf16.msra.mxu0 %v1087
      %1286 = vmatprep.subr.bf16.mxu0 0
      %1287 = vmatpush1.bf16.msra.mxu0 %v1088
      %1288 = vmatprep.subr.bf16.mxu0 0
      %1289 = vmatpush1.bf16.msra.mxu0 %v1089
      %1290 = vmatprep.subr.bf16.mxu0 0
      %1291 = vmatpush1.bf16.msra.mxu0 %v1090
      %1292 = vmatprep.subr.bf16.mxu0 0
      %1293 = vmatpush1.bf16.msra.mxu0 %v1091
      %1294 = vmatprep.subr.bf16.mxu0 0
      %1295 = vmatpush1.bf16.msra.mxu0 %v1092
      %1296 = vmatprep.subr.bf16.mxu0 0
      %1297 = vmatpush1.bf16.msra.mxu0 %v1093
      %1298 = vmatprep.subr.bf16.mxu0 0
      %1299 = vmatpush1.bf16.msra.mxu0 %v1094
      %1300 = vmatprep.subr.bf16.mxu0 0
      %1301 = vmatpush1.bf16.msra.mxu0 %v1095
      %1302 = vmatprep.subr.bf16.mxu0 0
      %1303 = vmatpush1.bf16.msra.mxu0 %v1096
      %1304 = vmatprep.subr.bf16.mxu0 0
      %1305 = vmatpush1.bf16.msra.mxu0 %v1097
      %1306 = vmatprep.subr.bf16.mxu0 0
      %1307 = vmatpush1.bf16.msra.mxu0 %v1098
      %1308 = vmatprep.mubr.bf16.mxu0 %v595
      %1309 = vmatmul.mubr.bf16.gmra.mrb[0].mxu0 %v594
      %v1310 = vpop.f32.mrb[0].mxu0
      %v1311 = vadd.f32 %v1246, %v1310
      %v1312 = vpop.f32.mrb[0].mxu0
      %v1313 = vpop.f32.mrb[0].mxu0
      %v1314 = vadd.f32 %v1249, %v1313
      %v1315 = vpop.f32.mrb[0].mxu0
      %1316 = vmatprep.mubr.bf16.mxu0 %v604
      %1317 = vmatmul.mubr.bf16.gmra.mrb[0].mxu0 %v603
      %v1318 = vpop.f32.mrb[0].mxu0
      %v1319 = vadd.f32 %v1254, %v1318
      %v1320 = vpop.f32.mrb[0].mxu0
      %v1321 = vpop.f32.mrb[0].mxu0
      %v1322 = vadd.f32 %v1257, %v1321
      %v1323 = vpop.f32.mrb[0].mxu0
      %1324 = vmatprep.mubr.bf16.mxu0 %v613
      %1325 = vmatmul.mubr.bf16.gmra.mrb[0].mxu0 %v612
      %v1326 = vpop.f32.mrb[0].mxu0
      %v1327 = vadd.f32 %v1262, %v1326
      %v1328 = vpop.f32.mrb[0].mxu0
      %v1329 = vpop.f32.mrb[0].mxu0
      %v1330 = vadd.f32 %v1265, %v1329
      %v1331 = vpop.f32.mrb[0].mxu0
      %1332 = vmatprep.mubr.bf16.mxu0 %v622
      %1333 = vmatmul.mubr.bf16.gmra.mrb[0].mxu0 %v621
      %v1334 = vpop.f32.mrb[0].mxu0
      %v1335 = vadd.f32 %v1270, %v1334
      %v1336 = vpop.f32.mrb[0].mxu0
      %v1337 = vpop.f32.mrb[0].mxu0
      %v1338 = vadd.f32 %v1273, %v1337
      %v1339 = vpop.f32.mrb[0].mxu0
      %1340 = vdwg.mxu0
      %1341 = vmatprep.subr.bf16.mxu0 0
      %1342 = vmatpush1.bf16.msra.mxu0 %v1099
      %1343 = vmatprep.subr.bf16.mxu0 0
      %1344 = vmatpush1.bf16.msra.mxu0 %v1100
      %1345 = vmatprep.subr.bf16.mxu0 0
      %1346 = vmatpush1.bf16.msra.mxu0 %v1101
      %1347 = vmatprep.subr.bf16.mxu0 0
      %1348 = vmatpush1.bf16.msra.mxu0 %v1102
      %1349 = vmatprep.subr.bf16.mxu0 0
      %1350 = vmatpush1.bf16.msra.mxu0 %v1103
      %1351 = vmatprep.subr.bf16.mxu0 0
      %1352 = vmatpush1.bf16.msra.mxu0 %v1104
      %1353 = vmatprep.subr.bf16.mxu0 0
      %1354 = vmatpush1.bf16.msra.mxu0 %v1105
      %1355 = vmatprep.subr.bf16.mxu0 0
      %1356 = vmatpush1.bf16.msra.mxu0 %v1106
      %1357 = vmatprep.subr.bf16.mxu0 0
      %1358 = vmatpush1.bf16.msra.mxu0 %v1107
      %1359 = vmatprep.subr.bf16.mxu0 0
      %1360 = vmatpush1.bf16.msra.mxu0 %v1108
      %1361 = vmatprep.subr.bf16.mxu0 0
      %1362 = vmatpush1.bf16.msra.mxu0 %v1109
      %1363 = vmatprep.subr.bf16.mxu0 0
      %1364 = vmatpush1.bf16.msra.mxu0 %v1110
      %1365 = vmatprep.subr.bf16.mxu0 0
      %1366 = vmatpush1.bf16.msra.mxu0 %v1111
      %1367 = vmatprep.subr.bf16.mxu0 0
      %1368 = vmatpush1.bf16.msra.mxu0 %v1112
      %1369 = vmatprep.subr.bf16.mxu0 0
      %1370 = vmatpush1.bf16.msra.mxu0 %v1113
      %1371 = vmatprep.subr.bf16.mxu0 0
      %1372 = vmatpush1.bf16.msra.mxu0 %v1114
      %1373 = vmatprep.mubr.bf16.mxu0 %v597
      %1374 = vmatmul.mubr.bf16.gmra.mrb[0].mxu0 %v596
      %v1375 = vpop.f32.mrb[0].mxu0
      %v1376 = vadd.f32 %v1311, %v1375
      %v1377 = vpop.f32.mrb[0].mxu0
      %v1378 = vpop.f32.mrb[0].mxu0
      %v1379 = vadd.f32 %v1314, %v1378
      %v1380 = vpop.f32.mrb[0].mxu0
      %1381 = vmatprep.mubr.bf16.mxu0 %v606
      %1382 = vmatmul.mubr.bf16.gmra.mrb[0].mxu0 %v605
      %v1383 = vpop.f32.mrb[0].mxu0
      %v1384 = vadd.f32 %v1319, %v1383
      %v1385 = vpop.f32.mrb[0].mxu0
      %v1386 = vpop.f32.mrb[0].mxu0
      %v1387 = vadd.f32 %v1322, %v1386
      %v1388 = vpop.f32.mrb[0].mxu0
      %1389 = vmatprep.mubr.bf16.mxu0 %v615
      %1390 = vmatmul.mubr.bf16.gmra.mrb[0].mxu0 %v614
      %v1391 = vpop.f32.mrb[0].mxu0
      %v1392 = vadd.f32 %v1327, %v1391
      %v1393 = vpop.f32.mrb[0].mxu0
      %v1394 = vpop.f32.mrb[0].mxu0
      %v1395 = vadd.f32 %v1330, %v1394
      %v1396 = vpop.f32.mrb[0].mxu0
      %1397 = vmatprep.mubr.bf16.mxu0 %v624
      %1398 = vmatmul.mubr.bf16.gmra.mrb[0].mxu0 %v623
      %v1399 = vpop.f32.mrb[0].mxu0
      %v1400 = vadd.f32 %v1335, %v1399
      %v1401 = vpop.f32.mrb[0].mxu0
      %v1402 = vpop.f32.mrb[0].mxu0
      %v1403 = vadd.f32 %v1338, %v1402
      %v1404 = vpop.f32.mrb[0].mxu0
      %1405 = vdwg.mxu0
      %1406 = vmatprep.subr.bf16.mxu0 0
      %1407 = vmatpush1.bf16.msra.mxu0 %v1115
      %1408 = vmatprep.subr.bf16.mxu0 0
      %1409 = vmatpush1.bf16.msra.mxu0 %v1116
      %1410 = vmatprep.subr.bf16.mxu0 0
      %1411 = vmatpush1.bf16.msra.mxu0 %v1117
      %1412 = vmatprep.subr.bf16.mxu0 0
      %1413 = vmatpush1.bf16.msra.mxu0 %v1118
      %1414 = vmatprep.subr.bf16.mxu0 0
      %1415 = vmatpush1.bf16.msra.mxu0 %v1119
      %1416 = vmatprep.subr.bf16.mxu0 0
      %1417 = vmatpush1.bf16.msra.mxu0 %v1120
      %1418 = vmatprep.subr.bf16.mxu0 0
      %1419 = vmatpush1.bf16.msra.mxu0 %v1121
      %1420 = vmatprep.subr.bf16.mxu0 0
      %1421 = vmatpush1.bf16.msra.mxu0 %v1122
      %1422 = vmatprep.subr.bf16.mxu0 0
      %1423 = vmatpush1.bf16.msra.mxu0 %v1123
      %1424 = vmatprep.subr.bf16.mxu0 0
      %1425 = vmatpush1.bf16.msra.mxu0 %v1124
      %1426 = vmatprep.subr.bf16.mxu0 0
      %1427 = vmatpush1.bf16.msra.mxu0 %v1125
      %1428 = vmatprep.subr.bf16.mxu0 0
      %1429 = vmatpush1.bf16.msra.mxu0 %v1126
      %1430 = vmatprep.subr.bf16.mxu0 0
      %1431 = vmatpush1.bf16.msra.mxu0 %v1127
      %1432 = vmatprep.subr.bf16.mxu0 0
      %1433 = vmatpush1.bf16.msra.mxu0 %v1128
      %1434 = vmatprep.subr.bf16.mxu0 0
      %1435 = vmatpush1.bf16.msra.mxu0 %v1129
      %1436 = vmatprep.subr.bf16.mxu0 0
      %1437 = vmatpush1.bf16.msra.mxu0 %v1130
      %1438 = vmatprep.mubr.bf16.mxu0 %v599
      %1439 = vmatmul.mubr.bf16.gmra.mrb[0].mxu0 %v598
      %v1440 = vpop.f32.mrb[0].mxu0
      %v1441 = vadd.f32 %v1376, %v1440
      %v1442 = vpop.f32.mrb[0].mxu0
      %v1443 = vpop.f32.mrb[0].mxu0
      %v1444 = vadd.f32 %v1379, %v1443
      %v1445 = vpop.f32.mrb[0].mxu0
      %1446 = vmatprep.mubr.bf16.mxu0 %v608
      %1447 = vmatmul.mubr.bf16.gmra.mrb[0].mxu0 %v607
      %v1448 = vpop.f32.mrb[0].mxu0
      %v1449 = vadd.f32 %v1384, %v1448
      %v1450 = vpop.f32.mrb[0].mxu0
      %v1451 = vpop.f32.mrb[0].mxu0
      %v1452 = vadd.f32 %v1387, %v1451
      %v1453 = vpop.f32.mrb[0].mxu0
      %1454 = vmatprep.mubr.bf16.mxu0 %v617
      %1455 = vmatmul.mubr.bf16.gmra.mrb[0].mxu0 %v616
      %v1456 = vpop.f32.mrb[0].mxu0
      %v1457 = vadd.f32 %v1392, %v1456
      %v1458 = vpop.f32.mrb[0].mxu0
      %v1459 = vpop.f32.mrb[0].mxu0
      %v1460 = vadd.f32 %v1395, %v1459
      %v1461 = vpop.f32.mrb[0].mxu0
      %1462 = vmatprep.mubr.bf16.mxu0 %v626
      %1463 = vmatmul.mubr.bf16.gmra.mrb[0].mxu0 %v625
      %v1464 = vpop.f32.mrb[0].mxu0
      %v1465 = vadd.f32 %v1400, %v1464
      %v1466 = vpop.f32.mrb[0].mxu0
      %v1467 = vpop.f32.mrb[0].mxu0
      %v1468 = vadd.f32 %v1403, %v1467
      %v1469 = vpop.f32.mrb[0].mxu0
      %1470 = vdwg.mxu0
      %1471 = vmatprep.subr.bf16.mxu0 0
      %1472 = vmatpush1.bf16.msra.mxu0 %v1131
      %1473 = vmatprep.subr.bf16.mxu0 0
      %1474 = vmatpush1.bf16.msra.mxu0 %v1132
      %1475 = vmatprep.subr.bf16.mxu0 0
      %1476 = vmatpush1.bf16.msra.mxu0 %v1133
      %1477 = vmatprep.subr.bf16.mxu0 0
      %1478 = vmatpush1.bf16.msra.mxu0 %v1134
      %1479 = vmatprep.subr.bf16.mxu0 0
      %1480 = vmatpush1.bf16.msra.mxu0 %v1135
      %1481 = vmatprep.subr.bf16.mxu0 0
      %1482 = vmatpush1.bf16.msra.mxu0 %v1136
      %1483 = vmatprep.subr.bf16.mxu0 0
      %1484 = vmatpush1.bf16.msra.mxu0 %v1137
      %1485 = vmatprep.subr.bf16.mxu0 0
      %1486 = vmatpush1.bf16.msra.mxu0 %v1138
      %1487 = vmatprep.subr.bf16.mxu0 0
      %1488 = vmatpush1.bf16.msra.mxu0 0
      %1489 = vmatprep.subr.bf16.mxu0 0
      %1490 = vmatpush1.bf16.msra.mxu0 0
      %1491 = vmatprep.subr.bf16.mxu0 0
      %1492 = vmatpush1.bf16.msra.mxu0 0
      %1493 = vmatprep.subr.bf16.mxu0 0
      %1494 = vmatpush1.bf16.msra.mxu0 0
      %1495 = vmatprep.subr.bf16.mxu0 0
      %1496 = vmatpush1.bf16.msra.mxu0 0
      %1497 = vmatprep.subr.bf16.mxu0 0
      %1498 = vmatpush1.bf16.msra.mxu0 0
      %1499 = vmatprep.subr.bf16.mxu0 0
      %1500 = vmatpush1.bf16.msra.mxu0 0
      %1501 = vmatprep.subr.bf16.mxu0 0
      %1502 = vmatpush1.bf16.msra.mxu0 0
      %1503 = vmatprep.mubr.bf16.mxu0 0
      %1504 = vmatmul.mubr.bf16.gmra.mrb[0].mxu0 %v600
      %v1505 = vpop.f32.mrb[0].mxu0
      %v1506 = vadd.f32 %v1441, %v1505
      %v1507 = vpop.f32.mrb[0].mxu0
      %v1508 = vpop.f32.mrb[0].mxu0
      %v1509 = vadd.f32 %v1444, %v1508
      %v1510 = vpop.f32.mrb[0].mxu0
      %1511 = vmatprep.mubr.bf16.mxu0 0
      %1512 = vmatmul.mubr.bf16.gmra.mrb[0].mxu0 %v609
      %v1513 = vpop.f32.mrb[0].mxu0
      %v1514 = vadd.f32 %v1449, %v1513
      %v1515 = vpop.f32.mrb[0].mxu0
      %v1516 = vpop.f32.mrb[0].mxu0
      %v1517 = vadd.f32 %v1452, %v1516
      %v1518 = vpop.f32.mrb[0].mxu0
      %1519 = vmatprep.mubr.bf16.mxu0 0
      %1520 = vmatmul.mubr.bf16.gmra.mrb[0].mxu0 %v618
      %v1521 = vpop.f32.mrb[0].mxu0
      %v1522 = vadd.f32 %v1457, %v1521
      %v1523 = vpop.f32.mrb[0].mxu0
      %v1524 = vpop.f32.mrb[0].mxu0
      %v1525 = vadd.f32 %v1460, %v1524
      %v1526 = vpop.f32.mrb[0].mxu0
      %1527 = vmatprep.mubr.bf16.mxu0 0
      %1528 = vmatmul.mubr.bf16.gmra.mrb[0].mxu0 %v627
      %v1529 = vpop.f32.mrb[0].mxu0
      %v1530 = vadd.f32 %v1465, %v1529
      %v1531 = vpop.f32.mrb[0].mxu0
      %v1532 = vpop.f32.mrb[0].mxu0
      %v1533 = vadd.f32 %v1468, %v1532
      %v1534 = vpop.f32.mrb[0].mxu0
      %1535 = vdwg.mxu0
      %v1536 = vmax.f32 %v1506, 0.0
      %v1537 = vmax.f32 %v1509, 0.0
      %v1538 = vmax.f32 %v1514, 0.0
      %v1539 = vmax.f32 %v1517, 0.0
      %v1540 = vmax.f32 %v1522, 0.0
      %v1541 = vmax.f32 %v1525, 0.0
      %v1542 = vmax.f32 %v1530, 0.0
      %v1543 = vmax.f32 %v1533, 0.0
      %v1544 = vpack.c.bf16 %v1537, %v1536
      %v1545 = vpack.c.bf16 %v1539, %v1538
      %v1546 = vpack.c.bf16 %v1541, %v1540
      %v1547 = vpack.c.bf16 %v1543, %v1542
      %v1548 = vld [vmem:[%s3] sm:$0xf]
      %v1549 = vld [vmem:[%s3 + $0x4] sm:$0xf]
      %v1550 = vld [vmem:[%s3 + $0x8] sm:$0xf]
      %v1551 = vld [vmem:[%s3 + $0xc] sm:$0xf]
      %v1552 = vld [vmem:[%s3 + $0x10] sm:$0xf]
      %v1553 = vld [vmem:[%s3 + $0x14] sm:$0xf]
      %v1554 = vld [vmem:[%s3 + $0x18] sm:$0xf]
      %v1555 = vld [vmem:[%s3 + $0x1c] sm:$0xf]
      %v1556 = vld [vmem:[%s3 + $0x20] sm:$0xf]
      %v1557 = vld [vmem:[%s3 + $0x24] sm:$0xf]
      %v1558 = vld [vmem:[%s3 + $0x28] sm:$0xf]
      %v1559 = vld [vmem:[%s3 + $0x2c] sm:$0xf]
      %v1560 = vld [vmem:[%s3 + $0x30] sm:$0xf]
      %v1561 = vld [vmem:[%s3 + $0x34] sm:$0xf]
      %v1562 = vld [vmem:[%s3 + $0x38] sm:$0xf]
      %v1563 = vld [vmem:[%s3 + $0x3c] sm:$0xf]
      %v1564 = vld [vmem:[%s4] sm:$0x1]
      %v1566 = vlaneseq
      %v1567 = vshrl.u32 %v1566, 7
      %v1568 = vsub.s32 0, %v1567
      %v1569 = vrot.slane %v1564, %v1568
      %v1587 = vunpack.c.l.b16 %v1548
      %v1588 = vunpack.c.l.b16 %v1549
      %v1589 = vunpack.c.l.b16 %v1550
      %v1590 = vunpack.c.l.b16 %v1551
      %v1591 = vunpack.c.l.b16 %v1552
      %v1592 = vunpack.c.l.b16 %v1553
      %v1593 = vunpack.c.l.b16 %v1554
      %v1594 = vunpack.c.l.b16 %v1555
      %v1595 = vunpack.c.l.b16 %v1556
      %v1596 = vunpack.c.l.b16 %v1557
      %v1597 = vunpack.c.l.b16 %v1558
      %v1598 = vunpack.c.l.b16 %v1559
      %v1599 = vunpack.c.l.b16 %v1560
      %v1600 = vunpack.c.l.b16 %v1561
      %v1601 = vunpack.c.l.b16 %v1562
      %v1602 = vunpack.c.l.b16 %v1563
      %v1603 = vpack.c.b16 %v1588, %v1587
      %v1604 = vpack.c.b16 %v1590, %v1589
      %v1605 = vpack.c.b16 %v1592, %v1591
      %v1606 = vpack.c.b16 %v1594, %v1593
      %v1607 = vpack.c.b16 %v1596, %v1595
      %v1608 = vpack.c.b16 %v1598, %v1597
      %v1609 = vpack.c.b16 %v1600, %v1599
      %v1610 = vpack.c.b16 %v1602, %v1601
      %1619 = vmatprep.subr.bf16.mxu0 0
      %1620 = vmatpush1.bf16.msra.mxu0 %v1603
      %1621 = vmatprep.subr.bf16.mxu0 0
      %1622 = vmatpush1.bf16.msra.mxu0 %v1604
      %1623 = vmatprep.subr.bf16.mxu0 0
      %1624 = vmatpush1.bf16.msra.mxu0 %v1605
      %1625 = vmatprep.subr.bf16.mxu0 0
      %1626 = vmatpush1.bf16.msra.mxu0 %v1606
      %1627 = vmatprep.subr.bf16.mxu0 0
      %1628 = vmatpush1.bf16.msra.mxu0 %v1607
      %1629 = vmatprep.subr.bf16.mxu0 0
      %1630 = vmatpush1.bf16.msra.mxu0 %v1608
      %1631 = vmatprep.subr.bf16.mxu0 0
      %1632 = vmatpush1.bf16.msra.mxu0 %v1609
      %1633 = vmatprep.subr.bf16.mxu0 0
      %1634 = vmatpush1.bf16.msra.mxu0 %v1610
      %1635 = vmatprep.subr.bf16.mxu0 0
      %1636 = vmatpush1.bf16.msra.mxu0 0
      %1637 = vmatprep.subr.bf16.mxu0 0
      %1638 = vmatpush1.bf16.msra.mxu0 0
      %1639 = vmatprep.subr.bf16.mxu0 0
      %1640 = vmatpush1.bf16.msra.mxu0 0
      %1641 = vmatprep.subr.bf16.mxu0 0
      %1642 = vmatpush1.bf16.msra.mxu0 0
      %1643 = vmatprep.subr.bf16.mxu0 0
      %1644 = vmatpush1.bf16.msra.mxu0 0
      %1645 = vmatprep.subr.bf16.mxu0 0
      %1646 = vmatpush1.bf16.msra.mxu0 0
      %1647 = vmatprep.subr.bf16.mxu0 0
      %1648 = vmatpush1.bf16.msra.mxu0 0
      %1649 = vmatprep.subr.bf16.mxu0 0
      %1650 = vmatpush1.bf16.msra.mxu0 0
      %1651 = vmatprep.mubr.bf16.mxu0 0
      %1652 = vmatmul.mubr.bf16.gmra.mrb[0].mxu0 %v1544
      %v1653 = vpop.f32.mrb[0].mxu0
      %v1654 = vadd.f32 %v1569, %v1653
      %v1655 = vpop.f32.mrb[0].mxu0
      %v1656 = vpop.f32.mrb[0].mxu0
      %v1657 = vadd.f32 %v1569, %v1656
      %v1658 = vpop.f32.mrb[0].mxu0
      %1659 = vmatprep.mubr.bf16.mxu0 0
      %1660 = vmatmul.mubr.bf16.gmra.mrb[0].mxu0 %v1545
      %v1661 = vpop.f32.mrb[0].mxu0
      %v1662 = vadd.f32 %v1569, %v1661
      %v1663 = vpop.f32.mrb[0].mxu0
      %v1664 = vpop.f32.mrb[0].mxu0
      %v1665 = vadd.f32 %v1569, %v1664
      %v1666 = vpop.f32.mrb[0].mxu0
      %1667 = vmatprep.mubr.bf16.mxu0 0
      %1668 = vmatmul.mubr.bf16.gmra.mrb[0].mxu0 %v1546
      %v1669 = vpop.f32.mrb[0].mxu0
      %v1670 = vadd.f32 %v1569, %v1669
      %v1671 = vpop.f32.mrb[0].mxu0
      %v1672 = vpop.f32.mrb[0].mxu0
      %v1673 = vadd.f32 %v1569, %v1672
      %v1674 = vpop.f32.mrb[0].mxu0
      %1675 = vmatprep.mubr.bf16.mxu0 0
      %1676 = vmatmul.mubr.bf16.gmra.mrb[0].mxu0 %v1547
      %v1677 = vpop.f32.mrb[0].mxu0
      %v1678 = vadd.f32 %v1569, %v1677
      %v1679 = vpop.f32.mrb[0].mxu0
      %v1680 = vpop.f32.mrb[0].mxu0
      %v1681 = vadd.f32 %v1569, %v1680
      %v1682 = vpop.f32.mrb[0].mxu0
      %1683 = vdwg.mxu0
      %v1685 = vshrl.u32 %v228, 16
      %v1687 = vrot.slane %v1685, 4
      %v1688 = vshll.u32 %v228, 16
      %v1690 = vrot.slane %v1688, 5
      %v1691 = vor.u32 %v1687, %v1690
      %v1692 = vrot.slane %v1691, 4
      %v1694 = vshll.u32 %v229, 16
      %v1696 = vrot.slane %v1694, 5
      %v1697 = vsel %vm296, %v1692, %v1696
      %v1699 = vshrl.u32 %v230, 16
      %v1701 = vrot.slane %v1699, 4
      %v1702 = vshll.u32 %v230, 16
      %v1704 = vrot.slane %v1702, 5
      %v1705 = vor.u32 %v1701, %v1704
      %v1706 = vrot.slane %v1705, 4
      %v1708 = vshll.u32 %v231, 16
      %v1710 = vrot.slane %v1708, 5
      %v1711 = vsel %vm296, %v1706, %v1710
      %v1713 = vshrl.u32 %v232, 16
      %v1715 = vrot.slane %v1713, 4
      %v1716 = vshll.u32 %v232, 16
      %v1718 = vrot.slane %v1716, 5
      %v1719 = vor.u32 %v1715, %v1718
      %v1720 = vrot.slane %v1719, 4
      %v1722 = vshll.u32 %v233, 16
      %v1724 = vrot.slane %v1722, 5
      %v1725 = vsel %vm296, %v1720, %v1724
      %v1727 = vshrl.u32 %v234, 16
      %v1729 = vrot.slane %v1727, 4
      %v1730 = vshll.u32 %v234, 16
      %v1732 = vrot.slane %v1730, 5
      %v1733 = vor.u32 %v1729, %v1732
      %v1734 = vrot.slane %v1733, 4
      %v1736 = vshll.u32 %v235, 16
      %v1738 = vrot.slane %v1736, 5
      %v1739 = vsel %vm296, %v1734, %v1738
      %v1741 = vshrl.u32 %v236, 16
      %v1743 = vrot.slane %v1741, 4
      %v1744 = vshll.u32 %v236, 16
      %v1746 = vrot.slane %v1744, 5
      %v1747 = vor.u32 %v1743, %v1746
      %v1748 = vrot.slane %v1747, 4
      %v1750 = vshll.u32 %v237, 16
      %v1752 = vrot.slane %v1750, 5
      %v1753 = vsel %vm296, %v1748, %v1752
      %v1755 = vshrl.u32 %v238, 16
      %v1757 = vrot.slane %v1755, 4
      %v1758 = vshll.u32 %v238, 16
      %v1760 = vrot.slane %v1758, 5
      %v1761 = vor.u32 %v1757, %v1760
      %v1762 = vrot.slane %v1761, 4
      %v1764 = vshll.u32 %v239, 16
      %v1766 = vrot.slane %v1764, 5
      %v1767 = vsel %vm296, %v1762, %v1766
      %v1769 = vshrl.u32 %v240, 16
      %v1771 = vrot.slane %v1769, 4
      %v1772 = vshll.u32 %v240, 16
      %v1774 = vrot.slane %v1772, 5
      %v1775 = vor.u32 %v1771, %v1774
      %v1776 = vrot.slane %v1775, 4
      %v1778 = vshll.u32 %v241, 16
      %v1780 = vrot.slane %v1778, 5
      %v1781 = vsel %vm296, %v1776, %v1780
      %v1783 = vshrl.u32 %v242, 16
      %v1785 = vrot.slane %v1783, 4
      %v1786 = vshll.u32 %v242, 16
      %v1788 = vrot.slane %v1786, 5
      %v1789 = vor.u32 %v1785, %v1788
      %v1790 = vrot.slane %v1789, 4
      %v1792 = vshll.u32 %v243, 16
      %v1794 = vrot.slane %v1792, 5
      %v1795 = vsel %vm296, %v1790, %v1794
      %v1804 = vunpack.c.l.bf16 %v1697
      %v1805 = vunpack.c.l.bf16 %v1711
      %v1806 = vunpack.c.l.bf16 %v1725
      %v1807 = vunpack.c.l.bf16 %v1739
      %v1808 = vunpack.c.l.bf16 %v1753
      %v1809 = vunpack.c.l.bf16 %v1767
      %v1810 = vunpack.c.l.bf16 %v1781
      %v1811 = vunpack.c.l.bf16 %v1795
      %v1812 = vadd.f32 %v1654, %v1804
      %v1813 = vadd.f32 %v1657, %v1805
      %v1814 = vadd.f32 %v1662, %v1806
      %v1815 = vadd.f32 %v1665, %v1807
      %v1816 = vadd.f32 %v1670, %v1808
      %v1817 = vadd.f32 %v1673, %v1809
      %v1818 = vadd.f32 %v1678, %v1810
      %v1819 = vadd.f32 %v1681, %v1811
      %v1820 = vpack.c.bf16 %v1812, %v1812
      %v1821 = vpack.c.bf16 %v1813, %v1813
      %v1822 = vpack.c.bf16 %v1814, %v1814
      %v1823 = vpack.c.bf16 %v1815, %v1815
      %v1824 = vpack.c.bf16 %v1816, %v1816
      %v1825 = vpack.c.bf16 %v1817, %v1817
      %v1826 = vpack.c.bf16 %v1818, %v1818
      %v1827 = vpack.c.bf16 %v1819, %v1819
      %1828 = vst [vmem:[%s224] sm:$0xf] %v1820
      %1829 = vst [vmem:[%s224 + $0x4] sm:$0xf] %v1821
      %1830 = vst [vmem:[%s224 + $0x8] sm:$0xf] %v1822
      %1831 = vst [vmem:[%s224 + $0xc] sm:$0xf] %v1823
      %1832 = vst [vmem:[%s224 + $0x10] sm:$0xf] %v1824
      %1833 = vst [vmem:[%s224 + $0x14] sm:$0xf] %v1825
      %1834 = vst [vmem:[%s224 + $0x18] sm:$0xf] %v1826
      %1835 = vst [vmem:[%s224 + $0x1c] sm:$0xf] %v1827
      %p1836 = scmp.lt.s32.totalorder %s16, 1
      %s1837 = scalar_select %p1836, %s16, 1
      %s1838 = smul.addr %s1837, 8
      %s1839 = smul.addr %s1838, 4
      %s1840 = scalar_lea.vmem %s5, %s1839
      // Predicated region
      $region41: #{decoder_forward.5} parent=39 // pred_check
        %p1841 = pneg %p144
      $region42: #{decoder_forward.5} parent=39 // pred_check_branch
        %1843 = sbr.rel (%p1841) target = $region44
      $region43: #{decoder_forward.5} parent=39 // pred_region
        _
      $region44: #{decoder_forward.5} parent=39 // pred_fallthru
        _
    $region40: #{decoder_forward.5} parent=5 // pred_fallthru
      _
    %p1844 = scmp.le.s32.totalorder 2, %s11
    // Predicated region
    $region45: #{decoder_forward.5} parent=5 // pred_check
      %p1845 = pneg %p1844
    $region46: #{decoder_forward.5} parent=5 // pred_check_branch
      %1847 = sbr.rel (%p1845) target = $region48
    $region47: #{decoder_forward.5} parent=5 // pred_region
      %s1848 = ssub.s32 %s11, 2
      // Predicated region
      $region49: #{decoder_forward.5} parent=47 // pred_check
        %p1849 = pneg %p150
      $region50: #{decoder_forward.5} parent=47 // pred_check_branch
        %1851 = sbr.rel (%p1849) target = $region52
      $region51: #{decoder_forward.5} parent=47 // pred_region
        %p1852 = scmp.lt.s32.totalorder %s17, 1
        %s1853 = scalar_select %p1852, %s17, 1
        %s1854 = smul.addr %s1853, 8
        %s1855 = smul.addr %s1854, 4
        %s1856 = scalar_lea.vmem %s5, %s1855
      $region52: #{decoder_forward.5} parent=47 // pred_fallthru
        _
    $region48: #{decoder_forward.5} parent=5 // pred_fallthru
      _
  $region6: #{decoder_forward.5} parent=0 // loop_footer
    %s15 = sadd.s32 1, %s11
  $region7: #{decoder_forward.5} parent=0 // loop_footer_branch
    %10 = sbr.rel target = $region3
  $region8: #{decoder_forward.5} parent=0 // loop_exit
    _

// kernel: decoder_forward.7
$region0: #{decoder_forward.7}
  #allocation0 [shape = 'u32[]', space=smem, size = 0x4, offset = 0x4, fixed_abs, tag = 'smem constant byte address 0x4 - core index']
  #allocation1 [shape = 'u32[144,128]{1,0:T(1,128)}', space=vmem, size = 0x12000, scoped, tag = 'internal scratch']
  #allocation2 [shape = 'bf16[64,512]{1,0:T(16,128)(2,1)}', space=vmem, size = 0x10000, scoped, tag = 'scratch operand']
  %s0 = inlined_call_operand.vmem [shape: bf16[2,10,10,128], index: 0, kind: input, shape index: {}]
  %s1 = inlined_call_operand.vmem [shape: bf16[4,512,768], index: 1, kind: input, shape index: {}]
  %s2 = inlined_call_operand.vmem [shape: f32[1,768], index: 2, kind: input, shape index: {}]
  %s3 = inlined_call_operand.vmem [shape: f32[2,4,64,768], index: 3, kind: output, shape index: {}]
  %s4 = sld [smem:[#allocation0]]
  $region45: #{decoder_forward.7} parent=0
    _
  %s6 = ssub.s32 1, %s4
  %s7 = scalar_select 0, %s6, %s4
  loop: start=0, step=1, limit=4
  $region2: #{decoder_forward.7} parent=0 // loop_pre_header
    _
  $region3: #{decoder_forward.7} parent=0 // loop_header
    %s9 = sphi 0, %s13
    %p10 = scmp.ge.s32.totalorder %s9, 4
    %s16 = sphi 0, %s28
    %s17 = sphi 0, %s24
    %s18 = sphi 0, %s16
    %s19 = sphi 0, %s17
    %s20 = sphi 0, %s18
    %s21 = sphi 0, %s19
    %s31 = sphi 0, %s33
    %s34 = sphi 0, %s31
    %s35 = sphi 0, %s34
    %s51 = sphi 0, %s35
    %s57 = sphi 0, %s59
    %s60 = sphi 0, %s57
    %s61 = sphi 0, %s60
    %s77 = sphi 0, %s61
    %s83 = sphi 0, %s85
    %s86 = sphi 0, %s83
    %s87 = sphi 0, %s86
    %s103 = sphi 0, %s87
    %s111 = sphi 0, %s113
    %s114 = sphi 0, %s111
    %s115 = sphi 0, %s114
    %s131 = sphi 0, %s115
  $region4: #{decoder_forward.7} parent=0 // loop_header_branch
    %12 = sbr.rel (%p10) target = $region8
  $region5: #{decoder_forward.7} parent=0 // loop_body
    %s14 = ssub.s32 %s9, 1
    %s15 = ssub.s32 %s9, 2
    %s22 = sadd.s32 1, %s17
    %p23 = scmp.ge.s32.totalorder %s22, 1
    %s24 = scalar_select %p23, 0, %s22
    %s25 = sadd.s32 1, %s16
    %s26 = scalar_select %p23, %s25, %s16
    %p27 = scmp.ge.s32.totalorder %s26, 2
    %s28 = scalar_select %p27, 0, %s26
    %s29 = ssub.s32 %s16, %s28
    %p30 = scmp.eq.s32.totalorder %s29, 0
    %s32 = sadd.s32 %s31, 1
    %s33 = scalar_select %p30, %s31, %s32
    %p36 = pneg %p30
    %p37 = scmp.eq.s32.totalorder %s9, 1
    %p38 = por %p36, %p37
    %p39 = scmp.ne.s32.totalorder %s31, %s34
    %p40 = scmp.eq.s32.totalorder %s9, 0
    %p41 = por %p39, %p40
    %p42 = scmp.ne.s32.totalorder %s31, %s34
    %p43 = scmp.eq.s32.totalorder %s14, 1
    %p44 = por %p42, %p43
    %p45 = scmp.ne.s32.totalorder %s34, %s35
    %p46 = scmp.eq.s32.totalorder %s14, 0
    %p47 = por %p45, %p46
    %p48 = scmp.ne.s32.totalorder %s34, %s35
    %p49 = scmp.eq.s32.totalorder %s15, 1
    %p50 = por %p48, %p49
    %p52 = scmp.ne.s32.totalorder %s35, %s51
    %p53 = scmp.eq.s32.totalorder %s15, 0
    %p54 = por %p52, %p53
    %s55 = ssub.s32 %s17, %s24
    %p56 = scmp.eq.s32.totalorder %s55, 0
    %s58 = sadd.s32 %s57, 1
    %s59 = scalar_select %p56, %s57, %s58
    %p62 = pneg %p56
    %p63 = scmp.eq.s32.totalorder %s9, 1
    %p64 = por %p62, %p63
    %p65 = scmp.ne.s32.totalorder %s57, %s60
    %p66 = scmp.eq.s32.totalorder %s9, 0
    %p67 = por %p65, %p66
    %p68 = scmp.ne.s32.totalorder %s57, %s60
    %p69 = scmp.eq.s32.totalorder %s14, 1
    %p70 = por %p68, %p69
    %p71 = scmp.ne.s32.totalorder %s60, %s61
    %p72 = scmp.eq.s32.totalorder %s14, 0
    %p73 = por %p71, %p72
    %p74 = scmp.ne.s32.totalorder %s60, %s61
    %p75 = scmp.eq.s32.totalorder %s15, 1
    %p76 = por %p74, %p75
    %p78 = scmp.ne.s32.totalorder %s61, %s77
    %p79 = scmp.eq.s32.totalorder %s15, 0
    %p80 = por %p78, %p79
    %s81 = ssub.s32 %s17, %s24
    %p82 = scmp.eq.s32.totalorder %s81, 0
    %s84 = sadd.s32 %s83, 1
    %s85 = scalar_select %p82, %s83, %s84
    %p88 = pneg %p82
    %p89 = scmp.eq.s32.totalorder %s9, 1
    %p90 = por %p88, %p89
    %p91 = scmp.ne.s32.totalorder %s83, %s86
    %p92 = scmp.eq.s32.totalorder %s9, 0
    %p93 = por %p91, %p92
    %p94 = scmp.ne.s32.totalorder %s83, %s86
    %p95 = scmp.eq.s32.totalorder %s14, 1
    %p96 = por %p94, %p95
    %p97 = scmp.ne.s32.totalorder %s86, %s87
    %p98 = scmp.eq.s32.totalorder %s14, 0
    %p99 = por %p97, %p98
    %p100 = scmp.ne.s32.totalorder %s86, %s87
    %p101 = scmp.eq.s32.totalorder %s15, 1
    %p102 = por %p100, %p101
    %p104 = scmp.ne.s32.totalorder %s87, %s103
    %p105 = scmp.eq.s32.totalorder %s15, 0
    %p106 = por %p104, %p105
    %s107 = ssub.s32 %s16, %s28
    %s108 = ssub.s32 %s17, %s24
    %s109 = sor.u32 %s107, %s108
    %p110 = scmp.eq.s32.totalorder %s109, 0
    %s112 = sadd.s32 %s111, 1
    %s113 = scalar_select %p110, %s111, %s112
    %p116 = pneg %p110
    %p117 = scmp.eq.s32.totalorder %s9, 1
    %p118 = por %p116, %p117
    %p119 = scmp.ne.s32.totalorder %s111, %s114
    %p120 = scmp.eq.s32.totalorder %s9, 0
    %p121 = por %p119, %p120
    %p122 = scmp.ne.s32.totalorder %s111, %s114
    %p123 = scmp.eq.s32.totalorder %s14, 1
    %p124 = por %p122, %p123
    %p125 = scmp.ne.s32.totalorder %s114, %s115
    %p126 = scmp.eq.s32.totalorder %s14, 0
    %p127 = por %p125, %p126
    %p128 = scmp.ne.s32.totalorder %s114, %s115
    %p129 = scmp.eq.s32.totalorder %s15, 1
    %p130 = por %p128, %p129
    %p132 = scmp.ne.s32.totalorder %s115, %s131
    %p133 = scmp.eq.s32.totalorder %s15, 0
    %p134 = por %p132, %p133
    %p135 = scmp.le.s32.totalorder 1, %s9
    %p136 = scmp.lt.s32.totalorder %s9, 3
    %p137 = pnand %p135, %p136
    %p138 = pneg %p137
    // Predicated region
    $region9: #{decoder_forward.7} parent=5 // pred_check
      _
    $region10: #{decoder_forward.7} parent=5 // pred_check_branch
      %140 = sbr.rel (%p137) target = $region12
    $region11: #{decoder_forward.7} parent=5 // pred_region
      %s141 = ssub.s32 %s9, 1
      // Predicated region
      $region13: #{decoder_forward.7} parent=11 // pred_check
        %p142 = pneg %p73
      $region14: #{decoder_forward.7} parent=11 // pred_check_branch
        %144 = sbr.rel (%p142) target = $region16
      $region15: #{decoder_forward.7} parent=11 // pred_region
        %s145 = smul.u32 6, %s19
        %p146 = scmp.lt.s32.totalorder %s145, 5
        %s147 = scalar_select %p146, %s145, 5
        %s148 = smul.addr %s147, 4
        %s149 = scalar_lea.vmem %s1, %s148
        %s150 = smul.u32 6, %s19
      $region16: #{decoder_forward.7} parent=11 // pred_fallthru
        _
      // Predicated region
      $region17: #{decoder_forward.7} parent=11 // pred_check
        %p151 = pneg %p99
      $region18: #{decoder_forward.7} parent=11 // pred_check_branch
        %153 = sbr.rel (%p151) target = $region20
      $region19: #{decoder_forward.7} parent=11 // pred_region
        %s154 = smul.u32 6, %s19
        %p155 = scmp.lt.s32.totalorder %s154, 5
        %s156 = scalar_select %p155, %s154, 5
        %s157 = scalar_lea.vmem %s2, %s156
        %s158 = smul.u32 6, %s19
      $region20: #{decoder_forward.7} parent=11 // pred_fallthru
        _
    $region12: #{decoder_forward.7} parent=5 // pred_fallthru
      _
    %p159 = scmp.lt.s32.totalorder %s9, 2
    // Predicated region
    $region21: #{decoder_forward.7} parent=5 // pred_check
      %p160 = pneg %p159
    $region22: #{decoder_forward.7} parent=5 // pred_check_branch
      %162 = sbr.rel (%p160) target = $region24
    $region23: #{decoder_forward.7} parent=5 // pred_region
      // Predicated region
      $region25: #{decoder_forward.7} parent=23 // pred_check
        %p163 = pneg %p41
      $region26: #{decoder_forward.7} parent=23 // pred_check_branch
        %165 = sbr.rel (%p163) target = $region28
      $region27: #{decoder_forward.7} parent=23 // pred_region
        %p166 = scmp.lt.s32.totalorder %s16, 1
        %s167 = scalar_select %p166, %s16, 1
        %s168 = smul.addr %s167, 20
        %s169 = smul.addr %s168, 4
        %s170 = scalar_lea.vmem %s0, %s169
      $region28: #{decoder_forward.7} parent=23 // pred_fallthru
        _
    $region24: #{decoder_forward.7} parent=5 // pred_fallthru
      _
    %p171 = scmp.le.s32.totalorder 1, %s9
    %p172 = scmp.lt.s32.totalorder %s9, 3
    %p173 = pnand %p171, %p172
    %p174 = pneg %p173
    // Predicated region
    $region29: #{decoder_forward.7} parent=5 // pred_check
      _
    $region30: #{decoder_forward.7} parent=5 // pred_check_branch
      %176 = sbr.rel (%p173) target = $region32
    $region31: #{decoder_forward.7} parent=5 // pred_region
      %s177 = ssub.s32 %s9, 1
      %p178 = scmp.lt.s32.totalorder %s18, 1
      %s179 = scalar_select %p178, %s18, 1
      %s180 = smul.addr %s179, 20
      %s181 = smul.addr %s180, 4
      %s182 = scalar_lea.vmem %s0, %s181
      %p183 = pneg %p47
      %p184 = pneg %p44
      %s185 = smul.u32 6, %s19
      %p186 = scmp.lt.s32.totalorder %s185, 5
      %s187 = scalar_select %p186, %s185, 5
      %s188 = smul.addr %s187, 4
      %s189 = scalar_lea.vmem %s1, %s188
      %p190 = pneg %p73
      %p191 = pneg %p70
      %s192 = smul.u32 6, %s19
      %p193 = scmp.lt.s32.totalorder %s192, 5
      %s194 = scalar_select %p193, %s192, 5
      %s195 = scalar_lea.vmem %s2, %s194
      %p196 = pneg %p99
      %p197 = pneg %p96
      %p198 = pneg %p127
      %p199 = pneg %p124
      %s200 = smul.u32 6, %s19
      %p201 = scmp.lt.s32.totalorder %s18, 1
      %s202 = scalar_select %p201, %s18, 1
      %p203 = scmp.lt.s32.totalorder %s200, 5
      %s204 = scalar_select %p203, %s200, 5
      %s205 = smul.addr %s202, 192
      %s206 = sadd.s32 %s204, %s205
      %s207 = smul.addr %s206, 8
      %s208 = scalar_lea.vmem %s3, %s207
      %p209 = scmp.lt.s32.totalorder %s18, 1
      %s210 = scalar_select %p209, %s18, 1
      %s211 = smul.addr %s210, 20
      %s212 = smul.addr %s211, 4
      %s213 = scalar_lea.vmem %s0, %s212
      %s214 = smul.u32 6, %s19
      %p215 = scmp.lt.s32.totalorder %s214, 5
      %s216 = scalar_select %p215, %s214, 5
      %s217 = smul.addr %s216, 4
      %s218 = scalar_lea.vmem %s1, %s217
      %s219 = smul.u32 6, %s19
      %s220 = smul.u32 6, %s19
      %p221 = scmp.lt.s32.totalorder %s220, 5
      %s222 = scalar_select %p221, %s220, 5
      %s223 = scalar_lea.vmem %s2, %s222
      %s224 = smul.u32 6, %s19
      %s225 = smul.u32 6, %s19
      %p226 = scmp.lt.s32.totalorder %s18, 1
      %s227 = scalar_select %p226, %s18, 1
      %p228 = scmp.lt.s32.totalorder %s225, 5
      %s229 = scalar_select %p228, %s225, 5
      %s230 = smul.addr %s227, 192
      %s231 = sadd.s32 %s229, %s230
      %s232 = smul.addr %s231, 8
      %s233 = scalar_lea.vmem %s3, %s232
      %s234 = smul.u32 6, %s19
      %v236 = vld [vmem:[%s213] sm:$0xf]
      %v237 = vld [vmem:[%s213 + $0x4] sm:$0x1]
      %v238 = vld [vmem:[%s213 + $0x8] sm:$0xf]
      %v239 = vld [vmem:[%s213 + $0xc] sm:$0x1]
      %v240 = vld [vmem:[%s213 + $0x10] sm:$0xf]
      %v241 = vld [vmem:[%s213 + $0x14] sm:$0x1]
      %v242 = vld [vmem:[%s213 + $0x18] sm:$0xf]
      %v243 = vld [vmem:[%s213 + $0x1c] sm:$0x1]
      %v244 = vld [vmem:[%s213 + $0x20] sm:$0xf]
      %v245 = vld [vmem:[%s213 + $0x24] sm:$0x1]
      %v246 = vld [vmem:[%s213 + $0x28] sm:$0xf]
      %v247 = vld [vmem:[%s213 + $0x2c] sm:$0x1]
      %v248 = vld [vmem:[%s213 + $0x30] sm:$0xf]
      %v249 = vld [vmem:[%s213 + $0x34] sm:$0x1]
      %v250 = vld [vmem:[%s213 + $0x38] sm:$0xf]
      %v251 = vld [vmem:[%s213 + $0x3c] sm:$0x1]
      %v252 = vld [vmem:[%s213 + $0x40] sm:$0xf]
      %v253 = vld [vmem:[%s213 + $0x44] sm:$0x1]
      %v254 = vld [vmem:[%s213 + $0x48] sm:$0xf]
      %v255 = vld [vmem:[%s213 + $0x4c] sm:$0x1]
      %v256 = vmax.bf16 %v236, 0
      %v257 = vmax.bf16 %v237, 0
      %v258 = vmax.bf16 %v238, 0
      %v259 = vmax.bf16 %v239, 0
      %v260 = vmax.bf16 %v240, 0
      %v261 = vmax.bf16 %v241, 0
      %v262 = vmax.bf16 %v242, 0
      %v263 = vmax.bf16 %v243, 0
      %v264 = vmax.bf16 %v244, 0
      %v265 = vmax.bf16 %v245, 0
      %v266 = vmax.bf16 %v246, 0
      %v267 = vmax.bf16 %v247, 0
      %v268 = vmax.bf16 %v248, 0
      %v269 = vmax.bf16 %v249, 0
      %v270 = vmax.bf16 %v250, 0
      %v271 = vmax.bf16 %v251, 0
      %v272 = vmax.bf16 %v252, 0
      %v273 = vmax.bf16 %v253, 0
      %v274 = vmax.bf16 %v254, 0
      %v275 = vmax.bf16 %v255, 0
      %v284 = vunpack.c.l.b16 %v256
      %v285 = vunpack.c.l.b16 %v258
      %v286 = vunpack.c.l.b16 %v260
      %v287 = vunpack.c.l.b16 %v262
      %v288 = vunpack.c.l.b16 %v264
      %v289 = vunpack.c.l.b16 %v266
      %v290 = vunpack.c.l.b16 %v268
      %v291 = vunpack.c.l.b16 %v270
      %v292 = vpack.c.b16 %v285, %v284
      %v293 = vpack.c.b16 %v287, %v286
      %v294 = vpack.c.b16 %v289, %v288
      %v295 = vpack.c.b16 %v291, %v290
      %300 = vst [vmem:[#allocation2] sm:$0xff] %v292
      %301 = vst [vmem:[#allocation2 + $0x20] sm:$0xff] %v293
      %302 = vst [vmem:[#allocation2 + $0x40] sm:$0xff] %v294
      %303 = vst [vmem:[#allocation2 + $0x60] sm:$0xff] %v295
      %vm304 = vsmask.f32 3328
      %vm305 = vsmask.f32 7440
      %vm306 = vmor %vm304, %vm305
      %v308 = vshrl.u32 %v256, 16
      %v310 = vrot.slane %v308, 4
      %v311 = vshll.u32 %v256, 16
      %v313 = vrot.slane %v311, 5
      %v314 = vor.u32 %v310, %v313
      %v315 = vrot.slane %v314, 4
      %v317 = vshll.u32 %v257, 16
      %v319 = vrot.slane %v317, 5
      %v320 = vsel %vm306, %v315, %v319
      %v322 = vshrl.u32 %v258, 16
      %v324 = vrot.slane %v322, 4
      %v325 = vshll.u32 %v258, 16
      %v327 = vrot.slane %v325, 5
      %v328 = vor.u32 %v324, %v327
      %v329 = vrot.slane %v328, 4
      %v331 = vshll.u32 %v259, 16
      %v333 = vrot.slane %v331, 5
      %v334 = vsel %vm306, %v329, %v333
      %v336 = vshrl.u32 %v260, 16
      %v338 = vrot.slane %v336, 4
      %v339 = vshll.u32 %v260, 16
      %v341 = vrot.slane %v339, 5
      %v342 = vor.u32 %v338, %v341
      %v343 = vrot.slane %v342, 4
      %v345 = vshll.u32 %v261, 16
      %v347 = vrot.slane %v345, 5
      %v348 = vsel %vm306, %v343, %v347
      %v350 = vshrl.u32 %v262, 16
      %v352 = vrot.slane %v350, 4
      %v353 = vshll.u32 %v262, 16
      %v355 = vrot.slane %v353, 5
      %v356 = vor.u32 %v352, %v355
      %v357 = vrot.slane %v356, 4
      %v359 = vshll.u32 %v263, 16
      %v361 = vrot.slane %v359, 5
      %v362 = vsel %vm306, %v357, %v361
      %v364 = vshrl.u32 %v264, 16
      %v366 = vrot.slane %v364, 4
      %v367 = vshll.u32 %v264, 16
      %v369 = vrot.slane %v367, 5
      %v370 = vor.u32 %v366, %v369
      %v371 = vrot.slane %v370, 4
      %v373 = vshll.u32 %v265, 16
      %v375 = vrot.slane %v373, 5
      %v376 = vsel %vm306, %v371, %v375
      %v378 = vshrl.u32 %v266, 16
      %v380 = vrot.slane %v378, 4
      %v381 = vshll.u32 %v266, 16
      %v383 = vrot.slane %v381, 5
      %v384 = vor.u32 %v380, %v383
      %v385 = vrot.slane %v384, 4
      %v387 = vshll.u32 %v267, 16
      %v389 = vrot.slane %v387, 5
      %v390 = vsel %vm306, %v385, %v389
      %v392 = vshrl.u32 %v268, 16
      %v394 = vrot.slane %v392, 4
      %v395 = vshll.u32 %v268, 16
      %v397 = vrot.slane %v395, 5
      %v398 = vor.u32 %v394, %v397
      %v399 = vrot.slane %v398, 4
      %v401 = vshll.u32 %v269, 16
      %v403 = vrot.slane %v401, 5
      %v404 = vsel %vm306, %v399, %v403
      %v406 = vshrl.u32 %v270, 16
      %v408 = vrot.slane %v406, 4
      %v409 = vshll.u32 %v270, 16
      %v411 = vrot.slane %v409, 5
      %v412 = vor.u32 %v408, %v411
      %v413 = vrot.slane %v412, 4
      %v415 = vshll.u32 %v271, 16
      %v417 = vrot.slane %v415, 5
      %v418 = vsel %vm306, %v413, %v417
      %v419 = vunpack.c.l.b16 %v320
      %v420 = vunpack.c.l.b16 %v334
      %v421 = vunpack.c.l.b16 %v348
      %v422 = vunpack.c.l.b16 %v362
      %v423 = vunpack.c.l.b16 %v376
      %v424 = vunpack.c.l.b16 %v390
      %v425 = vunpack.c.l.b16 %v404
      %v426 = vunpack.c.l.b16 %v418
      %v427 = vpack.c.b16 %v420, %v419
      %v428 = vpack.c.b16 %v422, %v421
      %v429 = vpack.c.b16 %v424, %v423
      %v430 = vpack.c.b16 %v426, %v425
      %435 = vst [vmem:[#allocation2 + $0x8] sm:$0xff] %v427
      %436 = vst [vmem:[#allocation2 + $0x28] sm:$0xff] %v428
      %437 = vst [vmem:[#allocation2 + $0x48] sm:$0xff] %v429
      %438 = vst [vmem:[#allocation2 + $0x68] sm:$0xff] %v430
      %v440 = vunpack.c.l.b16 %v272
      %v441 = vpack.c.b16 %v286, %v285
      %v442 = vpack.c.b16 %v288, %v287
      %v443 = vpack.c.b16 %v290, %v289
      %v444 = vpack.c.b16 %v440, %v291
      %449 = vst [vmem:[#allocation2 + $0x10] sm:$0xff] %v441
      %450 = vst [vmem:[#allocation2 + $0x30] sm:$0xff] %v442
      %451 = vst [vmem:[#allocation2 + $0x50] sm:$0xff] %v443
      %452 = vst [vmem:[#allocation2 + $0x70] sm:$0xff] %v444
      %v454 = vshrl.u32 %v272, 16
      %v456 = vrot.slane %v454, 4
      %v457 = vshll.u32 %v272, 16
      %v459 = vrot.slane %v457, 5
      %v460 = vor.u32 %v456, %v459
      %v461 = vrot.slane %v460, 4
      %v463 = vshll.u32 %v273, 16
      %v465 = vrot.slane %v463, 5
      %v466 = vsel %vm306, %v461, %v465
      %v467 = vunpack.c.l.b16 %v466
      %v468 = vpack.c.b16 %v421, %v420
      %v469 = vpack.c.b16 %v423, %v422
      %v470 = vpack.c.b16 %v425, %v424
      %v471 = vpack.c.b16 %v467, %v426
      %476 = vst [vmem:[#allocation2 + $0x18] sm:$0xff] %v468
      %477 = vst [vmem:[#allocation2 + $0x38] sm:$0xff] %v469
      %478 = vst [vmem:[#allocation2 + $0x58] sm:$0xff] %v470
      %479 = vst [vmem:[#allocation2 + $0x78] sm:$0xff] %v471
      %v480 = vld [vmem:[#allocation2] sm:$0xff]
      %v481 = vld [vmem:[#allocation2 + $0x8] sm:$0xff]
      %v482 = vld [vmem:[#allocation2 + $0x10] sm:$0xff]
      %v483 = vld [vmem:[#allocation2 + $0x18] sm:$0xff]
      %v484 = vld [vmem:[#allocation2 + $0x20] sm:$0xff]
      %v485 = vld [vmem:[#allocation2 + $0x28] sm:$0xff]
      %v486 = vld [vmem:[#allocation2 + $0x30] sm:$0xff]
      %v487 = vld [vmem:[#allocation2 + $0x38] sm:$0xff]
      %v488 = vld [vmem:[#allocation2 + $0x40] sm:$0xff]
      %v489 = vld [vmem:[#allocation2 + $0x48] sm:$0xff]
      %v490 = vld [vmem:[#allocation2 + $0x50] sm:$0xff]
      %v491 = vld [vmem:[#allocation2 + $0x58] sm:$0xff]
      %v492 = vld [vmem:[#allocation2 + $0x60] sm:$0xff]
      %v493 = vld [vmem:[#allocation2 + $0x68] sm:$0xff]
      %v494 = vld [vmem:[#allocation2 + $0x70] sm:$0xff]
      %v495 = vld [vmem:[#allocation2 + $0x78] sm:$0xff]
      %v496 = vld [vmem:[%s218] sm:$0xff]
      %v497 = vld [vmem:[%s218 + $0x8] sm:$0xff]
      %v498 = vld [vmem:[%s218 + $0x10] sm:$0xff]
      %v499 = vld [vmem:[%s218 + $0x18] sm:$0xff]
      %v500 = vld [vmem:[%s218 + $0x20] sm:$0xff]
      %v501 = vld [vmem:[%s218 + $0x28] sm:$0xff]
      %v502 = vld [vmem:[%s218 + $0x30] sm:$0xff]
      %v503 = vld [vmem:[%s218 + $0x38] sm:$0xff]
      %v504 = vld [vmem:[%s218 + $0x40] sm:$0xff]
      %v505 = vld [vmem:[%s218 + $0x48] sm:$0xff]
      %v506 = vld [vmem:[%s218 + $0x50] sm:$0xff]
      %v507 = vld [vmem:[%s218 + $0x58] sm:$0xff]
      %v508 = vld [vmem:[%s218 + $0x60] sm:$0xff]
      %v509 = vld [vmem:[%s218 + $0x68] sm:$0xff]
      %v510 = vld [vmem:[%s218 + $0x70] sm:$0xff]
      %v511 = vld [vmem:[%s218 + $0x78] sm:$0xff]
      %v512 = vld [vmem:[%s218 + $0x80] sm:$0xff]
      %v513 = vld [vmem:[%s218 + $0x88] sm:$0xff]
      %v514 = vld [vmem:[%s218 + $0x90] sm:$0xff]
      %v515 = vld [vmem:[%s218 + $0x98] sm:$0xff]
      %v516 = vld [vmem:[%s218 + $0xa0] sm:$0xff]
      %v517 = vld [vmem:[%s218 + $0xa8] sm:$0xff]
      %v518 = vld [vmem:[%s218 + $0xb0] sm:$0xff]
      %v519 = vld [vmem:[%s218 + $0xb8] sm:$0xff]
      %v520 = vld [vmem:[%s218 + $0xc0] sm:$0xff]
      %v521 = vld [vmem:[%s218 + $0xc8] sm:$0xff]
      %v522 = vld [vmem:[%s218 + $0xd0] sm:$0xff]
      %v523 = vld [vmem:[%s218 + $0xd8] sm:$0xff]
      %v524 = vld [vmem:[%s218 + $0xe0] sm:$0xff]
      %v525 = vld [vmem:[%s218 + $0xe8] sm:$0xff]
      %v526 = vld [vmem:[%s218 + $0xf0] sm:$0xff]
      %v527 = vld [vmem:[%s218 + $0xf8] sm:$0xff]
      %v528 = vld [vmem:[%s218 + $0x100] sm:$0xff]
      %v529 = vld [vmem:[%s218 + $0x108] sm:$0xff]
      %v530 = vld [vmem:[%s218 + $0x110] sm:$0xff]
      %v531 = vld [vmem:[%s218 + $0x118] sm:$0xff]
      %v532 = vld [vmem:[%s218 + $0x120] sm:$0xff]
      %v533 = vld [vmem:[%s218 + $0x128] sm:$0xff]
      %v534 = vld [vmem:[%s218 + $0x130] sm:$0xff]
      %v535 = vld [vmem:[%s218 + $0x138] sm:$0xff]
      %v536 = vld [vmem:[%s218 + $0x140] sm:$0xff]
      %v537 = vld [vmem:[%s218 + $0x148] sm:$0xff]
      %v538 = vld [vmem:[%s218 + $0x150] sm:$0xff]
      %v539 = vld [vmem:[%s218 + $0x158] sm:$0xff]
      %v540 = vld [vmem:[%s218 + $0x160] sm:$0xff]
      %v541 = vld [vmem:[%s218 + $0x168] sm:$0xff]
      %v542 = vld [vmem:[%s218 + $0x170] sm:$0xff]
      %v543 = vld [vmem:[%s218 + $0x178] sm:$0xff]
      %v544 = vld [vmem:[%s218 + $0x180] sm:$0xff]
      %v545 = vld [vmem:[%s218 + $0x188] sm:$0xff]
      %v546 = vld [vmem:[%s218 + $0x190] sm:$0xff]
      %v547 = vld [vmem:[%s218 + $0x198] sm:$0xff]
      %v548 = vld [vmem:[%s218 + $0x1a0] sm:$0xff]
      %v549 = vld [vmem:[%s218 + $0x1a8] sm:$0xff]
      %v550 = vld [vmem:[%s218 + $0x1b0] sm:$0xff]
      %v551 = vld [vmem:[%s218 + $0x1b8] sm:$0xff]
      %v552 = vld [vmem:[%s218 + $0x1c0] sm:$0xff]
      %v553 = vld [vmem:[%s218 + $0x1c8] sm:$0xff]
      %v554 = vld [vmem:[%s218 + $0x1d0] sm:$0xff]
      %v555 = vld [vmem:[%s218 + $0x1d8] sm:$0xff]
      %v556 = vld [vmem:[%s218 + $0x1e0] sm:$0xff]
      %v557 = vld [vmem:[%s218 + $0x1e8] sm:$0xff]
      %v558 = vld [vmem:[%s218 + $0x1f0] sm:$0xff]
      %v559 = vld [vmem:[%s218 + $0x1f8] sm:$0xff]
      %v560 = vld [vmem:[%s218 + $0x200] sm:$0xff]
      %v561 = vld [vmem:[%s218 + $0x208] sm:$0xff]
      %v562 = vld [vmem:[%s218 + $0x210] sm:$0xff]
      %v563 = vld [vmem:[%s218 + $0x218] sm:$0xff]
      %v564 = vld [vmem:[%s218 + $0x220] sm:$0xff]
      %v565 = vld [vmem:[%s218 + $0x228] sm:$0xff]
      %v566 = vld [vmem:[%s218 + $0x230] sm:$0xff]
      %v567 = vld [vmem:[%s218 + $0x238] sm:$0xff]
      %v568 = vld [vmem:[%s218 + $0x240] sm:$0xff]
      %v569 = vld [vmem:[%s218 + $0x248] sm:$0xff]
      %v570 = vld [vmem:[%s218 + $0x250] sm:$0xff]
      %v571 = vld [vmem:[%s218 + $0x258] sm:$0xff]
      %v572 = vld [vmem:[%s218 + $0x260] sm:$0xff]
      %v573 = vld [vmem:[%s218 + $0x268] sm:$0xff]
      %v574 = vld [vmem:[%s218 + $0x270] sm:$0xff]
      %v575 = vld [vmem:[%s218 + $0x278] sm:$0xff]
      %v576 = vld [vmem:[%s218 + $0x280] sm:$0xff]
      %v577 = vld [vmem:[%s218 + $0x288] sm:$0xff]
      %v578 = vld [vmem:[%s218 + $0x290] sm:$0xff]
      %v579 = vld [vmem:[%s218 + $0x298] sm:$0xff]
      %v580 = vld [vmem:[%s218 + $0x2a0] sm:$0xff]
      %v581 = vld [vmem:[%s218 + $0x2a8] sm:$0xff]
      %v582 = vld [vmem:[%s218 + $0x2b0] sm:$0xff]
      %v583 = vld [vmem:[%s218 + $0x2b8] sm:$0xff]
      %v584 = vld [vmem:[%s218 + $0x2c0] sm:$0xff]
      %v585 = vld [vmem:[%s218 + $0x2c8] sm:$0xff]
      %v586 = vld [vmem:[%s218 + $0x2d0] sm:$0xff]
      %v587 = vld [vmem:[%s218 + $0x2d8] sm:$0xff]
      %v588 = vld [vmem:[%s218 + $0x2e0] sm:$0xff]
      %v589 = vld [vmem:[%s218 + $0x2e8] sm:$0xff]
      %v590 = vld [vmem:[%s218 + $0x2f0] sm:$0xff]
      %v591 = vld [vmem:[%s218 + $0x2f8] sm:$0xff]
      %v592 = vld [vmem:[%s218 + $0x300] sm:$0xff]
      %v593 = vld [vmem:[%s218 + $0x308] sm:$0xff]
      %v594 = vld [vmem:[%s218 + $0x310] sm:$0xff]
      %v595 = vld [vmem:[%s218 + $0x318] sm:$0xff]
      %v596 = vld [vmem:[%s218 + $0x320] sm:$0xff]
      %v597 = vld [vmem:[%s218 + $0x328] sm:$0xff]
      %v598 = vld [vmem:[%s218 + $0x330] sm:$0xff]
      %v599 = vld [vmem:[%s218 + $0x338] sm:$0xff]
      %v600 = vld [vmem:[%s218 + $0x340] sm:$0xff]
      %v601 = vld [vmem:[%s218 + $0x348] sm:$0xff]
      %v602 = vld [vmem:[%s218 + $0x350] sm:$0xff]
      %v603 = vld [vmem:[%s218 + $0x358] sm:$0xff]
      %v604 = vld [vmem:[%s218 + $0x360] sm:$0xff]
      %v605 = vld [vmem:[%s218 + $0x368] sm:$0xff]
      %v606 = vld [vmem:[%s218 + $0x370] sm:$0xff]
      %v607 = vld [vmem:[%s218 + $0x378] sm:$0xff]
      %v608 = vld [vmem:[%s218 + $0x380] sm:$0xff]
      %v609 = vld [vmem:[%s218 + $0x388] sm:$0xff]
      %v610 = vld [vmem:[%s218 + $0x390] sm:$0xff]
      %v611 = vld [vmem:[%s218 + $0x398] sm:$0xff]
      %v612 = vld [vmem:[%s218 + $0x3a0] sm:$0xff]
      %v613 = vld [vmem:[%s218 + $0x3a8] sm:$0xff]
      %v614 = vld [vmem:[%s218 + $0x3b0] sm:$0xff]
      %v615 = vld [vmem:[%s218 + $0x3b8] sm:$0xff]
      %v616 = vld [vmem:[%s218 + $0x3c0] sm:$0xff]
      %v617 = vld [vmem:[%s218 + $0x3c8] sm:$0xff]
      %v618 = vld [vmem:[%s218 + $0x3d0] sm:$0xff]
      %v619 = vld [vmem:[%s218 + $0x3d8] sm:$0xff]
      %v620 = vld [vmem:[%s218 + $0x3e0] sm:$0xff]
      %v621 = vld [vmem:[%s218 + $0x3e8] sm:$0xff]
      %v622 = vld [vmem:[%s218 + $0x3f0] sm:$0xff]
      %v623 = vld [vmem:[%s218 + $0x3f8] sm:$0xff]
      %v624 = vld [vmem:[%s218 + $0x400] sm:$0xff]
      %v625 = vld [vmem:[%s218 + $0x408] sm:$0xff]
      %v626 = vld [vmem:[%s218 + $0x410] sm:$0xff]
      %v627 = vld [vmem:[%s218 + $0x418] sm:$0xff]
      %v628 = vld [vmem:[%s218 + $0x420] sm:$0xff]
      %v629 = vld [vmem:[%s218 + $0x428] sm:$0xff]
      %v630 = vld [vmem:[%s218 + $0x430] sm:$0xff]
      %v631 = vld [vmem:[%s218 + $0x438] sm:$0xff]
      %v632 = vld [vmem:[%s218 + $0x440] sm:$0xff]
      %v633 = vld [vmem:[%s218 + $0x448] sm:$0xff]
      %v634 = vld [vmem:[%s218 + $0x450] sm:$0xff]
      %v635 = vld [vmem:[%s218 + $0x458] sm:$0xff]
      %v636 = vld [vmem:[%s218 + $0x460] sm:$0xff]
      %v637 = vld [vmem:[%s218 + $0x468] sm:$0xff]
      %v638 = vld [vmem:[%s218 + $0x470] sm:$0xff]
      %v639 = vld [vmem:[%s218 + $0x478] sm:$0xff]
      %v640 = vld [vmem:[%s218 + $0x480] sm:$0xff]
      %v641 = vld [vmem:[%s218 + $0x488] sm:$0xff]
      %v642 = vld [vmem:[%s218 + $0x490] sm:$0xff]
      %v643 = vld [vmem:[%s218 + $0x498] sm:$0xff]
      %v644 = vld [vmem:[%s218 + $0x4a0] sm:$0xff]
      %v645 = vld [vmem:[%s218 + $0x4a8] sm:$0xff]
      %v646 = vld [vmem:[%s218 + $0x4b0] sm:$0xff]
      %v647 = vld [vmem:[%s218 + $0x4b8] sm:$0xff]
      %v648 = vld [vmem:[%s218 + $0x4c0] sm:$0xff]
      %v649 = vld [vmem:[%s218 + $0x4c8] sm:$0xff]
      %v650 = vld [vmem:[%s218 + $0x4d0] sm:$0xff]
      %v651 = vld [vmem:[%s218 + $0x4d8] sm:$0xff]
      %v652 = vld [vmem:[%s218 + $0x4e0] sm:$0xff]
      %v653 = vld [vmem:[%s218 + $0x4e8] sm:$0xff]
      %v654 = vld [vmem:[%s218 + $0x4f0] sm:$0xff]
      %v655 = vld [vmem:[%s218 + $0x4f8] sm:$0xff]
      %v656 = vld [vmem:[%s218 + $0x500] sm:$0xff]
      %v657 = vld [vmem:[%s218 + $0x508] sm:$0xff]
      %v658 = vld [vmem:[%s218 + $0x510] sm:$0xff]
      %v659 = vld [vmem:[%s218 + $0x518] sm:$0xff]
      %v660 = vld [vmem:[%s218 + $0x520] sm:$0xff]
      %v661 = vld [vmem:[%s218 + $0x528] sm:$0xff]
      %v662 = vld [vmem:[%s218 + $0x530] sm:$0xff]
      %v663 = vld [vmem:[%s218 + $0x538] sm:$0xff]
      %v664 = vld [vmem:[%s218 + $0x540] sm:$0xff]
      %v665 = vld [vmem:[%s218 + $0x548] sm:$0xff]
      %v666 = vld [vmem:[%s218 + $0x550] sm:$0xff]
      %v667 = vld [vmem:[%s218 + $0x558] sm:$0xff]
      %v668 = vld [vmem:[%s218 + $0x560] sm:$0xff]
      %v669 = vld [vmem:[%s218 + $0x568] sm:$0xff]
      %v670 = vld [vmem:[%s218 + $0x570] sm:$0xff]
      %v671 = vld [vmem:[%s218 + $0x578] sm:$0xff]
      %v672 = vld [vmem:[%s218 + $0x580] sm:$0xff]
      %v673 = vld [vmem:[%s218 + $0x588] sm:$0xff]
      %v674 = vld [vmem:[%s218 + $0x590] sm:$0xff]
      %v675 = vld [vmem:[%s218 + $0x598] sm:$0xff]
      %v676 = vld [vmem:[%s218 + $0x5a0] sm:$0xff]
      %v677 = vld [vmem:[%s218 + $0x5a8] sm:$0xff]
      %v678 = vld [vmem:[%s218 + $0x5b0] sm:$0xff]
      %v679 = vld [vmem:[%s218 + $0x5b8] sm:$0xff]
      %v680 = vld [vmem:[%s218 + $0x5c0] sm:$0xff]
      %v681 = vld [vmem:[%s218 + $0x5c8] sm:$0xff]
      %v682 = vld [vmem:[%s218 + $0x5d0] sm:$0xff]
      %v683 = vld [vmem:[%s218 + $0x5d8] sm:$0xff]
      %v684 = vld [vmem:[%s218 + $0x5e0] sm:$0xff]
      %v685 = vld [vmem:[%s218 + $0x5e8] sm:$0xff]
      %v686 = vld [vmem:[%s218 + $0x5f0] sm:$0xff]
      %v687 = vld [vmem:[%s218 + $0x5f8] sm:$0xff]
      %v688 = vld [vmem:[%s223] sm:$0x3f]
      %v690 = vlaneseq
      %v691 = vshrl.u32 %v690, 7
      %v692 = vsub.s32 0, %v691
      %v693 = vrot.slane %v688, %v692
      %v694 = vlaneseq
      %v695 = vshrl.u32 %v694, 7
      %v696 = vsub.s32 1, %v695
      %v697 = vrot.slane %v688, %v696
      %v698 = vlaneseq
      %v699 = vshrl.u32 %v698, 7
      %v700 = vsub.s32 2, %v699
      %v701 = vrot.slane %v688, %v700
      %v702 = vlaneseq
      %v703 = vshrl.u32 %v702, 7
      %v704 = vsub.s32 3, %v703
      %v705 = vrot.slane %v688, %v704
      %v706 = vlaneseq
      %v707 = vshrl.u32 %v706, 7
      %v708 = vsub.s32 4, %v707
      %v709 = vrot.slane %v688, %v708
      %v710 = vlaneseq
      %v711 = vshrl.u32 %v710, 7
      %v712 = vsub.s32 5, %v711
      %v713 = vrot.slane %v688, %v712
      %v912 = vunpack.c.l.b16 %v496
      %v913 = vunpack.c.h.b16 %v496
      %v914 = vunpack.c.l.b16 %v497
      %v915 = vunpack.c.h.b16 %v497
      %v916 = vunpack.c.l.b16 %v498
      %v917 = vunpack.c.h.b16 %v498
      %v918 = vunpack.c.l.b16 %v499
      %v919 = vunpack.c.h.b16 %v499
      %v920 = vunpack.c.l.b16 %v500
      %v921 = vunpack.c.h.b16 %v500
      %v922 = vunpack.c.l.b16 %v501
      %v923 = vunpack.c.h.b16 %v501
      %v924 = vunpack.c.l.b16 %v502
      %v925 = vunpack.c.h.b16 %v502
      %v926 = vunpack.c.l.b16 %v503
      %v927 = vunpack.c.h.b16 %v503
      %v928 = vunpack.c.l.b16 %v504
      %v929 = vunpack.c.h.b16 %v504
      %v930 = vunpack.c.l.b16 %v505
      %v931 = vunpack.c.h.b16 %v505
      %v932 = vunpack.c.l.b16 %v506
      %v933 = vunpack.c.h.b16 %v506
      %v934 = vunpack.c.l.b16 %v507
      %v935 = vunpack.c.h.b16 %v507
      %v936 = vunpack.c.l.b16 %v508
      %v937 = vunpack.c.h.b16 %v508
      %v938 = vunpack.c.l.b16 %v509
      %v939 = vunpack.c.h.b16 %v509
      %v940 = vunpack.c.l.b16 %v510
      %v941 = vunpack.c.h.b16 %v510
      %v942 = vunpack.c.l.b16 %v511
      %v943 = vunpack.c.h.b16 %v511
      %v944 = vunpack.c.l.b16 %v512
      %v945 = vunpack.c.h.b16 %v512
      %v946 = vunpack.c.l.b16 %v513
      %v947 = vunpack.c.h.b16 %v513
      %v948 = vunpack.c.l.b16 %v514
      %v949 = vunpack.c.h.b16 %v514
      %v950 = vunpack.c.l.b16 %v515
      %v951 = vunpack.c.h.b16 %v515
      %v952 = vunpack.c.l.b16 %v516
      %v953 = vunpack.c.h.b16 %v516
      %v954 = vunpack.c.l.b16 %v517
      %v955 = vunpack.c.h.b16 %v517
      %v956 = vunpack.c.l.b16 %v518
      %v957 = vunpack.c.h.b16 %v518
      %v958 = vunpack.c.l.b16 %v519
      %v959 = vunpack.c.h.b16 %v519
      %v960 = vunpack.c.l.b16 %v520
      %v961 = vunpack.c.h.b16 %v520
      %v962 = vunpack.c.l.b16 %v521
      %v963 = vunpack.c.h.b16 %v521
      %v964 = vunpack.c.l.b16 %v522
      %v965 = vunpack.c.h.b16 %v522
      %v966 = vunpack.c.l.b16 %v523
      %v967 = vunpack.c.h.b16 %v523
      %v968 = vunpack.c.l.b16 %v524
      %v969 = vunpack.c.h.b16 %v524
      %v970 = vunpack.c.l.b16 %v525
      %v971 = vunpack.c.h.b16 %v525
      %v972 = vunpack.c.l.b16 %v526
      %v973 = vunpack.c.h.b16 %v526
      %v974 = vunpack.c.l.b16 %v527
      %v975 = vunpack.c.h.b16 %v527
      %v976 = vunpack.c.l.b16 %v528
      %v977 = vunpack.c.h.b16 %v528
      %v978 = vunpack.c.l.b16 %v529
      %v979 = vunpack.c.h.b16 %v529
      %v980 = vunpack.c.l.b16 %v530
      %v981 = vunpack.c.h.b16 %v530
      %v982 = vunpack.c.l.b16 %v531
      %v983 = vunpack.c.h.b16 %v531
      %v984 = vunpack.c.l.b16 %v532
      %v985 = vunpack.c.h.b16 %v532
      %v986 = vunpack.c.l.b16 %v533
      %v987 = vunpack.c.h.b16 %v533
      %v988 = vunpack.c.l.b16 %v534
      %v989 = vunpack.c.h.b16 %v534
      %v990 = vunpack.c.l.b16 %v535
      %v991 = vunpack.c.h.b16 %v535
      %v992 = vunpack.c.l.b16 %v536
      %v993 = vunpack.c.h.b16 %v536
      %v994 = vunpack.c.l.b16 %v537
      %v995 = vunpack.c.h.b16 %v537
      %v996 = vunpack.c.l.b16 %v538
      %v997 = vunpack.c.h.b16 %v538
      %v998 = vunpack.c.l.b16 %v539
      %v999 = vunpack.c.h.b16 %v539
      %v1000 = vunpack.c.l.b16 %v540
      %v1001 = vunpack.c.h.b16 %v540
      %v1002 = vunpack.c.l.b16 %v541
      %v1003 = vunpack.c.h.b16 %v541
      %v1004 = vunpack.c.l.b16 %v542
      %v1005 = vunpack.c.h.b16 %v542
      %v1006 = vunpack.c.l.b16 %v543
      %v1007 = vunpack.c.h.b16 %v543
      %v1008 = vunpack.c.l.b16 %v544
      %v1009 = vunpack.c.h.b16 %v544
      %v1010 = vunpack.c.l.b16 %v545
      %v1011 = vunpack.c.h.b16 %v545
      %v1012 = vunpack.c.l.b16 %v546
      %v1013 = vunpack.c.h.b16 %v546
      %v1014 = vunpack.c.l.b16 %v547
      %v1015 = vunpack.c.h.b16 %v547
      %v1016 = vunpack.c.l.b16 %v548
      %v1017 = vunpack.c.h.b16 %v548
      %v1018 = vunpack.c.l.b16 %v549
      %v1019 = vunpack.c.h.b16 %v549
      %v1020 = vunpack.c.l.b16 %v550
      %v1021 = vunpack.c.h.b16 %v550
      %v1022 = vunpack.c.l.b16 %v551
      %v1023 = vunpack.c.h.b16 %v551
      %v1024 = vunpack.c.l.b16 %v552
      %v1025 = vunpack.c.h.b16 %v552
      %v1026 = vunpack.c.l.b16 %v553
      %v1027 = vunpack.c.h.b16 %v553
      %v1028 = vunpack.c.l.b16 %v554
      %v1029 = vunpack.c.h.b16 %v554
      %v1030 = vunpack.c.l.b16 %v555
      %v1031 = vunpack.c.h.b16 %v555
      %v1032 = vunpack.c.l.b16 %v556
      %v1033 = vunpack.c.h.b16 %v556
      %v1034 = vunpack.c.l.b16 %v557
      %v1035 = vunpack.c.h.b16 %v557
      %v1036 = vunpack.c.l.b16 %v558
      %v1037 = vunpack.c.h.b16 %v558
      %v1038 = vunpack.c.l.b16 %v559
      %v1039 = vunpack.c.h.b16 %v559
      %v1040 = vunpack.c.l.b16 %v560
      %v1041 = vunpack.c.h.b16 %v560
      %v1042 = vunpack.c.l.b16 %v561
      %v1043 = vunpack.c.h.b16 %v561
      %v1044 = vunpack.c.l.b16 %v562
      %v1045 = vunpack.c.h.b16 %v562
      %v1046 = vunpack.c.l.b16 %v563
      %v1047 = vunpack.c.h.b16 %v563
      %v1048 = vunpack.c.l.b16 %v564
      %v1049 = vunpack.c.h.b16 %v564
      %v1050 = vunpack.c.l.b16 %v565
      %v1051 = vunpack.c.h.b16 %v565
      %v1052 = vunpack.c.l.b16 %v566
      %v1053 = vunpack.c.h.b16 %v566
      %v1054 = vunpack.c.l.b16 %v567
      %v1055 = vunpack.c.h.b16 %v567
      %v1056 = vunpack.c.l.b16 %v568
      %v1057 = vunpack.c.h.b16 %v568
      %v1058 = vunpack.c.l.b16 %v569
      %v1059 = vunpack.c.h.b16 %v569
      %v1060 = vunpack.c.l.b16 %v570
      %v1061 = vunpack.c.h.b16 %v570
      %v1062 = vunpack.c.l.b16 %v571
      %v1063 = vunpack.c.h.b16 %v571
      %v1064 = vunpack.c.l.b16 %v572
      %v1065 = vunpack.c.h.b16 %v572
      %v1066 = vunpack.c.l.b16 %v573
      %v1067 = vunpack.c.h.b16 %v573
      %v1068 = vunpack.c.l.b16 %v574
      %v1069 = vunpack.c.h.b16 %v574
      %v1070 = vunpack.c.l.b16 %v575
      %v1071 = vunpack.c.h.b16 %v575
      %v1072 = vunpack.c.l.b16 %v576
      %v1073 = vunpack.c.h.b16 %v576
      %v1074 = vunpack.c.l.b16 %v577
      %v1075 = vunpack.c.h.b16 %v577
      %v1076 = vunpack.c.l.b16 %v578
      %v1077 = vunpack.c.h.b16 %v578
      %v1078 = vunpack.c.l.b16 %v579
      %v1079 = vunpack.c.h.b16 %v579
      %v1080 = vunpack.c.l.b16 %v580
      %v1081 = vunpack.c.h.b16 %v580
      %v1082 = vunpack.c.l.b16 %v581
      %v1083 = vunpack.c.h.b16 %v581
      %v1084 = vunpack.c.l.b16 %v582
      %v1085 = vunpack.c.h.b16 %v582
      %v1086 = vunpack.c.l.b16 %v583
      %v1087 = vunpack.c.h.b16 %v583
      %v1088 = vunpack.c.l.b16 %v584
      %v1089 = vunpack.c.h.b16 %v584
      %v1090 = vunpack.c.l.b16 %v585
      %v1091 = vunpack.c.h.b16 %v585
      %v1092 = vunpack.c.l.b16 %v586
      %v1093 = vunpack.c.h.b16 %v586
      %v1094 = vunpack.c.l.b16 %v587
      %v1095 = vunpack.c.h.b16 %v587
      %v1096 = vunpack.c.l.b16 %v588
      %v1097 = vunpack.c.h.b16 %v588
      %v1098 = vunpack.c.l.b16 %v589
      %v1099 = vunpack.c.h.b16 %v589
      %v1100 = vunpack.c.l.b16 %v590
      %v1101 = vunpack.c.h.b16 %v590
      %v1102 = vunpack.c.l.b16 %v591
      %v1103 = vunpack.c.h.b16 %v591
      %v1104 = vunpack.c.l.b16 %v592
      %v1105 = vunpack.c.h.b16 %v592
      %v1106 = vunpack.c.l.b16 %v593
      %v1107 = vunpack.c.h.b16 %v593
      %v1108 = vunpack.c.l.b16 %v594
      %v1109 = vunpack.c.h.b16 %v594
      %v1110 = vunpack.c.l.b16 %v595
      %v1111 = vunpack.c.h.b16 %v595
      %v1112 = vunpack.c.l.b16 %v596
      %v1113 = vunpack.c.h.b16 %v596
      %v1114 = vunpack.c.l.b16 %v597
      %v1115 = vunpack.c.h.b16 %v597
      %v1116 = vunpack.c.l.b16 %v598
      %v1117 = vunpack.c.h.b16 %v598
      %v1118 = vunpack.c.l.b16 %v599
      %v1119 = vunpack.c.h.b16 %v599
      %v1120 = vunpack.c.l.b16 %v600
      %v1121 = vunpack.c.h.b16 %v600
      %v1122 = vunpack.c.l.b16 %v601
      %v1123 = vunpack.c.h.b16 %v601
      %v1124 = vunpack.c.l.b16 %v602
      %v1125 = vunpack.c.h.b16 %v602
      %v1126 = vunpack.c.l.b16 %v603
      %v1127 = vunpack.c.h.b16 %v603
      %v1128 = vunpack.c.l.b16 %v604
      %v1129 = vunpack.c.h.b16 %v604
      %v1130 = vunpack.c.l.b16 %v605
      %v1131 = vunpack.c.h.b16 %v605
      %v1132 = vunpack.c.l.b16 %v606
      %v1133 = vunpack.c.h.b16 %v606
      %v1134 = vunpack.c.l.b16 %v607
      %v1135 = vunpack.c.h.b16 %v607
      %v1136 = vunpack.c.l.b16 %v608
      %v1137 = vunpack.c.h.b16 %v608
      %v1138 = vunpack.c.l.b16 %v609
      %v1139 = vunpack.c.h.b16 %v609
      %v1140 = vunpack.c.l.b16 %v610
      %v1141 = vunpack.c.h.b16 %v610
      %v1142 = vunpack.c.l.b16 %v611
      %v1143 = vunpack.c.h.b16 %v611
      %v1144 = vunpack.c.l.b16 %v612
      %v1145 = vunpack.c.h.b16 %v612
      %v1146 = vunpack.c.l.b16 %v613
      %v1147 = vunpack.c.h.b16 %v613
      %v1148 = vunpack.c.l.b16 %v614
      %v1149 = vunpack.c.h.b16 %v614
      %v1150 = vunpack.c.l.b16 %v615
      %v1151 = vunpack.c.h.b16 %v615
      %v1152 = vunpack.c.l.b16 %v616
      %v1153 = vunpack.c.h.b16 %v616
      %v1154 = vunpack.c.l.b16 %v617
      %v1155 = vunpack.c.h.b16 %v617
      %v1156 = vunpack.c.l.b16 %v618
      %v1157 = vunpack.c.h.b16 %v618
      %v1158 = vunpack.c.l.b16 %v619
      %v1159 = vunpack.c.h.b16 %v619
      %v1160 = vunpack.c.l.b16 %v620
      %v1161 = vunpack.c.h.b16 %v620
      %v1162 = vunpack.c.l.b16 %v621
      %v1163 = vunpack.c.h.b16 %v621
      %v1164 = vunpack.c.l.b16 %v622
      %v1165 = vunpack.c.h.b16 %v622
      %v1166 = vunpack.c.l.b16 %v623
      %v1167 = vunpack.c.h.b16 %v623
      %v1168 = vunpack.c.l.b16 %v624
      %v1169 = vunpack.c.h.b16 %v624
      %v1170 = vunpack.c.l.b16 %v625
      %v1171 = vunpack.c.h.b16 %v625
      %v1172 = vunpack.c.l.b16 %v626
      %v1173 = vunpack.c.h.b16 %v626
      %v1174 = vunpack.c.l.b16 %v627
      %v1175 = vunpack.c.h.b16 %v627
      %v1176 = vunpack.c.l.b16 %v628
      %v1177 = vunpack.c.h.b16 %v628
      %v1178 = vunpack.c.l.b16 %v629
      %v1179 = vunpack.c.h.b16 %v629
      %v1180 = vunpack.c.l.b16 %v630
      %v1181 = vunpack.c.h.b16 %v630
      %v1182 = vunpack.c.l.b16 %v631
      %v1183 = vunpack.c.h.b16 %v631
      %v1184 = vunpack.c.l.b16 %v632
      %v1185 = vunpack.c.h.b16 %v632
      %v1186 = vunpack.c.l.b16 %v633
      %v1187 = vunpack.c.h.b16 %v633
      %v1188 = vunpack.c.l.b16 %v634
      %v1189 = vunpack.c.h.b16 %v634
      %v1190 = vunpack.c.l.b16 %v635
      %v1191 = vunpack.c.h.b16 %v635
      %v1192 = vunpack.c.l.b16 %v636
      %v1193 = vunpack.c.h.b16 %v636
      %v1194 = vunpack.c.l.b16 %v637
      %v1195 = vunpack.c.h.b16 %v637
      %v1196 = vunpack.c.l.b16 %v638
      %v1197 = vunpack.c.h.b16 %v638
      %v1198 = vunpack.c.l.b16 %v639
      %v1199 = vunpack.c.h.b16 %v639
      %v1200 = vunpack.c.l.b16 %v640
      %v1201 = vunpack.c.h.b16 %v640
      %v1202 = vunpack.c.l.b16 %v641
      %v1203 = vunpack.c.h.b16 %v641
      %v1204 = vunpack.c.l.b16 %v642
      %v1205 = vunpack.c.h.b16 %v642
      %v1206 = vunpack.c.l.b16 %v643
      %v1207 = vunpack.c.h.b16 %v643
      %v1208 = vunpack.c.l.b16 %v644
      %v1209 = vunpack.c.h.b16 %v644
      %v1210 = vunpack.c.l.b16 %v645
      %v1211 = vunpack.c.h.b16 %v645
      %v1212 = vunpack.c.l.b16 %v646
      %v1213 = vunpack.c.h.b16 %v646
      %v1214 = vunpack.c.l.b16 %v647
      %v1215 = vunpack.c.h.b16 %v647
      %v1216 = vunpack.c.l.b16 %v648
      %v1217 = vunpack.c.h.b16 %v648
      %v1218 = vunpack.c.l.b16 %v649
      %v1219 = vunpack.c.h.b16 %v649
      %v1220 = vunpack.c.l.b16 %v650
      %v1221 = vunpack.c.h.b16 %v650
      %v1222 = vunpack.c.l.b16 %v651
      %v1223 = vunpack.c.h.b16 %v651
      %v1224 = vunpack.c.l.b16 %v652
      %v1225 = vunpack.c.h.b16 %v652
      %v1226 = vunpack.c.l.b16 %v653
      %v1227 = vunpack.c.h.b16 %v653
      %v1228 = vunpack.c.l.b16 %v654
      %v1229 = vunpack.c.h.b16 %v654
      %v1230 = vunpack.c.l.b16 %v655
      %v1231 = vunpack.c.h.b16 %v655
      %v1232 = vunpack.c.l.b16 %v656
      %v1233 = vunpack.c.h.b16 %v656
      %v1234 = vunpack.c.l.b16 %v657
      %v1235 = vunpack.c.h.b16 %v657
      %v1236 = vunpack.c.l.b16 %v658
      %v1237 = vunpack.c.h.b16 %v658
      %v1238 = vunpack.c.l.b16 %v659
      %v1239 = vunpack.c.h.b16 %v659
      %v1240 = vunpack.c.l.b16 %v660
      %v1241 = vunpack.c.h.b16 %v660
      %v1242 = vunpack.c.l.b16 %v661
      %v1243 = vunpack.c.h.b16 %v661
      %v1244 = vunpack.c.l.b16 %v662
      %v1245 = vunpack.c.h.b16 %v662
      %v1246 = vunpack.c.l.b16 %v663
      %v1247 = vunpack.c.h.b16 %v663
      %v1248 = vunpack.c.l.b16 %v664
      %v1249 = vunpack.c.h.b16 %v664
      %v1250 = vunpack.c.l.b16 %v665
      %v1251 = vunpack.c.h.b16 %v665
      %v1252 = vunpack.c.l.b16 %v666
      %v1253 = vunpack.c.h.b16 %v666
      %v1254 = vunpack.c.l.b16 %v667
      %v1255 = vunpack.c.h.b16 %v667
      %v1256 = vunpack.c.l.b16 %v668
      %v1257 = vunpack.c.h.b16 %v668
      %v1258 = vunpack.c.l.b16 %v669
      %v1259 = vunpack.c.h.b16 %v669
      %v1260 = vunpack.c.l.b16 %v670
      %v1261 = vunpack.c.h.b16 %v670
      %v1262 = vunpack.c.l.b16 %v671
      %v1263 = vunpack.c.h.b16 %v671
      %v1264 = vunpack.c.l.b16 %v672
      %v1265 = vunpack.c.h.b16 %v672
      %v1266 = vunpack.c.l.b16 %v673
      %v1267 = vunpack.c.h.b16 %v673
      %v1268 = vunpack.c.l.b16 %v674
      %v1269 = vunpack.c.h.b16 %v674
      %v1270 = vunpack.c.l.b16 %v675
      %v1271 = vunpack.c.h.b16 %v675
      %v1272 = vunpack.c.l.b16 %v676
      %v1273 = vunpack.c.h.b16 %v676
      %v1274 = vunpack.c.l.b16 %v677
      %v1275 = vunpack.c.h.b16 %v677
      %v1276 = vunpack.c.l.b16 %v678
      %v1277 = vunpack.c.h.b16 %v678
      %v1278 = vunpack.c.l.b16 %v679
      %v1279 = vunpack.c.h.b16 %v679
      %v1280 = vunpack.c.l.b16 %v680
      %v1281 = vunpack.c.h.b16 %v680
      %v1282 = vunpack.c.l.b16 %v681
      %v1283 = vunpack.c.h.b16 %v681
      %v1284 = vunpack.c.l.b16 %v682
      %v1285 = vunpack.c.h.b16 %v682
      %v1286 = vunpack.c.l.b16 %v683
      %v1287 = vunpack.c.h.b16 %v683
      %v1288 = vunpack.c.l.b16 %v684
      %v1289 = vunpack.c.h.b16 %v684
      %v1290 = vunpack.c.l.b16 %v685
      %v1291 = vunpack.c.h.b16 %v685
      %v1292 = vunpack.c.l.b16 %v686
      %v1293 = vunpack.c.h.b16 %v686
      %v1294 = vunpack.c.l.b16 %v687
      %v1295 = vunpack.c.h.b16 %v687
      %v1296 = vpack.c.b16 %v918, %v912
      %v1297 = vpack.c.b16 %v919, %v913
      %v1298 = vpack.c.b16 %v920, %v914
      %v1299 = vpack.c.b16 %v921, %v915
      %v1300 = vpack.c.b16 %v922, %v916
      %v1301 = vpack.c.b16 %v923, %v917
      %v1302 = vpack.c.b16 %v930, %v924
      %v1303 = vpack.c.b16 %v931, %v925
      %v1304 = vpack.c.b16 %v932, %v926
      %v1305 = vpack.c.b16 %v933, %v927
      %v1306 = vpack.c.b16 %v934, %v928
      %v1307 = vpack.c.b16 %v935, %v929
      %v1308 = vpack.c.b16 %v942, %v936
      %v1309 = vpack.c.b16 %v943, %v937
      %v1310 = vpack.c.b16 %v944, %v938
      %v1311 = vpack.c.b16 %v945, %v939
      %v1312 = vpack.c.b16 %v946, %v940
      %v1313 = vpack.c.b16 %v947, %v941
      %v1314 = vpack.c.b16 %v954, %v948
      %v1315 = vpack.c.b16 %v955, %v949
      %v1316 = vpack.c.b16 %v956, %v950
      %v1317 = vpack.c.b16 %v957, %v951
      %v1318 = vpack.c.b16 %v958, %v952
      %v1319 = vpack.c.b16 %v959, %v953
      %v1320 = vpack.c.b16 %v966, %v960
      %v1321 = vpack.c.b16 %v967, %v961
      %v1322 = vpack.c.b16 %v968, %v962
      %v1323 = vpack.c.b16 %v969, %v963
      %v1324 = vpack.c.b16 %v970, %v964
      %v1325 = vpack.c.b16 %v971, %v965
      %v1326 = vpack.c.b16 %v978, %v972
      %v1327 = vpack.c.b16 %v979, %v973
      %v1328 = vpack.c.b16 %v980, %v974
      %v1329 = vpack.c.b16 %v981, %v975
      %v1330 = vpack.c.b16 %v982, %v976
      %v1331 = vpack.c.b16 %v983, %v977
      %v1332 = vpack.c.b16 %v990, %v984
      %v1333 = vpack.c.b16 %v991, %v985
      %v1334 = vpack.c.b16 %v992, %v986
      %v1335 = vpack.c.b16 %v993, %v987
      %v1336 = vpack.c.b16 %v994, %v988
      %v1337 = vpack.c.b16 %v995, %v989
      %v1338 = vpack.c.b16 %v1002, %v996
      %v1339 = vpack.c.b16 %v1003, %v997
      %v1340 = vpack.c.b16 %v1004, %v998
      %v1341 = vpack.c.b16 %v1005, %v999
      %v1342 = vpack.c.b16 %v1006, %v1000
      %v1343 = vpack.c.b16 %v1007, %v1001
      %v1344 = vpack.c.b16 %v1014, %v1008
      %v1345 = vpack.c.b16 %v1015, %v1009
      %v1346 = vpack.c.b16 %v1016, %v1010
      %v1347 = vpack.c.b16 %v1017, %v1011
      %v1348 = vpack.c.b16 %v1018, %v1012
      %v1349 = vpack.c.b16 %v1019, %v1013
      %v1350 = vpack.c.b16 %v1026, %v1020
      %v1351 = vpack.c.b16 %v1027, %v1021
      %v1352 = vpack.c.b16 %v1028, %v1022
      %v1353 = vpack.c.b16 %v1029, %v1023
      %v1354 = vpack.c.b16 %v1030, %v1024
      %v1355 = vpack.c.b16 %v1031, %v1025
      %v1356 = vpack.c.b16 %v1038, %v1032
      %v1357 = vpack.c.b16 %v1039, %v1033
      %v1358 = vpack.c.b16 %v1040, %v1034
      %v1359 = vpack.c.b16 %v1041, %v1035
      %v1360 = vpack.c.b16 %v1042, %v1036
      %v1361 = vpack.c.b16 %v1043, %v1037
      %v1362 = vpack.c.b16 %v1050, %v1044
      %v1363 = vpack.c.b16 %v1051, %v1045
      %v1364 = vpack.c.b16 %v1052, %v1046
      %v1365 = vpack.c.b16 %v1053, %v1047
      %v1366 = vpack.c.b16 %v1054, %v1048
      %v1367 = vpack.c.b16 %v1055, %v1049
      %v1368 = vpack.c.b16 %v1062, %v1056
      %v1369 = vpack.c.b16 %v1063, %v1057
      %v1370 = vpack.c.b16 %v1064, %v1058
      %v1371 = vpack.c.b16 %v1065, %v1059
      %v1372 = vpack.c.b16 %v1066, %v1060
      %v1373 = vpack.c.b16 %v1067, %v1061
      %v1374 = vpack.c.b16 %v1074, %v1068
      %v1375 = vpack.c.b16 %v1075, %v1069
      %v1376 = vpack.c.b16 %v1076, %v1070
      %v1377 = vpack.c.b16 %v1077, %v1071
      %v1378 = vpack.c.b16 %v1078, %v1072
      %v1379 = vpack.c.b16 %v1079, %v1073
      %v1380 = vpack.c.b16 %v1086, %v1080
      %v1381 = vpack.c.b16 %v1087, %v1081
      %v1382 = vpack.c.b16 %v1088, %v1082
      %v1383 = vpack.c.b16 %v1089, %v1083
      %v1384 = vpack.c.b16 %v1090, %v1084
      %v1385 = vpack.c.b16 %v1091, %v1085
      %v1386 = vpack.c.b16 %v1098, %v1092
      %v1387 = vpack.c.b16 %v1099, %v1093
      %v1388 = vpack.c.b16 %v1100, %v1094
      %v1389 = vpack.c.b16 %v1101, %v1095
      %v1390 = vpack.c.b16 %v1102, %v1096
      %v1391 = vpack.c.b16 %v1103, %v1097
      %v1392 = vpack.c.b16 %v1110, %v1104
      %v1393 = vpack.c.b16 %v1111, %v1105
      %v1394 = vpack.c.b16 %v1112, %v1106
      %v1395 = vpack.c.b16 %v1113, %v1107
      %v1396 = vpack.c.b16 %v1114, %v1108
      %v1397 = vpack.c.b16 %v1115, %v1109
      %v1398 = vpack.c.b16 %v1122, %v1116
      %v1399 = vpack.c.b16 %v1123, %v1117
      %v1400 = vpack.c.b16 %v1124, %v1118
      %v1401 = vpack.c.b16 %v1125, %v1119
      %v1402 = vpack.c.b16 %v1126, %v1120
      %v1403 = vpack.c.b16 %v1127, %v1121
      %v1404 = vpack.c.b16 %v1134, %v1128
      %v1405 = vpack.c.b16 %v1135, %v1129
      %v1406 = vpack.c.b16 %v1136, %v1130
      %v1407 = vpack.c.b16 %v1137, %v1131
      %v1408 = vpack.c.b16 %v1138, %v1132
      %v1409 = vpack.c.b16 %v1139, %v1133
      %v1410 = vpack.c.b16 %v1146, %v1140
      %v1411 = vpack.c.b16 %v1147, %v1141
      %v1412 = vpack.c.b16 %v1148, %v1142
      %v1413 = vpack.c.b16 %v1149, %v1143
      %v1414 = vpack.c.b16 %v1150, %v1144
      %v1415 = vpack.c.b16 %v1151, %v1145
      %v1416 = vpack.c.b16 %v1158, %v1152
      %v1417 = vpack.c.b16 %v1159, %v1153
      %v1418 = vpack.c.b16 %v1160, %v1154
      %v1419 = vpack.c.b16 %v1161, %v1155
      %v1420 = vpack.c.b16 %v1162, %v1156
      %v1421 = vpack.c.b16 %v1163, %v1157
      %v1422 = vpack.c.b16 %v1170, %v1164
      %v1423 = vpack.c.b16 %v1171, %v1165
      %v1424 = vpack.c.b16 %v1172, %v1166
      %v1425 = vpack.c.b16 %v1173, %v1167
      %v1426 = vpack.c.b16 %v1174, %v1168
      %v1427 = vpack.c.b16 %v1175, %v1169
      %v1428 = vpack.c.b16 %v1182, %v1176
      %v1429 = vpack.c.b16 %v1183, %v1177
      %v1430 = vpack.c.b16 %v1184, %v1178
      %v1431 = vpack.c.b16 %v1185, %v1179
      %v1432 = vpack.c.b16 %v1186, %v1180
      %v1433 = vpack.c.b16 %v1187, %v1181
      %v1434 = vpack.c.b16 %v1194, %v1188
      %v1435 = vpack.c.b16 %v1195, %v1189
      %v1436 = vpack.c.b16 %v1196, %v1190
      %v1437 = vpack.c.b16 %v1197, %v1191
      %v1438 = vpack.c.b16 %v1198, %v1192
      %v1439 = vpack.c.b16 %v1199, %v1193
      %v1440 = vpack.c.b16 %v1206, %v1200
      %v1441 = vpack.c.b16 %v1207, %v1201
      %v1442 = vpack.c.b16 %v1208, %v1202
      %v1443 = vpack.c.b16 %v1209, %v1203
      %v1444 = vpack.c.b16 %v1210, %v1204
      %v1445 = vpack.c.b16 %v1211, %v1205
      %v1446 = vpack.c.b16 %v1218, %v1212
      %v1447 = vpack.c.b16 %v1219, %v1213
      %v1448 = vpack.c.b16 %v1220, %v1214
      %v1449 = vpack.c.b16 %v1221, %v1215
      %v1450 = vpack.c.b16 %v1222, %v1216
      %v1451 = vpack.c.b16 %v1223, %v1217
      %v1452 = vpack.c.b16 %v1230, %v1224
      %v1453 = vpack.c.b16 %v1231, %v1225
      %v1454 = vpack.c.b16 %v1232, %v1226
      %v1455 = vpack.c.b16 %v1233, %v1227
      %v1456 = vpack.c.b16 %v1234, %v1228
      %v1457 = vpack.c.b16 %v1235, %v1229
      %v1458 = vpack.c.b16 %v1242, %v1236
      %v1459 = vpack.c.b16 %v1243, %v1237
      %v1460 = vpack.c.b16 %v1244, %v1238
      %v1461 = vpack.c.b16 %v1245, %v1239
      %v1462 = vpack.c.b16 %v1246, %v1240
      %v1463 = vpack.c.b16 %v1247, %v1241
      %v1464 = vpack.c.b16 %v1254, %v1248
      %v1465 = vpack.c.b16 %v1255, %v1249
      %v1466 = vpack.c.b16 %v1256, %v1250
      %v1467 = vpack.c.b16 %v1257, %v1251
      %v1468 = vpack.c.b16 %v1258, %v1252
      %v1469 = vpack.c.b16 %v1259, %v1253
      %v1470 = vpack.c.b16 %v1266, %v1260
      %v1471 = vpack.c.b16 %v1267, %v1261
      %v1472 = vpack.c.b16 %v1268, %v1262
      %v1473 = vpack.c.b16 %v1269, %v1263
      %v1474 = vpack.c.b16 %v1270, %v1264
      %v1475 = vpack.c.b16 %v1271, %v1265
      %v1476 = vpack.c.b16 %v1278, %v1272
      %v1477 = vpack.c.b16 %v1279, %v1273
      %v1478 = vpack.c.b16 %v1280, %v1274
      %v1479 = vpack.c.b16 %v1281, %v1275
      %v1480 = vpack.c.b16 %v1282, %v1276
      %v1481 = vpack.c.b16 %v1283, %v1277
      %v1482 = vpack.c.b16 %v1290, %v1284
      %v1483 = vpack.c.b16 %v1291, %v1285
      %v1484 = vpack.c.b16 %v1292, %v1286
      %v1485 = vpack.c.b16 %v1293, %v1287
      %v1486 = vpack.c.b16 %v1294, %v1288
      %v1487 = vpack.c.b16 %v1295, %v1289
      %1680 = vmatprep.subr.bf16.mxu0 %v1297
      %1681 = vmatpush1.bf16.msra.mxu0 %v1296
      %1682 = vmatprep.subr.bf16.mxu0 %v1303
      %1683 = vmatpush1.bf16.msra.mxu0 %v1302
      %1684 = vmatprep.subr.bf16.mxu0 %v1309
      %1685 = vmatpush1.bf16.msra.mxu0 %v1308
      %1686 = vmatprep.subr.bf16.mxu0 %v1315
      %1687 = vmatpush1.bf16.msra.mxu0 %v1314
      %1688 = vmatprep.subr.bf16.mxu0 %v1321
      %1689 = vmatpush1.bf16.msra.mxu0 %v1320
      %1690 = vmatprep.subr.bf16.mxu0 %v1327
      %1691 = vmatpush1.bf16.msra.mxu0 %v1326
      %1692 = vmatprep.subr.bf16.mxu0 %v1333
      %1693 = vmatpush1.bf16.msra.mxu0 %v1332
      %1694 = vmatprep.subr.bf16.mxu0 %v1339
      %1695 = vmatpush1.bf16.msra.mxu0 %v1338
      %1696 = vmatprep.subr.bf16.mxu0 %v1345
      %1697 = vmatpush1.bf16.msra.mxu0 %v1344
      %1698 = vmatprep.subr.bf16.mxu0 %v1351
      %1699 = vmatpush1.bf16.msra.mxu0 %v1350
      %1700 = vmatprep.subr.bf16.mxu0 %v1357
      %1701 = vmatpush1.bf16.msra.mxu0 %v1356
      %1702 = vmatprep.subr.bf16.mxu0 %v1363
      %1703 = vmatpush1.bf16.msra.mxu0 %v1362
      %1704 = vmatprep.subr.bf16.mxu0 %v1369
      %1705 = vmatpush1.bf16.msra.mxu0 %v1368
      %1706 = vmatprep.subr.bf16.mxu0 %v1375
      %1707 = vmatpush1.bf16.msra.mxu0 %v1374
      %1708 = vmatprep.subr.bf16.mxu0 %v1381
      %1709 = vmatpush1.bf16.msra.mxu0 %v1380
      %1710 = vmatprep.subr.bf16.mxu0 %v1387
      %1711 = vmatpush1.bf16.msra.mxu0 %v1386
      %1712 = vmatprep.mubr.bf16.mxu0 %v481
      %1713 = vmatmul.mubr.bf16.gmra.mrb[0].mxu0 %v480
      %v1714 = vpop.f32.mrb[0].mxu0
      %v1715 = vadd.f32 %v693, %v1714
      %v1716 = vpop.f32.mrb[0].mxu0
      %v1717 = vadd.f32 %v697, %v1716
      %v1718 = vpop.f32.mrb[0].mxu0
      %v1719 = vadd.f32 %v693, %v1718
      %v1720 = vpop.f32.mrb[0].mxu0
      %v1721 = vadd.f32 %v697, %v1720
      %1722 = vmatprep.mubr.bf16.mxu0 %v485
      %1723 = vmatmul.mubr.bf16.gmra.mrb[0].mxu0 %v484
      %v1724 = vpop.f32.mrb[0].mxu0
      %v1725 = vadd.f32 %v693, %v1724
      %v1726 = vpop.f32.mrb[0].mxu0
      %v1727 = vadd.f32 %v697, %v1726
      %v1728 = vpop.f32.mrb[0].mxu0
      %v1729 = vadd.f32 %v693, %v1728
      %v1730 = vpop.f32.mrb[0].mxu0
      %v1731 = vadd.f32 %v697, %v1730
      %1732 = vmatprep.mubr.bf16.mxu0 %v489
      %1733 = vmatmul.mubr.bf16.gmra.mrb[0].mxu0 %v488
      %v1734 = vpop.f32.mrb[0].mxu0
      %v1735 = vadd.f32 %v693, %v1734
      %v1736 = vpop.f32.mrb[0].mxu0
      %v1737 = vadd.f32 %v697, %v1736
      %v1738 = vpop.f32.mrb[0].mxu0
      %v1739 = vadd.f32 %v693, %v1738
      %v1740 = vpop.f32.mrb[0].mxu0
      %v1741 = vadd.f32 %v697, %v1740
      %1742 = vmatprep.mubr.bf16.mxu0 %v493
      %1743 = vmatmul.mubr.bf16.gmra.mrb[0].mxu0 %v492
      %v1744 = vpop.f32.mrb[0].mxu0
      %v1745 = vadd.f32 %v693, %v1744
      %v1746 = vpop.f32.mrb[0].mxu0
      %v1747 = vadd.f32 %v697, %v1746
      %v1748 = vpop.f32.mrb[0].mxu0
      %v1749 = vadd.f32 %v693, %v1748
      %v1750 = vpop.f32.mrb[0].mxu0
      %v1751 = vadd.f32 %v697, %v1750
      %1752 = vdwg.mxu0
      %1753 = vmatprep.subr.bf16.mxu0 %v1393
      %1754 = vmatpush1.bf16.msra.mxu0 %v1392
      %1755 = vmatprep.subr.bf16.mxu0 %v1399
      %1756 = vmatpush1.bf16.msra.mxu0 %v1398
      %1757 = vmatprep.subr.bf16.mxu0 %v1405
      %1758 = vmatpush1.bf16.msra.mxu0 %v1404
      %1759 = vmatprep.subr.bf16.mxu0 %v1411
      %1760 = vmatpush1.bf16.msra.mxu0 %v1410
      %1761 = vmatprep.subr.bf16.mxu0 %v1417
      %1762 = vmatpush1.bf16.msra.mxu0 %v1416
      %1763 = vmatprep.subr.bf16.mxu0 %v1423
      %1764 = vmatpush1.bf16.msra.mxu0 %v1422
      %1765 = vmatprep.subr.bf16.mxu0 %v1429
      %1766 = vmatpush1.bf16.msra.mxu0 %v1428
      %1767 = vmatprep.subr.bf16.mxu0 %v1435
      %1768 = vmatpush1.bf16.msra.mxu0 %v1434
      %1769 = vmatprep.subr.bf16.mxu0 %v1441
      %1770 = vmatpush1.bf16.msra.mxu0 %v1440
      %1771 = vmatprep.subr.bf16.mxu0 %v1447
      %1772 = vmatpush1.bf16.msra.mxu0 %v1446
      %1773 = vmatprep.subr.bf16.mxu0 %v1453
      %1774 = vmatpush1.bf16.msra.mxu0 %v1452
      %1775 = vmatprep.subr.bf16.mxu0 %v1459
      %1776 = vmatpush1.bf16.msra.mxu0 %v1458
      %1777 = vmatprep.subr.bf16.mxu0 %v1465
      %1778 = vmatpush1.bf16.msra.mxu0 %v1464
      %1779 = vmatprep.subr.bf16.mxu0 %v1471
      %1780 = vmatpush1.bf16.msra.mxu0 %v1470
      %1781 = vmatprep.subr.bf16.mxu0 %v1477
      %1782 = vmatpush1.bf16.msra.mxu0 %v1476
      %1783 = vmatprep.subr.bf16.mxu0 %v1483
      %1784 = vmatpush1.bf16.msra.mxu0 %v1482
      %1785 = vmatprep.mubr.bf16.mxu0 %v483
      %1786 = vmatmul.mubr.bf16.gmra.mrb[0].mxu0 %v482
      %v1787 = vpop.f32.mrb[0].mxu0
      %v1788 = vadd.f32 %v1715, %v1787
      %v1789 = vpop.f32.mrb[0].mxu0
      %v1790 = vadd.f32 %v1717, %v1789
      %v1791 = vpop.f32.mrb[0].mxu0
      %v1792 = vadd.f32 %v1719, %v1791
      %v1793 = vpop.f32.mrb[0].mxu0
      %v1794 = vadd.f32 %v1721, %v1793
      %1795 = vmatprep.mubr.bf16.mxu0 %v487
      %1796 = vmatmul.mubr.bf16.gmra.mrb[0].mxu0 %v486
      %v1797 = vpop.f32.mrb[0].mxu0
      %v1798 = vadd.f32 %v1725, %v1797
      %v1799 = vpop.f32.mrb[0].mxu0
      %v1800 = vadd.f32 %v1727, %v1799
      %v1801 = vpop.f32.mrb[0].mxu0
      %v1802 = vadd.f32 %v1729, %v1801
      %v1803 = vpop.f32.mrb[0].mxu0
      %v1804 = vadd.f32 %v1731, %v1803
      %1805 = vmatprep.mubr.bf16.mxu0 %v491
      %1806 = vmatmul.mubr.bf16.gmra.mrb[0].mxu0 %v490
      %v1807 = vpop.f32.mrb[0].mxu0
      %v1808 = vadd.f32 %v1735, %v1807
      %v1809 = vpop.f32.mrb[0].mxu0
      %v1810 = vadd.f32 %v1737, %v1809
      %v1811 = vpop.f32.mrb[0].mxu0
      %v1812 = vadd.f32 %v1739, %v1811
      %v1813 = vpop.f32.mrb[0].mxu0
      %v1814 = vadd.f32 %v1741, %v1813
      %1815 = vmatprep.mubr.bf16.mxu0 %v495
      %1816 = vmatmul.mubr.bf16.gmra.mrb[0].mxu0 %v494
      %v1817 = vpop.f32.mrb[0].mxu0
      %v1818 = vadd.f32 %v1745, %v1817
      %v1819 = vpop.f32.mrb[0].mxu0
      %v1820 = vadd.f32 %v1747, %v1819
      %v1821 = vpop.f32.mrb[0].mxu0
      %v1822 = vadd.f32 %v1749, %v1821
      %v1823 = vpop.f32.mrb[0].mxu0
      %v1824 = vadd.f32 %v1751, %v1823
      %1825 = vdwg.mxu0
      %1826 = vmatprep.subr.bf16.mxu0 %v1299
      %1827 = vmatpush1.bf16.msra.mxu0 %v1298
      %1828 = vmatprep.subr.bf16.mxu0 %v1305
      %1829 = vmatpush1.bf16.msra.mxu0 %v1304
      %1830 = vmatprep.subr.bf16.mxu0 %v1311
      %1831 = vmatpush1.bf16.msra.mxu0 %v1310
      %1832 = vmatprep.subr.bf16.mxu0 %v1317
      %1833 = vmatpush1.bf16.msra.mxu0 %v1316
      %1834 = vmatprep.subr.bf16.mxu0 %v1323
      %1835 = vmatpush1.bf16.msra.mxu0 %v1322
      %1836 = vmatprep.subr.bf16.mxu0 %v1329
      %1837 = vmatpush1.bf16.msra.mxu0 %v1328
      %1838 = vmatprep.subr.bf16.mxu0 %v1335
      %1839 = vmatpush1.bf16.msra.mxu0 %v1334
      %1840 = vmatprep.subr.bf16.mxu0 %v1341
      %1841 = vmatpush1.bf16.msra.mxu0 %v1340
      %1842 = vmatprep.subr.bf16.mxu0 %v1347
      %1843 = vmatpush1.bf16.msra.mxu0 %v1346
      %1844 = vmatprep.subr.bf16.mxu0 %v1353
      %1845 = vmatpush1.bf16.msra.mxu0 %v1352
      %1846 = vmatprep.subr.bf16.mxu0 %v1359
      %1847 = vmatpush1.bf16.msra.mxu0 %v1358
      %1848 = vmatprep.subr.bf16.mxu0 %v1365
      %1849 = vmatpush1.bf16.msra.mxu0 %v1364
      %1850 = vmatprep.subr.bf16.mxu0 %v1371
      %1851 = vmatpush1.bf16.msra.mxu0 %v1370
      %1852 = vmatprep.subr.bf16.mxu0 %v1377
      %1853 = vmatpush1.bf16.msra.mxu0 %v1376
      %1854 = vmatprep.subr.bf16.mxu0 %v1383
      %1855 = vmatpush1.bf16.msra.mxu0 %v1382
      %1856 = vmatprep.subr.bf16.mxu0 %v1389
      %1857 = vmatpush1.bf16.msra.mxu0 %v1388
      %1858 = vmatprep.mubr.bf16.mxu0 %v481
      %1859 = vmatmul.mubr.bf16.gmra.mrb[0].mxu0 %v480
      %v1860 = vpop.f32.mrb[0].mxu0
      %v1861 = vadd.f32 %v701, %v1860
      %v1862 = vpop.f32.mrb[0].mxu0
      %v1863 = vadd.f32 %v705, %v1862
      %v1864 = vpop.f32.mrb[0].mxu0
      %v1865 = vadd.f32 %v701, %v1864
      %v1866 = vpop.f32.mrb[0].mxu0
      %v1867 = vadd.f32 %v705, %v1866
      %1868 = vmatprep.mubr.bf16.mxu0 %v485
      %1869 = vmatmul.mubr.bf16.gmra.mrb[0].mxu0 %v484
      %v1870 = vpop.f32.mrb[0].mxu0
      %v1871 = vadd.f32 %v701, %v1870
      %v1872 = vpop.f32.mrb[0].mxu0
      %v1873 = vadd.f32 %v705, %v1872
      %v1874 = vpop.f32.mrb[0].mxu0
      %v1875 = vadd.f32 %v701, %v1874
      %v1876 = vpop.f32.mrb[0].mxu0
      %v1877 = vadd.f32 %v705, %v1876
      %1878 = vmatprep.mubr.bf16.mxu0 %v489
      %1879 = vmatmul.mubr.bf16.gmra.mrb[0].mxu0 %v488
      %v1880 = vpop.f32.mrb[0].mxu0
      %v1881 = vadd.f32 %v701, %v1880
      %v1882 = vpop.f32.mrb[0].mxu0
      %v1883 = vadd.f32 %v705, %v1882
      %v1884 = vpop.f32.mrb[0].mxu0
      %v1885 = vadd.f32 %v701, %v1884
      %v1886 = vpop.f32.mrb[0].mxu0
      %v1887 = vadd.f32 %v705, %v1886
      %1888 = vmatprep.mubr.bf16.mxu0 %v493
      %1889 = vmatmul.mubr.bf16.gmra.mrb[0].mxu0 %v492
      %v1890 = vpop.f32.mrb[0].mxu0
      %v1891 = vadd.f32 %v701, %v1890
      %v1892 = vpop.f32.mrb[0].mxu0
      %v1893 = vadd.f32 %v705, %v1892
      %v1894 = vpop.f32.mrb[0].mxu0
      %v1895 = vadd.f32 %v701, %v1894
      %v1896 = vpop.f32.mrb[0].mxu0
      %v1897 = vadd.f32 %v705, %v1896
      %1898 = vdwg.mxu0
      %1899 = vmatprep.subr.bf16.mxu0 %v1395
      %1900 = vmatpush1.bf16.msra.mxu0 %v1394
      %1901 = vmatprep.subr.bf16.mxu0 %v1401
      %1902 = vmatpush1.bf16.msra.mxu0 %v1400
      %1903 = vmatprep.subr.bf16.mxu0 %v1407
      %1904 = vmatpush1.bf16.msra.mxu0 %v1406
      %1905 = vmatprep.subr.bf16.mxu0 %v1413
      %1906 = vmatpush1.bf16.msra.mxu0 %v1412
      %1907 = vmatprep.subr.bf16.mxu0 %v1419
      %1908 = vmatpush1.bf16.msra.mxu0 %v1418
      %1909 = vmatprep.subr.bf16.mxu0 %v1425
      %1910 = vmatpush1.bf16.msra.mxu0 %v1424
      %1911 = vmatprep.subr.bf16.mxu0 %v1431
      %1912 = vmatpush1.bf16.msra.mxu0 %v1430
      %1913 = vmatprep.subr.bf16.mxu0 %v1437
      %1914 = vmatpush1.bf16.msra.mxu0 %v1436
      %1915 = vmatprep.subr.bf16.mxu0 %v1443
      %1916 = vmatpush1.bf16.msra.mxu0 %v1442
      %1917 = vmatprep.subr.bf16.mxu0 %v1449
      %1918 = vmatpush1.bf16.msra.mxu0 %v1448
      %1919 = vmatprep.subr.bf16.mxu0 %v1455
      %1920 = vmatpush1.bf16.msra.mxu0 %v1454
      %1921 = vmatprep.subr.bf16.mxu0 %v1461
      %1922 = vmatpush1.bf16.msra.mxu0 %v1460
      %1923 = vmatprep.subr.bf16.mxu0 %v1467
      %1924 = vmatpush1.bf16.msra.mxu0 %v1466
      %1925 = vmatprep.subr.bf16.mxu0 %v1473
      %1926 = vmatpush1.bf16.msra.mxu0 %v1472
      %1927 = vmatprep.subr.bf16.mxu0 %v1479
      %1928 = vmatpush1.bf16.msra.mxu0 %v1478
      %1929 = vmatprep.subr.bf16.mxu0 %v1485
      %1930 = vmatpush1.bf16.msra.mxu0 %v1484
      %1931 = vmatprep.mubr.bf16.mxu0 %v483
      %1932 = vmatmul.mubr.bf16.gmra.mrb[0].mxu0 %v482
      %v1933 = vpop.f32.mrb[0].mxu0
      %v1934 = vadd.f32 %v1861, %v1933
      %v1935 = vpop.f32.mrb[0].mxu0
      %v1936 = vadd.f32 %v1863, %v1935
      %v1937 = vpop.f32.mrb[0].mxu0
      %v1938 = vadd.f32 %v1865, %v1937
      %v1939 = vpop.f32.mrb[0].mxu0
      %v1940 = vadd.f32 %v1867, %v1939
      %1941 = vmatprep.mubr.bf16.mxu0 %v487
      %1942 = vmatmul.mubr.bf16.gmra.mrb[0].mxu0 %v486
      %v1943 = vpop.f32.mrb[0].mxu0
      %v1944 = vadd.f32 %v1871, %v1943
      %v1945 = vpop.f32.mrb[0].mxu0
      %v1946 = vadd.f32 %v1873, %v1945
      %v1947 = vpop.f32.mrb[0].mxu0
      %v1948 = vadd.f32 %v1875, %v1947
      %v1949 = vpop.f32.mrb[0].mxu0
      %v1950 = vadd.f32 %v1877, %v1949
      %1951 = vmatprep.mubr.bf16.mxu0 %v491
      %1952 = vmatmul.mubr.bf16.gmra.mrb[0].mxu0 %v490
      %v1953 = vpop.f32.mrb[0].mxu0
      %v1954 = vadd.f32 %v1881, %v1953
      %v1955 = vpop.f32.mrb[0].mxu0
      %v1956 = vadd.f32 %v1883, %v1955
      %v1957 = vpop.f32.mrb[0].mxu0
      %v1958 = vadd.f32 %v1885, %v1957
      %v1959 = vpop.f32.mrb[0].mxu0
      %v1960 = vadd.f32 %v1887, %v1959
      %1961 = vmatprep.mubr.bf16.mxu0 %v495
      %1962 = vmatmul.mubr.bf16.gmra.mrb[0].mxu0 %v494
      %v1963 = vpop.f32.mrb[0].mxu0
      %v1964 = vadd.f32 %v1891, %v1963
      %v1965 = vpop.f32.mrb[0].mxu0
      %v1966 = vadd.f32 %v1893, %v1965
      %v1967 = vpop.f32.mrb[0].mxu0
      %v1968 = vadd.f32 %v1895, %v1967
      %v1969 = vpop.f32.mrb[0].mxu0
      %v1970 = vadd.f32 %v1897, %v1969
      %1971 = vdwg.mxu0
      %1972 = vmatprep.subr.bf16.mxu0 %v1301
      %1973 = vmatpush1.bf16.msra.mxu0 %v1300
      %1974 = vmatprep.subr.bf16.mxu0 %v1307
      %1975 = vmatpush1.bf16.msra.mxu0 %v1306
      %1976 = vmatprep.subr.bf16.mxu0 %v1313
      %1977 = vmatpush1.bf16.msra.mxu0 %v1312
      %1978 = vmatprep.subr.bf16.mxu0 %v1319
      %1979 = vmatpush1.bf16.msra.mxu0 %v1318
      %1980 = vmatprep.subr.bf16.mxu0 %v1325
      %1981 = vmatpush1.bf16.msra.mxu0 %v1324
      %1982 = vmatprep.subr.bf16.mxu0 %v1331
      %1983 = vmatpush1.bf16.msra.mxu0 %v1330
      %1984 = vmatprep.subr.bf16.mxu0 %v1337
      %1985 = vmatpush1.bf16.msra.mxu0 %v1336
      %1986 = vmatprep.subr.bf16.mxu0 %v1343
      %1987 = vmatpush1.bf16.msra.mxu0 %v1342
      %1988 = vmatprep.subr.bf16.mxu0 %v1349
      %1989 = vmatpush1.bf16.msra.mxu0 %v1348
      %1990 = vmatprep.subr.bf16.mxu0 %v1355
      %1991 = vmatpush1.bf16.msra.mxu0 %v1354
      %1992 = vmatprep.subr.bf16.mxu0 %v1361
      %1993 = vmatpush1.bf16.msra.mxu0 %v1360
      %1994 = vmatprep.subr.bf16.mxu0 %v1367
      %1995 = vmatpush1.bf16.msra.mxu0 %v1366
      %1996 = vmatprep.subr.bf16.mxu0 %v1373
      %1997 = vmatpush1.bf16.msra.mxu0 %v1372
      %1998 = vmatprep.subr.bf16.mxu0 %v1379
      %1999 = vmatpush1.bf16.msra.mxu0 %v1378
      %2000 = vmatprep.subr.bf16.mxu0 %v1385
      %2001 = vmatpush1.bf16.msra.mxu0 %v1384
      %2002 = vmatprep.subr.bf16.mxu0 %v1391
      %2003 = vmatpush1.bf16.msra.mxu0 %v1390
      %2004 = vmatprep.mubr.bf16.mxu0 %v481
      %2005 = vmatmul.mubr.bf16.gmra.mrb[0].mxu0 %v480
      %v2006 = vpop.f32.mrb[0].mxu0
      %v2007 = vadd.f32 %v709, %v2006
      %v2008 = vpop.f32.mrb[0].mxu0
      %v2009 = vadd.f32 %v713, %v2008
      %v2010 = vpop.f32.mrb[0].mxu0
      %v2011 = vadd.f32 %v709, %v2010
      %v2012 = vpop.f32.mrb[0].mxu0
      %v2013 = vadd.f32 %v713, %v2012
      %2014 = vmatprep.mubr.bf16.mxu0 %v485
      %2015 = vmatmul.mubr.bf16.gmra.mrb[0].mxu0 %v484
      %v2016 = vpop.f32.mrb[0].mxu0
      %v2017 = vadd.f32 %v709, %v2016
      %v2018 = vpop.f32.mrb[0].mxu0
      %v2019 = vadd.f32 %v713, %v2018
      %v2020 = vpop.f32.mrb[0].mxu0
      %v2021 = vadd.f32 %v709, %v2020
      %v2022 = vpop.f32.mrb[0].mxu0
      %v2023 = vadd.f32 %v713, %v2022
      %2024 = vmatprep.mubr.bf16.mxu0 %v489
      %2025 = vmatmul.mubr.bf16.gmra.mrb[0].mxu0 %v488
      %v2026 = vpop.f32.mrb[0].mxu0
      %v2027 = vadd.f32 %v709, %v2026
      %v2028 = vpop.f32.mrb[0].mxu0
      %v2029 = vadd.f32 %v713, %v2028
      %v2030 = vpop.f32.mrb[0].mxu0
      %v2031 = vadd.f32 %v709, %v2030
      %v2032 = vpop.f32.mrb[0].mxu0
      %v2033 = vadd.f32 %v713, %v2032
      %2034 = vmatprep.mubr.bf16.mxu0 %v493
      %2035 = vmatmul.mubr.bf16.gmra.mrb[0].mxu0 %v492
      %v2036 = vpop.f32.mrb[0].mxu0
      %v2037 = vadd.f32 %v709, %v2036
      %v2038 = vpop.f32.mrb[0].mxu0
      %v2039 = vadd.f32 %v713, %v2038
      %v2040 = vpop.f32.mrb[0].mxu0
      %v2041 = vadd.f32 %v709, %v2040
      %v2042 = vpop.f32.mrb[0].mxu0
      %v2043 = vadd.f32 %v713, %v2042
      %2044 = vdwg.mxu0
      %2045 = vmatprep.subr.bf16.mxu0 %v1397
      %2046 = vmatpush1.bf16.msra.mxu0 %v1396
      %2047 = vmatprep.subr.bf16.mxu0 %v1403
      %2048 = vmatpush1.bf16.msra.mxu0 %v1402
      %2049 = vmatprep.subr.bf16.mxu0 %v1409
      %2050 = vmatpush1.bf16.msra.mxu0 %v1408
      %2051 = vmatprep.subr.bf16.mxu0 %v1415
      %2052 = vmatpush1.bf16.msra.mxu0 %v1414
      %2053 = vmatprep.subr.bf16.mxu0 %v1421
      %2054 = vmatpush1.bf16.msra.mxu0 %v1420
      %2055 = vmatprep.subr.bf16.mxu0 %v1427
      %2056 = vmatpush1.bf16.msra.mxu0 %v1426
      %2057 = vmatprep.subr.bf16.mxu0 %v1433
      %2058 = vmatpush1.bf16.msra.mxu0 %v1432
      %2059 = vmatprep.subr.bf16.mxu0 %v1439
      %2060 = vmatpush1.bf16.msra.mxu0 %v1438
      %2061 = vmatprep.subr.bf16.mxu0 %v1445
      %2062 = vmatpush1.bf16.msra.mxu0 %v1444
      %2063 = vmatprep.subr.bf16.mxu0 %v1451
      %2064 = vmatpush1.bf16.msra.mxu0 %v1450
      %2065 = vmatprep.subr.bf16.mxu0 %v1457
      %2066 = vmatpush1.bf16.msra.mxu0 %v1456
      %2067 = vmatprep.subr.bf16.mxu0 %v1463
      %2068 = vmatpush1.bf16.msra.mxu0 %v1462
      %2069 = vmatprep.subr.bf16.mxu0 %v1469
      %2070 = vmatpush1.bf16.msra.mxu0 %v1468
      %2071 = vmatprep.subr.bf16.mxu0 %v1475
      %2072 = vmatpush1.bf16.msra.mxu0 %v1474
      %2073 = vmatprep.subr.bf16.mxu0 %v1481
      %2074 = vmatpush1.bf16.msra.mxu0 %v1480
      %2075 = vmatprep.subr.bf16.mxu0 %v1487
      %2076 = vmatpush1.bf16.msra.mxu0 %v1486
      %2077 = vmatprep.mubr.bf16.mxu0 %v483
      %2078 = vmatmul.mubr.bf16.gmra.mrb[0].mxu0 %v482
      %v2079 = vpop.f32.mrb[0].mxu0
      %v2080 = vadd.f32 %v2007, %v2079
      %v2081 = vpop.f32.mrb[0].mxu0
      %v2082 = vadd.f32 %v2009, %v2081
      %v2083 = vpop.f32.mrb[0].mxu0
      %v2084 = vadd.f32 %v2011, %v2083
      %v2085 = vpop.f32.mrb[0].mxu0
      %v2086 = vadd.f32 %v2013, %v2085
      %2087 = vmatprep.mubr.bf16.mxu0 %v487
      %2088 = vmatmul.mubr.bf16.gmra.mrb[0].mxu0 %v486
      %v2089 = vpop.f32.mrb[0].mxu0
      %v2090 = vadd.f32 %v2017, %v2089
      %v2091 = vpop.f32.mrb[0].mxu0
      %v2092 = vadd.f32 %v2019, %v2091
      %v2093 = vpop.f32.mrb[0].mxu0
      %v2094 = vadd.f32 %v2021, %v2093
      %v2095 = vpop.f32.mrb[0].mxu0
      %v2096 = vadd.f32 %v2023, %v2095
      %2097 = vmatprep.mubr.bf16.mxu0 %v491
      %2098 = vmatmul.mubr.bf16.gmra.mrb[0].mxu0 %v490
      %v2099 = vpop.f32.mrb[0].mxu0
      %v2100 = vadd.f32 %v2027, %v2099
      %v2101 = vpop.f32.mrb[0].mxu0
      %v2102 = vadd.f32 %v2029, %v2101
      %v2103 = vpop.f32.mrb[0].mxu0
      %v2104 = vadd.f32 %v2031, %v2103
      %v2105 = vpop.f32.mrb[0].mxu0
      %v2106 = vadd.f32 %v2033, %v2105
      %2107 = vmatprep.mubr.bf16.mxu0 %v495
      %2108 = vmatmul.mubr.bf16.gmra.mrb[0].mxu0 %v494
      %v2109 = vpop.f32.mrb[0].mxu0
      %v2110 = vadd.f32 %v2037, %v2109
      %v2111 = vpop.f32.mrb[0].mxu0
      %v2112 = vadd.f32 %v2039, %v2111
      %v2113 = vpop.f32.mrb[0].mxu0
      %v2114 = vadd.f32 %v2041, %v2113
      %v2115 = vpop.f32.mrb[0].mxu0
      %v2116 = vadd.f32 %v2043, %v2115
      %2117 = vdwg.mxu0
      %2118 = vst [vmem:[%s233] sm:$0xff] %v1788
      %2119 = vst [vmem:[%s233 + $0x8] sm:$0xff] %v1790
      %2120 = vst [vmem:[%s233 + $0x10] sm:$0xff] %v1934
      %2121 = vst [vmem:[%s233 + $0x18] sm:$0xff] %v1936
      %2122 = vst [vmem:[%s233 + $0x20] sm:$0xff] %v2080
      %2123 = vst [vmem:[%s233 + $0x28] sm:$0xff] %v2082
      %2124 = vst [vmem:[%s233 + $0x30] sm:$0xff] %v1792
      %2125 = vst [vmem:[%s233 + $0x38] sm:$0xff] %v1794
      %2126 = vst [vmem:[%s233 + $0x40] sm:$0xff] %v1938
      %2127 = vst [vmem:[%s233 + $0x48] sm:$0xff] %v1940
      %2128 = vst [vmem:[%s233 + $0x50] sm:$0xff] %v2084
      %2129 = vst [vmem:[%s233 + $0x58] sm:$0xff] %v2086
      %2130 = vst [vmem:[%s233 + $0x60] sm:$0xff] %v1798
      %2131 = vst [vmem:[%s233 + $0x68] sm:$0xff] %v1800
      %2132 = vst [vmem:[%s233 + $0x70] sm:$0xff] %v1944
      %2133 = vst [vmem:[%s233 + $0x78] sm:$0xff] %v1946
      %2134 = vst [vmem:[%s233 + $0x80] sm:$0xff] %v2090
      %2135 = vst [vmem:[%s233 + $0x88] sm:$0xff] %v2092
      %2136 = vst [vmem:[%s233 + $0x90] sm:$0xff] %v1802
      %2137 = vst [vmem:[%s233 + $0x98] sm:$0xff] %v1804
      %2138 = vst [vmem:[%s233 + $0xa0] sm:$0xff] %v1948
      %2139 = vst [vmem:[%s233 + $0xa8] sm:$0xff] %v1950
      %2140 = vst [vmem:[%s233 + $0xb0] sm:$0xff] %v2094
      %2141 = vst [vmem:[%s233 + $0xb8] sm:$0xff] %v2096
      %2142 = vst [vmem:[%s233 + $0xc0] sm:$0xff] %v1808
      %2143 = vst [vmem:[%s233 + $0xc8] sm:$0xff] %v1810
      %2144 = vst [vmem:[%s233 + $0xd0] sm:$0xff] %v1954
      %2145 = vst [vmem:[%s233 + $0xd8] sm:$0xff] %v1956
      %2146 = vst [vmem:[%s233 + $0xe0] sm:$0xff] %v2100
      %2147 = vst [vmem:[%s233 + $0xe8] sm:$0xff] %v2102
      %2148 = vst [vmem:[%s233 + $0xf0] sm:$0xff] %v1812
      %2149 = vst [vmem:[%s233 + $0xf8] sm:$0xff] %v1814
      %2150 = vst [vmem:[%s233 + $0x100] sm:$0xff] %v1958
      %2151 = vst [vmem:[%s233 + $0x108] sm:$0xff] %v1960
      %2152 = vst [vmem:[%s233 + $0x110] sm:$0xff] %v2104
      %2153 = vst [vmem:[%s233 + $0x118] sm:$0xff] %v2106
      %2154 = vst [vmem:[%s233 + $0x120] sm:$0xff] %v1818
      %2155 = vst [vmem:[%s233 + $0x128] sm:$0xff] %v1820
      %2156 = vst [vmem:[%s233 + $0x130] sm:$0xff] %v1964
      %2157 = vst [vmem:[%s233 + $0x138] sm:$0xff] %v1966
      %2158 = vst [vmem:[%s233 + $0x140] sm:$0xff] %v2110
      %2159 = vst [vmem:[%s233 + $0x148] sm:$0xff] %v2112
      %2160 = vst [vmem:[%s233 + $0x150] sm:$0xff] %v1822
      %2161 = vst [vmem:[%s233 + $0x158] sm:$0xff] %v1824
      %2162 = vst [vmem:[%s233 + $0x160] sm:$0xff] %v1968
      %2163 = vst [vmem:[%s233 + $0x168] sm:$0xff] %v1970
      %2164 = vst [vmem:[%s233 + $0x170] sm:$0xff] %v2114
      %2165 = vst [vmem:[%s233 + $0x178] sm:$0xff] %v2116
      %2166 = vst [vmem:[#allocation2] sm:$0xff] %v427
      %2167 = vst [vmem:[#allocation2 + $0x20] sm:$0xff] %v428
      %2168 = vst [vmem:[#allocation2 + $0x40] sm:$0xff] %v429
      %2169 = vst [vmem:[#allocation2 + $0x60] sm:$0xff] %v430
      %vm2178 = vcmask 1042432
      %vm2179 = vcmask 1046532
      %vm2180 = vmor %vm2178, %vm2179
      %v2181 = vrot.slane %v256, 5
      %v2182 = vrot.slane %v2181, 4
      %v2183 = vrot.slane %v257, 5
      %v2184 = vsel %vm2180, %v2182, %v2183
      %v2185 = vrot.slane %v258, 5
      %v2186 = vrot.slane %v2185, 4
      %v2187 = vrot.slane %v259, 5
      %v2188 = vsel %vm2180, %v2186, %v2187
      %v2189 = vrot.slane %v260, 5
      %v2190 = vrot.slane %v2189, 4
      %v2191 = vrot.slane %v261, 5
      %v2192 = vsel %vm2180, %v2190, %v2191
      %v2193 = vrot.slane %v262, 5
      %v2194 = vrot.slane %v2193, 4
      %v2195 = vrot.slane %v263, 5
      %v2196 = vsel %vm2180, %v2194, %v2195
      %v2197 = vrot.slane %v264, 5
      %v2198 = vrot.slane %v2197, 4
      %v2199 = vrot.slane %v265, 5
      %v2200 = vsel %vm2180, %v2198, %v2199
      %v2201 = vrot.slane %v266, 5
      %v2202 = vrot.slane %v2201, 4
      %v2203 = vrot.slane %v267, 5
      %v2204 = vsel %vm2180, %v2202, %v2203
      %v2205 = vrot.slane %v268, 5
      %v2206 = vrot.slane %v2205, 4
      %v2207 = vrot.slane %v269, 5
      %v2208 = vsel %vm2180, %v2206, %v2207
      %v2209 = vrot.slane %v270, 5
      %v2210 = vrot.slane %v2209, 4
      %v2211 = vrot.slane %v271, 5
      %v2212 = vsel %vm2180, %v2210, %v2211
      %v2213 = vunpack.c.l.b16 %v2184
      %v2214 = vunpack.c.l.b16 %v2188
      %v2215 = vunpack.c.l.b16 %v2192
      %v2216 = vunpack.c.l.b16 %v2196
      %v2217 = vunpack.c.l.b16 %v2200
      %v2218 = vunpack.c.l.b16 %v2204
      %v2219 = vunpack.c.l.b16 %v2208
      %v2220 = vunpack.c.l.b16 %v2212
      %v2221 = vpack.c.b16 %v2214, %v2213
      %v2222 = vpack.c.b16 %v2216, %v2215
      %v2223 = vpack.c.b16 %v2218, %v2217
      %v2224 = vpack.c.b16 %v2220, %v2219
      %2229 = vst [vmem:[#allocation2 + $0x8] sm:$0xff] %v2221
      %2230 = vst [vmem:[#allocation2 + $0x28] sm:$0xff] %v2222
      %2231 = vst [vmem:[#allocation2 + $0x48] sm:$0xff] %v2223
      %2232 = vst [vmem:[#allocation2 + $0x68] sm:$0xff] %v2224
      %2233 = vst [vmem:[#allocation2 + $0x10] sm:$0xff] %v468
      %2234 = vst [vmem:[#allocation2 + $0x30] sm:$0xff] %v469
      %2235 = vst [vmem:[#allocation2 + $0x50] sm:$0xff] %v470
      %2236 = vst [vmem:[#allocation2 + $0x70] sm:$0xff] %v471
      %v2238 = vrot.slane %v272, 5
      %v2239 = vrot.slane %v2238, 4
      %v2240 = vrot.slane %v273, 5
      %v2241 = vsel %vm2180, %v2239, %v2240
      %v2242 = vunpack.c.l.b16 %v2241
      %v2243 = vpack.c.b16 %v2215, %v2214
      %v2244 = vpack.c.b16 %v2217, %v2216
      %v2245 = vpack.c.b16 %v2219, %v2218
      %v2246 = vpack.c.b16 %v2242, %v2220
      %2251 = vst [vmem:[#allocation2 + $0x18] sm:$0xff] %v2243
      %2252 = vst [vmem:[#allocation2 + $0x38] sm:$0xff] %v2244
      %2253 = vst [vmem:[#allocation2 + $0x58] sm:$0xff] %v2245
      %2254 = vst [vmem:[#allocation2 + $0x78] sm:$0xff] %v2246
      %v2255 = vld [vmem:[#allocation2] sm:$0xff]
      %v2256 = vld [vmem:[#allocation2 + $0x8] sm:$0xff]
      %v2257 = vld [vmem:[#allocation2 + $0x10] sm:$0xff]
      %v2258 = vld [vmem:[#allocation2 + $0x18] sm:$0xff]
      %v2259 = vld [vmem:[#allocation2 + $0x20] sm:$0xff]
      %v2260 = vld [vmem:[#allocation2 + $0x28] sm:$0xff]
      %v2261 = vld [vmem:[#allocation2 + $0x30] sm:$0xff]
      %v2262 = vld [vmem:[#allocation2 + $0x38] sm:$0xff]
      %v2263 = vld [vmem:[#allocation2 + $0x40] sm:$0xff]
      %v2264 = vld [vmem:[#allocation2 + $0x48] sm:$0xff]
      %v2265 = vld [vmem:[#allocation2 + $0x50] sm:$0xff]
      %v2266 = vld [vmem:[#allocation2 + $0x58] sm:$0xff]
      %v2267 = vld [vmem:[#allocation2 + $0x60] sm:$0xff]
      %v2268 = vld [vmem:[#allocation2 + $0x68] sm:$0xff]
      %v2269 = vld [vmem:[#allocation2 + $0x70] sm:$0xff]
      %v2270 = vld [vmem:[#allocation2 + $0x78] sm:$0xff]
      %s2271 = scalar_lea.vmem %s218, 1536
      %v2272 = vld [vmem:[%s2271] sm:$0xff]
      %v2273 = vld [vmem:[%s2271 + $0x8] sm:$0xff]
      %v2274 = vld [vmem:[%s2271 + $0x10] sm:$0xff]
      %v2275 = vld [vmem:[%s2271 + $0x18] sm:$0xff]
      %v2276 = vld [vmem:[%s2271 + $0x20] sm:$0xff]
      %v2277 = vld [vmem:[%s2271 + $0x28] sm:$0xff]
      %v2278 = vld [vmem:[%s2271 + $0x30] sm:$0xff]
      %v2279 = vld [vmem:[%s2271 + $0x38] sm:$0xff]
      %v2280 = vld [vmem:[%s2271 + $0x40] sm:$0xff]
      %v2281 = vld [vmem:[%s2271 + $0x48] sm:$0xff]
      %v2282 = vld [vmem:[%s2271 + $0x50] sm:$0xff]
      %v2283 = vld [vmem:[%s2271 + $0x58] sm:$0xff]
      %v2284 = vld [vmem:[%s2271 + $0x60] sm:$0xff]
      %v2285 = vld [vmem:[%s2271 + $0x68] sm:$0xff]
      %v2286 = vld [vmem:[%s2271 + $0x70] sm:$0xff]
      %v2287 = vld [vmem:[%s2271 + $0x78] sm:$0xff]
      %v2288 = vld [vmem:[%s2271 + $0x80] sm:$0xff]
      %v2289 = vld [vmem:[%s2271 + $0x88] sm:$0xff]
      %v2290 = vld [vmem:[%s2271 + $0x90] sm:$0xff]
      %v2291 = vld [vmem:[%s2271 + $0x98] sm:$0xff]
      %v2292 = vld [vmem:[%s2271 + $0xa0] sm:$0xff]
      %v2293 = vld [vmem:[%s2271 + $0xa8] sm:$0xff]
      %v2294 = vld [vmem:[%s2271 + $0xb0] sm:$0xff]
      %v2295 = vld [vmem:[%s2271 + $0xb8] sm:$0xff]
      %v2296 = vld [vmem:[%s2271 + $0xc0] sm:$0xff]
      %v2297 = vld [vmem:[%s2271 + $0xc8] sm:$0xff]
      %v2298 = vld [vmem:[%s2271 + $0xd0] sm:$0xff]
      %v2299 = vld [vmem:[%s2271 + $0xd8] sm:$0xff]
      %v2300 = vld [vmem:[%s2271 + $0xe0] sm:$0xff]
      %v2301 = vld [vmem:[%s2271 + $0xe8] sm:$0xff]
      %v2302 = vld [vmem:[%s2271 + $0xf0] sm:$0xff]
      %v2303 = vld [vmem:[%s2271 + $0xf8] sm:$0xff]
      %v2304 = vld [vmem:[%s2271 + $0x100] sm:$0xff]
      %v2305 = vld [vmem:[%s2271 + $0x108] sm:$0xff]
      %v2306 = vld [vmem:[%s2271 + $0x110] sm:$0xff]
      %v2307 = vld [vmem:[%s2271 + $0x118] sm:$0xff]
      %v2308 = vld [vmem:[%s2271 + $0x120] sm:$0xff]
      %v2309 = vld [vmem:[%s2271 + $0x128] sm:$0xff]
      %v2310 = vld [vmem:[%s2271 + $0x130] sm:$0xff]
      %v2311 = vld [vmem:[%s2271 + $0x138] sm:$0xff]
      %v2312 = vld [vmem:[%s2271 + $0x140] sm:$0xff]
      %v2313 = vld [vmem:[%s2271 + $0x148] sm:$0xff]
      %v2314 = vld [vmem:[%s2271 + $0x150] sm:$0xff]
      %v2315 = vld [vmem:[%s2271 + $0x158] sm:$0xff]
      %v2316 = vld [vmem:[%s2271 + $0x160] sm:$0xff]
      %v2317 = vld [vmem:[%s2271 + $0x168] sm:$0xff]
      %v2318 = vld [vmem:[%s2271 + $0x170] sm:$0xff]
      %v2319 = vld [vmem:[%s2271 + $0x178] sm:$0xff]
      %v2320 = vld [vmem:[%s2271 + $0x180] sm:$0xff]
      %v2321 = vld [vmem:[%s2271 + $0x188] sm:$0xff]
      %v2322 = vld [vmem:[%s2271 + $0x190] sm:$0xff]
      %v2323 = vld [vmem:[%s2271 + $0x198] sm:$0xff]
      %v2324 = vld [vmem:[%s2271 + $0x1a0] sm:$0xff]
      %v2325 = vld [vmem:[%s2271 + $0x1a8] sm:$0xff]
      %v2326 = vld [vmem:[%s2271 + $0x1b0] sm:$0xff]
      %v2327 = vld [vmem:[%s2271 + $0x1b8] sm:$0xff]
      %v2328 = vld [vmem:[%s2271 + $0x1c0] sm:$0xff]
      %v2329 = vld [vmem:[%s2271 + $0x1c8] sm:$0xff]
      %v2330 = vld [vmem:[%s2271 + $0x1d0] sm:$0xff]
      %v2331 = vld [vmem:[%s2271 + $0x1d8] sm:$0xff]
      %v2332 = vld [vmem:[%s2271 + $0x1e0] sm:$0xff]
      %v2333 = vld [vmem:[%s2271 + $0x1e8] sm:$0xff]
      %v2334 = vld [vmem:[%s2271 + $0x1f0] sm:$0xff]
      %v2335 = vld [vmem:[%s2271 + $0x1f8] sm:$0xff]
      %v2336 = vld [vmem:[%s2271 + $0x200] sm:$0xff]
      %v2337 = vld [vmem:[%s2271 + $0x208] sm:$0xff]
      %v2338 = vld [vmem:[%s2271 + $0x210] sm:$0xff]
      %v2339 = vld [vmem:[%s2271 + $0x218] sm:$0xff]
      %v2340 = vld [vmem:[%s2271 + $0x220] sm:$0xff]
      %v2341 = vld [vmem:[%s2271 + $0x228] sm:$0xff]
      %v2342 = vld [vmem:[%s2271 + $0x230] sm:$0xff]
      %v2343 = vld [vmem:[%s2271 + $0x238] sm:$0xff]
      %v2344 = vld [vmem:[%s2271 + $0x240] sm:$0xff]
      %v2345 = vld [vmem:[%s2271 + $0x248] sm:$0xff]
      %v2346 = vld [vmem:[%s2271 + $0x250] sm:$0xff]
      %v2347 = vld [vmem:[%s2271 + $0x258] sm:$0xff]
      %v2348 = vld [vmem:[%s2271 + $0x260] sm:$0xff]
      %v2349 = vld [vmem:[%s2271 + $0x268] sm:$0xff]
      %v2350 = vld [vmem:[%s2271 + $0x270] sm:$0xff]
      %v2351 = vld [vmem:[%s2271 + $0x278] sm:$0xff]
      %v2352 = vld [vmem:[%s2271 + $0x280] sm:$0xff]
      %v2353 = vld [vmem:[%s2271 + $0x288] sm:$0xff]
      %v2354 = vld [vmem:[%s2271 + $0x290] sm:$0xff]
      %v2355 = vld [vmem:[%s2271 + $0x298] sm:$0xff]
      %v2356 = vld [vmem:[%s2271 + $0x2a0] sm:$0xff]
      %v2357 = vld [vmem:[%s2271 + $0x2a8] sm:$0xff]
      %v2358 = vld [vmem:[%s2271 + $0x2b0] sm:$0xff]
      %v2359 = vld [vmem:[%s2271 + $0x2b8] sm:$0xff]
      %v2360 = vld [vmem:[%s2271 + $0x2c0] sm:$0xff]
      %v2361 = vld [vmem:[%s2271 + $0x2c8] sm:$0xff]
      %v2362 = vld [vmem:[%s2271 + $0x2d0] sm:$0xff]
      %v2363 = vld [vmem:[%s2271 + $0x2d8] sm:$0xff]
      %v2364 = vld [vmem:[%s2271 + $0x2e0] sm:$0xff]
      %v2365 = vld [vmem:[%s2271 + $0x2e8] sm:$0xff]
      %v2366 = vld [vmem:[%s2271 + $0x2f0] sm:$0xff]
      %v2367 = vld [vmem:[%s2271 + $0x2f8] sm:$0xff]
      %v2368 = vld [vmem:[%s2271 + $0x300] sm:$0xff]
      %v2369 = vld [vmem:[%s2271 + $0x308] sm:$0xff]
      %v2370 = vld [vmem:[%s2271 + $0x310] sm:$0xff]
      %v2371 = vld [vmem:[%s2271 + $0x318] sm:$0xff]
      %v2372 = vld [vmem:[%s2271 + $0x320] sm:$0xff]
      %v2373 = vld [vmem:[%s2271 + $0x328] sm:$0xff]
      %v2374 = vld [vmem:[%s2271 + $0x330] sm:$0xff]
      %v2375 = vld [vmem:[%s2271 + $0x338] sm:$0xff]
      %v2376 = vld [vmem:[%s2271 + $0x340] sm:$0xff]
      %v2377 = vld [vmem:[%s2271 + $0x348] sm:$0xff]
      %v2378 = vld [vmem:[%s2271 + $0x350] sm:$0xff]
      %v2379 = vld [vmem:[%s2271 + $0x358] sm:$0xff]
      %v2380 = vld [vmem:[%s2271 + $0x360] sm:$0xff]
      %v2381 = vld [vmem:[%s2271 + $0x368] sm:$0xff]
      %v2382 = vld [vmem:[%s2271 + $0x370] sm:$0xff]
      %v2383 = vld [vmem:[%s2271 + $0x378] sm:$0xff]
      %v2384 = vld [vmem:[%s2271 + $0x380] sm:$0xff]
      %v2385 = vld [vmem:[%s2271 + $0x388] sm:$0xff]
      %v2386 = vld [vmem:[%s2271 + $0x390] sm:$0xff]
      %v2387 = vld [vmem:[%s2271 + $0x398] sm:$0xff]
      %v2388 = vld [vmem:[%s2271 + $0x3a0] sm:$0xff]
      %v2389 = vld [vmem:[%s2271 + $0x3a8] sm:$0xff]
      %v2390 = vld [vmem:[%s2271 + $0x3b0] sm:$0xff]
      %v2391 = vld [vmem:[%s2271 + $0x3b8] sm:$0xff]
      %v2392 = vld [vmem:[%s2271 + $0x3c0] sm:$0xff]
      %v2393 = vld [vmem:[%s2271 + $0x3c8] sm:$0xff]
      %v2394 = vld [vmem:[%s2271 + $0x3d0] sm:$0xff]
      %v2395 = vld [vmem:[%s2271 + $0x3d8] sm:$0xff]
      %v2396 = vld [vmem:[%s2271 + $0x3e0] sm:$0xff]
      %v2397 = vld [vmem:[%s2271 + $0x3e8] sm:$0xff]
      %v2398 = vld [vmem:[%s2271 + $0x3f0] sm:$0xff]
      %v2399 = vld [vmem:[%s2271 + $0x3f8] sm:$0xff]
      %v2400 = vld [vmem:[%s2271 + $0x400] sm:$0xff]
      %v2401 = vld [vmem:[%s2271 + $0x408] sm:$0xff]
      %v2402 = vld [vmem:[%s2271 + $0x410] sm:$0xff]
      %v2403 = vld [vmem:[%s2271 + $0x418] sm:$0xff]
      %v2404 = vld [vmem:[%s2271 + $0x420] sm:$0xff]
      %v2405 = vld [vmem:[%s2271 + $0x428] sm:$0xff]
      %v2406 = vld [vmem:[%s2271 + $0x430] sm:$0xff]
      %v2407 = vld [vmem:[%s2271 + $0x438] sm:$0xff]
      %v2408 = vld [vmem:[%s2271 + $0x440] sm:$0xff]
      %v2409 = vld [vmem:[%s2271 + $0x448] sm:$0xff]
      %v2410 = vld [vmem:[%s2271 + $0x450] sm:$0xff]
      %v2411 = vld [vmem:[%s2271 + $0x458] sm:$0xff]
      %v2412 = vld [vmem:[%s2271 + $0x460] sm:$0xff]
      %v2413 = vld [vmem:[%s2271 + $0x468] sm:$0xff]
      %v2414 = vld [vmem:[%s2271 + $0x470] sm:$0xff]
      %v2415 = vld [vmem:[%s2271 + $0x478] sm:$0xff]
      %v2416 = vld [vmem:[%s2271 + $0x480] sm:$0xff]
      %v2417 = vld [vmem:[%s2271 + $0x488] sm:$0xff]
      %v2418 = vld [vmem:[%s2271 + $0x490] sm:$0xff]
      %v2419 = vld [vmem:[%s2271 + $0x498] sm:$0xff]
      %v2420 = vld [vmem:[%s2271 + $0x4a0] sm:$0xff]
      %v2421 = vld [vmem:[%s2271 + $0x4a8] sm:$0xff]
      %v2422 = vld [vmem:[%s2271 + $0x4b0] sm:$0xff]
      %v2423 = vld [vmem:[%s2271 + $0x4b8] sm:$0xff]
      %v2424 = vld [vmem:[%s2271 + $0x4c0] sm:$0xff]
      %v2425 = vld [vmem:[%s2271 + $0x4c8] sm:$0xff]
      %v2426 = vld [vmem:[%s2271 + $0x4d0] sm:$0xff]
      %v2427 = vld [vmem:[%s2271 + $0x4d8] sm:$0xff]
      %v2428 = vld [vmem:[%s2271 + $0x4e0] sm:$0xff]
      %v2429 = vld [vmem:[%s2271 + $0x4e8] sm:$0xff]
      %v2430 = vld [vmem:[%s2271 + $0x4f0] sm:$0xff]
      %v2431 = vld [vmem:[%s2271 + $0x4f8] sm:$0xff]
      %v2432 = vld [vmem:[%s2271 + $0x500] sm:$0xff]
      %v2433 = vld [vmem:[%s2271 + $0x508] sm:$0xff]
      %v2434 = vld [vmem:[%s2271 + $0x510] sm:$0xff]
      %v2435 = vld [vmem:[%s2271 + $0x518] sm:$0xff]
      %v2436 = vld [vmem:[%s2271 + $0x520] sm:$0xff]
      %v2437 = vld [vmem:[%s2271 + $0x528] sm:$0xff]
      %v2438 = vld [vmem:[%s2271 + $0x530] sm:$0xff]
      %v2439 = vld [vmem:[%s2271 + $0x538] sm:$0xff]
      %v2440 = vld [vmem:[%s2271 + $0x540] sm:$0xff]
      %v2441 = vld [vmem:[%s2271 + $0x548] sm:$0xff]
      %v2442 = vld [vmem:[%s2271 + $0x550] sm:$0xff]
      %v2443 = vld [vmem:[%s2271 + $0x558] sm:$0xff]
      %v2444 = vld [vmem:[%s2271 + $0x560] sm:$0xff]
      %v2445 = vld [vmem:[%s2271 + $0x568] sm:$0xff]
      %v2446 = vld [vmem:[%s2271 + $0x570] sm:$0xff]
      %v2447 = vld [vmem:[%s2271 + $0x578] sm:$0xff]
      %v2448 = vld [vmem:[%s2271 + $0x580] sm:$0xff]
      %v2449 = vld [vmem:[%s2271 + $0x588] sm:$0xff]
      %v2450 = vld [vmem:[%s2271 + $0x590] sm:$0xff]
      %v2451 = vld [vmem:[%s2271 + $0x598] sm:$0xff]
      %v2452 = vld [vmem:[%s2271 + $0x5a0] sm:$0xff]
      %v2453 = vld [vmem:[%s2271 + $0x5a8] sm:$0xff]
      %v2454 = vld [vmem:[%s2271 + $0x5b0] sm:$0xff]
      %v2455 = vld [vmem:[%s2271 + $0x5b8] sm:$0xff]
      %v2456 = vld [vmem:[%s2271 + $0x5c0] sm:$0xff]
      %v2457 = vld [vmem:[%s2271 + $0x5c8] sm:$0xff]
      %v2458 = vld [vmem:[%s2271 + $0x5d0] sm:$0xff]
      %v2459 = vld [vmem:[%s2271 + $0x5d8] sm:$0xff]
      %v2460 = vld [vmem:[%s2271 + $0x5e0] sm:$0xff]
      %v2461 = vld [vmem:[%s2271 + $0x5e8] sm:$0xff]
      %v2462 = vld [vmem:[%s2271 + $0x5f0] sm:$0xff]
      %v2463 = vld [vmem:[%s2271 + $0x5f8] sm:$0xff]
      %v2464 = vld [vmem:[%s223] sm:$0x3f]
      %v2466 = vlaneseq
      %v2467 = vshrl.u32 %v2466, 7
      %v2468 = vsub.s32 0, %v2467
      %v2469 = vrot.slane %v2464, %v2468
      %v2470 = vlaneseq
      %v2471 = vshrl.u32 %v2470, 7
      %v2472 = vsub.s32 1, %v2471
      %v2473 = vrot.slane %v2464, %v2472
      %v2474 = vlaneseq
      %v2475 = vshrl.u32 %v2474, 7
      %v2476 = vsub.s32 2, %v2475
      %v2477 = vrot.slane %v2464, %v2476
      %v2478 = vlaneseq
      %v2479 = vshrl.u32 %v2478, 7
      %v2480 = vsub.s32 3, %v2479
      %v2481 = vrot.slane %v2464, %v2480
      %v2482 = vlaneseq
      %v2483 = vshrl.u32 %v2482, 7
      %v2484 = vsub.s32 4, %v2483
      %v2485 = vrot.slane %v2464, %v2484
      %v2486 = vlaneseq
      %v2487 = vshrl.u32 %v2486, 7
      %v2488 = vsub.s32 5, %v2487
      %v2489 = vrot.slane %v2464, %v2488
      %v2688 = vunpack.c.l.b16 %v2272
      %v2689 = vunpack.c.h.b16 %v2272
      %v2690 = vunpack.c.l.b16 %v2273
      %v2691 = vunpack.c.h.b16 %v2273
      %v2692 = vunpack.c.l.b16 %v2274
      %v2693 = vunpack.c.h.b16 %v2274
      %v2694 = vunpack.c.l.b16 %v2275
      %v2695 = vunpack.c.h.b16 %v2275
      %v2696 = vunpack.c.l.b16 %v2276
      %v2697 = vunpack.c.h.b16 %v2276
      %v2698 = vunpack.c.l.b16 %v2277
      %v2699 = vunpack.c.h.b16 %v2277
      %v2700 = vunpack.c.l.b16 %v2278
      %v2701 = vunpack.c.h.b16 %v2278
      %v2702 = vunpack.c.l.b16 %v2279
      %v2703 = vunpack.c.h.b16 %v2279
      %v2704 = vunpack.c.l.b16 %v2280
      %v2705 = vunpack.c.h.b16 %v2280
      %v2706 = vunpack.c.l.b16 %v2281
      %v2707 = vunpack.c.h.b16 %v2281
      %v2708 = vunpack.c.l.b16 %v2282
      %v2709 = vunpack.c.h.b16 %v2282
      %v2710 = vunpack.c.l.b16 %v2283
      %v2711 = vunpack.c.h.b16 %v2283
      %v2712 = vunpack.c.l.b16 %v2284
      %v2713 = vunpack.c.h.b16 %v2284
      %v2714 = vunpack.c.l.b16 %v2285
      %v2715 = vunpack.c.h.b16 %v2285
      %v2716 = vunpack.c.l.b16 %v2286
      %v2717 = vunpack.c.h.b16 %v2286
      %v2718 = vunpack.c.l.b16 %v2287
      %v2719 = vunpack.c.h.b16 %v2287
      %v2720 = vunpack.c.l.b16 %v2288
      %v2721 = vunpack.c.h.b16 %v2288
      %v2722 = vunpack.c.l.b16 %v2289
      %v2723 = vunpack.c.h.b16 %v2289
      %v2724 = vunpack.c.l.b16 %v2290
      %v2725 = vunpack.c.h.b16 %v2290
      %v2726 = vunpack.c.l.b16 %v2291
      %v2727 = vunpack.c.h.b16 %v2291
      %v2728 = vunpack.c.l.b16 %v2292
      %v2729 = vunpack.c.h.b16 %v2292
      %v2730 = vunpack.c.l.b16 %v2293
      %v2731 = vunpack.c.h.b16 %v2293
      %v2732 = vunpack.c.l.b16 %v2294
      %v2733 = vunpack.c.h.b16 %v2294
      %v2734 = vunpack.c.l.b16 %v2295
      %v2735 = vunpack.c.h.b16 %v2295
      %v2736 = vunpack.c.l.b16 %v2296
      %v2737 = vunpack.c.h.b16 %v2296
      %v2738 = vunpack.c.l.b16 %v2297
      %v2739 = vunpack.c.h.b16 %v2297
      %v2740 = vunpack.c.l.b16 %v2298
      %v2741 = vunpack.c.h.b16 %v2298
      %v2742 = vunpack.c.l.b16 %v2299
      %v2743 = vunpack.c.h.b16 %v2299
      %v2744 = vunpack.c.l.b16 %v2300
      %v2745 = vunpack.c.h.b16 %v2300
      %v2746 = vunpack.c.l.b16 %v2301
      %v2747 = vunpack.c.h.b16 %v2301
      %v2748 = vunpack.c.l.b16 %v2302
      %v2749 = vunpack.c.h.b16 %v2302
      %v2750 = vunpack.c.l.b16 %v2303
      %v2751 = vunpack.c.h.b16 %v2303
      %v2752 = vunpack.c.l.b16 %v2304
      %v2753 = vunpack.c.h.b16 %v2304
      %v2754 = vunpack.c.l.b16 %v2305
      %v2755 = vunpack.c.h.b16 %v2305
      %v2756 = vunpack.c.l.b16 %v2306
      %v2757 = vunpack.c.h.b16 %v2306
      %v2758 = vunpack.c.l.b16 %v2307
      %v2759 = vunpack.c.h.b16 %v2307
      %v2760 = vunpack.c.l.b16 %v2308
      %v2761 = vunpack.c.h.b16 %v2308
      %v2762 = vunpack.c.l.b16 %v2309
      %v2763 = vunpack.c.h.b16 %v2309
      %v2764 = vunpack.c.l.b16 %v2310
      %v2765 = vunpack.c.h.b16 %v2310
      %v2766 = vunpack.c.l.b16 %v2311
      %v2767 = vunpack.c.h.b16 %v2311
      %v2768 = vunpack.c.l.b16 %v2312
      %v2769 = vunpack.c.h.b16 %v2312
      %v2770 = vunpack.c.l.b16 %v2313
      %v2771 = vunpack.c.h.b16 %v2313
      %v2772 = vunpack.c.l.b16 %v2314
      %v2773 = vunpack.c.h.b16 %v2314
      %v2774 = vunpack.c.l.b16 %v2315
      %v2775 = vunpack.c.h.b16 %v2315
      %v2776 = vunpack.c.l.b16 %v2316
      %v2777 = vunpack.c.h.b16 %v2316
      %v2778 = vunpack.c.l.b16 %v2317
      %v2779 = vunpack.c.h.b16 %v2317
      %v2780 = vunpack.c.l.b16 %v2318
      %v2781 = vunpack.c.h.b16 %v2318
      %v2782 = vunpack.c.l.b16 %v2319
      %v2783 = vunpack.c.h.b16 %v2319
      %v2784 = vunpack.c.l.b16 %v2320
      %v2785 = vunpack.c.h.b16 %v2320
      %v2786 = vunpack.c.l.b16 %v2321
      %v2787 = vunpack.c.h.b16 %v2321
      %v2788 = vunpack.c.l.b16 %v2322
      %v2789 = vunpack.c.h.b16 %v2322
      %v2790 = vunpack.c.l.b16 %v2323
      %v2791 = vunpack.c.h.b16 %v2323
      %v2792 = vunpack.c.l.b16 %v2324
      %v2793 = vunpack.c.h.b16 %v2324
      %v2794 = vunpack.c.l.b16 %v2325
      %v2795 = vunpack.c.h.b16 %v2325
      %v2796 = vunpack.c.l.b16 %v2326
      %v2797 = vunpack.c.h.b16 %v2326
      %v2798 = vunpack.c.l.b16 %v2327
      %v2799 = vunpack.c.h.b16 %v2327
      %v2800 = vunpack.c.l.b16 %v2328
      %v2801 = vunpack.c.h.b16 %v2328
      %v2802 = vunpack.c.l.b16 %v2329
      %v2803 = vunpack.c.h.b16 %v2329
      %v2804 = vunpack.c.l.b16 %v2330
      %v2805 = vunpack.c.h.b16 %v2330
      %v2806 = vunpack.c.l.b16 %v2331
      %v2807 = vunpack.c.h.b16 %v2331
      %v2808 = vunpack.c.l.b16 %v2332
      %v2809 = vunpack.c.h.b16 %v2332
      %v2810 = vunpack.c.l.b16 %v2333
      %v2811 = vunpack.c.h.b16 %v2333
      %v2812 = vunpack.c.l.b16 %v2334
      %v2813 = vunpack.c.h.b16 %v2334
      %v2814 = vunpack.c.l.b16 %v2335
      %v2815 = vunpack.c.h.b16 %v2335
      %v2816 = vunpack.c.l.b16 %v2336
      %v2817 = vunpack.c.h.b16 %v2336
      %v2818 = vunpack.c.l.b16 %v2337
      %v2819 = vunpack.c.h.b16 %v2337
      %v2820 = vunpack.c.l.b16 %v2338
      %v2821 = vunpack.c.h.b16 %v2338
      %v2822 = vunpack.c.l.b16 %v2339
      %v2823 = vunpack.c.h.b16 %v2339
      %v2824 = vunpack.c.l.b16 %v2340
      %v2825 = vunpack.c.h.b16 %v2340
      %v2826 = vunpack.c.l.b16 %v2341
      %v2827 = vunpack.c.h.b16 %v2341
      %v2828 = vunpack.c.l.b16 %v2342
      %v2829 = vunpack.c.h.b16 %v2342
      %v2830 = vunpack.c.l.b16 %v2343
      %v2831 = vunpack.c.h.b16 %v2343
      %v2832 = vunpack.c.l.b16 %v2344
      %v2833 = vunpack.c.h.b16 %v2344
      %v2834 = vunpack.c.l.b16 %v2345
      %v2835 = vunpack.c.h.b16 %v2345
      %v2836 = vunpack.c.l.b16 %v2346
      %v2837 = vunpack.c.h.b16 %v2346
      %v2838 = vunpack.c.l.b16 %v2347
      %v2839 = vunpack.c.h.b16 %v2347
      %v2840 = vunpack.c.l.b16 %v2348
      %v2841 = vunpack.c.h.b16 %v2348
      %v2842 = vunpack.c.l.b16 %v2349
      %v2843 = vunpack.c.h.b16 %v2349
      %v2844 = vunpack.c.l.b16 %v2350
      %v2845 = vunpack.c.h.b16 %v2350
      %v2846 = vunpack.c.l.b16 %v2351
      %v2847 = vunpack.c.h.b16 %v2351
      %v2848 = vunpack.c.l.b16 %v2352
      %v2849 = vunpack.c.h.b16 %v2352
      %v2850 = vunpack.c.l.b16 %v2353
      %v2851 = vunpack.c.h.b16 %v2353
      %v2852 = vunpack.c.l.b16 %v2354
      %v2853 = vunpack.c.h.b16 %v2354
      %v2854 = vunpack.c.l.b16 %v2355
      %v2855 = vunpack.c.h.b16 %v2355
      %v2856 = vunpack.c.l.b16 %v2356
      %v2857 = vunpack.c.h.b16 %v2356
      %v2858 = vunpack.c.l.b16 %v2357
      %v2859 = vunpack.c.h.b16 %v2357
      %v2860 = vunpack.c.l.b16 %v2358
      %v2861 = vunpack.c.h.b16 %v2358
      %v2862 = vunpack.c.l.b16 %v2359
      %v2863 = vunpack.c.h.b16 %v2359
      %v2864 = vunpack.c.l.b16 %v2360
      %v2865 = vunpack.c.h.b16 %v2360
      %v2866 = vunpack.c.l.b16 %v2361
      %v2867 = vunpack.c.h.b16 %v2361
      %v2868 = vunpack.c.l.b16 %v2362
      %v2869 = vunpack.c.h.b16 %v2362
      %v2870 = vunpack.c.l.b16 %v2363
      %v2871 = vunpack.c.h.b16 %v2363
      %v2872 = vunpack.c.l.b16 %v2364
      %v2873 = vunpack.c.h.b16 %v2364
      %v2874 = vunpack.c.l.b16 %v2365
      %v2875 = vunpack.c.h.b16 %v2365
      %v2876 = vunpack.c.l.b16 %v2366
      %v2877 = vunpack.c.h.b16 %v2366
      %v2878 = vunpack.c.l.b16 %v2367
      %v2879 = vunpack.c.h.b16 %v2367
      %v2880 = vunpack.c.l.b16 %v2368
      %v2881 = vunpack.c.h.b16 %v2368
      %v2882 = vunpack.c.l.b16 %v2369
      %v2883 = vunpack.c.h.b16 %v2369
      %v2884 = vunpack.c.l.b16 %v2370
      %v2885 = vunpack.c.h.b16 %v2370
      %v2886 = vunpack.c.l.b16 %v2371
      %v2887 = vunpack.c.h.b16 %v2371
      %v2888 = vunpack.c.l.b16 %v2372
      %v2889 = vunpack.c.h.b16 %v2372
      %v2890 = vunpack.c.l.b16 %v2373
      %v2891 = vunpack.c.h.b16 %v2373
      %v2892 = vunpack.c.l.b16 %v2374
      %v2893 = vunpack.c.h.b16 %v2374
      %v2894 = vunpack.c.l.b16 %v2375
      %v2895 = vunpack.c.h.b16 %v2375
      %v2896 = vunpack.c.l.b16 %v2376
      %v2897 = vunpack.c.h.b16 %v2376
      %v2898 = vunpack.c.l.b16 %v2377
      %v2899 = vunpack.c.h.b16 %v2377
      %v2900 = vunpack.c.l.b16 %v2378
      %v2901 = vunpack.c.h.b16 %v2378
      %v2902 = vunpack.c.l.b16 %v2379
      %v2903 = vunpack.c.h.b16 %v2379
      %v2904 = vunpack.c.l.b16 %v2380
      %v2905 = vunpack.c.h.b16 %v2380
      %v2906 = vunpack.c.l.b16 %v2381
      %v2907 = vunpack.c.h.b16 %v2381
      %v2908 = vunpack.c.l.b16 %v2382
      %v2909 = vunpack.c.h.b16 %v2382
      %v2910 = vunpack.c.l.b16 %v2383
      %v2911 = vunpack.c.h.b16 %v2383
      %v2912 = vunpack.c.l.b16 %v2384
      %v2913 = vunpack.c.h.b16 %v2384
      %v2914 = vunpack.c.l.b16 %v2385
      %v2915 = vunpack.c.h.b16 %v2385
      %v2916 = vunpack.c.l.b16 %v2386
      %v2917 = vunpack.c.h.b16 %v2386
      %v2918 = vunpack.c.l.b16 %v2387
      %v2919 = vunpack.c.h.b16 %v2387
      %v2920 = vunpack.c.l.b16 %v2388
      %v2921 = vunpack.c.h.b16 %v2388
      %v2922 = vunpack.c.l.b16 %v2389
      %v2923 = vunpack.c.h.b16 %v2389
      %v2924 = vunpack.c.l.b16 %v2390
      %v2925 = vunpack.c.h.b16 %v2390
      %v2926 = vunpack.c.l.b16 %v2391
      %v2927 = vunpack.c.h.b16 %v2391
      %v2928 = vunpack.c.l.b16 %v2392
      %v2929 = vunpack.c.h.b16 %v2392
      %v2930 = vunpack.c.l.b16 %v2393
      %v2931 = vunpack.c.h.b16 %v2393
      %v2932 = vunpack.c.l.b16 %v2394
      %v2933 = vunpack.c.h.b16 %v2394
      %v2934 = vunpack.c.l.b16 %v2395
      %v2935 = vunpack.c.h.b16 %v2395
      %v2936 = vunpack.c.l.b16 %v2396
      %v2937 = vunpack.c.h.b16 %v2396
      %v2938 = vunpack.c.l.b16 %v2397
      %v2939 = vunpack.c.h.b16 %v2397
      %v2940 = vunpack.c.l.b16 %v2398
      %v2941 = vunpack.c.h.b16 %v2398
      %v2942 = vunpack.c.l.b16 %v2399
      %v2943 = vunpack.c.h.b16 %v2399
      %v2944 = vunpack.c.l.b16 %v2400
      %v2945 = vunpack.c.h.b16 %v2400
      %v2946 = vunpack.c.l.b16 %v2401
      %v2947 = vunpack.c.h.b16 %v2401
      %v2948 = vunpack.c.l.b16 %v2402
      %v2949 = vunpack.c.h.b16 %v2402
      %v2950 = vunpack.c.l.b16 %v2403
      %v2951 = vunpack.c.h.b16 %v2403
      %v2952 = vunpack.c.l.b16 %v2404
      %v2953 = vunpack.c.h.b16 %v2404
      %v2954 = vunpack.c.l.b16 %v2405
      %v2955 = vunpack.c.h.b16 %v2405
      %v2956 = vunpack.c.l.b16 %v2406
      %v2957 = vunpack.c.h.b16 %v2406
      %v2958 = vunpack.c.l.b16 %v2407
      %v2959 = vunpack.c.h.b16 %v2407
      %v2960 = vunpack.c.l.b16 %v2408
      %v2961 = vunpack.c.h.b16 %v2408
      %v2962 = vunpack.c.l.b16 %v2409
      %v2963 = vunpack.c.h.b16 %v2409
      %v2964 = vunpack.c.l.b16 %v2410
      %v2965 = vunpack.c.h.b16 %v2410
      %v2966 = vunpack.c.l.b16 %v2411
      %v2967 = vunpack.c.h.b16 %v2411
      %v2968 = vunpack.c.l.b16 %v2412
      %v2969 = vunpack.c.h.b16 %v2412
      %v2970 = vunpack.c.l.b16 %v2413
      %v2971 = vunpack.c.h.b16 %v2413
      %v2972 = vunpack.c.l.b16 %v2414
      %v2973 = vunpack.c.h.b16 %v2414
      %v2974 = vunpack.c.l.b16 %v2415
      %v2975 = vunpack.c.h.b16 %v2415
      %v2976 = vunpack.c.l.b16 %v2416
      %v2977 = vunpack.c.h.b16 %v2416
      %v2978 = vunpack.c.l.b16 %v2417
      %v2979 = vunpack.c.h.b16 %v2417
      %v2980 = vunpack.c.l.b16 %v2418
      %v2981 = vunpack.c.h.b16 %v2418
      %v2982 = vunpack.c.l.b16 %v2419
      %v2983 = vunpack.c.h.b16 %v2419
      %v2984 = vunpack.c.l.b16 %v2420
      %v2985 = vunpack.c.h.b16 %v2420
      %v2986 = vunpack.c.l.b16 %v2421
      %v2987 = vunpack.c.h.b16 %v2421
      %v2988 = vunpack.c.l.b16 %v2422
      %v2989 = vunpack.c.h.b16 %v2422
      %v2990 = vunpack.c.l.b16 %v2423
      %v2991 = vunpack.c.h.b16 %v2423
      %v2992 = vunpack.c.l.b16 %v2424
      %v2993 = vunpack.c.h.b16 %v2424
      %v2994 = vunpack.c.l.b16 %v2425
      %v2995 = vunpack.c.h.b16 %v2425
      %v2996 = vunpack.c.l.b16 %v2426
      %v2997 = vunpack.c.h.b16 %v2426
      %v2998 = vunpack.c.l.b16 %v2427
      %v2999 = vunpack.c.h.b16 %v2427
      %v3000 = vunpack.c.l.b16 %v2428
      %v3001 = vunpack.c.h.b16 %v2428
      %v3002 = vunpack.c.l.b16 %v2429
      %v3003 = vunpack.c.h.b16 %v2429
      %v3004 = vunpack.c.l.b16 %v2430
      %v3005 = vunpack.c.h.b16 %v2430
      %v3006 = vunpack.c.l.b16 %v2431
      %v3007 = vunpack.c.h.b16 %v2431
      %v3008 = vunpack.c.l.b16 %v2432
      %v3009 = vunpack.c.h.b16 %v2432
      %v3010 = vunpack.c.l.b16 %v2433
      %v3011 = vunpack.c.h.b16 %v2433
      %v3012 = vunpack.c.l.b16 %v2434
      %v3013 = vunpack.c.h.b16 %v2434
      %v3014 = vunpack.c.l.b16 %v2435
      %v3015 = vunpack.c.h.b16 %v2435
      %v3016 = vunpack.c.l.b16 %v2436
      %v3017 = vunpack.c.h.b16 %v2436
      %v3018 = vunpack.c.l.b16 %v2437
      %v3019 = vunpack.c.h.b16 %v2437
      %v3020 = vunpack.c.l.b16 %v2438
      %v3021 = vunpack.c.h.b16 %v2438
      %v3022 = vunpack.c.l.b16 %v2439
      %v3023 = vunpack.c.h.b16 %v2439
      %v3024 = vunpack.c.l.b16 %v2440
      %v3025 = vunpack.c.h.b16 %v2440
      %v3026 = vunpack.c.l.b16 %v2441
      %v3027 = vunpack.c.h.b16 %v2441
      %v3028 = vunpack.c.l.b16 %v2442
      %v3029 = vunpack.c.h.b16 %v2442
      %v3030 = vunpack.c.l.b16 %v2443
      %v3031 = vunpack.c.h.b16 %v2443
      %v3032 = vunpack.c.l.b16 %v2444
      %v3033 = vunpack.c.h.b16 %v2444
      %v3034 = vunpack.c.l.b16 %v2445
      %v3035 = vunpack.c.h.b16 %v2445
      %v3036 = vunpack.c.l.b16 %v2446
      %v3037 = vunpack.c.h.b16 %v2446
      %v3038 = vunpack.c.l.b16 %v2447
      %v3039 = vunpack.c.h.b16 %v2447
      %v3040 = vunpack.c.l.b16 %v2448
      %v3041 = vunpack.c.h.b16 %v2448
      %v3042 = vunpack.c.l.b16 %v2449
      %v3043 = vunpack.c.h.b16 %v2449
      %v3044 = vunpack.c.l.b16 %v2450
      %v3045 = vunpack.c.h.b16 %v2450
      %v3046 = vunpack.c.l.b16 %v2451
      %v3047 = vunpack.c.h.b16 %v2451
      %v3048 = vunpack.c.l.b16 %v2452
      %v3049 = vunpack.c.h.b16 %v2452
      %v3050 = vunpack.c.l.b16 %v2453
      %v3051 = vunpack.c.h.b16 %v2453
      %v3052 = vunpack.c.l.b16 %v2454
      %v3053 = vunpack.c.h.b16 %v2454
      %v3054 = vunpack.c.l.b16 %v2455
      %v3055 = vunpack.c.h.b16 %v2455
      %v3056 = vunpack.c.l.b16 %v2456
      %v3057 = vunpack.c.h.b16 %v2456
      %v3058 = vunpack.c.l.b16 %v2457
      %v3059 = vunpack.c.h.b16 %v2457
      %v3060 = vunpack.c.l.b16 %v2458
      %v3061 = vunpack.c.h.b16 %v2458
      %v3062 = vunpack.c.l.b16 %v2459
      %v3063 = vunpack.c.h.b16 %v2459
      %v3064 = vunpack.c.l.b16 %v2460
      %v3065 = vunpack.c.h.b16 %v2460
      %v3066 = vunpack.c.l.b16 %v2461
      %v3067 = vunpack.c.h.b16 %v2461
      %v3068 = vunpack.c.l.b16 %v2462
      %v3069 = vunpack.c.h.b16 %v2462
      %v3070 = vunpack.c.l.b16 %v2463
      %v3071 = vunpack.c.h.b16 %v2463
      %v3072 = vpack.c.b16 %v2694, %v2688
      %v3073 = vpack.c.b16 %v2695, %v2689
      %v3074 = vpack.c.b16 %v2696, %v2690
      %v3075 = vpack.c.b16 %v2697, %v2691
      %v3076 = vpack.c.b16 %v2698, %v2692
      %v3077 = vpack.c.b16 %v2699, %v2693
      %v3078 = vpack.c.b16 %v2706, %v2700
      %v3079 = vpack.c.b16 %v2707, %v2701
      %v3080 = vpack.c.b16 %v2708, %v2702
      %v3081 = vpack.c.b16 %v2709, %v2703
      %v3082 = vpack.c.b16 %v2710, %v2704
      %v3083 = vpack.c.b16 %v2711, %v2705
      %v3084 = vpack.c.b16 %v2718, %v2712
      %v3085 = vpack.c.b16 %v2719, %v2713
      %v3086 = vpack.c.b16 %v2720, %v2714
      %v3087 = vpack.c.b16 %v2721, %v2715
      %v3088 = vpack.c.b16 %v2722, %v2716
      %v3089 = vpack.c.b16 %v2723, %v2717
      %v3090 = vpack.c.b16 %v2730, %v2724
      %v3091 = vpack.c.b16 %v2731, %v2725
      %v3092 = vpack.c.b16 %v2732, %v2726
      %v3093 = vpack.c.b16 %v2733, %v2727
      %v3094 = vpack.c.b16 %v2734, %v2728
      %v3095 = vpack.c.b16 %v2735, %v2729
      %v3096 = vpack.c.b16 %v2742, %v2736
      %v3097 = vpack.c.b16 %v2743, %v2737
      %v3098 = vpack.c.b16 %v2744, %v2738
      %v3099 = vpack.c.b16 %v2745, %v2739
      %v3100 = vpack.c.b16 %v2746, %v2740
      %v3101 = vpack.c.b16 %v2747, %v2741
      %v3102 = vpack.c.b16 %v2754, %v2748
      %v3103 = vpack.c.b16 %v2755, %v2749
      %v3104 = vpack.c.b16 %v2756, %v2750
      %v3105 = vpack.c.b16 %v2757, %v2751
      %v3106 = vpack.c.b16 %v2758, %v2752
      %v3107 = vpack.c.b16 %v2759, %v2753
      %v3108 = vpack.c.b16 %v2766, %v2760
      %v3109 = vpack.c.b16 %v2767, %v2761
      %v3110 = vpack.c.b16 %v2768, %v2762
      %v3111 = vpack.c.b16 %v2769, %v2763
      %v3112 = vpack.c.b16 %v2770, %v2764
      %v3113 = vpack.c.b16 %v2771, %v2765
      %v3114 = vpack.c.b16 %v2778, %v2772
      %v3115 = vpack.c.b16 %v2779, %v2773
      %v3116 = vpack.c.b16 %v2780, %v2774
      %v3117 = vpack.c.b16 %v2781, %v2775
      %v3118 = vpack.c.b16 %v2782, %v2776
      %v3119 = vpack.c.b16 %v2783, %v2777
      %v3120 = vpack.c.b16 %v2790, %v2784
      %v3121 = vpack.c.b16 %v2791, %v2785
      %v3122 = vpack.c.b16 %v2792, %v2786
      %v3123 = vpack.c.b16 %v2793, %v2787
      %v3124 = vpack.c.b16 %v2794, %v2788
      %v3125 = vpack.c.b16 %v2795, %v2789
      %v3126 = vpack.c.b16 %v2802, %v2796
      %v3127 = vpack.c.b16 %v2803, %v2797
      %v3128 = vpack.c.b16 %v2804, %v2798
      %v3129 = vpack.c.b16 %v2805, %v2799
      %v3130 = vpack.c.b16 %v2806, %v2800
      %v3131 = vpack.c.b16 %v2807, %v2801
      %v3132 = vpack.c.b16 %v2814, %v2808
      %v3133 = vpack.c.b16 %v2815, %v2809
      %v3134 = vpack.c.b16 %v2816, %v2810
      %v3135 = vpack.c.b16 %v2817, %v2811
      %v3136 = vpack.c.b16 %v2818, %v2812
      %v3137 = vpack.c.b16 %v2819, %v2813
      %v3138 = vpack.c.b16 %v2826, %v2820
      %v3139 = vpack.c.b16 %v2827, %v2821
      %v3140 = vpack.c.b16 %v2828, %v2822
      %v3141 = vpack.c.b16 %v2829, %v2823
      %v3142 = vpack.c.b16 %v2830, %v2824
      %v3143 = vpack.c.b16 %v2831, %v2825
      %v3144 = vpack.c.b16 %v2838, %v2832
      %v3145 = vpack.c.b16 %v2839, %v2833
      %v3146 = vpack.c.b16 %v2840, %v2834
      %v3147 = vpack.c.b16 %v2841, %v2835
      %v3148 = vpack.c.b16 %v2842, %v2836
      %v3149 = vpack.c.b16 %v2843, %v2837
      %v3150 = vpack.c.b16 %v2850, %v2844
      %v3151 = vpack.c.b16 %v2851, %v2845
      %v3152 = vpack.c.b16 %v2852, %v2846
      %v3153 = vpack.c.b16 %v2853, %v2847
      %v3154 = vpack.c.b16 %v2854, %v2848
      %v3155 = vpack.c.b16 %v2855, %v2849
      %v3156 = vpack.c.b16 %v2862, %v2856
      %v3157 = vpack.c.b16 %v2863, %v2857
      %v3158 = vpack.c.b16 %v2864, %v2858
      %v3159 = vpack.c.b16 %v2865, %v2859
      %v3160 = vpack.c.b16 %v2866, %v2860
      %v3161 = vpack.c.b16 %v2867, %v2861
      %v3162 = vpack.c.b16 %v2874, %v2868
      %v3163 = vpack.c.b16 %v2875, %v2869
      %v3164 = vpack.c.b16 %v2876, %v2870
      %v3165 = vpack.c.b16 %v2877, %v2871
      %v3166 = vpack.c.b16 %v2878, %v2872
      %v3167 = vpack.c.b16 %v2879, %v2873
      %v3168 = vpack.c.b16 %v2886, %v2880
      %v3169 = vpack.c.b16 %v2887, %v2881
      %v3170 = vpack.c.b16 %v2888, %v2882
      %v3171 = vpack.c.b16 %v2889, %v2883
      %v3172 = vpack.c.b16 %v2890, %v2884
      %v3173 = vpack.c.b16 %v2891, %v2885
      %v3174 = vpack.c.b16 %v2898, %v2892
      %v3175 = vpack.c.b16 %v2899, %v2893
      %v3176 = vpack.c.b16 %v2900, %v2894
      %v3177 = vpack.c.b16 %v2901, %v2895
      %v3178 = vpack.c.b16 %v2902, %v2896
      %v3179 = vpack.c.b16 %v2903, %v2897
      %v3180 = vpack.c.b16 %v2910, %v2904
      %v3181 = vpack.c.b16 %v2911, %v2905
      %v3182 = vpack.c.b16 %v2912, %v2906
      %v3183 = vpack.c.b16 %v2913, %v2907
      %v3184 = vpack.c.b16 %v2914, %v2908
      %v3185 = vpack.c.b16 %v2915, %v2909
      %v3186 = vpack.c.b16 %v2922, %v2916
      %v3187 = vpack.c.b16 %v2923, %v2917
      %v3188 = vpack.c.b16 %v2924, %v2918
      %v3189 = vpack.c.b16 %v2925, %v2919
      %v3190 = vpack.c.b16 %v2926, %v2920
      %v3191 = vpack.c.b16 %v2927, %v2921
      %v3192 = vpack.c.b16 %v2934, %v2928
      %v3193 = vpack.c.b16 %v2935, %v2929
      %v3194 = vpack.c.b16 %v2936, %v2930
      %v3195 = vpack.c.b16 %v2937, %v2931
      %v3196 = vpack.c.b16 %v2938, %v2932
      %v3197 = vpack.c.b16 %v2939, %v2933
      %v3198 = vpack.c.b16 %v2946, %v2940
      %v3199 = vpack.c.b16 %v2947, %v2941
      %v3200 = vpack.c.b16 %v2948, %v2942
      %v3201 = vpack.c.b16 %v2949, %v2943
      %v3202 = vpack.c.b16 %v2950, %v2944
      %v3203 = vpack.c.b16 %v2951, %v2945
      %v3204 = vpack.c.b16 %v2958, %v2952
      %v3205 = vpack.c.b16 %v2959, %v2953
      %v3206 = vpack.c.b16 %v2960, %v2954
      %v3207 = vpack.c.b16 %v2961, %v2955
      %v3208 = vpack.c.b16 %v2962, %v2956
      %v3209 = vpack.c.b16 %v2963, %v2957
      %v3210 = vpack.c.b16 %v2970, %v2964
      %v3211 = vpack.c.b16 %v2971, %v2965
      %v3212 = vpack.c.b16 %v2972, %v2966
      %v3213 = vpack.c.b16 %v2973, %v2967
      %v3214 = vpack.c.b16 %v2974, %v2968
      %v3215 = vpack.c.b16 %v2975, %v2969
      %v3216 = vpack.c.b16 %v2982, %v2976
      %v3217 = vpack.c.b16 %v2983, %v2977
      %v3218 = vpack.c.b16 %v2984, %v2978
      %v3219 = vpack.c.b16 %v2985, %v2979
      %v3220 = vpack.c.b16 %v2986, %v2980
      %v3221 = vpack.c.b16 %v2987, %v2981
      %v3222 = vpack.c.b16 %v2994, %v2988
      %v3223 = vpack.c.b16 %v2995, %v2989
      %v3224 = vpack.c.b16 %v2996, %v2990
      %v3225 = vpack.c.b16 %v2997, %v2991
      %v3226 = vpack.c.b16 %v2998, %v2992
      %v3227 = vpack.c.b16 %v2999, %v2993
      %v3228 = vpack.c.b16 %v3006, %v3000
      %v3229 = vpack.c.b16 %v3007, %v3001
      %v3230 = vpack.c.b16 %v3008, %v3002
      %v3231 = vpack.c.b16 %v3009, %v3003
      %v3232 = vpack.c.b16 %v3010, %v3004
      %v3233 = vpack.c.b16 %v3011, %v3005
      %v3234 = vpack.c.b16 %v3018, %v3012
      %v3235 = vpack.c.b16 %v3019, %v3013
      %v3236 = vpack.c.b16 %v3020, %v3014
      %v3237 = vpack.c.b16 %v3021, %v3015
      %v3238 = vpack.c.b16 %v3022, %v3016
      %v3239 = vpack.c.b16 %v3023, %v3017
      %v3240 = vpack.c.b16 %v3030, %v3024
      %v3241 = vpack.c.b16 %v3031, %v3025
      %v3242 = vpack.c.b16 %v3032, %v3026
      %v3243 = vpack.c.b16 %v3033, %v3027
      %v3244 = vpack.c.b16 %v3034, %v3028
      %v3245 = vpack.c.b16 %v3035, %v3029
      %v3246 = vpack.c.b16 %v3042, %v3036
      %v3247 = vpack.c.b16 %v3043, %v3037
      %v3248 = vpack.c.b16 %v3044, %v3038
      %v3249 = vpack.c.b16 %v3045, %v3039
      %v3250 = vpack.c.b16 %v3046, %v3040
      %v3251 = vpack.c.b16 %v3047, %v3041
      %v3252 = vpack.c.b16 %v3054, %v3048
      %v3253 = vpack.c.b16 %v3055, %v3049
      %v3254 = vpack.c.b16 %v3056, %v3050
      %v3255 = vpack.c.b16 %v3057, %v3051
      %v3256 = vpack.c.b16 %v3058, %v3052
      %v3257 = vpack.c.b16 %v3059, %v3053
      %v3258 = vpack.c.b16 %v3066, %v3060
      %v3259 = vpack.c.b16 %v3067, %v3061
      %v3260 = vpack.c.b16 %v3068, %v3062
      %v3261 = vpack.c.b16 %v3069, %v3063
      %v3262 = vpack.c.b16 %v3070, %v3064
      %v3263 = vpack.c.b16 %v3071, %v3065
      %3456 = vmatprep.subr.bf16.mxu0 %v3073
      %3457 = vmatpush1.bf16.msra.mxu0 %v3072
      %3458 = vmatprep.subr.bf16.mxu0 %v3079
      %3459 = vmatpush1.bf16.msra.mxu0 %v3078
      %3460 = vmatprep.subr.bf16.mxu0 %v3085
      %3461 = vmatpush1.bf16.msra.mxu0 %v3084
      %3462 = vmatprep.subr.bf16.mxu0 %v3091
      %3463 = vmatpush1.bf16.msra.mxu0 %v3090
      %3464 = vmatprep.subr.bf16.mxu0 %v3097
      %3465 = vmatpush1.bf16.msra.mxu0 %v3096
      %3466 = vmatprep.subr.bf16.mxu0 %v3103
      %3467 = vmatpush1.bf16.msra.mxu0 %v3102
      %3468 = vmatprep.subr.bf16.mxu0 %v3109
      %3469 = vmatpush1.bf16.msra.mxu0 %v3108
      %3470 = vmatprep.subr.bf16.mxu0 %v3115
      %3471 = vmatpush1.bf16.msra.mxu0 %v3114
      %3472 = vmatprep.subr.bf16.mxu0 %v3121
      %3473 = vmatpush1.bf16.msra.mxu0 %v3120
      %3474 = vmatprep.subr.bf16.mxu0 %v3127
      %3475 = vmatpush1.bf16.msra.mxu0 %v3126
      %3476 = vmatprep.subr.bf16.mxu0 %v3133
      %3477 = vmatpush1.bf16.msra.mxu0 %v3132
      %3478 = vmatprep.subr.bf16.mxu0 %v3139
      %3479 = vmatpush1.bf16.msra.mxu0 %v3138
      %3480 = vmatprep.subr.bf16.mxu0 %v3145
      %3481 = vmatpush1.bf16.msra.mxu0 %v3144
      %3482 = vmatprep.subr.bf16.mxu0 %v3151
      %3483 = vmatpush1.bf16.msra.mxu0 %v3150
      %3484 = vmatprep.subr.bf16.mxu0 %v3157
      %3485 = vmatpush1.bf16.msra.mxu0 %v3156
      %3486 = vmatprep.subr.bf16.mxu0 %v3163
      %3487 = vmatpush1.bf16.msra.mxu0 %v3162
      %3488 = vmatprep.mubr.bf16.mxu0 %v2256
      %3489 = vmatmul.mubr.bf16.gmra.mrb[0].mxu0 %v2255
      %v3490 = vpop.f32.mrb[0].mxu0
      %v3491 = vadd.f32 %v2469, %v3490
      %v3492 = vpop.f32.mrb[0].mxu0
      %v3493 = vadd.f32 %v2473, %v3492
      %v3494 = vpop.f32.mrb[0].mxu0
      %v3495 = vadd.f32 %v2469, %v3494
      %v3496 = vpop.f32.mrb[0].mxu0
      %v3497 = vadd.f32 %v2473, %v3496
      %3498 = vmatprep.mubr.bf16.mxu0 %v2260
      %3499 = vmatmul.mubr.bf16.gmra.mrb[0].mxu0 %v2259
      %v3500 = vpop.f32.mrb[0].mxu0
      %v3501 = vadd.f32 %v2469, %v3500
      %v3502 = vpop.f32.mrb[0].mxu0
      %v3503 = vadd.f32 %v2473, %v3502
      %v3504 = vpop.f32.mrb[0].mxu0
      %v3505 = vadd.f32 %v2469, %v3504
      %v3506 = vpop.f32.mrb[0].mxu0
      %v3507 = vadd.f32 %v2473, %v3506
      %3508 = vmatprep.mubr.bf16.mxu0 %v2264
      %3509 = vmatmul.mubr.bf16.gmra.mrb[0].mxu0 %v2263
      %v3510 = vpop.f32.mrb[0].mxu0
      %v3511 = vadd.f32 %v2469, %v3510
      %v3512 = vpop.f32.mrb[0].mxu0
      %v3513 = vadd.f32 %v2473, %v3512
      %v3514 = vpop.f32.mrb[0].mxu0
      %v3515 = vadd.f32 %v2469, %v3514
      %v3516 = vpop.f32.mrb[0].mxu0
      %v3517 = vadd.f32 %v2473, %v3516
      %3518 = vmatprep.mubr.bf16.mxu0 %v2268
      %3519 = vmatmul.mubr.bf16.gmra.mrb[0].mxu0 %v2267
      %v3520 = vpop.f32.mrb[0].mxu0
      %v3521 = vadd.f32 %v2469, %v3520
      %v3522 = vpop.f32.mrb[0].mxu0
      %v3523 = vadd.f32 %v2473, %v3522
      %v3524 = vpop.f32.mrb[0].mxu0
      %v3525 = vadd.f32 %v2469, %v3524
      %v3526 = vpop.f32.mrb[0].mxu0
      %v3527 = vadd.f32 %v2473, %v3526
      %3528 = vdwg.mxu0
      %3529 = vmatprep.subr.bf16.mxu0 %v3169
      %3530 = vmatpush1.bf16.msra.mxu0 %v3168
      %3531 = vmatprep.subr.bf16.mxu0 %v3175
      %3532 = vmatpush1.bf16.msra.mxu0 %v3174
      %3533 = vmatprep.subr.bf16.mxu0 %v3181
      %3534 = vmatpush1.bf16.msra.mxu0 %v3180
      %3535 = vmatprep.subr.bf16.mxu0 %v3187
      %3536 = vmatpush1.bf16.msra.mxu0 %v3186
      %3537 = vmatprep.subr.bf16.mxu0 %v3193
      %3538 = vmatpush1.bf16.msra.mxu0 %v3192
      %3539 = vmatprep.subr.bf16.mxu0 %v3199
      %3540 = vmatpush1.bf16.msra.mxu0 %v3198
      %3541 = vmatprep.subr.bf16.mxu0 %v3205
      %3542 = vmatpush1.bf16.msra.mxu0 %v3204
      %3543 = vmatprep.subr.bf16.mxu0 %v3211
      %3544 = vmatpush1.bf16.msra.mxu0 %v3210
      %3545 = vmatprep.subr.bf16.mxu0 %v3217
      %3546 = vmatpush1.bf16.msra.mxu0 %v3216
      %3547 = vmatprep.subr.bf16.mxu0 %v3223
      %3548 = vmatpush1.bf16.msra.mxu0 %v3222
      %3549 = vmatprep.subr.bf16.mxu0 %v3229
      %3550 = vmatpush1.bf16.msra.mxu0 %v3228
      %3551 = vmatprep.subr.bf16.mxu0 %v3235
      %3552 = vmatpush1.bf16.msra.mxu0 %v3234
      %3553 = vmatprep.subr.bf16.mxu0 %v3241
      %3554 = vmatpush1.bf16.msra.mxu0 %v3240
      %3555 = vmatprep.subr.bf16.mxu0 %v3247
      %3556 = vmatpush1.bf16.msra.mxu0 %v3246
      %3557 = vmatprep.subr.bf16.mxu0 %v3253
      %3558 = vmatpush1.bf16.msra.mxu0 %v3252
      %3559 = vmatprep.subr.bf16.mxu0 %v3259
      %3560 = vmatpush1.bf16.msra.mxu0 %v3258
      %3561 = vmatprep.mubr.bf16.mxu0 %v2258
      %3562 = vmatmul.mubr.bf16.gmra.mrb[0].mxu0 %v2257
      %v3563 = vpop.f32.mrb[0].mxu0
      %v3564 = vadd.f32 %v3491, %v3563
      %v3565 = vpop.f32.mrb[0].mxu0
      %v3566 = vadd.f32 %v3493, %v3565
      %v3567 = vpop.f32.mrb[0].mxu0
      %v3568 = vadd.f32 %v3495, %v3567
      %v3569 = vpop.f32.mrb[0].mxu0
      %v3570 = vadd.f32 %v3497, %v3569
      %3571 = vmatprep.mubr.bf16.mxu0 %v2262
      %3572 = vmatmul.mubr.bf16.gmra.mrb[0].mxu0 %v2261
      %v3573 = vpop.f32.mrb[0].mxu0
      %v3574 = vadd.f32 %v3501, %v3573
      %v3575 = vpop.f32.mrb[0].mxu0
      %v3576 = vadd.f32 %v3503, %v3575
      %v3577 = vpop.f32.mrb[0].mxu0
      %v3578 = vadd.f32 %v3505, %v3577
      %v3579 = vpop.f32.mrb[0].mxu0
      %v3580 = vadd.f32 %v3507, %v3579
      %3581 = vmatprep.mubr.bf16.mxu0 %v2266
      %3582 = vmatmul.mubr.bf16.gmra.mrb[0].mxu0 %v2265
      %v3583 = vpop.f32.mrb[0].mxu0
      %v3584 = vadd.f32 %v3511, %v3583
      %v3585 = vpop.f32.mrb[0].mxu0
      %v3586 = vadd.f32 %v3513, %v3585
      %v3587 = vpop.f32.mrb[0].mxu0
      %v3588 = vadd.f32 %v3515, %v3587
      %v3589 = vpop.f32.mrb[0].mxu0
      %v3590 = vadd.f32 %v3517, %v3589
      %3591 = vmatprep.mubr.bf16.mxu0 %v2270
      %3592 = vmatmul.mubr.bf16.gmra.mrb[0].mxu0 %v2269
      %v3593 = vpop.f32.mrb[0].mxu0
      %v3594 = vadd.f32 %v3521, %v3593
      %v3595 = vpop.f32.mrb[0].mxu0
      %v3596 = vadd.f32 %v3523, %v3595
      %v3597 = vpop.f32.mrb[0].mxu0
      %v3598 = vadd.f32 %v3525, %v3597
      %v3599 = vpop.f32.mrb[0].mxu0
      %v3600 = vadd.f32 %v3527, %v3599
      %3601 = vdwg.mxu0
      %3602 = vmatprep.subr.bf16.mxu0 %v3075
      %3603 = vmatpush1.bf16.msra.mxu0 %v3074
      %3604 = vmatprep.subr.bf16.mxu0 %v3081
      %3605 = vmatpush1.bf16.msra.mxu0 %v3080
      %3606 = vmatprep.subr.bf16.mxu0 %v3087
      %3607 = vmatpush1.bf16.msra.mxu0 %v3086
      %3608 = vmatprep.subr.bf16.mxu0 %v3093
      %3609 = vmatpush1.bf16.msra.mxu0 %v3092
      %3610 = vmatprep.subr.bf16.mxu0 %v3099
      %3611 = vmatpush1.bf16.msra.mxu0 %v3098
      %3612 = vmatprep.subr.bf16.mxu0 %v3105
      %3613 = vmatpush1.bf16.msra.mxu0 %v3104
      %3614 = vmatprep.subr.bf16.mxu0 %v3111
      %3615 = vmatpush1.bf16.msra.mxu0 %v3110
      %3616 = vmatprep.subr.bf16.mxu0 %v3117
      %3617 = vmatpush1.bf16.msra.mxu0 %v3116
      %3618 = vmatprep.subr.bf16.mxu0 %v3123
      %3619 = vmatpush1.bf16.msra.mxu0 %v3122
      %3620 = vmatprep.subr.bf16.mxu0 %v3129
      %3621 = vmatpush1.bf16.msra.mxu0 %v3128
      %3622 = vmatprep.subr.bf16.mxu0 %v3135
      %3623 = vmatpush1.bf16.msra.mxu0 %v3134
      %3624 = vmatprep.subr.bf16.mxu0 %v3141
      %3625 = vmatpush1.bf16.msra.mxu0 %v3140
      %3626 = vmatprep.subr.bf16.mxu0 %v3147
      %3627 = vmatpush1.bf16.msra.mxu0 %v3146
      %3628 = vmatprep.subr.bf16.mxu0 %v3153
      %3629 = vmatpush1.bf16.msra.mxu0 %v3152
      %3630 = vmatprep.subr.bf16.mxu0 %v3159
      %3631 = vmatpush1.bf16.msra.mxu0 %v3158
      %3632 = vmatprep.subr.bf16.mxu0 %v3165
      %3633 = vmatpush1.bf16.msra.mxu0 %v3164
      %3634 = vmatprep.mubr.bf16.mxu0 %v2256
      %3635 = vmatmul.mubr.bf16.gmra.mrb[0].mxu0 %v2255
      %v3636 = vpop.f32.mrb[0].mxu0
      %v3637 = vadd.f32 %v2477, %v3636
      %v3638 = vpop.f32.mrb[0].mxu0
      %v3639 = vadd.f32 %v2481, %v3638
      %v3640 = vpop.f32.mrb[0].mxu0
      %v3641 = vadd.f32 %v2477, %v3640
      %v3642 = vpop.f32.mrb[0].mxu0
      %v3643 = vadd.f32 %v2481, %v3642
      %3644 = vmatprep.mubr.bf16.mxu0 %v2260
      %3645 = vmatmul.mubr.bf16.gmra.mrb[0].mxu0 %v2259
      %v3646 = vpop.f32.mrb[0].mxu0
      %v3647 = vadd.f32 %v2477, %v3646
      %v3648 = vpop.f32.mrb[0].mxu0
      %v3649 = vadd.f32 %v2481, %v3648
      %v3650 = vpop.f32.mrb[0].mxu0
      %v3651 = vadd.f32 %v2477, %v3650
      %v3652 = vpop.f32.mrb[0].mxu0
      %v3653 = vadd.f32 %v2481, %v3652
      %3654 = vmatprep.mubr.bf16.mxu0 %v2264
      %3655 = vmatmul.mubr.bf16.gmra.mrb[0].mxu0 %v2263
      %v3656 = vpop.f32.mrb[0].mxu0
      %v3657 = vadd.f32 %v2477, %v3656
      %v3658 = vpop.f32.mrb[0].mxu0
      %v3659 = vadd.f32 %v2481, %v3658
      %v3660 = vpop.f32.mrb[0].mxu0
      %v3661 = vadd.f32 %v2477, %v3660
      %v3662 = vpop.f32.mrb[0].mxu0
      %v3663 = vadd.f32 %v2481, %v3662
      %3664 = vmatprep.mubr.bf16.mxu0 %v2268
      %3665 = vmatmul.mubr.bf16.gmra.mrb[0].mxu0 %v2267
      %v3666 = vpop.f32.mrb[0].mxu0
      %v3667 = vadd.f32 %v2477, %v3666
      %v3668 = vpop.f32.mrb[0].mxu0
      %v3669 = vadd.f32 %v2481, %v3668
      %v3670 = vpop.f32.mrb[0].mxu0
      %v3671 = vadd.f32 %v2477, %v3670
      %v3672 = vpop.f32.mrb[0].mxu0
      %v3673 = vadd.f32 %v2481, %v3672
      %3674 = vdwg.mxu0
      %3675 = vmatprep.subr.bf16.mxu0 %v3171
      %3676 = vmatpush1.bf16.msra.mxu0 %v3170
      %3677 = vmatprep.subr.bf16.mxu0 %v3177
      %3678 = vmatpush1.bf16.msra.mxu0 %v3176
      %3679 = vmatprep.subr.bf16.mxu0 %v3183
      %3680 = vmatpush1.bf16.msra.mxu0 %v3182
      %3681 = vmatprep.subr.bf16.mxu0 %v3189
      %3682 = vmatpush1.bf16.msra.mxu0 %v3188
      %3683 = vmatprep.subr.bf16.mxu0 %v3195
      %3684 = vmatpush1.bf16.msra.mxu0 %v3194
      %3685 = vmatprep.subr.bf16.mxu0 %v3201
      %3686 = vmatpush1.bf16.msra.mxu0 %v3200
      %3687 = vmatprep.subr.bf16.mxu0 %v3207
      %3688 = vmatpush1.bf16.msra.mxu0 %v3206
      %3689 = vmatprep.subr.bf16.mxu0 %v3213
      %3690 = vmatpush1.bf16.msra.mxu0 %v3212
      %3691 = vmatprep.subr.bf16.mxu0 %v3219
      %3692 = vmatpush1.bf16.msra.mxu0 %v3218
      %3693 = vmatprep.subr.bf16.mxu0 %v3225
      %3694 = vmatpush1.bf16.msra.mxu0 %v3224
      %3695 = vmatprep.subr.bf16.mxu0 %v3231
      %3696 = vmatpush1.bf16.msra.mxu0 %v3230
      %3697 = vmatprep.subr.bf16.mxu0 %v3237
      %3698 = vmatpush1.bf16.msra.mxu0 %v3236
      %3699 = vmatprep.subr.bf16.mxu0 %v3243
      %3700 = vmatpush1.bf16.msra.mxu0 %v3242
      %3701 = vmatprep.subr.bf16.mxu0 %v3249
      %3702 = vmatpush1.bf16.msra.mxu0 %v3248
      %3703 = vmatprep.subr.bf16.mxu0 %v3255
      %3704 = vmatpush1.bf16.msra.mxu0 %v3254
      %3705 = vmatprep.subr.bf16.mxu0 %v3261
      %3706 = vmatpush1.bf16.msra.mxu0 %v3260
      %3707 = vmatprep.mubr.bf16.mxu0 %v2258
      %3708 = vmatmul.mubr.bf16.gmra.mrb[0].mxu0 %v2257
      %v3709 = vpop.f32.mrb[0].mxu0
      %v3710 = vadd.f32 %v3637, %v3709
      %v3711 = vpop.f32.mrb[0].mxu0
      %v3712 = vadd.f32 %v3639, %v3711
      %v3713 = vpop.f32.mrb[0].mxu0
      %v3714 = vadd.f32 %v3641, %v3713
      %v3715 = vpop.f32.mrb[0].mxu0
      %v3716 = vadd.f32 %v3643, %v3715
      %3717 = vmatprep.mubr.bf16.mxu0 %v2262
      %3718 = vmatmul.mubr.bf16.gmra.mrb[0].mxu0 %v2261
      %v3719 = vpop.f32.mrb[0].mxu0
      %v3720 = vadd.f32 %v3647, %v3719
      %v3721 = vpop.f32.mrb[0].mxu0
      %v3722 = vadd.f32 %v3649, %v3721
      %v3723 = vpop.f32.mrb[0].mxu0
      %v3724 = vadd.f32 %v3651, %v3723
      %v3725 = vpop.f32.mrb[0].mxu0
      %v3726 = vadd.f32 %v3653, %v3725
      %3727 = vmatprep.mubr.bf16.mxu0 %v2266
      %3728 = vmatmul.mubr.bf16.gmra.mrb[0].mxu0 %v2265
      %v3729 = vpop.f32.mrb[0].mxu0
      %v3730 = vadd.f32 %v3657, %v3729
      %v3731 = vpop.f32.mrb[0].mxu0
      %v3732 = vadd.f32 %v3659, %v3731
      %v3733 = vpop.f32.mrb[0].mxu0
      %v3734 = vadd.f32 %v3661, %v3733
      %v3735 = vpop.f32.mrb[0].mxu0
      %v3736 = vadd.f32 %v3663, %v3735
      %3737 = vmatprep.mubr.bf16.mxu0 %v2270
      %3738 = vmatmul.mubr.bf16.gmra.mrb[0].mxu0 %v2269
      %v3739 = vpop.f32.mrb[0].mxu0
      %v3740 = vadd.f32 %v3667, %v3739
      %v3741 = vpop.f32.mrb[0].mxu0
      %v3742 = vadd.f32 %v3669, %v3741
      %v3743 = vpop.f32.mrb[0].mxu0
      %v3744 = vadd.f32 %v3671, %v3743
      %v3745 = vpop.f32.mrb[0].mxu0
      %v3746 = vadd.f32 %v3673, %v3745
      %3747 = vdwg.mxu0
      %3748 = vmatprep.subr.bf16.mxu0 %v3077
      %3749 = vmatpush1.bf16.msra.mxu0 %v3076
      %3750 = vmatprep.subr.bf16.mxu0 %v3083
      %3751 = vmatpush1.bf16.msra.mxu0 %v3082
      %3752 = vmatprep.subr.bf16.mxu0 %v3089
      %3753 = vmatpush1.bf16.msra.mxu0 %v3088
      %3754 = vmatprep.subr.bf16.mxu0 %v3095
      %3755 = vmatpush1.bf16.msra.mxu0 %v3094
      %3756 = vmatprep.subr.bf16.mxu0 %v3101
      %3757 = vmatpush1.bf16.msra.mxu0 %v3100
      %3758 = vmatprep.subr.bf16.mxu0 %v3107
      %3759 = vmatpush1.bf16.msra.mxu0 %v3106
      %3760 = vmatprep.subr.bf16.mxu0 %v3113
      %3761 = vmatpush1.bf16.msra.mxu0 %v3112
      %3762 = vmatprep.subr.bf16.mxu0 %v3119
      %3763 = vmatpush1.bf16.msra.mxu0 %v3118
      %3764 = vmatprep.subr.bf16.mxu0 %v3125
      %3765 = vmatpush1.bf16.msra.mxu0 %v3124
      %3766 = vmatprep.subr.bf16.mxu0 %v3131
      %3767 = vmatpush1.bf16.msra.mxu0 %v3130
      %3768 = vmatprep.subr.bf16.mxu0 %v3137
      %3769 = vmatpush1.bf16.msra.mxu0 %v3136
      %3770 = vmatprep.subr.bf16.mxu0 %v3143
      %3771 = vmatpush1.bf16.msra.mxu0 %v3142
      %3772 = vmatprep.subr.bf16.mxu0 %v3149
      %3773 = vmatpush1.bf16.msra.mxu0 %v3148
      %3774 = vmatprep.subr.bf16.mxu0 %v3155
      %3775 = vmatpush1.bf16.msra.mxu0 %v3154
      %3776 = vmatprep.subr.bf16.mxu0 %v3161
      %3777 = vmatpush1.bf16.msra.mxu0 %v3160
      %3778 = vmatprep.subr.bf16.mxu0 %v3167
      %3779 = vmatpush1.bf16.msra.mxu0 %v3166
      %3780 = vmatprep.mubr.bf16.mxu0 %v2256
      %3781 = vmatmul.mubr.bf16.gmra.mrb[0].mxu0 %v2255
      %v3782 = vpop.f32.mrb[0].mxu0
      %v3783 = vadd.f32 %v2485, %v3782
      %v3784 = vpop.f32.mrb[0].mxu0
      %v3785 = vadd.f32 %v2489, %v3784
      %v3786 = vpop.f32.mrb[0].mxu0
      %v3787 = vadd.f32 %v2485, %v3786
      %v3788 = vpop.f32.mrb[0].mxu0
      %v3789 = vadd.f32 %v2489, %v3788
      %3790 = vmatprep.mubr.bf16.mxu0 %v2260
      %3791 = vmatmul.mubr.bf16.gmra.mrb[0].mxu0 %v2259
      %v3792 = vpop.f32.mrb[0].mxu0
      %v3793 = vadd.f32 %v2485, %v3792
      %v3794 = vpop.f32.mrb[0].mxu0
      %v3795 = vadd.f32 %v2489, %v3794
      %v3796 = vpop.f32.mrb[0].mxu0
      %v3797 = vadd.f32 %v2485, %v3796
      %v3798 = vpop.f32.mrb[0].mxu0
      %v3799 = vadd.f32 %v2489, %v3798
      %3800 = vmatprep.mubr.bf16.mxu0 %v2264
      %3801 = vmatmul.mubr.bf16.gmra.mrb[0].mxu0 %v2263
      %v3802 = vpop.f32.mrb[0].mxu0
      %v3803 = vadd.f32 %v2485, %v3802
      %v3804 = vpop.f32.mrb[0].mxu0
      %v3805 = vadd.f32 %v2489, %v3804
      %v3806 = vpop.f32.mrb[0].mxu0
      %v3807 = vadd.f32 %v2485, %v3806
      %v3808 = vpop.f32.mrb[0].mxu0
      %v3809 = vadd.f32 %v2489, %v3808
      %3810 = vmatprep.mubr.bf16.mxu0 %v2268
      %3811 = vmatmul.mubr.bf16.gmra.mrb[0].mxu0 %v2267
      %v3812 = vpop.f32.mrb[0].mxu0
      %v3813 = vadd.f32 %v2485, %v3812
      %v3814 = vpop.f32.mrb[0].mxu0
      %v3815 = vadd.f32 %v2489, %v3814
      %v3816 = vpop.f32.mrb[0].mxu0
      %v3817 = vadd.f32 %v2485, %v3816
      %v3818 = vpop.f32.mrb[0].mxu0
      %v3819 = vadd.f32 %v2489, %v3818
      %3820 = vdwg.mxu0
      %3821 = vmatprep.subr.bf16.mxu0 %v3173
      %3822 = vmatpush1.bf16.msra.mxu0 %v3172
      %3823 = vmatprep.subr.bf16.mxu0 %v3179
      %3824 = vmatpush1.bf16.msra.mxu0 %v3178
      %3825 = vmatprep.subr.bf16.mxu0 %v3185
      %3826 = vmatpush1.bf16.msra.mxu0 %v3184
      %3827 = vmatprep.subr.bf16.mxu0 %v3191
      %3828 = vmatpush1.bf16.msra.mxu0 %v3190
      %3829 = vmatprep.subr.bf16.mxu0 %v3197
      %3830 = vmatpush1.bf16.msra.mxu0 %v3196
      %3831 = vmatprep.subr.bf16.mxu0 %v3203
      %3832 = vmatpush1.bf16.msra.mxu0 %v3202
      %3833 = vmatprep.subr.bf16.mxu0 %v3209
      %3834 = vmatpush1.bf16.msra.mxu0 %v3208
      %3835 = vmatprep.subr.bf16.mxu0 %v3215
      %3836 = vmatpush1.bf16.msra.mxu0 %v3214
      %3837 = vmatprep.subr.bf16.mxu0 %v3221
      %3838 = vmatpush1.bf16.msra.mxu0 %v3220
      %3839 = vmatprep.subr.bf16.mxu0 %v3227
      %3840 = vmatpush1.bf16.msra.mxu0 %v3226
      %3841 = vmatprep.subr.bf16.mxu0 %v3233
      %3842 = vmatpush1.bf16.msra.mxu0 %v3232
      %3843 = vmatprep.subr.bf16.mxu0 %v3239
      %3844 = vmatpush1.bf16.msra.mxu0 %v3238
      %3845 = vmatprep.subr.bf16.mxu0 %v3245
      %3846 = vmatpush1.bf16.msra.mxu0 %v3244
      %3847 = vmatprep.subr.bf16.mxu0 %v3251
      %3848 = vmatpush1.bf16.msra.mxu0 %v3250
      %3849 = vmatprep.subr.bf16.mxu0 %v3257
      %3850 = vmatpush1.bf16.msra.mxu0 %v3256
      %3851 = vmatprep.subr.bf16.mxu0 %v3263
      %3852 = vmatpush1.bf16.msra.mxu0 %v3262
      %3853 = vmatprep.mubr.bf16.mxu0 %v2258
      %3854 = vmatmul.mubr.bf16.gmra.mrb[0].mxu0 %v2257
      %v3855 = vpop.f32.mrb[0].mxu0
      %v3856 = vadd.f32 %v3783, %v3855
      %v3857 = vpop.f32.mrb[0].mxu0
      %v3858 = vadd.f32 %v3785, %v3857
      %v3859 = vpop.f32.mrb[0].mxu0
      %v3860 = vadd.f32 %v3787, %v3859
      %v3861 = vpop.f32.mrb[0].mxu0
      %v3862 = vadd.f32 %v3789, %v3861
      %3863 = vmatprep.mubr.bf16.mxu0 %v2262
      %3864 = vmatmul.mubr.bf16.gmra.mrb[0].mxu0 %v2261
      %v3865 = vpop.f32.mrb[0].mxu0
      %v3866 = vadd.f32 %v3793, %v3865
      %v3867 = vpop.f32.mrb[0].mxu0
      %v3868 = vadd.f32 %v3795, %v3867
      %v3869 = vpop.f32.mrb[0].mxu0
      %v3870 = vadd.f32 %v3797, %v3869
      %v3871 = vpop.f32.mrb[0].mxu0
      %v3872 = vadd.f32 %v3799, %v3871
      %3873 = vmatprep.mubr.bf16.mxu0 %v2266
      %3874 = vmatmul.mubr.bf16.gmra.mrb[0].mxu0 %v2265
      %v3875 = vpop.f32.mrb[0].mxu0
      %v3876 = vadd.f32 %v3803, %v3875
      %v3877 = vpop.f32.mrb[0].mxu0
      %v3878 = vadd.f32 %v3805, %v3877
      %v3879 = vpop.f32.mrb[0].mxu0
      %v3880 = vadd.f32 %v3807, %v3879
      %v3881 = vpop.f32.mrb[0].mxu0
      %v3882 = vadd.f32 %v3809, %v3881
      %3883 = vmatprep.mubr.bf16.mxu0 %v2270
      %3884 = vmatmul.mubr.bf16.gmra.mrb[0].mxu0 %v2269
      %v3885 = vpop.f32.mrb[0].mxu0
      %v3886 = vadd.f32 %v3813, %v3885
      %v3887 = vpop.f32.mrb[0].mxu0
      %v3888 = vadd.f32 %v3815, %v3887
      %v3889 = vpop.f32.mrb[0].mxu0
      %v3890 = vadd.f32 %v3817, %v3889
      %v3891 = vpop.f32.mrb[0].mxu0
      %v3892 = vadd.f32 %v3819, %v3891
      %3893 = vdwg.mxu0
      %s3894 = scalar_lea.vmem %s233, 384
      %3895 = vst [vmem:[%s3894] sm:$0xff] %v3564
      %3896 = vst [vmem:[%s3894 + $0x8] sm:$0xff] %v3566
      %3897 = vst [vmem:[%s3894 + $0x10] sm:$0xff] %v3710
      %3898 = vst [vmem:[%s3894 + $0x18] sm:$0xff] %v3712
      %3899 = vst [vmem:[%s3894 + $0x20] sm:$0xff] %v3856
      %3900 = vst [vmem:[%s3894 + $0x28] sm:$0xff] %v3858
      %3901 = vst [vmem:[%s3894 + $0x30] sm:$0xff] %v3568
      %3902 = vst [vmem:[%s3894 + $0x38] sm:$0xff] %v3570
      %3903 = vst [vmem:[%s3894 + $0x40] sm:$0xff] %v3714
      %3904 = vst [vmem:[%s3894 + $0x48] sm:$0xff] %v3716
      %3905 = vst [vmem:[%s3894 + $0x50] sm:$0xff] %v3860
      %3906 = vst [vmem:[%s3894 + $0x58] sm:$0xff] %v3862
      %3907 = vst [vmem:[%s3894 + $0x60] sm:$0xff] %v3574
      %3908 = vst [vmem:[%s3894 + $0x68] sm:$0xff] %v3576
      %3909 = vst [vmem:[%s3894 + $0x70] sm:$0xff] %v3720
      %3910 = vst [vmem:[%s3894 + $0x78] sm:$0xff] %v3722
      %3911 = vst [vmem:[%s3894 + $0x80] sm:$0xff] %v3866
      %3912 = vst [vmem:[%s3894 + $0x88] sm:$0xff] %v3868
      %3913 = vst [vmem:[%s3894 + $0x90] sm:$0xff] %v3578
      %3914 = vst [vmem:[%s3894 + $0x98] sm:$0xff] %v3580
      %3915 = vst [vmem:[%s3894 + $0xa0] sm:$0xff] %v3724
      %3916 = vst [vmem:[%s3894 + $0xa8] sm:$0xff] %v3726
      %3917 = vst [vmem:[%s3894 + $0xb0] sm:$0xff] %v3870
      %3918 = vst [vmem:[%s3894 + $0xb8] sm:$0xff] %v3872
      %3919 = vst [vmem:[%s3894 + $0xc0] sm:$0xff] %v3584
      %3920 = vst [vmem:[%s3894 + $0xc8] sm:$0xff] %v3586
      %3921 = vst [vmem:[%s3894 + $0xd0] sm:$0xff] %v3730
      %3922 = vst [vmem:[%s3894 + $0xd8] sm:$0xff] %v3732
      %3923 = vst [vmem:[%s3894 + $0xe0] sm:$0xff] %v3876
      %3924 = vst [vmem:[%s3894 + $0xe8] sm:$0xff] %v3878
      %3925 = vst [vmem:[%s3894 + $0xf0] sm:$0xff] %v3588
      %3926 = vst [vmem:[%s3894 + $0xf8] sm:$0xff] %v3590
      %3927 = vst [vmem:[%s3894 + $0x100] sm:$0xff] %v3734
      %3928 = vst [vmem:[%s3894 + $0x108] sm:$0xff] %v3736
      %3929 = vst [vmem:[%s3894 + $0x110] sm:$0xff] %v3880
      %3930 = vst [vmem:[%s3894 + $0x118] sm:$0xff] %v3882
      %3931 = vst [vmem:[%s3894 + $0x120] sm:$0xff] %v3594
      %3932 = vst [vmem:[%s3894 + $0x128] sm:$0xff] %v3596
      %3933 = vst [vmem:[%s3894 + $0x130] sm:$0xff] %v3740
      %3934 = vst [vmem:[%s3894 + $0x138] sm:$0xff] %v3742
      %3935 = vst [vmem:[%s3894 + $0x140] sm:$0xff] %v3886
      %3936 = vst [vmem:[%s3894 + $0x148] sm:$0xff] %v3888
      %3937 = vst [vmem:[%s3894 + $0x150] sm:$0xff] %v3598
      %3938 = vst [vmem:[%s3894 + $0x158] sm:$0xff] %v3600
      %3939 = vst [vmem:[%s3894 + $0x160] sm:$0xff] %v3744
      %3940 = vst [vmem:[%s3894 + $0x168] sm:$0xff] %v3746
      %3941 = vst [vmem:[%s3894 + $0x170] sm:$0xff] %v3890
      %3942 = vst [vmem:[%s3894 + $0x178] sm:$0xff] %v3892
      %3943 = vst [vmem:[#allocation2] sm:$0xff] %v441
      %3944 = vst [vmem:[#allocation2 + $0x20] sm:$0xff] %v442
      %3945 = vst [vmem:[#allocation2 + $0x40] sm:$0xff] %v443
      %3946 = vst [vmem:[#allocation2 + $0x60] sm:$0xff] %v444
      %3947 = vst [vmem:[#allocation2 + $0x8] sm:$0xff] %v468
      %3948 = vst [vmem:[#allocation2 + $0x28] sm:$0xff] %v469
      %3949 = vst [vmem:[#allocation2 + $0x48] sm:$0xff] %v470
      %3950 = vst [vmem:[#allocation2 + $0x68] sm:$0xff] %v471
      %v3952 = vunpack.c.l.b16 %v274
      %v3953 = vpack.c.b16 %v3952, %v440
      %3955 = vst [vmem:[#allocation2 + $0x10] sm:$0xff] %v293
      %3956 = vst [vmem:[#allocation2 + $0x30] sm:$0xff] %v294
      %3957 = vst [vmem:[#allocation2 + $0x50] sm:$0xff] %v295
      %3958 = vst [vmem:[#allocation2 + $0x70] sm:$0xff] %v3953
      %v3960 = vshrl.u32 %v274, 16
      %v3962 = vrot.slane %v3960, 4
      %v3963 = vshll.u32 %v274, 16
      %v3965 = vrot.slane %v3963, 5
      %v3966 = vor.u32 %v3962, %v3965
      %v3967 = vrot.slane %v3966, 4
      %v3969 = vshll.u32 %v275, 16
      %v3971 = vrot.slane %v3969, 5
      %v3972 = vsel %vm306, %v3967, %v3971
      %v3973 = vunpack.c.l.b16 %v3972
      %v3974 = vpack.c.b16 %v3973, %v467
      %3976 = vst [vmem:[#allocation2 + $0x18] sm:$0xff] %v428
      %3977 = vst [vmem:[#allocation2 + $0x38] sm:$0xff] %v429
      %3978 = vst [vmem:[#allocation2 + $0x58] sm:$0xff] %v430
      %3979 = vst [vmem:[#allocation2 + $0x78] sm:$0xff] %v3974
      %v3980 = vld [vmem:[#allocation2] sm:$0xff]
      %v3981 = vld [vmem:[#allocation2 + $0x8] sm:$0xff]
      %v3982 = vld [vmem:[#allocation2 + $0x10] sm:$0xff]
      %v3983 = vld [vmem:[#allocation2 + $0x18] sm:$0xff]
      %v3984 = vld [vmem:[#allocation2 + $0x20] sm:$0xff]
      %v3985 = vld [vmem:[#allocation2 + $0x28] sm:$0xff]
      %v3986 = vld [vmem:[#allocation2 + $0x30] sm:$0xff]
      %v3987 = vld [vmem:[#allocation2 + $0x38] sm:$0xff]
      %v3988 = vld [vmem:[#allocation2 + $0x40] sm:$0xff]
      %v3989 = vld [vmem:[#allocation2 + $0x48] sm:$0xff]
      %v3990 = vld [vmem:[#allocation2 + $0x50] sm:$0xff]
      %v3991 = vld [vmem:[#allocation2 + $0x58] sm:$0xff]
      %v3992 = vld [vmem:[#allocation2 + $0x60] sm:$0xff]
      %v3993 = vld [vmem:[#allocation2 + $0x68] sm:$0xff]
      %v3994 = vld [vmem:[#allocation2 + $0x70] sm:$0xff]
      %v3995 = vld [vmem:[#allocation2 + $0x78] sm:$0xff]
      %s3996 = scalar_lea.vmem %s218, 3072
      %v3997 = vld [vmem:[%s3996] sm:$0xff]
      %v3998 = vld [vmem:[%s3996 + $0x8] sm:$0xff]
      %v3999 = vld [vmem:[%s3996 + $0x10] sm:$0xff]
      %v4000 = vld [vmem:[%s3996 + $0x18] sm:$0xff]
      %v4001 = vld [vmem:[%s3996 + $0x20] sm:$0xff]
      %v4002 = vld [vmem:[%s3996 + $0x28] sm:$0xff]
      %v4003 = vld [vmem:[%s3996 + $0x30] sm:$0xff]
      %v4004 = vld [vmem:[%s3996 + $0x38] sm:$0xff]
      %v4005 = vld [vmem:[%s3996 + $0x40] sm:$0xff]
      %v4006 = vld [vmem:[%s3996 + $0x48] sm:$0xff]
      %v4007 = vld [vmem:[%s3996 + $0x50] sm:$0xff]
      %v4008 = vld [vmem:[%s3996 + $0x58] sm:$0xff]
      %v4009 = vld [vmem:[%s3996 + $0x60] sm:$0xff]
      %v4010 = vld [vmem:[%s3996 + $0x68] sm:$0xff]
      %v4011 = vld [vmem:[%s3996 + $0x70] sm:$0xff]
      %v4012 = vld [vmem:[%s3996 + $0x78] sm:$0xff]
      %v4013 = vld [vmem:[%s3996 + $0x80] sm:$0xff]
      %v4014 = vld [vmem:[%s3996 + $0x88] sm:$0xff]
      %v4015 = vld [vmem:[%s3996 + $0x90] sm:$0xff]
      %v4016 = vld [vmem:[%s3996 + $0x98] sm:$0xff]
      %v4017 = vld [vmem:[%s3996 + $0xa0] sm:$0xff]
      %v4018 = vld [vmem:[%s3996 + $0xa8] sm:$0xff]
      %v4019 = vld [vmem:[%s3996 + $0xb0] sm:$0xff]
      %v4020 = vld [vmem:[%s3996 + $0xb8] sm:$0xff]
      %v4021 = vld [vmem:[%s3996 + $0xc0] sm:$0xff]
      %v4022 = vld [vmem:[%s3996 + $0xc8] sm:$0xff]
      %v4023 = vld [vmem:[%s3996 + $0xd0] sm:$0xff]
      %v4024 = vld [vmem:[%s3996 + $0xd8] sm:$0xff]
      %v4025 = vld [vmem:[%s3996 + $0xe0] sm:$0xff]
      %v4026 = vld [vmem:[%s3996 + $0xe8] sm:$0xff]
      %v4027 = vld [vmem:[%s3996 + $0xf0] sm:$0xff]
      %v4028 = vld [vmem:[%s3996 + $0xf8] sm:$0xff]
      %v4029 = vld [vmem:[%s3996 + $0x100] sm:$0xff]
      %v4030 = vld [vmem:[%s3996 + $0x108] sm:$0xff]
      %v4031 = vld [vmem:[%s3996 + $0x110] sm:$0xff]
      %v4032 = vld [vmem:[%s3996 + $0x118] sm:$0xff]
      %v4033 = vld [vmem:[%s3996 + $0x120] sm:$0xff]
      %v4034 = vld [vmem:[%s3996 + $0x128] sm:$0xff]
      %v4035 = vld [vmem:[%s3996 + $0x130] sm:$0xff]
      %v4036 = vld [vmem:[%s3996 + $0x138] sm:$0xff]
      %v4037 = vld [vmem:[%s3996 + $0x140] sm:$0xff]
      %v4038 = vld [vmem:[%s3996 + $0x148] sm:$0xff]
      %v4039 = vld [vmem:[%s3996 + $0x150] sm:$0xff]
      %v4040 = vld [vmem:[%s3996 + $0x158] sm:$0xff]
      %v4041 = vld [vmem:[%s3996 + $0x160] sm:$0xff]
      %v4042 = vld [vmem:[%s3996 + $0x168] sm:$0xff]
      %v4043 = vld [vmem:[%s3996 + $0x170] sm:$0xff]
      %v4044 = vld [vmem:[%s3996 + $0x178] sm:$0xff]
      %v4045 = vld [vmem:[%s3996 + $0x180] sm:$0xff]
      %v4046 = vld [vmem:[%s3996 + $0x188] sm:$0xff]
      %v4047 = vld [vmem:[%s3996 + $0x190] sm:$0xff]
      %v4048 = vld [vmem:[%s3996 + $0x198] sm:$0xff]
      %v4049 = vld [vmem:[%s3996 + $0x1a0] sm:$0xff]
      %v4050 = vld [vmem:[%s3996 + $0x1a8] sm:$0xff]
      %v4051 = vld [vmem:[%s3996 + $0x1b0] sm:$0xff]
      %v4052 = vld [vmem:[%s3996 + $0x1b8] sm:$0xff]
      %v4053 = vld [vmem:[%s3996 + $0x1c0] sm:$0xff]
      %v4054 = vld [vmem:[%s3996 + $0x1c8] sm:$0xff]
      %v4055 = vld [vmem:[%s3996 + $0x1d0] sm:$0xff]
      %v4056 = vld [vmem:[%s3996 + $0x1d8] sm:$0xff]
      %v4057 = vld [vmem:[%s3996 + $0x1e0] sm:$0xff]
      %v4058 = vld [vmem:[%s3996 + $0x1e8] sm:$0xff]
      %v4059 = vld [vmem:[%s3996 + $0x1f0] sm:$0xff]
      %v4060 = vld [vmem:[%s3996 + $0x1f8] sm:$0xff]
      %v4061 = vld [vmem:[%s3996 + $0x200] sm:$0xff]
      %v4062 = vld [vmem:[%s3996 + $0x208] sm:$0xff]
      %v4063 = vld [vmem:[%s3996 + $0x210] sm:$0xff]
      %v4064 = vld [vmem:[%s3996 + $0x218] sm:$0xff]
      %v4065 = vld [vmem:[%s3996 + $0x220] sm:$0xff]
      %v4066 = vld [vmem:[%s3996 + $0x228] sm:$0xff]
      %v4067 = vld [vmem:[%s3996 + $0x230] sm:$0xff]
      %v4068 = vld [vmem:[%s3996 + $0x238] sm:$0xff]
      %v4069 = vld [vmem:[%s3996 + $0x240] sm:$0xff]
      %v4070 = vld [vmem:[%s3996 + $0x248] sm:$0xff]
      %v4071 = vld [vmem:[%s3996 + $0x250] sm:$0xff]
      %v4072 = vld [vmem:[%s3996 + $0x258] sm:$0xff]
      %v4073 = vld [vmem:[%s3996 + $0x260] sm:$0xff]
      %v4074 = vld [vmem:[%s3996 + $0x268] sm:$0xff]
      %v4075 = vld [vmem:[%s3996 + $0x270] sm:$0xff]
      %v4076 = vld [vmem:[%s3996 + $0x278] sm:$0xff]
      %v4077 = vld [vmem:[%s3996 + $0x280] sm:$0xff]
      %v4078 = vld [vmem:[%s3996 + $0x288] sm:$0xff]
      %v4079 = vld [vmem:[%s3996 + $0x290] sm:$0xff]
      %v4080 = vld [vmem:[%s3996 + $0x298] sm:$0xff]
      %v4081 = vld [vmem:[%s3996 + $0x2a0] sm:$0xff]
      %v4082 = vld [vmem:[%s3996 + $0x2a8] sm:$0xff]
      %v4083 = vld [vmem:[%s3996 + $0x2b0] sm:$0xff]
      %v4084 = vld [vmem:[%s3996 + $0x2b8] sm:$0xff]
      %v4085 = vld [vmem:[%s3996 + $0x2c0] sm:$0xff]
      %v4086 = vld [vmem:[%s3996 + $0x2c8] sm:$0xff]
      %v4087 = vld [vmem:[%s3996 + $0x2d0] sm:$0xff]
      %v4088 = vld [vmem:[%s3996 + $0x2d8] sm:$0xff]
      %v4089 = vld [vmem:[%s3996 + $0x2e0] sm:$0xff]
      %v4090 = vld [vmem:[%s3996 + $0x2e8] sm:$0xff]
      %v4091 = vld [vmem:[%s3996 + $0x2f0] sm:$0xff]
      %v4092 = vld [vmem:[%s3996 + $0x2f8] sm:$0xff]
      %v4093 = vld [vmem:[%s3996 + $0x300] sm:$0xff]
      %v4094 = vld [vmem:[%s3996 + $0x308] sm:$0xff]
      %v4095 = vld [vmem:[%s3996 + $0x310] sm:$0xff]
      %v4096 = vld [vmem:[%s3996 + $0x318] sm:$0xff]
      %v4097 = vld [vmem:[%s3996 + $0x320] sm:$0xff]
      %v4098 = vld [vmem:[%s3996 + $0x328] sm:$0xff]
      %v4099 = vld [vmem:[%s3996 + $0x330] sm:$0xff]
      %v4100 = vld [vmem:[%s3996 + $0x338] sm:$0xff]
      %v4101 = vld [vmem:[%s3996 + $0x340] sm:$0xff]
      %v4102 = vld [vmem:[%s3996 + $0x348] sm:$0xff]
      %v4103 = vld [vmem:[%s3996 + $0x350] sm:$0xff]
      %v4104 = vld [vmem:[%s3996 + $0x358] sm:$0xff]
      %v4105 = vld [vmem:[%s3996 + $0x360] sm:$0xff]
      %v4106 = vld [vmem:[%s3996 + $0x368] sm:$0xff]
      %v4107 = vld [vmem:[%s3996 + $0x370] sm:$0xff]
      %v4108 = vld [vmem:[%s3996 + $0x378] sm:$0xff]
      %v4109 = vld [vmem:[%s3996 + $0x380] sm:$0xff]
      %v4110 = vld [vmem:[%s3996 + $0x388] sm:$0xff]
      %v4111 = vld [vmem:[%s3996 + $0x390] sm:$0xff]
      %v4112 = vld [vmem:[%s3996 + $0x398] sm:$0xff]
      %v4113 = vld [vmem:[%s3996 + $0x3a0] sm:$0xff]
      %v4114 = vld [vmem:[%s3996 + $0x3a8] sm:$0xff]
      %v4115 = vld [vmem:[%s3996 + $0x3b0] sm:$0xff]
      %v4116 = vld [vmem:[%s3996 + $0x3b8] sm:$0xff]
      %v4117 = vld [vmem:[%s3996 + $0x3c0] sm:$0xff]
      %v4118 = vld [vmem:[%s3996 + $0x3c8] sm:$0xff]
      %v4119 = vld [vmem:[%s3996 + $0x3d0] sm:$0xff]
      %v4120 = vld [vmem:[%s3996 + $0x3d8] sm:$0xff]
      %v4121 = vld [vmem:[%s3996 + $0x3e0] sm:$0xff]
      %v4122 = vld [vmem:[%s3996 + $0x3e8] sm:$0xff]
      %v4123 = vld [vmem:[%s3996 + $0x3f0] sm:$0xff]
      %v4124 = vld [vmem:[%s3996 + $0x3f8] sm:$0xff]
      %v4125 = vld [vmem:[%s3996 + $0x400] sm:$0xff]
      %v4126 = vld [vmem:[%s3996 + $0x408] sm:$0xff]
      %v4127 = vld [vmem:[%s3996 + $0x410] sm:$0xff]
      %v4128 = vld [vmem:[%s3996 + $0x418] sm:$0xff]
      %v4129 = vld [vmem:[%s3996 + $0x420] sm:$0xff]
      %v4130 = vld [vmem:[%s3996 + $0x428] sm:$0xff]
      %v4131 = vld [vmem:[%s3996 + $0x430] sm:$0xff]
      %v4132 = vld [vmem:[%s3996 + $0x438] sm:$0xff]
      %v4133 = vld [vmem:[%s3996 + $0x440] sm:$0xff]
      %v4134 = vld [vmem:[%s3996 + $0x448] sm:$0xff]
      %v4135 = vld [vmem:[%s3996 + $0x450] sm:$0xff]
      %v4136 = vld [vmem:[%s3996 + $0x458] sm:$0xff]
      %v4137 = vld [vmem:[%s3996 + $0x460] sm:$0xff]
      %v4138 = vld [vmem:[%s3996 + $0x468] sm:$0xff]
      %v4139 = vld [vmem:[%s3996 + $0x470] sm:$0xff]
      %v4140 = vld [vmem:[%s3996 + $0x478] sm:$0xff]
      %v4141 = vld [vmem:[%s3996 + $0x480] sm:$0xff]
      %v4142 = vld [vmem:[%s3996 + $0x488] sm:$0xff]
      %v4143 = vld [vmem:[%s3996 + $0x490] sm:$0xff]
      %v4144 = vld [vmem:[%s3996 + $0x498] sm:$0xff]
      %v4145 = vld [vmem:[%s3996 + $0x4a0] sm:$0xff]
      %v4146 = vld [vmem:[%s3996 + $0x4a8] sm:$0xff]
      %v4147 = vld [vmem:[%s3996 + $0x4b0] sm:$0xff]
      %v4148 = vld [vmem:[%s3996 + $0x4b8] sm:$0xff]
      %v4149 = vld [vmem:[%s3996 + $0x4c0] sm:$0xff]
      %v4150 = vld [vmem:[%s3996 + $0x4c8] sm:$0xff]
      %v4151 = vld [vmem:[%s3996 + $0x4d0] sm:$0xff]
      %v4152 = vld [vmem:[%s3996 + $0x4d8] sm:$0xff]
      %v4153 = vld [vmem:[%s3996 + $0x4e0] sm:$0xff]
      %v4154 = vld [vmem:[%s3996 + $0x4e8] sm:$0xff]
      %v4155 = vld [vmem:[%s3996 + $0x4f0] sm:$0xff]
      %v4156 = vld [vmem:[%s3996 + $0x4f8] sm:$0xff]
      %v4157 = vld [vmem:[%s3996 + $0x500] sm:$0xff]
      %v4158 = vld [vmem:[%s3996 + $0x508] sm:$0xff]
      %v4159 = vld [vmem:[%s3996 + $0x510] sm:$0xff]
      %v4160 = vld [vmem:[%s3996 + $0x518] sm:$0xff]
      %v4161 = vld [vmem:[%s3996 + $0x520] sm:$0xff]
      %v4162 = vld [vmem:[%s3996 + $0x528] sm:$0xff]
      %v4163 = vld [vmem:[%s3996 + $0x530] sm:$0xff]
      %v4164 = vld [vmem:[%s3996 + $0x538] sm:$0xff]
      %v4165 = vld [vmem:[%s3996 + $0x540] sm:$0xff]
      %v4166 = vld [vmem:[%s3996 + $0x548] sm:$0xff]
      %v4167 = vld [vmem:[%s3996 + $0x550] sm:$0xff]
      %v4168 = vld [vmem:[%s3996 + $0x558] sm:$0xff]
      %v4169 = vld [vmem:[%s3996 + $0x560] sm:$0xff]
      %v4170 = vld [vmem:[%s3996 + $0x568] sm:$0xff]
      %v4171 = vld [vmem:[%s3996 + $0x570] sm:$0xff]
      %v4172 = vld [vmem:[%s3996 + $0x578] sm:$0xff]
      %v4173 = vld [vmem:[%s3996 + $0x580] sm:$0xff]
      %v4174 = vld [vmem:[%s3996 + $0x588] sm:$0xff]
      %v4175 = vld [vmem:[%s3996 + $0x590] sm:$0xff]
      %v4176 = vld [vmem:[%s3996 + $0x598] sm:$0xff]
      %v4177 = vld [vmem:[%s3996 + $0x5a0] sm:$0xff]
      %v4178 = vld [vmem:[%s3996 + $0x5a8] sm:$0xff]
      %v4179 = vld [vmem:[%s3996 + $0x5b0] sm:$0xff]
      %v4180 = vld [vmem:[%s3996 + $0x5b8] sm:$0xff]
      %v4181 = vld [vmem:[%s3996 + $0x5c0] sm:$0xff]
      %v4182 = vld [vmem:[%s3996 + $0x5c8] sm:$0xff]
      %v4183 = vld [vmem:[%s3996 + $0x5d0] sm:$0xff]
      %v4184 = vld [vmem:[%s3996 + $0x5d8] sm:$0xff]
      %v4185 = vld [vmem:[%s3996 + $0x5e0] sm:$0xff]
      %v4186 = vld [vmem:[%s3996 + $0x5e8] sm:$0xff]
      %v4187 = vld [vmem:[%s3996 + $0x5f0] sm:$0xff]
      %v4188 = vld [vmem:[%s3996 + $0x5f8] sm:$0xff]
      %v4189 = vld [vmem:[%s223] sm:$0x3f]
      %v4191 = vlaneseq
      %v4192 = vshrl.u32 %v4191, 7
      %v4193 = vsub.s32 0, %v4192
      %v4194 = vrot.slane %v4189, %v4193
      %v4195 = vlaneseq
      %v4196 = vshrl.u32 %v4195, 7
      %v4197 = vsub.s32 1, %v4196
      %v4198 = vrot.slane %v4189, %v4197
      %v4199 = vlaneseq
      %v4200 = vshrl.u32 %v4199, 7
      %v4201 = vsub.s32 2, %v4200
      %v4202 = vrot.slane %v4189, %v4201
      %v4203 = vlaneseq
      %v4204 = vshrl.u32 %v4203, 7
      %v4205 = vsub.s32 3, %v4204
      %v4206 = vrot.slane %v4189, %v4205
      %v4207 = vlaneseq
      %v4208 = vshrl.u32 %v4207, 7
      %v4209 = vsub.s32 4, %v4208
      %v4210 = vrot.slane %v4189, %v4209
      %v4211 = vlaneseq
      %v4212 = vshrl.u32 %v4211, 7
      %v4213 = vsub.s32 5, %v4212
      %v4214 = vrot.slane %v4189, %v4213
      %v4413 = vunpack.c.l.b16 %v3997
      %v4414 = vunpack.c.h.b16 %v3997
      %v4415 = vunpack.c.l.b16 %v3998
      %v4416 = vunpack.c.h.b16 %v3998
      %v4417 = vunpack.c.l.b16 %v3999
      %v4418 = vunpack.c.h.b16 %v3999
      %v4419 = vunpack.c.l.b16 %v4000
      %v4420 = vunpack.c.h.b16 %v4000
      %v4421 = vunpack.c.l.b16 %v4001
      %v4422 = vunpack.c.h.b16 %v4001
      %v4423 = vunpack.c.l.b16 %v4002
      %v4424 = vunpack.c.h.b16 %v4002
      %v4425 = vunpack.c.l.b16 %v4003
      %v4426 = vunpack.c.h.b16 %v4003
      %v4427 = vunpack.c.l.b16 %v4004
      %v4428 = vunpack.c.h.b16 %v4004
      %v4429 = vunpack.c.l.b16 %v4005
      %v4430 = vunpack.c.h.b16 %v4005
      %v4431 = vunpack.c.l.b16 %v4006
      %v4432 = vunpack.c.h.b16 %v4006
      %v4433 = vunpack.c.l.b16 %v4007
      %v4434 = vunpack.c.h.b16 %v4007
      %v4435 = vunpack.c.l.b16 %v4008
      %v4436 = vunpack.c.h.b16 %v4008
      %v4437 = vunpack.c.l.b16 %v4009
      %v4438 = vunpack.c.h.b16 %v4009
      %v4439 = vunpack.c.l.b16 %v4010
      %v4440 = vunpack.c.h.b16 %v4010
      %v4441 = vunpack.c.l.b16 %v4011
      %v4442 = vunpack.c.h.b16 %v4011
      %v4443 = vunpack.c.l.b16 %v4012
      %v4444 = vunpack.c.h.b16 %v4012
      %v4445 = vunpack.c.l.b16 %v4013
      %v4446 = vunpack.c.h.b16 %v4013
      %v4447 = vunpack.c.l.b16 %v4014
      %v4448 = vunpack.c.h.b16 %v4014
      %v4449 = vunpack.c.l.b16 %v4015
      %v4450 = vunpack.c.h.b16 %v4015
      %v4451 = vunpack.c.l.b16 %v4016
      %v4452 = vunpack.c.h.b16 %v4016
      %v4453 = vunpack.c.l.b16 %v4017
      %v4454 = vunpack.c.h.b16 %v4017
      %v4455 = vunpack.c.l.b16 %v4018
      %v4456 = vunpack.c.h.b16 %v4018
      %v4457 = vunpack.c.l.b16 %v4019
      %v4458 = vunpack.c.h.b16 %v4019
      %v4459 = vunpack.c.l.b16 %v4020
      %v4460 = vunpack.c.h.b16 %v4020
      %v4461 = vunpack.c.l.b16 %v4021
      %v4462 = vunpack.c.h.b16 %v4021
      %v4463 = vunpack.c.l.b16 %v4022
      %v4464 = vunpack.c.h.b16 %v4022
      %v4465 = vunpack.c.l.b16 %v4023
      %v4466 = vunpack.c.h.b16 %v4023
      %v4467 = vunpack.c.l.b16 %v4024
      %v4468 = vunpack.c.h.b16 %v4024
      %v4469 = vunpack.c.l.b16 %v4025
      %v4470 = vunpack.c.h.b16 %v4025
      %v4471 = vunpack.c.l.b16 %v4026
      %v4472 = vunpack.c.h.b16 %v4026
      %v4473 = vunpack.c.l.b16 %v4027
      %v4474 = vunpack.c.h.b16 %v4027
      %v4475 = vunpack.c.l.b16 %v4028
      %v4476 = vunpack.c.h.b16 %v4028
      %v4477 = vunpack.c.l.b16 %v4029
      %v4478 = vunpack.c.h.b16 %v4029
      %v4479 = vunpack.c.l.b16 %v4030
      %v4480 = vunpack.c.h.b16 %v4030
      %v4481 = vunpack.c.l.b16 %v4031
      %v4482 = vunpack.c.h.b16 %v4031
      %v4483 = vunpack.c.l.b16 %v4032
      %v4484 = vunpack.c.h.b16 %v4032
      %v4485 = vunpack.c.l.b16 %v4033
      %v4486 = vunpack.c.h.b16 %v4033
      %v4487 = vunpack.c.l.b16 %v4034
      %v4488 = vunpack.c.h.b16 %v4034
      %v4489 = vunpack.c.l.b16 %v4035
      %v4490 = vunpack.c.h.b16 %v4035
      %v4491 = vunpack.c.l.b16 %v4036
      %v4492 = vunpack.c.h.b16 %v4036
      %v4493 = vunpack.c.l.b16 %v4037
      %v4494 = vunpack.c.h.b16 %v4037
      %v4495 = vunpack.c.l.b16 %v4038
      %v4496 = vunpack.c.h.b16 %v4038
      %v4497 = vunpack.c.l.b16 %v4039
      %v4498 = vunpack.c.h.b16 %v4039
      %v4499 = vunpack.c.l.b16 %v4040
      %v4500 = vunpack.c.h.b16 %v4040
      %v4501 = vunpack.c.l.b16 %v4041
      %v4502 = vunpack.c.h.b16 %v4041
      %v4503 = vunpack.c.l.b16 %v4042
      %v4504 = vunpack.c.h.b16 %v4042
      %v4505 = vunpack.c.l.b16 %v4043
      %v4506 = vunpack.c.h.b16 %v4043
      %v4507 = vunpack.c.l.b16 %v4044
      %v4508 = vunpack.c.h.b16 %v4044
      %v4509 = vunpack.c.l.b16 %v4045
      %v4510 = vunpack.c.h.b16 %v4045
      %v4511 = vunpack.c.l.b16 %v4046
      %v4512 = vunpack.c.h.b16 %v4046
      %v4513 = vunpack.c.l.b16 %v4047
      %v4514 = vunpack.c.h.b16 %v4047
      %v4515 = vunpack.c.l.b16 %v4048
      %v4516 = vunpack.c.h.b16 %v4048
      %v4517 = vunpack.c.l.b16 %v4049
      %v4518 = vunpack.c.h.b16 %v4049
      %v4519 = vunpack.c.l.b16 %v4050
      %v4520 = vunpack.c.h.b16 %v4050
      %v4521 = vunpack.c.l.b16 %v4051
      %v4522 = vunpack.c.h.b16 %v4051
      %v4523 = vunpack.c.l.b16 %v4052
      %v4524 = vunpack.c.h.b16 %v4052
      %v4525 = vunpack.c.l.b16 %v4053
      %v4526 = vunpack.c.h.b16 %v4053
      %v4527 = vunpack.c.l.b16 %v4054
      %v4528 = vunpack.c.h.b16 %v4054
      %v4529 = vunpack.c.l.b16 %v4055
      %v4530 = vunpack.c.h.b16 %v4055
      %v4531 = vunpack.c.l.b16 %v4056
      %v4532 = vunpack.c.h.b16 %v4056
      %v4533 = vunpack.c.l.b16 %v4057
      %v4534 = vunpack.c.h.b16 %v4057
      %v4535 = vunpack.c.l.b16 %v4058
      %v4536 = vunpack.c.h.b16 %v4058
      %v4537 = vunpack.c.l.b16 %v4059
      %v4538 = vunpack.c.h.b16 %v4059
      %v4539 = vunpack.c.l.b16 %v4060
      %v4540 = vunpack.c.h.b16 %v4060
      %v4541 = vunpack.c.l.b16 %v4061
      %v4542 = vunpack.c.h.b16 %v4061
      %v4543 = vunpack.c.l.b16 %v4062
      %v4544 = vunpack.c.h.b16 %v4062
      %v4545 = vunpack.c.l.b16 %v4063
      %v4546 = vunpack.c.h.b16 %v4063
      %v4547 = vunpack.c.l.b16 %v4064
      %v4548 = vunpack.c.h.b16 %v4064
      %v4549 = vunpack.c.l.b16 %v4065
      %v4550 = vunpack.c.h.b16 %v4065
      %v4551 = vunpack.c.l.b16 %v4066
      %v4552 = vunpack.c.h.b16 %v4066
      %v4553 = vunpack.c.l.b16 %v4067
      %v4554 = vunpack.c.h.b16 %v4067
      %v4555 = vunpack.c.l.b16 %v4068
      %v4556 = vunpack.c.h.b16 %v4068
      %v4557 = vunpack.c.l.b16 %v4069
      %v4558 = vunpack.c.h.b16 %v4069
      %v4559 = vunpack.c.l.b16 %v4070
      %v4560 = vunpack.c.h.b16 %v4070
      %v4561 = vunpack.c.l.b16 %v4071
      %v4562 = vunpack.c.h.b16 %v4071
      %v4563 = vunpack.c.l.b16 %v4072
      %v4564 = vunpack.c.h.b16 %v4072
      %v4565 = vunpack.c.l.b16 %v4073
      %v4566 = vunpack.c.h.b16 %v4073
      %v4567 = vunpack.c.l.b16 %v4074
      %v4568 = vunpack.c.h.b16 %v4074
      %v4569 = vunpack.c.l.b16 %v4075
      %v4570 = vunpack.c.h.b16 %v4075
      %v4571 = vunpack.c.l.b16 %v4076
      %v4572 = vunpack.c.h.b16 %v4076
      %v4573 = vunpack.c.l.b16 %v4077
      %v4574 = vunpack.c.h.b16 %v4077
      %v4575 = vunpack.c.l.b16 %v4078
      %v4576 = vunpack.c.h.b16 %v4078
      %v4577 = vunpack.c.l.b16 %v4079
      %v4578 = vunpack.c.h.b16 %v4079
      %v4579 = vunpack.c.l.b16 %v4080
      %v4580 = vunpack.c.h.b16 %v4080
      %v4581 = vunpack.c.l.b16 %v4081
      %v4582 = vunpack.c.h.b16 %v4081
      %v4583 = vunpack.c.l.b16 %v4082
      %v4584 = vunpack.c.h.b16 %v4082
      %v4585 = vunpack.c.l.b16 %v4083
      %v4586 = vunpack.c.h.b16 %v4083
      %v4587 = vunpack.c.l.b16 %v4084
      %v4588 = vunpack.c.h.b16 %v4084
      %v4589 = vunpack.c.l.b16 %v4085
      %v4590 = vunpack.c.h.b16 %v4085
      %v4591 = vunpack.c.l.b16 %v4086
      %v4592 = vunpack.c.h.b16 %v4086
      %v4593 = vunpack.c.l.b16 %v4087
      %v4594 = vunpack.c.h.b16 %v4087
      %v4595 = vunpack.c.l.b16 %v4088
      %v4596 = vunpack.c.h.b16 %v4088
      %v4597 = vunpack.c.l.b16 %v4089
      %v4598 = vunpack.c.h.b16 %v4089
      %v4599 = vunpack.c.l.b16 %v4090
      %v4600 = vunpack.c.h.b16 %v4090
      %v4601 = vunpack.c.l.b16 %v4091
      %v4602 = vunpack.c.h.b16 %v4091
      %v4603 = vunpack.c.l.b16 %v4092
      %v4604 = vunpack.c.h.b16 %v4092
      %v4605 = vunpack.c.l.b16 %v4093
      %v4606 = vunpack.c.h.b16 %v4093
      %v4607 = vunpack.c.l.b16 %v4094
      %v4608 = vunpack.c.h.b16 %v4094
      %v4609 = vunpack.c.l.b16 %v4095
      %v4610 = vunpack.c.h.b16 %v4095
      %v4611 = vunpack.c.l.b16 %v4096
      %v4612 = vunpack.c.h.b16 %v4096
      %v4613 = vunpack.c.l.b16 %v4097
      %v4614 = vunpack.c.h.b16 %v4097
      %v4615 = vunpack.c.l.b16 %v4098
      %v4616 = vunpack.c.h.b16 %v4098
      %v4617 = vunpack.c.l.b16 %v4099
      %v4618 = vunpack.c.h.b16 %v4099
      %v4619 = vunpack.c.l.b16 %v4100
      %v4620 = vunpack.c.h.b16 %v4100
      %v4621 = vunpack.c.l.b16 %v4101
      %v4622 = vunpack.c.h.b16 %v4101
      %v4623 = vunpack.c.l.b16 %v4102
      %v4624 = vunpack.c.h.b16 %v4102
      %v4625 = vunpack.c.l.b16 %v4103
      %v4626 = vunpack.c.h.b16 %v4103
      %v4627 = vunpack.c.l.b16 %v4104
      %v4628 = vunpack.c.h.b16 %v4104
      %v4629 = vunpack.c.l.b16 %v4105
      %v4630 = vunpack.c.h.b16 %v4105
      %v4631 = vunpack.c.l.b16 %v4106
      %v4632 = vunpack.c.h.b16 %v4106
      %v4633 = vunpack.c.l.b16 %v4107
      %v4634 = vunpack.c.h.b16 %v4107
      %v4635 = vunpack.c.l.b16 %v4108
      %v4636 = vunpack.c.h.b16 %v4108
      %v4637 = vunpack.c.l.b16 %v4109
      %v4638 = vunpack.c.h.b16 %v4109
      %v4639 = vunpack.c.l.b16 %v4110
      %v4640 = vunpack.c.h.b16 %v4110
      %v4641 = vunpack.c.l.b16 %v4111
      %v4642 = vunpack.c.h.b16 %v4111
      %v4643 = vunpack.c.l.b16 %v4112
      %v4644 = vunpack.c.h.b16 %v4112
      %v4645 = vunpack.c.l.b16 %v4113
      %v4646 = vunpack.c.h.b16 %v4113
      %v4647 = vunpack.c.l.b16 %v4114
      %v4648 = vunpack.c.h.b16 %v4114
      %v4649 = vunpack.c.l.b16 %v4115
      %v4650 = vunpack.c.h.b16 %v4115
      %v4651 = vunpack.c.l.b16 %v4116
      %v4652 = vunpack.c.h.b16 %v4116
      %v4653 = vunpack.c.l.b16 %v4117
      %v4654 = vunpack.c.h.b16 %v4117
      %v4655 = vunpack.c.l.b16 %v4118
      %v4656 = vunpack.c.h.b16 %v4118
      %v4657 = vunpack.c.l.b16 %v4119
      %v4658 = vunpack.c.h.b16 %v4119
      %v4659 = vunpack.c.l.b16 %v4120
      %v4660 = vunpack.c.h.b16 %v4120
      %v4661 = vunpack.c.l.b16 %v4121
      %v4662 = vunpack.c.h.b16 %v4121
      %v4663 = vunpack.c.l.b16 %v4122
      %v4664 = vunpack.c.h.b16 %v4122
      %v4665 = vunpack.c.l.b16 %v4123
      %v4666 = vunpack.c.h.b16 %v4123
      %v4667 = vunpack.c.l.b16 %v4124
      %v4668 = vunpack.c.h.b16 %v4124
      %v4669 = vunpack.c.l.b16 %v4125
      %v4670 = vunpack.c.h.b16 %v4125
      %v4671 = vunpack.c.l.b16 %v4126
      %v4672 = vunpack.c.h.b16 %v4126
      %v4673 = vunpack.c.l.b16 %v4127
      %v4674 = vunpack.c.h.b16 %v4127
      %v4675 = vunpack.c.l.b16 %v4128
      %v4676 = vunpack.c.h.b16 %v4128
      %v4677 = vunpack.c.l.b16 %v4129
      %v4678 = vunpack.c.h.b16 %v4129
      %v4679 = vunpack.c.l.b16 %v4130
      %v4680 = vunpack.c.h.b16 %v4130
      %v4681 = vunpack.c.l.b16 %v4131
      %v4682 = vunpack.c.h.b16 %v4131
      %v4683 = vunpack.c.l.b16 %v4132
      %v4684 = vunpack.c.h.b16 %v4132
      %v4685 = vunpack.c.l.b16 %v4133
      %v4686 = vunpack.c.h.b16 %v4133
      %v4687 = vunpack.c.l.b16 %v4134
      %v4688 = vunpack.c.h.b16 %v4134
      %v4689 = vunpack.c.l.b16 %v4135
      %v4690 = vunpack.c.h.b16 %v4135
      %v4691 = vunpack.c.l.b16 %v4136
      %v4692 = vunpack.c.h.b16 %v4136
      %v4693 = vunpack.c.l.b16 %v4137
      %v4694 = vunpack.c.h.b16 %v4137
      %v4695 = vunpack.c.l.b16 %v4138
      %v4696 = vunpack.c.h.b16 %v4138
      %v4697 = vunpack.c.l.b16 %v4139
      %v4698 = vunpack.c.h.b16 %v4139
      %v4699 = vunpack.c.l.b16 %v4140
      %v4700 = vunpack.c.h.b16 %v4140
      %v4701 = vunpack.c.l.b16 %v4141
      %v4702 = vunpack.c.h.b16 %v4141
      %v4703 = vunpack.c.l.b16 %v4142
      %v4704 = vunpack.c.h.b16 %v4142
      %v4705 = vunpack.c.l.b16 %v4143
      %v4706 = vunpack.c.h.b16 %v4143
      %v4707 = vunpack.c.l.b16 %v4144
      %v4708 = vunpack.c.h.b16 %v4144
      %v4709 = vunpack.c.l.b16 %v4145
      %v4710 = vunpack.c.h.b16 %v4145
      %v4711 = vunpack.c.l.b16 %v4146
      %v4712 = vunpack.c.h.b16 %v4146
      %v4713 = vunpack.c.l.b16 %v4147
      %v4714 = vunpack.c.h.b16 %v4147
      %v4715 = vunpack.c.l.b16 %v4148
      %v4716 = vunpack.c.h.b16 %v4148
      %v4717 = vunpack.c.l.b16 %v4149
      %v4718 = vunpack.c.h.b16 %v4149
      %v4719 = vunpack.c.l.b16 %v4150
      %v4720 = vunpack.c.h.b16 %v4150
      %v4721 = vunpack.c.l.b16 %v4151
      %v4722 = vunpack.c.h.b16 %v4151
      %v4723 = vunpack.c.l.b16 %v4152
      %v4724 = vunpack.c.h.b16 %v4152
      %v4725 = vunpack.c.l.b16 %v4153
      %v4726 = vunpack.c.h.b16 %v4153
      %v4727 = vunpack.c.l.b16 %v4154
      %v4728 = vunpack.c.h.b16 %v4154
      %v4729 = vunpack.c.l.b16 %v4155
      %v4730 = vunpack.c.h.b16 %v4155
      %v4731 = vunpack.c.l.b16 %v4156
      %v4732 = vunpack.c.h.b16 %v4156
      %v4733 = vunpack.c.l.b16 %v4157
      %v4734 = vunpack.c.h.b16 %v4157
      %v4735 = vunpack.c.l.b16 %v4158
      %v4736 = vunpack.c.h.b16 %v4158
      %v4737 = vunpack.c.l.b16 %v4159
      %v4738 = vunpack.c.h.b16 %v4159
      %v4739 = vunpack.c.l.b16 %v4160
      %v4740 = vunpack.c.h.b16 %v4160
      %v4741 = vunpack.c.l.b16 %v4161
      %v4742 = vunpack.c.h.b16 %v4161
      %v4743 = vunpack.c.l.b16 %v4162
      %v4744 = vunpack.c.h.b16 %v4162
      %v4745 = vunpack.c.l.b16 %v4163
      %v4746 = vunpack.c.h.b16 %v4163
      %v4747 = vunpack.c.l.b16 %v4164
      %v4748 = vunpack.c.h.b16 %v4164
      %v4749 = vunpack.c.l.b16 %v4165
      %v4750 = vunpack.c.h.b16 %v4165
      %v4751 = vunpack.c.l.b16 %v4166
      %v4752 = vunpack.c.h.b16 %v4166
      %v4753 = vunpack.c.l.b16 %v4167
      %v4754 = vunpack.c.h.b16 %v4167
      %v4755 = vunpack.c.l.b16 %v4168
      %v4756 = vunpack.c.h.b16 %v4168
      %v4757 = vunpack.c.l.b16 %v4169
      %v4758 = vunpack.c.h.b16 %v4169
      %v4759 = vunpack.c.l.b16 %v4170
      %v4760 = vunpack.c.h.b16 %v4170
      %v4761 = vunpack.c.l.b16 %v4171
      %v4762 = vunpack.c.h.b16 %v4171
      %v4763 = vunpack.c.l.b16 %v4172
      %v4764 = vunpack.c.h.b16 %v4172
      %v4765 = vunpack.c.l.b16 %v4173
      %v4766 = vunpack.c.h.b16 %v4173
      %v4767 = vunpack.c.l.b16 %v4174
      %v4768 = vunpack.c.h.b16 %v4174
      %v4769 = vunpack.c.l.b16 %v4175
      %v4770 = vunpack.c.h.b16 %v4175
      %v4771 = vunpack.c.l.b16 %v4176
      %v4772 = vunpack.c.h.b16 %v4176
      %v4773 = vunpack.c.l.b16 %v4177
      %v4774 = vunpack.c.h.b16 %v4177
      %v4775 = vunpack.c.l.b16 %v4178
      %v4776 = vunpack.c.h.b16 %v4178
      %v4777 = vunpack.c.l.b16 %v4179
      %v4778 = vunpack.c.h.b16 %v4179
      %v4779 = vunpack.c.l.b16 %v4180
      %v4780 = vunpack.c.h.b16 %v4180
      %v4781 = vunpack.c.l.b16 %v4181
      %v4782 = vunpack.c.h.b16 %v4181
      %v4783 = vunpack.c.l.b16 %v4182
      %v4784 = vunpack.c.h.b16 %v4182
      %v4785 = vunpack.c.l.b16 %v4183
      %v4786 = vunpack.c.h.b16 %v4183
      %v4787 = vunpack.c.l.b16 %v4184
      %v4788 = vunpack.c.h.b16 %v4184
      %v4789 = vunpack.c.l.b16 %v4185
      %v4790 = vunpack.c.h.b16 %v4185
      %v4791 = vunpack.c.l.b16 %v4186
      %v4792 = vunpack.c.h.b16 %v4186
      %v4793 = vunpack.c.l.b16 %v4187
      %v4794 = vunpack.c.h.b16 %v4187
      %v4795 = vunpack.c.l.b16 %v4188
      %v4796 = vunpack.c.h.b16 %v4188
      %v4797 = vpack.c.b16 %v4419, %v4413
      %v4798 = vpack.c.b16 %v4420, %v4414
      %v4799 = vpack.c.b16 %v4421, %v4415
      %v4800 = vpack.c.b16 %v4422, %v4416
      %v4801 = vpack.c.b16 %v4423, %v4417
      %v4802 = vpack.c.b16 %v4424, %v4418
      %v4803 = vpack.c.b16 %v4431, %v4425
      %v4804 = vpack.c.b16 %v4432, %v4426
      %v4805 = vpack.c.b16 %v4433, %v4427
      %v4806 = vpack.c.b16 %v4434, %v4428
      %v4807 = vpack.c.b16 %v4435, %v4429
      %v4808 = vpack.c.b16 %v4436, %v4430
      %v4809 = vpack.c.b16 %v4443, %v4437
      %v4810 = vpack.c.b16 %v4444, %v4438
      %v4811 = vpack.c.b16 %v4445, %v4439
      %v4812 = vpack.c.b16 %v4446, %v4440
      %v4813 = vpack.c.b16 %v4447, %v4441
      %v4814 = vpack.c.b16 %v4448, %v4442
      %v4815 = vpack.c.b16 %v4455, %v4449
      %v4816 = vpack.c.b16 %v4456, %v4450
      %v4817 = vpack.c.b16 %v4457, %v4451
      %v4818 = vpack.c.b16 %v4458, %v4452
      %v4819 = vpack.c.b16 %v4459, %v4453
      %v4820 = vpack.c.b16 %v4460, %v4454
      %v4821 = vpack.c.b16 %v4467, %v4461
      %v4822 = vpack.c.b16 %v4468, %v4462
      %v4823 = vpack.c.b16 %v4469, %v4463
      %v4824 = vpack.c.b16 %v4470, %v4464
      %v4825 = vpack.c.b16 %v4471, %v4465
      %v4826 = vpack.c.b16 %v4472, %v4466
      %v4827 = vpack.c.b16 %v4479, %v4473
      %v4828 = vpack.c.b16 %v4480, %v4474
      %v4829 = vpack.c.b16 %v4481, %v4475
      %v4830 = vpack.c.b16 %v4482, %v4476
      %v4831 = vpack.c.b16 %v4483, %v4477
      %v4832 = vpack.c.b16 %v4484, %v4478
      %v4833 = vpack.c.b16 %v4491, %v4485
      %v4834 = vpack.c.b16 %v4492, %v4486
      %v4835 = vpack.c.b16 %v4493, %v4487
      %v4836 = vpack.c.b16 %v4494, %v4488
      %v4837 = vpack.c.b16 %v4495, %v4489
      %v4838 = vpack.c.b16 %v4496, %v4490
      %v4839 = vpack.c.b16 %v4503, %v4497
      %v4840 = vpack.c.b16 %v4504, %v4498
      %v4841 = vpack.c.b16 %v4505, %v4499
      %v4842 = vpack.c.b16 %v4506, %v4500
      %v4843 = vpack.c.b16 %v4507, %v4501
      %v4844 = vpack.c.b16 %v4508, %v4502
      %v4845 = vpack.c.b16 %v4515, %v4509
      %v4846 = vpack.c.b16 %v4516, %v4510
      %v4847 = vpack.c.b16 %v4517, %v4511
      %v4848 = vpack.c.b16 %v4518, %v4512
      %v4849 = vpack.c.b16 %v4519, %v4513
      %v4850 = vpack.c.b16 %v4520, %v4514
      %v4851 = vpack.c.b16 %v4527, %v4521
      %v4852 = vpack.c.b16 %v4528, %v4522
      %v4853 = vpack.c.b16 %v4529, %v4523
      %v4854 = vpack.c.b16 %v4530, %v4524
      %v4855 = vpack.c.b16 %v4531, %v4525
      %v4856 = vpack.c.b16 %v4532, %v4526
      %v4857 = vpack.c.b16 %v4539, %v4533
      %v4858 = vpack.c.b16 %v4540, %v4534
      %v4859 = vpack.c.b16 %v4541, %v4535
      %v4860 = vpack.c.b16 %v4542, %v4536
      %v4861 = vpack.c.b16 %v4543, %v4537
      %v4862 = vpack.c.b16 %v4544, %v4538
      %v4863 = vpack.c.b16 %v4551, %v4545
      %v4864 = vpack.c.b16 %v4552, %v4546
      %v4865 = vpack.c.b16 %v4553, %v4547
      %v4866 = vpack.c.b16 %v4554, %v4548
      %v4867 = vpack.c.b16 %v4555, %v4549
      %v4868 = vpack.c.b16 %v4556, %v4550
      %v4869 = vpack.c.b16 %v4563, %v4557
      %v4870 = vpack.c.b16 %v4564, %v4558
      %v4871 = vpack.c.b16 %v4565, %v4559
      %v4872 = vpack.c.b16 %v4566, %v4560
      %v4873 = vpack.c.b16 %v4567, %v4561
      %v4874 = vpack.c.b16 %v4568, %v4562
      %v4875 = vpack.c.b16 %v4575, %v4569
      %v4876 = vpack.c.b16 %v4576, %v4570
      %v4877 = vpack.c.b16 %v4577, %v4571
      %v4878 = vpack.c.b16 %v4578, %v4572
      %v4879 = vpack.c.b16 %v4579, %v4573
      %v4880 = vpack.c.b16 %v4580, %v4574
      %v4881 = vpack.c.b16 %v4587, %v4581
      %v4882 = vpack.c.b16 %v4588, %v4582
      %v4883 = vpack.c.b16 %v4589, %v4583
      %v4884 = vpack.c.b16 %v4590, %v4584
      %v4885 = vpack.c.b16 %v4591, %v4585
      %v4886 = vpack.c.b16 %v4592, %v4586
      %v4887 = vpack.c.b16 %v4599, %v4593
      %v4888 = vpack.c.b16 %v4600, %v4594
      %v4889 = vpack.c.b16 %v4601, %v4595
      %v4890 = vpack.c.b16 %v4602, %v4596
      %v4891 = vpack.c.b16 %v4603, %v4597
      %v4892 = vpack.c.b16 %v4604, %v4598
      %v4893 = vpack.c.b16 %v4611, %v4605
      %v4894 = vpack.c.b16 %v4612, %v4606
      %v4895 = vpack.c.b16 %v4613, %v4607
      %v4896 = vpack.c.b16 %v4614, %v4608
      %v4897 = vpack.c.b16 %v4615, %v4609
      %v4898 = vpack.c.b16 %v4616, %v4610
      %v4899 = vpack.c.b16 %v4623, %v4617
      %v4900 = vpack.c.b16 %v4624, %v4618
      %v4901 = vpack.c.b16 %v4625, %v4619
      %v4902 = vpack.c.b16 %v4626, %v4620
      %v4903 = vpack.c.b16 %v4627, %v4621
      %v4904 = vpack.c.b16 %v4628, %v4622
      %v4905 = vpack.c.b16 %v4635, %v4629
      %v4906 = vpack.c.b16 %v4636, %v4630
      %v4907 = vpack.c.b16 %v4637, %v4631
      %v4908 = vpack.c.b16 %v4638, %v4632
      %v4909 = vpack.c.b16 %v4639, %v4633
      %v4910 = vpack.c.b16 %v4640, %v4634
      %v4911 = vpack.c.b16 %v4647, %v4641
      %v4912 = vpack.c.b16 %v4648, %v4642
      %v4913 = vpack.c.b16 %v4649, %v4643
      %v4914 = vpack.c.b16 %v4650, %v4644
      %v4915 = vpack.c.b16 %v4651, %v4645
      %v4916 = vpack.c.b16 %v4652, %v4646
      %v4917 = vpack.c.b16 %v4659, %v4653
      %v4918 = vpack.c.b16 %v4660, %v4654
      %v4919 = vpack.c.b16 %v4661, %v4655
      %v4920 = vpack.c.b16 %v4662, %v4656
      %v4921 = vpack.c.b16 %v4663, %v4657
      %v4922 = vpack.c.b16 %v4664, %v4658
      %v4923 = vpack.c.b16 %v4671, %v4665
      %v4924 = vpack.c.b16 %v4672, %v4666
      %v4925 = vpack.c.b16 %v4673, %v4667
      %v4926 = vpack.c.b16 %v4674, %v4668
      %v4927 = vpack.c.b16 %v4675, %v4669
      %v4928 = vpack.c.b16 %v4676, %v4670
      %v4929 = vpack.c.b16 %v4683, %v4677
      %v4930 = vpack.c.b16 %v4684, %v4678
      %v4931 = vpack.c.b16 %v4685, %v4679
      %v4932 = vpack.c.b16 %v4686, %v4680
      %v4933 = vpack.c.b16 %v4687, %v4681
      %v4934 = vpack.c.b16 %v4688, %v4682
      %v4935 = vpack.c.b16 %v4695, %v4689
      %v4936 = vpack.c.b16 %v4696, %v4690
      %v4937 = vpack.c.b16 %v4697, %v4691
      %v4938 = vpack.c.b16 %v4698, %v4692
      %v4939 = vpack.c.b16 %v4699, %v4693
      %v4940 = vpack.c.b16 %v4700, %v4694
      %v4941 = vpack.c.b16 %v4707, %v4701
      %v4942 = vpack.c.b16 %v4708, %v4702
      %v4943 = vpack.c.b16 %v4709, %v4703
      %v4944 = vpack.c.b16 %v4710, %v4704
      %v4945 = vpack.c.b16 %v4711, %v4705
      %v4946 = vpack.c.b16 %v4712, %v4706
      %v4947 = vpack.c.b16 %v4719, %v4713
      %v4948 = vpack.c.b16 %v4720, %v4714
      %v4949 = vpack.c.b16 %v4721, %v4715
      %v4950 = vpack.c.b16 %v4722, %v4716
      %v4951 = vpack.c.b16 %v4723, %v4717
      %v4952 = vpack.c.b16 %v4724, %v4718
      %v4953 = vpack.c.b16 %v4731, %v4725
      %v4954 = vpack.c.b16 %v4732, %v4726
      %v4955 = vpack.c.b16 %v4733, %v4727
      %v4956 = vpack.c.b16 %v4734, %v4728
      %v4957 = vpack.c.b16 %v4735, %v4729
      %v4958 = vpack.c.b16 %v4736, %v4730
      %v4959 = vpack.c.b16 %v4743, %v4737
      %v4960 = vpack.c.b16 %v4744, %v4738
      %v4961 = vpack.c.b16 %v4745, %v4739
      %v4962 = vpack.c.b16 %v4746, %v4740
      %v4963 = vpack.c.b16 %v4747, %v4741
      %v4964 = vpack.c.b16 %v4748, %v4742
      %v4965 = vpack.c.b16 %v4755, %v4749
      %v4966 = vpack.c.b16 %v4756, %v4750
      %v4967 = vpack.c.b16 %v4757, %v4751
      %v4968 = vpack.c.b16 %v4758, %v4752
      %v4969 = vpack.c.b16 %v4759, %v4753
      %v4970 = vpack.c.b16 %v4760, %v4754
      %v4971 = vpack.c.b16 %v4767, %v4761
      %v4972 = vpack.c.b16 %v4768, %v4762
      %v4973 = vpack.c.b16 %v4769, %v4763
      %v4974 = vpack.c.b16 %v4770, %v4764
      %v4975 = vpack.c.b16 %v4771, %v4765
      %v4976 = vpack.c.b16 %v4772, %v4766
      %v4977 = vpack.c.b16 %v4779, %v4773
      %v4978 = vpack.c.b16 %v4780, %v4774
      %v4979 = vpack.c.b16 %v4781, %v4775
      %v4980 = vpack.c.b16 %v4782, %v4776
      %v4981 = vpack.c.b16 %v4783, %v4777
      %v4982 = vpack.c.b16 %v4784, %v4778
      %v4983 = vpack.c.b16 %v4791, %v4785
      %v4984 = vpack.c.b16 %v4792, %v4786
      %v4985 = vpack.c.b16 %v4793, %v4787
      %v4986 = vpack.c.b16 %v4794, %v4788
      %v4987 = vpack.c.b16 %v4795, %v4789
      %v4988 = vpack.c.b16 %v4796, %v4790
      %5181 = vmatprep.subr.bf16.mxu0 %v4798
      %5182 = vmatpush1.bf16.msra.mxu0 %v4797
      %5183 = vmatprep.subr.bf16.mxu0 %v4804
      %5184 = vmatpush1.bf16.msra.mxu0 %v4803
      %5185 = vmatprep.subr.bf16.mxu0 %v4810
      %5186 = vmatpush1.bf16.msra.mxu0 %v4809
      %5187 = vmatprep.subr.bf16.mxu0 %v4816
      %5188 = vmatpush1.bf16.msra.mxu0 %v4815
      %5189 = vmatprep.subr.bf16.mxu0 %v4822
      %5190 = vmatpush1.bf16.msra.mxu0 %v4821
      %5191 = vmatprep.subr.bf16.mxu0 %v4828
      %5192 = vmatpush1.bf16.msra.mxu0 %v4827
      %5193 = vmatprep.subr.bf16.mxu0 %v4834
      %5194 = vmatpush1.bf16.msra.mxu0 %v4833
      %5195 = vmatprep.subr.bf16.mxu0 %v4840
      %5196 = vmatpush1.bf16.msra.mxu0 %v4839
      %5197 = vmatprep.subr.bf16.mxu0 %v4846
      %5198 = vmatpush1.bf16.msra.mxu0 %v4845
      %5199 = vmatprep.subr.bf16.mxu0 %v4852
      %5200 = vmatpush1.bf16.msra.mxu0 %v4851
      %5201 = vmatprep.subr.bf16.mxu0 %v4858
      %5202 = vmatpush1.bf16.msra.mxu0 %v4857
      %5203 = vmatprep.subr.bf16.mxu0 %v4864
      %5204 = vmatpush1.bf16.msra.mxu0 %v4863
      %5205 = vmatprep.subr.bf16.mxu0 %v4870
      %5206 = vmatpush1.bf16.msra.mxu0 %v4869
      %5207 = vmatprep.subr.bf16.mxu0 %v4876
      %5208 = vmatpush1.bf16.msra.mxu0 %v4875
      %5209 = vmatprep.subr.bf16.mxu0 %v4882
      %5210 = vmatpush1.bf16.msra.mxu0 %v4881
      %5211 = vmatprep.subr.bf16.mxu0 %v4888
      %5212 = vmatpush1.bf16.msra.mxu0 %v4887
      %5213 = vmatprep.mubr.bf16.mxu0 %v3981
      %5214 = vmatmul.mubr.bf16.gmra.mrb[0].mxu0 %v3980
      %v5215 = vpop.f32.mrb[0].mxu0
      %v5216 = vadd.f32 %v4194, %v5215
      %v5217 = vpop.f32.mrb[0].mxu0
      %v5218 = vadd.f32 %v4198, %v5217
      %v5219 = vpop.f32.mrb[0].mxu0
      %v5220 = vadd.f32 %v4194, %v5219
      %v5221 = vpop.f32.mrb[0].mxu0
      %v5222 = vadd.f32 %v4198, %v5221
      %5223 = vmatprep.mubr.bf16.mxu0 %v3985
      %5224 = vmatmul.mubr.bf16.gmra.mrb[0].mxu0 %v3984
      %v5225 = vpop.f32.mrb[0].mxu0
      %v5226 = vadd.f32 %v4194, %v5225
      %v5227 = vpop.f32.mrb[0].mxu0
      %v5228 = vadd.f32 %v4198, %v5227
      %v5229 = vpop.f32.mrb[0].mxu0
      %v5230 = vadd.f32 %v4194, %v5229
      %v5231 = vpop.f32.mrb[0].mxu0
      %v5232 = vadd.f32 %v4198, %v5231
      %5233 = vmatprep.mubr.bf16.mxu0 %v3989
      %5234 = vmatmul.mubr.bf16.gmra.mrb[0].mxu0 %v3988
      %v5235 = vpop.f32.mrb[0].mxu0
      %v5236 = vadd.f32 %v4194, %v5235
      %v5237 = vpop.f32.mrb[0].mxu0
      %v5238 = vadd.f32 %v4198, %v5237
      %v5239 = vpop.f32.mrb[0].mxu0
      %v5240 = vadd.f32 %v4194, %v5239
      %v5241 = vpop.f32.mrb[0].mxu0
      %v5242 = vadd.f32 %v4198, %v5241
      %5243 = vmatprep.mubr.bf16.mxu0 %v3993
      %5244 = vmatmul.mubr.bf16.gmra.mrb[0].mxu0 %v3992
      %v5245 = vpop.f32.mrb[0].mxu0
      %v5246 = vadd.f32 %v4194, %v5245
      %v5247 = vpop.f32.mrb[0].mxu0
      %v5248 = vadd.f32 %v4198, %v5247
      %v5249 = vpop.f32.mrb[0].mxu0
      %v5250 = vadd.f32 %v4194, %v5249
      %v5251 = vpop.f32.mrb[0].mxu0
      %v5252 = vadd.f32 %v4198, %v5251
      %5253 = vdwg.mxu0
      %5254 = vmatprep.subr.bf16.mxu0 %v4894
      %5255 = vmatpush1.bf16.msra.mxu0 %v4893
      %5256 = vmatprep.subr.bf16.mxu0 %v4900
      %5257 = vmatpush1.bf16.msra.mxu0 %v4899
      %5258 = vmatprep.subr.bf16.mxu0 %v4906
      %5259 = vmatpush1.bf16.msra.mxu0 %v4905
      %5260 = vmatprep.subr.bf16.mxu0 %v4912
      %5261 = vmatpush1.bf16.msra.mxu0 %v4911
      %5262 = vmatprep.subr.bf16.mxu0 %v4918
      %5263 = vmatpush1.bf16.msra.mxu0 %v4917
      %5264 = vmatprep.subr.bf16.mxu0 %v4924
      %5265 = vmatpush1.bf16.msra.mxu0 %v4923
      %5266 = vmatprep.subr.bf16.mxu0 %v4930
      %5267 = vmatpush1.bf16.msra.mxu0 %v4929
      %5268 = vmatprep.subr.bf16.mxu0 %v4936
      %5269 = vmatpush1.bf16.msra.mxu0 %v4935
      %5270 = vmatprep.subr.bf16.mxu0 %v4942
      %5271 = vmatpush1.bf16.msra.mxu0 %v4941
      %5272 = vmatprep.subr.bf16.mxu0 %v4948
      %5273 = vmatpush1.bf16.msra.mxu0 %v4947
      %5274 = vmatprep.subr.bf16.mxu0 %v4954
      %5275 = vmatpush1.bf16.msra.mxu0 %v4953
      %5276 = vmatprep.subr.bf16.mxu0 %v4960
      %5277 = vmatpush1.bf16.msra.mxu0 %v4959
      %5278 = vmatprep.subr.bf16.mxu0 %v4966
      %5279 = vmatpush1.bf16.msra.mxu0 %v4965
      %5280 = vmatprep.subr.bf16.mxu0 %v4972
      %5281 = vmatpush1.bf16.msra.mxu0 %v4971
      %5282 = vmatprep.subr.bf16.mxu0 %v4978
      %5283 = vmatpush1.bf16.msra.mxu0 %v4977
      %5284 = vmatprep.subr.bf16.mxu0 %v4984
      %5285 = vmatpush1.bf16.msra.mxu0 %v4983
      %5286 = vmatprep.mubr.bf16.mxu0 %v3983
      %5287 = vmatmul.mubr.bf16.gmra.mrb[0].mxu0 %v3982
      %v5288 = vpop.f32.mrb[0].mxu0
      %v5289 = vadd.f32 %v5216, %v5288
      %v5290 = vpop.f32.mrb[0].mxu0
      %v5291 = vadd.f32 %v5218, %v5290
      %v5292 = vpop.f32.mrb[0].mxu0
      %v5293 = vadd.f32 %v5220, %v5292
      %v5294 = vpop.f32.mrb[0].mxu0
      %v5295 = vadd.f32 %v5222, %v5294
      %5296 = vmatprep.mubr.bf16.mxu0 %v3987
      %5297 = vmatmul.mubr.bf16.gmra.mrb[0].mxu0 %v3986
      %v5298 = vpop.f32.mrb[0].mxu0
      %v5299 = vadd.f32 %v5226, %v5298
      %v5300 = vpop.f32.mrb[0].mxu0
      %v5301 = vadd.f32 %v5228, %v5300
      %v5302 = vpop.f32.mrb[0].mxu0
      %v5303 = vadd.f32 %v5230, %v5302
      %v5304 = vpop.f32.mrb[0].mxu0
      %v5305 = vadd.f32 %v5232, %v5304
      %5306 = vmatprep.mubr.bf16.mxu0 %v3991
      %5307 = vmatmul.mubr.bf16.gmra.mrb[0].mxu0 %v3990
      %v5308 = vpop.f32.mrb[0].mxu0
      %v5309 = vadd.f32 %v5236, %v5308
      %v5310 = vpop.f32.mrb[0].mxu0
      %v5311 = vadd.f32 %v5238, %v5310
      %v5312 = vpop.f32.mrb[0].mxu0
      %v5313 = vadd.f32 %v5240, %v5312
      %v5314 = vpop.f32.mrb[0].mxu0
      %v5315 = vadd.f32 %v5242, %v5314
      %5316 = vmatprep.mubr.bf16.mxu0 %v3995
      %5317 = vmatmul.mubr.bf16.gmra.mrb[0].mxu0 %v3994
      %v5318 = vpop.f32.mrb[0].mxu0
      %v5319 = vadd.f32 %v5246, %v5318
      %v5320 = vpop.f32.mrb[0].mxu0
      %v5321 = vadd.f32 %v5248, %v5320
      %v5322 = vpop.f32.mrb[0].mxu0
      %v5323 = vadd.f32 %v5250, %v5322
      %v5324 = vpop.f32.mrb[0].mxu0
      %v5325 = vadd.f32 %v5252, %v5324
      %5326 = vdwg.mxu0
      %5327 = vmatprep.subr.bf16.mxu0 %v4800
      %5328 = vmatpush1.bf16.msra.mxu0 %v4799
      %5329 = vmatprep.subr.bf16.mxu0 %v4806
      %5330 = vmatpush1.bf16.msra.mxu0 %v4805
      %5331 = vmatprep.subr.bf16.mxu0 %v4812
      %5332 = vmatpush1.bf16.msra.mxu0 %v4811
      %5333 = vmatprep.subr.bf16.mxu0 %v4818
      %5334 = vmatpush1.bf16.msra.mxu0 %v4817
      %5335 = vmatprep.subr.bf16.mxu0 %v4824
      %5336 = vmatpush1.bf16.msra.mxu0 %v4823
      %5337 = vmatprep.subr.bf16.mxu0 %v4830
      %5338 = vmatpush1.bf16.msra.mxu0 %v4829
      %5339 = vmatprep.subr.bf16.mxu0 %v4836
      %5340 = vmatpush1.bf16.msra.mxu0 %v4835
      %5341 = vmatprep.subr.bf16.mxu0 %v4842
      %5342 = vmatpush1.bf16.msra.mxu0 %v4841
      %5343 = vmatprep.subr.bf16.mxu0 %v4848
      %5344 = vmatpush1.bf16.msra.mxu0 %v4847
      %5345 = vmatprep.subr.bf16.mxu0 %v4854
      %5346 = vmatpush1.bf16.msra.mxu0 %v4853
      %5347 = vmatprep.subr.bf16.mxu0 %v4860
      %5348 = vmatpush1.bf16.msra.mxu0 %v4859
      %5349 = vmatprep.subr.bf16.mxu0 %v4866
      %5350 = vmatpush1.bf16.msra.mxu0 %v4865
      %5351 = vmatprep.subr.bf16.mxu0 %v4872
      %5352 = vmatpush1.bf16.msra.mxu0 %v4871
      %5353 = vmatprep.subr.bf16.mxu0 %v4878
      %5354 = vmatpush1.bf16.msra.mxu0 %v4877
      %5355 = vmatprep.subr.bf16.mxu0 %v4884
      %5356 = vmatpush1.bf16.msra.mxu0 %v4883
      %5357 = vmatprep.subr.bf16.mxu0 %v4890
      %5358 = vmatpush1.bf16.msra.mxu0 %v4889
      %5359 = vmatprep.mubr.bf16.mxu0 %v3981
      %5360 = vmatmul.mubr.bf16.gmra.mrb[0].mxu0 %v3980
      %v5361 = vpop.f32.mrb[0].mxu0
      %v5362 = vadd.f32 %v4202, %v5361
      %v5363 = vpop.f32.mrb[0].mxu0
      %v5364 = vadd.f32 %v4206, %v5363
      %v5365 = vpop.f32.mrb[0].mxu0
      %v5366 = vadd.f32 %v4202, %v5365
      %v5367 = vpop.f32.mrb[0].mxu0
      %v5368 = vadd.f32 %v4206, %v5367
      %5369 = vmatprep.mubr.bf16.mxu0 %v3985
      %5370 = vmatmul.mubr.bf16.gmra.mrb[0].mxu0 %v3984
      %v5371 = vpop.f32.mrb[0].mxu0
      %v5372 = vadd.f32 %v4202, %v5371
      %v5373 = vpop.f32.mrb[0].mxu0
      %v5374 = vadd.f32 %v4206, %v5373
      %v5375 = vpop.f32.mrb[0].mxu0
      %v5376 = vadd.f32 %v4202, %v5375
      %v5377 = vpop.f32.mrb[0].mxu0
      %v5378 = vadd.f32 %v4206, %v5377
      %5379 = vmatprep.mubr.bf16.mxu0 %v3989
      %5380 = vmatmul.mubr.bf16.gmra.mrb[0].mxu0 %v3988
      %v5381 = vpop.f32.mrb[0].mxu0
      %v5382 = vadd.f32 %v4202, %v5381
      %v5383 = vpop.f32.mrb[0].mxu0
      %v5384 = vadd.f32 %v4206, %v5383
      %v5385 = vpop.f32.mrb[0].mxu0
      %v5386 = vadd.f32 %v4202, %v5385
      %v5387 = vpop.f32.mrb[0].mxu0
      %v5388 = vadd.f32 %v4206, %v5387
      %5389 = vmatprep.mubr.bf16.mxu0 %v3993
      %5390 = vmatmul.mubr.bf16.gmra.mrb[0].mxu0 %v3992
      %v5391 = vpop.f32.mrb[0].mxu0
      %v5392 = vadd.f32 %v4202, %v5391
      %v5393 = vpop.f32.mrb[0].mxu0
      %v5394 = vadd.f32 %v4206, %v5393
      %v5395 = vpop.f32.mrb[0].mxu0
      %v5396 = vadd.f32 %v4202, %v5395
      %v5397 = vpop.f32.mrb[0].mxu0
      %v5398 = vadd.f32 %v4206, %v5397
      %5399 = vdwg.mxu0
      %5400 = vmatprep.subr.bf16.mxu0 %v4896
      %5401 = vmatpush1.bf16.msra.mxu0 %v4895
      %5402 = vmatprep.subr.bf16.mxu0 %v4902
      %5403 = vmatpush1.bf16.msra.mxu0 %v4901
      %5404 = vmatprep.subr.bf16.mxu0 %v4908
      %5405 = vmatpush1.bf16.msra.mxu0 %v4907
      %5406 = vmatprep.subr.bf16.mxu0 %v4914
      %5407 = vmatpush1.bf16.msra.mxu0 %v4913
      %5408 = vmatprep.subr.bf16.mxu0 %v4920
      %5409 = vmatpush1.bf16.msra.mxu0 %v4919
      %5410 = vmatprep.subr.bf16.mxu0 %v4926
      %5411 = vmatpush1.bf16.msra.mxu0 %v4925
      %5412 = vmatprep.subr.bf16.mxu0 %v4932
      %5413 = vmatpush1.bf16.msra.mxu0 %v4931
      %5414 = vmatprep.subr.bf16.mxu0 %v4938
      %5415 = vmatpush1.bf16.msra.mxu0 %v4937
      %5416 = vmatprep.subr.bf16.mxu0 %v4944
      %5417 = vmatpush1.bf16.msra.mxu0 %v4943
      %5418 = vmatprep.subr.bf16.mxu0 %v4950
      %5419 = vmatpush1.bf16.msra.mxu0 %v4949
      %5420 = vmatprep.subr.bf16.mxu0 %v4956
      %5421 = vmatpush1.bf16.msra.mxu0 %v4955
      %5422 = vmatprep.subr.bf16.mxu0 %v4962
      %5423 = vmatpush1.bf16.msra.mxu0 %v4961
      %5424 = vmatprep.subr.bf16.mxu0 %v4968
      %5425 = vmatpush1.bf16.msra.mxu0 %v4967
      %5426 = vmatprep.subr.bf16.mxu0 %v4974
      %5427 = vmatpush1.bf16.msra.mxu0 %v4973
      %5428 = vmatprep.subr.bf16.mxu0 %v4980
      %5429 = vmatpush1.bf16.msra.mxu0 %v4979
      %5430 = vmatprep.subr.bf16.mxu0 %v4986
      %5431 = vmatpush1.bf16.msra.mxu0 %v4985
      %5432 = vmatprep.mubr.bf16.mxu0 %v3983
      %5433 = vmatmul.mubr.bf16.gmra.mrb[0].mxu0 %v3982
      %v5434 = vpop.f32.mrb[0].mxu0
      %v5435 = vadd.f32 %v5362, %v5434
      %v5436 = vpop.f32.mrb[0].mxu0
      %v5437 = vadd.f32 %v5364, %v5436
      %v5438 = vpop.f32.mrb[0].mxu0
      %v5439 = vadd.f32 %v5366, %v5438
      %v5440 = vpop.f32.mrb[0].mxu0
      %v5441 = vadd.f32 %v5368, %v5440
      %5442 = vmatprep.mubr.bf16.mxu0 %v3987
      %5443 = vmatmul.mubr.bf16.gmra.mrb[0].mxu0 %v3986
      %v5444 = vpop.f32.mrb[0].mxu0
      %v5445 = vadd.f32 %v5372, %v5444
      %v5446 = vpop.f32.mrb[0].mxu0
      %v5447 = vadd.f32 %v5374, %v5446
      %v5448 = vpop.f32.mrb[0].mxu0
      %v5449 = vadd.f32 %v5376, %v5448
      %v5450 = vpop.f32.mrb[0].mxu0
      %v5451 = vadd.f32 %v5378, %v5450
      %5452 = vmatprep.mubr.bf16.mxu0 %v3991
      %5453 = vmatmul.mubr.bf16.gmra.mrb[0].mxu0 %v3990
      %v5454 = vpop.f32.mrb[0].mxu0
      %v5455 = vadd.f32 %v5382, %v5454
      %v5456 = vpop.f32.mrb[0].mxu0
      %v5457 = vadd.f32 %v5384, %v5456
      %v5458 = vpop.f32.mrb[0].mxu0
      %v5459 = vadd.f32 %v5386, %v5458
      %v5460 = vpop.f32.mrb[0].mxu0
      %v5461 = vadd.f32 %v5388, %v5460
      %5462 = vmatprep.mubr.bf16.mxu0 %v3995
      %5463 = vmatmul.mubr.bf16.gmra.mrb[0].mxu0 %v3994
      %v5464 = vpop.f32.mrb[0].mxu0
      %v5465 = vadd.f32 %v5392, %v5464
      %v5466 = vpop.f32.mrb[0].mxu0
      %v5467 = vadd.f32 %v5394, %v5466
      %v5468 = vpop.f32.mrb[0].mxu0
      %v5469 = vadd.f32 %v5396, %v5468
      %v5470 = vpop.f32.mrb[0].mxu0
      %v5471 = vadd.f32 %v5398, %v5470
      %5472 = vdwg.mxu0
      %5473 = vmatprep.subr.bf16.mxu0 %v4802
      %5474 = vmatpush1.bf16.msra.mxu0 %v4801
      %5475 = vmatprep.subr.bf16.mxu0 %v4808
      %5476 = vmatpush1.bf16.msra.mxu0 %v4807
      %5477 = vmatprep.subr.bf16.mxu0 %v4814
      %5478 = vmatpush1.bf16.msra.mxu0 %v4813
      %5479 = vmatprep.subr.bf16.mxu0 %v4820
      %5480 = vmatpush1.bf16.msra.mxu0 %v4819
      %5481 = vmatprep.subr.bf16.mxu0 %v4826
      %5482 = vmatpush1.bf16.msra.mxu0 %v4825
      %5483 = vmatprep.subr.bf16.mxu0 %v4832
      %5484 = vmatpush1.bf16.msra.mxu0 %v4831
      %5485 = vmatprep.subr.bf16.mxu0 %v4838
      %5486 = vmatpush1.bf16.msra.mxu0 %v4837
      %5487 = vmatprep.subr.bf16.mxu0 %v4844
      %5488 = vmatpush1.bf16.msra.mxu0 %v4843
      %5489 = vmatprep.subr.bf16.mxu0 %v4850
      %5490 = vmatpush1.bf16.msra.mxu0 %v4849
      %5491 = vmatprep.subr.bf16.mxu0 %v4856
      %5492 = vmatpush1.bf16.msra.mxu0 %v4855
      %5493 = vmatprep.subr.bf16.mxu0 %v4862
      %5494 = vmatpush1.bf16.msra.mxu0 %v4861
      %5495 = vmatprep.subr.bf16.mxu0 %v4868
      %5496 = vmatpush1.bf16.msra.mxu0 %v4867
      %5497 = vmatprep.subr.bf16.mxu0 %v4874
      %5498 = vmatpush1.bf16.msra.mxu0 %v4873
      %5499 = vmatprep.subr.bf16.mxu0 %v4880
      %5500 = vmatpush1.bf16.msra.mxu0 %v4879
      %5501 = vmatprep.subr.bf16.mxu0 %v4886
      %5502 = vmatpush1.bf16.msra.mxu0 %v4885
      %5503 = vmatprep.subr.bf16.mxu0 %v4892
      %5504 = vmatpush1.bf16.msra.mxu0 %v4891
      %5505 = vmatprep.mubr.bf16.mxu0 %v3981
      %5506 = vmatmul.mubr.bf16.gmra.mrb[0].mxu0 %v3980
      %v5507 = vpop.f32.mrb[0].mxu0
      %v5508 = vadd.f32 %v4210, %v5507
      %v5509 = vpop.f32.mrb[0].mxu0
      %v5510 = vadd.f32 %v4214, %v5509
      %v5511 = vpop.f32.mrb[0].mxu0
      %v5512 = vadd.f32 %v4210, %v5511
      %v5513 = vpop.f32.mrb[0].mxu0
      %v5514 = vadd.f32 %v4214, %v5513
      %5515 = vmatprep.mubr.bf16.mxu0 %v3985
      %5516 = vmatmul.mubr.bf16.gmra.mrb[0].mxu0 %v3984
      %v5517 = vpop.f32.mrb[0].mxu0
      %v5518 = vadd.f32 %v4210, %v5517
      %v5519 = vpop.f32.mrb[0].mxu0
      %v5520 = vadd.f32 %v4214, %v5519
      %v5521 = vpop.f32.mrb[0].mxu0
      %v5522 = vadd.f32 %v4210, %v5521
      %v5523 = vpop.f32.mrb[0].mxu0
      %v5524 = vadd.f32 %v4214, %v5523
      %5525 = vmatprep.mubr.bf16.mxu0 %v3989
      %5526 = vmatmul.mubr.bf16.gmra.mrb[0].mxu0 %v3988
      %v5527 = vpop.f32.mrb[0].mxu0
      %v5528 = vadd.f32 %v4210, %v5527
      %v5529 = vpop.f32.mrb[0].mxu0
      %v5530 = vadd.f32 %v4214, %v5529
      %v5531 = vpop.f32.mrb[0].mxu0
      %v5532 = vadd.f32 %v4210, %v5531
      %v5533 = vpop.f32.mrb[0].mxu0
      %v5534 = vadd.f32 %v4214, %v5533
      %5535 = vmatprep.mubr.bf16.mxu0 %v3993
      %5536 = vmatmul.mubr.bf16.gmra.mrb[0].mxu0 %v3992
      %v5537 = vpop.f32.mrb[0].mxu0
      %v5538 = vadd.f32 %v4210, %v5537
      %v5539 = vpop.f32.mrb[0].mxu0
      %v5540 = vadd.f32 %v4214, %v5539
      %v5541 = vpop.f32.mrb[0].mxu0
      %v5542 = vadd.f32 %v4210, %v5541
      %v5543 = vpop.f32.mrb[0].mxu0
      %v5544 = vadd.f32 %v4214, %v5543
      %5545 = vdwg.mxu0
      %5546 = vmatprep.subr.bf16.mxu0 %v4898
      %5547 = vmatpush1.bf16.msra.mxu0 %v4897
      %5548 = vmatprep.subr.bf16.mxu0 %v4904
      %5549 = vmatpush1.bf16.msra.mxu0 %v4903
      %5550 = vmatprep.subr.bf16.mxu0 %v4910
      %5551 = vmatpush1.bf16.msra.mxu0 %v4909
      %5552 = vmatprep.subr.bf16.mxu0 %v4916
      %5553 = vmatpush1.bf16.msra.mxu0 %v4915
      %5554 = vmatprep.subr.bf16.mxu0 %v4922
      %5555 = vmatpush1.bf16.msra.mxu0 %v4921
      %5556 = vmatprep.subr.bf16.mxu0 %v4928
      %5557 = vmatpush1.bf16.msra.mxu0 %v4927
      %5558 = vmatprep.subr.bf16.mxu0 %v4934
      %5559 = vmatpush1.bf16.msra.mxu0 %v4933
      %5560 = vmatprep.subr.bf16.mxu0 %v4940
      %5561 = vmatpush1.bf16.msra.mxu0 %v4939
      %5562 = vmatprep.subr.bf16.mxu0 %v4946
      %5563 = vmatpush1.bf16.msra.mxu0 %v4945
      %5564 = vmatprep.subr.bf16.mxu0 %v4952
      %5565 = vmatpush1.bf16.msra.mxu0 %v4951
      %5566 = vmatprep.subr.bf16.mxu0 %v4958
      %5567 = vmatpush1.bf16.msra.mxu0 %v4957
      %5568 = vmatprep.subr.bf16.mxu0 %v4964
      %5569 = vmatpush1.bf16.msra.mxu0 %v4963
      %5570 = vmatprep.subr.bf16.mxu0 %v4970
      %5571 = vmatpush1.bf16.msra.mxu0 %v4969
      %5572 = vmatprep.subr.bf16.mxu0 %v4976
      %5573 = vmatpush1.bf16.msra.mxu0 %v4975
      %5574 = vmatprep.subr.bf16.mxu0 %v4982
      %5575 = vmatpush1.bf16.msra.mxu0 %v4981
      %5576 = vmatprep.subr.bf16.mxu0 %v4988
      %5577 = vmatpush1.bf16.msra.mxu0 %v4987
      %5578 = vmatprep.mubr.bf16.mxu0 %v3983
      %5579 = vmatmul.mubr.bf16.gmra.mrb[0].mxu0 %v3982
      %v5580 = vpop.f32.mrb[0].mxu0
      %v5581 = vadd.f32 %v5508, %v5580
      %v5582 = vpop.f32.mrb[0].mxu0
      %v5583 = vadd.f32 %v5510, %v5582
      %v5584 = vpop.f32.mrb[0].mxu0
      %v5585 = vadd.f32 %v5512, %v5584
      %v5586 = vpop.f32.mrb[0].mxu0
      %v5587 = vadd.f32 %v5514, %v5586
      %5588 = vmatprep.mubr.bf16.mxu0 %v3987
      %5589 = vmatmul.mubr.bf16.gmra.mrb[0].mxu0 %v3986
      %v5590 = vpop.f32.mrb[0].mxu0
      %v5591 = vadd.f32 %v5518, %v5590
      %v5592 = vpop.f32.mrb[0].mxu0
      %v5593 = vadd.f32 %v5520, %v5592
      %v5594 = vpop.f32.mrb[0].mxu0
      %v5595 = vadd.f32 %v5522, %v5594
      %v5596 = vpop.f32.mrb[0].mxu0
      %v5597 = vadd.f32 %v5524, %v5596
      %5598 = vmatprep.mubr.bf16.mxu0 %v3991
      %5599 = vmatmul.mubr.bf16.gmra.mrb[0].mxu0 %v3990
      %v5600 = vpop.f32.mrb[0].mxu0
      %v5601 = vadd.f32 %v5528, %v5600
      %v5602 = vpop.f32.mrb[0].mxu0
      %v5603 = vadd.f32 %v5530, %v5602
      %v5604 = vpop.f32.mrb[0].mxu0
      %v5605 = vadd.f32 %v5532, %v5604
      %v5606 = vpop.f32.mrb[0].mxu0
      %v5607 = vadd.f32 %v5534, %v5606
      %5608 = vmatprep.mubr.bf16.mxu0 %v3995
      %5609 = vmatmul.mubr.bf16.gmra.mrb[0].mxu0 %v3994
      %v5610 = vpop.f32.mrb[0].mxu0
      %v5611 = vadd.f32 %v5538, %v5610
      %v5612 = vpop.f32.mrb[0].mxu0
      %v5613 = vadd.f32 %v5540, %v5612
      %v5614 = vpop.f32.mrb[0].mxu0
      %v5615 = vadd.f32 %v5542, %v5614
      %v5616 = vpop.f32.mrb[0].mxu0
      %v5617 = vadd.f32 %v5544, %v5616
      %5618 = vdwg.mxu0
      %s5619 = scalar_lea.vmem %s233, 768
      %5620 = vst [vmem:[%s5619] sm:$0xff] %v5289
      %5621 = vst [vmem:[%s5619 + $0x8] sm:$0xff] %v5291
      %5622 = vst [vmem:[%s5619 + $0x10] sm:$0xff] %v5435
      %5623 = vst [vmem:[%s5619 + $0x18] sm:$0xff] %v5437
      %5624 = vst [vmem:[%s5619 + $0x20] sm:$0xff] %v5581
      %5625 = vst [vmem:[%s5619 + $0x28] sm:$0xff] %v5583
      %5626 = vst [vmem:[%s5619 + $0x30] sm:$0xff] %v5293
      %5627 = vst [vmem:[%s5619 + $0x38] sm:$0xff] %v5295
      %5628 = vst [vmem:[%s5619 + $0x40] sm:$0xff] %v5439
      %5629 = vst [vmem:[%s5619 + $0x48] sm:$0xff] %v5441
      %5630 = vst [vmem:[%s5619 + $0x50] sm:$0xff] %v5585
      %5631 = vst [vmem:[%s5619 + $0x58] sm:$0xff] %v5587
      %5632 = vst [vmem:[%s5619 + $0x60] sm:$0xff] %v5299
      %5633 = vst [vmem:[%s5619 + $0x68] sm:$0xff] %v5301
      %5634 = vst [vmem:[%s5619 + $0x70] sm:$0xff] %v5445
      %5635 = vst [vmem:[%s5619 + $0x78] sm:$0xff] %v5447
      %5636 = vst [vmem:[%s5619 + $0x80] sm:$0xff] %v5591
      %5637 = vst [vmem:[%s5619 + $0x88] sm:$0xff] %v5593
      %5638 = vst [vmem:[%s5619 + $0x90] sm:$0xff] %v5303
      %5639 = vst [vmem:[%s5619 + $0x98] sm:$0xff] %v5305
      %5640 = vst [vmem:[%s5619 + $0xa0] sm:$0xff] %v5449
      %5641 = vst [vmem:[%s5619 + $0xa8] sm:$0xff] %v5451
      %5642 = vst [vmem:[%s5619 + $0xb0] sm:$0xff] %v5595
      %5643 = vst [vmem:[%s5619 + $0xb8] sm:$0xff] %v5597
      %5644 = vst [vmem:[%s5619 + $0xc0] sm:$0xff] %v5309
      %5645 = vst [vmem:[%s5619 + $0xc8] sm:$0xff] %v5311
      %5646 = vst [vmem:[%s5619 + $0xd0] sm:$0xff] %v5455
      %5647 = vst [vmem:[%s5619 + $0xd8] sm:$0xff] %v5457
      %5648 = vst [vmem:[%s5619 + $0xe0] sm:$0xff] %v5601
      %5649 = vst [vmem:[%s5619 + $0xe8] sm:$0xff] %v5603
      %5650 = vst [vmem:[%s5619 + $0xf0] sm:$0xff] %v5313
      %5651 = vst [vmem:[%s5619 + $0xf8] sm:$0xff] %v5315
      %5652 = vst [vmem:[%s5619 + $0x100] sm:$0xff] %v5459
      %5653 = vst [vmem:[%s5619 + $0x108] sm:$0xff] %v5461
      %5654 = vst [vmem:[%s5619 + $0x110] sm:$0xff] %v5605
      %5655 = vst [vmem:[%s5619 + $0x118] sm:$0xff] %v5607
      %5656 = vst [vmem:[%s5619 + $0x120] sm:$0xff] %v5319
      %5657 = vst [vmem:[%s5619 + $0x128] sm:$0xff] %v5321
      %5658 = vst [vmem:[%s5619 + $0x130] sm:$0xff] %v5465
      %5659 = vst [vmem:[%s5619 + $0x138] sm:$0xff] %v5467
      %5660 = vst [vmem:[%s5619 + $0x140] sm:$0xff] %v5611
      %5661 = vst [vmem:[%s5619 + $0x148] sm:$0xff] %v5613
      %5662 = vst [vmem:[%s5619 + $0x150] sm:$0xff] %v5323
      %5663 = vst [vmem:[%s5619 + $0x158] sm:$0xff] %v5325
      %5664 = vst [vmem:[%s5619 + $0x160] sm:$0xff] %v5469
      %5665 = vst [vmem:[%s5619 + $0x168] sm:$0xff] %v5471
      %5666 = vst [vmem:[%s5619 + $0x170] sm:$0xff] %v5615
      %5667 = vst [vmem:[%s5619 + $0x178] sm:$0xff] %v5617
      %5668 = vst [vmem:[#allocation2] sm:$0xff] %v468
      %5669 = vst [vmem:[#allocation2 + $0x20] sm:$0xff] %v469
      %5670 = vst [vmem:[#allocation2 + $0x40] sm:$0xff] %v470
      %5671 = vst [vmem:[#allocation2 + $0x60] sm:$0xff] %v471
      %5672 = vst [vmem:[#allocation2 + $0x8] sm:$0xff] %v2243
      %5673 = vst [vmem:[#allocation2 + $0x28] sm:$0xff] %v2244
      %5674 = vst [vmem:[#allocation2 + $0x48] sm:$0xff] %v2245
      %5675 = vst [vmem:[#allocation2 + $0x68] sm:$0xff] %v2246
      %5676 = vst [vmem:[#allocation2 + $0x10] sm:$0xff] %v428
      %5677 = vst [vmem:[#allocation2 + $0x30] sm:$0xff] %v429
      %5678 = vst [vmem:[#allocation2 + $0x50] sm:$0xff] %v430
      %5679 = vst [vmem:[#allocation2 + $0x70] sm:$0xff] %v3974
      %v5681 = vrot.slane %v274, 5
      %v5682 = vrot.slane %v5681, 4
      %v5683 = vrot.slane %v275, 5
      %v5684 = vsel %vm2180, %v5682, %v5683
      %v5685 = vunpack.c.l.b16 %v5684
      %v5686 = vpack.c.b16 %v5685, %v2242
      %5688 = vst [vmem:[#allocation2 + $0x18] sm:$0xff] %v2222
      %5689 = vst [vmem:[#allocation2 + $0x38] sm:$0xff] %v2223
      %5690 = vst [vmem:[#allocation2 + $0x58] sm:$0xff] %v2224
      %5691 = vst [vmem:[#allocation2 + $0x78] sm:$0xff] %v5686
      %v5692 = vld [vmem:[#allocation2] sm:$0xff]
      %v5693 = vld [vmem:[#allocation2 + $0x8] sm:$0xff]
      %v5694 = vld [vmem:[#allocation2 + $0x10] sm:$0xff]
      %v5695 = vld [vmem:[#allocation2 + $0x18] sm:$0xff]
      %v5696 = vld [vmem:[#allocation2 + $0x20] sm:$0xff]
      %v5697 = vld [vmem:[#allocation2 + $0x28] sm:$0xff]
      %v5698 = vld [vmem:[#allocation2 + $0x30] sm:$0xff]
      %v5699 = vld [vmem:[#allocation2 + $0x38] sm:$0xff]
      %v5700 = vld [vmem:[#allocation2 + $0x40] sm:$0xff]
      %v5701 = vld [vmem:[#allocation2 + $0x48] sm:$0xff]
      %v5702 = vld [vmem:[#allocation2 + $0x50] sm:$0xff]
      %v5703 = vld [vmem:[#allocation2 + $0x58] sm:$0xff]
      %v5704 = vld [vmem:[#allocation2 + $0x60] sm:$0xff]
      %v5705 = vld [vmem:[#allocation2 + $0x68] sm:$0xff]
      %v5706 = vld [vmem:[#allocation2 + $0x70] sm:$0xff]
      %v5707 = vld [vmem:[#allocation2 + $0x78] sm:$0xff]
      %s5708 = scalar_lea.vmem %s218, 4608
      %v5709 = vld [vmem:[%s5708] sm:$0xff]
      %v5710 = vld [vmem:[%s5708 + $0x8] sm:$0xff]
      %v5711 = vld [vmem:[%s5708 + $0x10] sm:$0xff]
      %v5712 = vld [vmem:[%s5708 + $0x18] sm:$0xff]
      %v5713 = vld [vmem:[%s5708 + $0x20] sm:$0xff]
      %v5714 = vld [vmem:[%s5708 + $0x28] sm:$0xff]
      %v5715 = vld [vmem:[%s5708 + $0x30] sm:$0xff]
      %v5716 = vld [vmem:[%s5708 + $0x38] sm:$0xff]
      %v5717 = vld [vmem:[%s5708 + $0x40] sm:$0xff]
      %v5718 = vld [vmem:[%s5708 + $0x48] sm:$0xff]
      %v5719 = vld [vmem:[%s5708 + $0x50] sm:$0xff]
      %v5720 = vld [vmem:[%s5708 + $0x58] sm:$0xff]
      %v5721 = vld [vmem:[%s5708 + $0x60] sm:$0xff]
      %v5722 = vld [vmem:[%s5708 + $0x68] sm:$0xff]
      %v5723 = vld [vmem:[%s5708 + $0x70] sm:$0xff]
      %v5724 = vld [vmem:[%s5708 + $0x78] sm:$0xff]
      %v5725 = vld [vmem:[%s5708 + $0x80] sm:$0xff]
      %v5726 = vld [vmem:[%s5708 + $0x88] sm:$0xff]
      %v5727 = vld [vmem:[%s5708 + $0x90] sm:$0xff]
      %v5728 = vld [vmem:[%s5708 + $0x98] sm:$0xff]
      %v5729 = vld [vmem:[%s5708 + $0xa0] sm:$0xff]
      %v5730 = vld [vmem:[%s5708 + $0xa8] sm:$0xff]
      %v5731 = vld [vmem:[%s5708 + $0xb0] sm:$0xff]
      %v5732 = vld [vmem:[%s5708 + $0xb8] sm:$0xff]
      %v5733 = vld [vmem:[%s5708 + $0xc0] sm:$0xff]
      %v5734 = vld [vmem:[%s5708 + $0xc8] sm:$0xff]
      %v5735 = vld [vmem:[%s5708 + $0xd0] sm:$0xff]
      %v5736 = vld [vmem:[%s5708 + $0xd8] sm:$0xff]
      %v5737 = vld [vmem:[%s5708 + $0xe0] sm:$0xff]
      %v5738 = vld [vmem:[%s5708 + $0xe8] sm:$0xff]
      %v5739 = vld [vmem:[%s5708 + $0xf0] sm:$0xff]
      %v5740 = vld [vmem:[%s5708 + $0xf8] sm:$0xff]
      %v5741 = vld [vmem:[%s5708 + $0x100] sm:$0xff]
      %v5742 = vld [vmem:[%s5708 + $0x108] sm:$0xff]
      %v5743 = vld [vmem:[%s5708 + $0x110] sm:$0xff]
      %v5744 = vld [vmem:[%s5708 + $0x118] sm:$0xff]
      %v5745 = vld [vmem:[%s5708 + $0x120] sm:$0xff]
      %v5746 = vld [vmem:[%s5708 + $0x128] sm:$0xff]
      %v5747 = vld [vmem:[%s5708 + $0x130] sm:$0xff]
      %v5748 = vld [vmem:[%s5708 + $0x138] sm:$0xff]
      %v5749 = vld [vmem:[%s5708 + $0x140] sm:$0xff]
      %v5750 = vld [vmem:[%s5708 + $0x148] sm:$0xff]
      %v5751 = vld [vmem:[%s5708 + $0x150] sm:$0xff]
      %v5752 = vld [vmem:[%s5708 + $0x158] sm:$0xff]
      %v5753 = vld [vmem:[%s5708 + $0x160] sm:$0xff]
      %v5754 = vld [vmem:[%s5708 + $0x168] sm:$0xff]
      %v5755 = vld [vmem:[%s5708 + $0x170] sm:$0xff]
      %v5756 = vld [vmem:[%s5708 + $0x178] sm:$0xff]
      %v5757 = vld [vmem:[%s5708 + $0x180] sm:$0xff]
      %v5758 = vld [vmem:[%s5708 + $0x188] sm:$0xff]
      %v5759 = vld [vmem:[%s5708 + $0x190] sm:$0xff]
      %v5760 = vld [vmem:[%s5708 + $0x198] sm:$0xff]
      %v5761 = vld [vmem:[%s5708 + $0x1a0] sm:$0xff]
      %v5762 = vld [vmem:[%s5708 + $0x1a8] sm:$0xff]
      %v5763 = vld [vmem:[%s5708 + $0x1b0] sm:$0xff]
      %v5764 = vld [vmem:[%s5708 + $0x1b8] sm:$0xff]
      %v5765 = vld [vmem:[%s5708 + $0x1c0] sm:$0xff]
      %v5766 = vld [vmem:[%s5708 + $0x1c8] sm:$0xff]
      %v5767 = vld [vmem:[%s5708 + $0x1d0] sm:$0xff]
      %v5768 = vld [vmem:[%s5708 + $0x1d8] sm:$0xff]
      %v5769 = vld [vmem:[%s5708 + $0x1e0] sm:$0xff]
      %v5770 = vld [vmem:[%s5708 + $0x1e8] sm:$0xff]
      %v5771 = vld [vmem:[%s5708 + $0x1f0] sm:$0xff]
      %v5772 = vld [vmem:[%s5708 + $0x1f8] sm:$0xff]
      %v5773 = vld [vmem:[%s5708 + $0x200] sm:$0xff]
      %v5774 = vld [vmem:[%s5708 + $0x208] sm:$0xff]
      %v5775 = vld [vmem:[%s5708 + $0x210] sm:$0xff]
      %v5776 = vld [vmem:[%s5708 + $0x218] sm:$0xff]
      %v5777 = vld [vmem:[%s5708 + $0x220] sm:$0xff]
      %v5778 = vld [vmem:[%s5708 + $0x228] sm:$0xff]
      %v5779 = vld [vmem:[%s5708 + $0x230] sm:$0xff]
      %v5780 = vld [vmem:[%s5708 + $0x238] sm:$0xff]
      %v5781 = vld [vmem:[%s5708 + $0x240] sm:$0xff]
      %v5782 = vld [vmem:[%s5708 + $0x248] sm:$0xff]
      %v5783 = vld [vmem:[%s5708 + $0x250] sm:$0xff]
      %v5784 = vld [vmem:[%s5708 + $0x258] sm:$0xff]
      %v5785 = vld [vmem:[%s5708 + $0x260] sm:$0xff]
      %v5786 = vld [vmem:[%s5708 + $0x268] sm:$0xff]
      %v5787 = vld [vmem:[%s5708 + $0x270] sm:$0xff]
      %v5788 = vld [vmem:[%s5708 + $0x278] sm:$0xff]
      %v5789 = vld [vmem:[%s5708 + $0x280] sm:$0xff]
      %v5790 = vld [vmem:[%s5708 + $0x288] sm:$0xff]
      %v5791 = vld [vmem:[%s5708 + $0x290] sm:$0xff]
      %v5792 = vld [vmem:[%s5708 + $0x298] sm:$0xff]
      %v5793 = vld [vmem:[%s5708 + $0x2a0] sm:$0xff]
      %v5794 = vld [vmem:[%s5708 + $0x2a8] sm:$0xff]
      %v5795 = vld [vmem:[%s5708 + $0x2b0] sm:$0xff]
      %v5796 = vld [vmem:[%s5708 + $0x2b8] sm:$0xff]
      %v5797 = vld [vmem:[%s5708 + $0x2c0] sm:$0xff]
      %v5798 = vld [vmem:[%s5708 + $0x2c8] sm:$0xff]
      %v5799 = vld [vmem:[%s5708 + $0x2d0] sm:$0xff]
      %v5800 = vld [vmem:[%s5708 + $0x2d8] sm:$0xff]
      %v5801 = vld [vmem:[%s5708 + $0x2e0] sm:$0xff]
      %v5802 = vld [vmem:[%s5708 + $0x2e8] sm:$0xff]
      %v5803 = vld [vmem:[%s5708 + $0x2f0] sm:$0xff]
      %v5804 = vld [vmem:[%s5708 + $0x2f8] sm:$0xff]
      %v5805 = vld [vmem:[%s5708 + $0x300] sm:$0xff]
      %v5806 = vld [vmem:[%s5708 + $0x308] sm:$0xff]
      %v5807 = vld [vmem:[%s5708 + $0x310] sm:$0xff]
      %v5808 = vld [vmem:[%s5708 + $0x318] sm:$0xff]
      %v5809 = vld [vmem:[%s5708 + $0x320] sm:$0xff]
      %v5810 = vld [vmem:[%s5708 + $0x328] sm:$0xff]
      %v5811 = vld [vmem:[%s5708 + $0x330] sm:$0xff]
      %v5812 = vld [vmem:[%s5708 + $0x338] sm:$0xff]
      %v5813 = vld [vmem:[%s5708 + $0x340] sm:$0xff]
      %v5814 = vld [vmem:[%s5708 + $0x348] sm:$0xff]
      %v5815 = vld [vmem:[%s5708 + $0x350] sm:$0xff]
      %v5816 = vld [vmem:[%s5708 + $0x358] sm:$0xff]
      %v5817 = vld [vmem:[%s5708 + $0x360] sm:$0xff]
      %v5818 = vld [vmem:[%s5708 + $0x368] sm:$0xff]
      %v5819 = vld [vmem:[%s5708 + $0x370] sm:$0xff]
      %v5820 = vld [vmem:[%s5708 + $0x378] sm:$0xff]
      %v5821 = vld [vmem:[%s5708 + $0x380] sm:$0xff]
      %v5822 = vld [vmem:[%s5708 + $0x388] sm:$0xff]
      %v5823 = vld [vmem:[%s5708 + $0x390] sm:$0xff]
      %v5824 = vld [vmem:[%s5708 + $0x398] sm:$0xff]
      %v5825 = vld [vmem:[%s5708 + $0x3a0] sm:$0xff]
      %v5826 = vld [vmem:[%s5708 + $0x3a8] sm:$0xff]
      %v5827 = vld [vmem:[%s5708 + $0x3b0] sm:$0xff]
      %v5828 = vld [vmem:[%s5708 + $0x3b8] sm:$0xff]
      %v5829 = vld [vmem:[%s5708 + $0x3c0] sm:$0xff]
      %v5830 = vld [vmem:[%s5708 + $0x3c8] sm:$0xff]
      %v5831 = vld [vmem:[%s5708 + $0x3d0] sm:$0xff]
      %v5832 = vld [vmem:[%s5708 + $0x3d8] sm:$0xff]
      %v5833 = vld [vmem:[%s5708 + $0x3e0] sm:$0xff]
      %v5834 = vld [vmem:[%s5708 + $0x3e8] sm:$0xff]
      %v5835 = vld [vmem:[%s5708 + $0x3f0] sm:$0xff]
      %v5836 = vld [vmem:[%s5708 + $0x3f8] sm:$0xff]
      %v5837 = vld [vmem:[%s5708 + $0x400] sm:$0xff]
      %v5838 = vld [vmem:[%s5708 + $0x408] sm:$0xff]
      %v5839 = vld [vmem:[%s5708 + $0x410] sm:$0xff]
      %v5840 = vld [vmem:[%s5708 + $0x418] sm:$0xff]
      %v5841 = vld [vmem:[%s5708 + $0x420] sm:$0xff]
      %v5842 = vld [vmem:[%s5708 + $0x428] sm:$0xff]
      %v5843 = vld [vmem:[%s5708 + $0x430] sm:$0xff]
      %v5844 = vld [vmem:[%s5708 + $0x438] sm:$0xff]
      %v5845 = vld [vmem:[%s5708 + $0x440] sm:$0xff]
      %v5846 = vld [vmem:[%s5708 + $0x448] sm:$0xff]
      %v5847 = vld [vmem:[%s5708 + $0x450] sm:$0xff]
      %v5848 = vld [vmem:[%s5708 + $0x458] sm:$0xff]
      %v5849 = vld [vmem:[%s5708 + $0x460] sm:$0xff]
      %v5850 = vld [vmem:[%s5708 + $0x468] sm:$0xff]
      %v5851 = vld [vmem:[%s5708 + $0x470] sm:$0xff]
      %v5852 = vld [vmem:[%s5708 + $0x478] sm:$0xff]
      %v5853 = vld [vmem:[%s5708 + $0x480] sm:$0xff]
      %v5854 = vld [vmem:[%s5708 + $0x488] sm:$0xff]
      %v5855 = vld [vmem:[%s5708 + $0x490] sm:$0xff]
      %v5856 = vld [vmem:[%s5708 + $0x498] sm:$0xff]
      %v5857 = vld [vmem:[%s5708 + $0x4a0] sm:$0xff]
      %v5858 = vld [vmem:[%s5708 + $0x4a8] sm:$0xff]
      %v5859 = vld [vmem:[%s5708 + $0x4b0] sm:$0xff]
      %v5860 = vld [vmem:[%s5708 + $0x4b8] sm:$0xff]
      %v5861 = vld [vmem:[%s5708 + $0x4c0] sm:$0xff]
      %v5862 = vld [vmem:[%s5708 + $0x4c8] sm:$0xff]
      %v5863 = vld [vmem:[%s5708 + $0x4d0] sm:$0xff]
      %v5864 = vld [vmem:[%s5708 + $0x4d8] sm:$0xff]
      %v5865 = vld [vmem:[%s5708 + $0x4e0] sm:$0xff]
      %v5866 = vld [vmem:[%s5708 + $0x4e8] sm:$0xff]
      %v5867 = vld [vmem:[%s5708 + $0x4f0] sm:$0xff]
      %v5868 = vld [vmem:[%s5708 + $0x4f8] sm:$0xff]
      %v5869 = vld [vmem:[%s5708 + $0x500] sm:$0xff]
      %v5870 = vld [vmem:[%s5708 + $0x508] sm:$0xff]
      %v5871 = vld [vmem:[%s5708 + $0x510] sm:$0xff]
      %v5872 = vld [vmem:[%s5708 + $0x518] sm:$0xff]
      %v5873 = vld [vmem:[%s5708 + $0x520] sm:$0xff]
      %v5874 = vld [vmem:[%s5708 + $0x528] sm:$0xff]
      %v5875 = vld [vmem:[%s5708 + $0x530] sm:$0xff]
      %v5876 = vld [vmem:[%s5708 + $0x538] sm:$0xff]
      %v5877 = vld [vmem:[%s5708 + $0x540] sm:$0xff]
      %v5878 = vld [vmem:[%s5708 + $0x548] sm:$0xff]
      %v5879 = vld [vmem:[%s5708 + $0x550] sm:$0xff]
      %v5880 = vld [vmem:[%s5708 + $0x558] sm:$0xff]
      %v5881 = vld [vmem:[%s5708 + $0x560] sm:$0xff]
      %v5882 = vld [vmem:[%s5708 + $0x568] sm:$0xff]
      %v5883 = vld [vmem:[%s5708 + $0x570] sm:$0xff]
      %v5884 = vld [vmem:[%s5708 + $0x578] sm:$0xff]
      %v5885 = vld [vmem:[%s5708 + $0x580] sm:$0xff]
      %v5886 = vld [vmem:[%s5708 + $0x588] sm:$0xff]
      %v5887 = vld [vmem:[%s5708 + $0x590] sm:$0xff]
      %v5888 = vld [vmem:[%s5708 + $0x598] sm:$0xff]
      %v5889 = vld [vmem:[%s5708 + $0x5a0] sm:$0xff]
      %v5890 = vld [vmem:[%s5708 + $0x5a8] sm:$0xff]
      %v5891 = vld [vmem:[%s5708 + $0x5b0] sm:$0xff]
      %v5892 = vld [vmem:[%s5708 + $0x5b8] sm:$0xff]
      %v5893 = vld [vmem:[%s5708 + $0x5c0] sm:$0xff]
      %v5894 = vld [vmem:[%s5708 + $0x5c8] sm:$0xff]
      %v5895 = vld [vmem:[%s5708 + $0x5d0] sm:$0xff]
      %v5896 = vld [vmem:[%s5708 + $0x5d8] sm:$0xff]
      %v5897 = vld [vmem:[%s5708 + $0x5e0] sm:$0xff]
      %v5898 = vld [vmem:[%s5708 + $0x5e8] sm:$0xff]
      %v5899 = vld [vmem:[%s5708 + $0x5f0] sm:$0xff]
      %v5900 = vld [vmem:[%s5708 + $0x5f8] sm:$0xff]
      %v5901 = vld [vmem:[%s223] sm:$0x3f]
      %v5903 = vlaneseq
      %v5904 = vshrl.u32 %v5903, 7
      %v5905 = vsub.s32 0, %v5904
      %v5906 = vrot.slane %v5901, %v5905
      %v5907 = vlaneseq
      %v5908 = vshrl.u32 %v5907, 7
      %v5909 = vsub.s32 1, %v5908
      %v5910 = vrot.slane %v5901, %v5909
      %v5911 = vlaneseq
      %v5912 = vshrl.u32 %v5911, 7
      %v5913 = vsub.s32 2, %v5912
      %v5914 = vrot.slane %v5901, %v5913
      %v5915 = vlaneseq
      %v5916 = vshrl.u32 %v5915, 7
      %v5917 = vsub.s32 3, %v5916
      %v5918 = vrot.slane %v5901, %v5917
      %v5919 = vlaneseq
      %v5920 = vshrl.u32 %v5919, 7
      %v5921 = vsub.s32 4, %v5920
      %v5922 = vrot.slane %v5901, %v5921
      %v5923 = vlaneseq
      %v5924 = vshrl.u32 %v5923, 7
      %v5925 = vsub.s32 5, %v5924
      %v5926 = vrot.slane %v5901, %v5925
      %v6125 = vunpack.c.l.b16 %v5709
      %v6126 = vunpack.c.h.b16 %v5709
      %v6127 = vunpack.c.l.b16 %v5710
      %v6128 = vunpack.c.h.b16 %v5710
      %v6129 = vunpack.c.l.b16 %v5711
      %v6130 = vunpack.c.h.b16 %v5711
      %v6131 = vunpack.c.l.b16 %v5712
      %v6132 = vunpack.c.h.b16 %v5712
      %v6133 = vunpack.c.l.b16 %v5713
      %v6134 = vunpack.c.h.b16 %v5713
      %v6135 = vunpack.c.l.b16 %v5714
      %v6136 = vunpack.c.h.b16 %v5714
      %v6137 = vunpack.c.l.b16 %v5715
      %v6138 = vunpack.c.h.b16 %v5715
      %v6139 = vunpack.c.l.b16 %v5716
      %v6140 = vunpack.c.h.b16 %v5716
      %v6141 = vunpack.c.l.b16 %v5717
      %v6142 = vunpack.c.h.b16 %v5717
      %v6143 = vunpack.c.l.b16 %v5718
      %v6144 = vunpack.c.h.b16 %v5718
      %v6145 = vunpack.c.l.b16 %v5719
      %v6146 = vunpack.c.h.b16 %v5719
      %v6147 = vunpack.c.l.b16 %v5720
      %v6148 = vunpack.c.h.b16 %v5720
      %v6149 = vunpack.c.l.b16 %v5721
      %v6150 = vunpack.c.h.b16 %v5721
      %v6151 = vunpack.c.l.b16 %v5722
      %v6152 = vunpack.c.h.b16 %v5722
      %v6153 = vunpack.c.l.b16 %v5723
      %v6154 = vunpack.c.h.b16 %v5723
      %v6155 = vunpack.c.l.b16 %v5724
      %v6156 = vunpack.c.h.b16 %v5724
      %v6157 = vunpack.c.l.b16 %v5725
      %v6158 = vunpack.c.h.b16 %v5725
      %v6159 = vunpack.c.l.b16 %v5726
      %v6160 = vunpack.c.h.b16 %v5726
      %v6161 = vunpack.c.l.b16 %v5727
      %v6162 = vunpack.c.h.b16 %v5727
      %v6163 = vunpack.c.l.b16 %v5728
      %v6164 = vunpack.c.h.b16 %v5728
      %v6165 = vunpack.c.l.b16 %v5729
      %v6166 = vunpack.c.h.b16 %v5729
      %v6167 = vunpack.c.l.b16 %v5730
      %v6168 = vunpack.c.h.b16 %v5730
      %v6169 = vunpack.c.l.b16 %v5731
      %v6170 = vunpack.c.h.b16 %v5731
      %v6171 = vunpack.c.l.b16 %v5732
      %v6172 = vunpack.c.h.b16 %v5732
      %v6173 = vunpack.c.l.b16 %v5733
      %v6174 = vunpack.c.h.b16 %v5733
      %v6175 = vunpack.c.l.b16 %v5734
      %v6176 = vunpack.c.h.b16 %v5734
      %v6177 = vunpack.c.l.b16 %v5735
      %v6178 = vunpack.c.h.b16 %v5735
      %v6179 = vunpack.c.l.b16 %v5736
      %v6180 = vunpack.c.h.b16 %v5736
      %v6181 = vunpack.c.l.b16 %v5737
      %v6182 = vunpack.c.h.b16 %v5737
      %v6183 = vunpack.c.l.b16 %v5738
      %v6184 = vunpack.c.h.b16 %v5738
      %v6185 = vunpack.c.l.b16 %v5739
      %v6186 = vunpack.c.h.b16 %v5739
      %v6187 = vunpack.c.l.b16 %v5740
      %v6188 = vunpack.c.h.b16 %v5740
      %v6189 = vunpack.c.l.b16 %v5741
      %v6190 = vunpack.c.h.b16 %v5741
      %v6191 = vunpack.c.l.b16 %v5742
      %v6192 = vunpack.c.h.b16 %v5742
      %v6193 = vunpack.c.l.b16 %v5743
      %v6194 = vunpack.c.h.b16 %v5743
      %v6195 = vunpack.c.l.b16 %v5744
      %v6196 = vunpack.c.h.b16 %v5744
      %v6197 = vunpack.c.l.b16 %v5745
      %v6198 = vunpack.c.h.b16 %v5745
      %v6199 = vunpack.c.l.b16 %v5746
      %v6200 = vunpack.c.h.b16 %v5746
      %v6201 = vunpack.c.l.b16 %v5747
      %v6202 = vunpack.c.h.b16 %v5747
      %v6203 = vunpack.c.l.b16 %v5748
      %v6204 = vunpack.c.h.b16 %v5748
      %v6205 = vunpack.c.l.b16 %v5749
      %v6206 = vunpack.c.h.b16 %v5749
      %v6207 = vunpack.c.l.b16 %v5750
      %v6208 = vunpack.c.h.b16 %v5750
      %v6209 = vunpack.c.l.b16 %v5751
      %v6210 = vunpack.c.h.b16 %v5751
      %v6211 = vunpack.c.l.b16 %v5752
      %v6212 = vunpack.c.h.b16 %v5752
      %v6213 = vunpack.c.l.b16 %v5753
      %v6214 = vunpack.c.h.b16 %v5753
      %v6215 = vunpack.c.l.b16 %v5754
      %v6216 = vunpack.c.h.b16 %v5754
      %v6217 = vunpack.c.l.b16 %v5755
      %v6218 = vunpack.c.h.b16 %v5755
      %v6219 = vunpack.c.l.b16 %v5756
      %v6220 = vunpack.c.h.b16 %v5756
      %v6221 = vunpack.c.l.b16 %v5757
      %v6222 = vunpack.c.h.b16 %v5757
      %v6223 = vunpack.c.l.b16 %v5758
      %v6224 = vunpack.c.h.b16 %v5758
      %v6225 = vunpack.c.l.b16 %v5759
      %v6226 = vunpack.c.h.b16 %v5759
      %v6227 = vunpack.c.l.b16 %v5760
      %v6228 = vunpack.c.h.b16 %v5760
      %v6229 = vunpack.c.l.b16 %v5761
      %v6230 = vunpack.c.h.b16 %v5761
      %v6231 = vunpack.c.l.b16 %v5762
      %v6232 = vunpack.c.h.b16 %v5762
      %v6233 = vunpack.c.l.b16 %v5763
      %v6234 = vunpack.c.h.b16 %v5763
      %v6235 = vunpack.c.l.b16 %v5764
      %v6236 = vunpack.c.h.b16 %v5764
      %v6237 = vunpack.c.l.b16 %v5765
      %v6238 = vunpack.c.h.b16 %v5765
      %v6239 = vunpack.c.l.b16 %v5766
      %v6240 = vunpack.c.h.b16 %v5766
      %v6241 = vunpack.c.l.b16 %v5767
      %v6242 = vunpack.c.h.b16 %v5767
      %v6243 = vunpack.c.l.b16 %v5768
      %v6244 = vunpack.c.h.b16 %v5768
      %v6245 = vunpack.c.l.b16 %v5769
      %v6246 = vunpack.c.h.b16 %v5769
      %v6247 = vunpack.c.l.b16 %v5770
      %v6248 = vunpack.c.h.b16 %v5770
      %v6249 = vunpack.c.l.b16 %v5771
      %v6250 = vunpack.c.h.b16 %v5771
      %v6251 = vunpack.c.l.b16 %v5772
      %v6252 = vunpack.c.h.b16 %v5772
      %v6253 = vunpack.c.l.b16 %v5773
      %v6254 = vunpack.c.h.b16 %v5773
      %v6255 = vunpack.c.l.b16 %v5774
      %v6256 = vunpack.c.h.b16 %v5774
      %v6257 = vunpack.c.l.b16 %v5775
      %v6258 = vunpack.c.h.b16 %v5775
      %v6259 = vunpack.c.l.b16 %v5776
      %v6260 = vunpack.c.h.b16 %v5776
      %v6261 = vunpack.c.l.b16 %v5777
      %v6262 = vunpack.c.h.b16 %v5777
      %v6263 = vunpack.c.l.b16 %v5778
      %v6264 = vunpack.c.h.b16 %v5778
      %v6265 = vunpack.c.l.b16 %v5779
      %v6266 = vunpack.c.h.b16 %v5779
      %v6267 = vunpack.c.l.b16 %v5780
      %v6268 = vunpack.c.h.b16 %v5780
      %v6269 = vunpack.c.l.b16 %v5781
      %v6270 = vunpack.c.h.b16 %v5781
      %v6271 = vunpack.c.l.b16 %v5782
      %v6272 = vunpack.c.h.b16 %v5782
      %v6273 = vunpack.c.l.b16 %v5783
      %v6274 = vunpack.c.h.b16 %v5783
      %v6275 = vunpack.c.l.b16 %v5784
      %v6276 = vunpack.c.h.b16 %v5784
      %v6277 = vunpack.c.l.b16 %v5785
      %v6278 = vunpack.c.h.b16 %v5785
      %v6279 = vunpack.c.l.b16 %v5786
      %v6280 = vunpack.c.h.b16 %v5786
      %v6281 = vunpack.c.l.b16 %v5787
      %v6282 = vunpack.c.h.b16 %v5787
      %v6283 = vunpack.c.l.b16 %v5788
      %v6284 = vunpack.c.h.b16 %v5788
      %v6285 = vunpack.c.l.b16 %v5789
      %v6286 = vunpack.c.h.b16 %v5789
      %v6287 = vunpack.c.l.b16 %v5790
      %v6288 = vunpack.c.h.b16 %v5790
      %v6289 = vunpack.c.l.b16 %v5791
      %v6290 = vunpack.c.h.b16 %v5791
      %v6291 = vunpack.c.l.b16 %v5792
      %v6292 = vunpack.c.h.b16 %v5792
      %v6293 = vunpack.c.l.b16 %v5793
      %v6294 = vunpack.c.h.b16 %v5793
      %v6295 = vunpack.c.l.b16 %v5794
      %v6296 = vunpack.c.h.b16 %v5794
      %v6297 = vunpack.c.l.b16 %v5795
      %v6298 = vunpack.c.h.b16 %v5795
      %v6299 = vunpack.c.l.b16 %v5796
      %v6300 = vunpack.c.h.b16 %v5796
      %v6301 = vunpack.c.l.b16 %v5797
      %v6302 = vunpack.c.h.b16 %v5797
      %v6303 = vunpack.c.l.b16 %v5798
      %v6304 = vunpack.c.h.b16 %v5798
      %v6305 = vunpack.c.l.b16 %v5799
      %v6306 = vunpack.c.h.b16 %v5799
      %v6307 = vunpack.c.l.b16 %v5800
      %v6308 = vunpack.c.h.b16 %v5800
      %v6309 = vunpack.c.l.b16 %v5801
      %v6310 = vunpack.c.h.b16 %v5801
      %v6311 = vunpack.c.l.b16 %v5802
      %v6312 = vunpack.c.h.b16 %v5802
      %v6313 = vunpack.c.l.b16 %v5803
      %v6314 = vunpack.c.h.b16 %v5803
      %v6315 = vunpack.c.l.b16 %v5804
      %v6316 = vunpack.c.h.b16 %v5804
      %v6317 = vunpack.c.l.b16 %v5805
      %v6318 = vunpack.c.h.b16 %v5805
      %v6319 = vunpack.c.l.b16 %v5806
      %v6320 = vunpack.c.h.b16 %v5806
      %v6321 = vunpack.c.l.b16 %v5807
      %v6322 = vunpack.c.h.b16 %v5807
      %v6323 = vunpack.c.l.b16 %v5808
      %v6324 = vunpack.c.h.b16 %v5808
      %v6325 = vunpack.c.l.b16 %v5809
      %v6326 = vunpack.c.h.b16 %v5809
      %v6327 = vunpack.c.l.b16 %v5810
      %v6328 = vunpack.c.h.b16 %v5810
      %v6329 = vunpack.c.l.b16 %v5811
      %v6330 = vunpack.c.h.b16 %v5811
      %v6331 = vunpack.c.l.b16 %v5812
      %v6332 = vunpack.c.h.b16 %v5812
      %v6333 = vunpack.c.l.b16 %v5813
      %v6334 = vunpack.c.h.b16 %v5813
      %v6335 = vunpack.c.l.b16 %v5814
      %v6336 = vunpack.c.h.b16 %v5814
      %v6337 = vunpack.c.l.b16 %v5815
      %v6338 = vunpack.c.h.b16 %v5815
      %v6339 = vunpack.c.l.b16 %v5816
      %v6340 = vunpack.c.h.b16 %v5816
      %v6341 = vunpack.c.l.b16 %v5817
      %v6342 = vunpack.c.h.b16 %v5817
      %v6343 = vunpack.c.l.b16 %v5818
      %v6344 = vunpack.c.h.b16 %v5818
      %v6345 = vunpack.c.l.b16 %v5819
      %v6346 = vunpack.c.h.b16 %v5819
      %v6347 = vunpack.c.l.b16 %v5820
      %v6348 = vunpack.c.h.b16 %v5820
      %v6349 = vunpack.c.l.b16 %v5821
      %v6350 = vunpack.c.h.b16 %v5821
      %v6351 = vunpack.c.l.b16 %v5822
      %v6352 = vunpack.c.h.b16 %v5822
      %v6353 = vunpack.c.l.b16 %v5823
      %v6354 = vunpack.c.h.b16 %v5823
      %v6355 = vunpack.c.l.b16 %v5824
      %v6356 = vunpack.c.h.b16 %v5824
      %v6357 = vunpack.c.l.b16 %v5825
      %v6358 = vunpack.c.h.b16 %v5825
      %v6359 = vunpack.c.l.b16 %v5826
      %v6360 = vunpack.c.h.b16 %v5826
      %v6361 = vunpack.c.l.b16 %v5827
      %v6362 = vunpack.c.h.b16 %v5827
      %v6363 = vunpack.c.l.b16 %v5828
      %v6364 = vunpack.c.h.b16 %v5828
      %v6365 = vunpack.c.l.b16 %v5829
      %v6366 = vunpack.c.h.b16 %v5829
      %v6367 = vunpack.c.l.b16 %v5830
      %v6368 = vunpack.c.h.b16 %v5830
      %v6369 = vunpack.c.l.b16 %v5831
      %v6370 = vunpack.c.h.b16 %v5831
      %v6371 = vunpack.c.l.b16 %v5832
      %v6372 = vunpack.c.h.b16 %v5832
      %v6373 = vunpack.c.l.b16 %v5833
      %v6374 = vunpack.c.h.b16 %v5833
      %v6375 = vunpack.c.l.b16 %v5834
      %v6376 = vunpack.c.h.b16 %v5834
      %v6377 = vunpack.c.l.b16 %v5835
      %v6378 = vunpack.c.h.b16 %v5835
      %v6379 = vunpack.c.l.b16 %v5836
      %v6380 = vunpack.c.h.b16 %v5836
      %v6381 = vunpack.c.l.b16 %v5837
      %v6382 = vunpack.c.h.b16 %v5837
      %v6383 = vunpack.c.l.b16 %v5838
      %v6384 = vunpack.c.h.b16 %v5838
      %v6385 = vunpack.c.l.b16 %v5839
      %v6386 = vunpack.c.h.b16 %v5839
      %v6387 = vunpack.c.l.b16 %v5840
      %v6388 = vunpack.c.h.b16 %v5840
      %v6389 = vunpack.c.l.b16 %v5841
      %v6390 = vunpack.c.h.b16 %v5841
      %v6391 = vunpack.c.l.b16 %v5842
      %v6392 = vunpack.c.h.b16 %v5842
      %v6393 = vunpack.c.l.b16 %v5843
      %v6394 = vunpack.c.h.b16 %v5843
      %v6395 = vunpack.c.l.b16 %v5844
      %v6396 = vunpack.c.h.b16 %v5844
      %v6397 = vunpack.c.l.b16 %v5845
      %v6398 = vunpack.c.h.b16 %v5845
      %v6399 = vunpack.c.l.b16 %v5846
      %v6400 = vunpack.c.h.b16 %v5846
      %v6401 = vunpack.c.l.b16 %v5847
      %v6402 = vunpack.c.h.b16 %v5847
      %v6403 = vunpack.c.l.b16 %v5848
      %v6404 = vunpack.c.h.b16 %v5848
      %v6405 = vunpack.c.l.b16 %v5849
      %v6406 = vunpack.c.h.b16 %v5849
      %v6407 = vunpack.c.l.b16 %v5850
      %v6408 = vunpack.c.h.b16 %v5850
      %v6409 = vunpack.c.l.b16 %v5851
      %v6410 = vunpack.c.h.b16 %v5851
      %v6411 = vunpack.c.l.b16 %v5852
      %v6412 = vunpack.c.h.b16 %v5852
      %v6413 = vunpack.c.l.b16 %v5853
      %v6414 = vunpack.c.h.b16 %v5853
      %v6415 = vunpack.c.l.b16 %v5854
      %v6416 = vunpack.c.h.b16 %v5854
      %v6417 = vunpack.c.l.b16 %v5855
      %v6418 = vunpack.c.h.b16 %v5855
      %v6419 = vunpack.c.l.b16 %v5856
      %v6420 = vunpack.c.h.b16 %v5856
      %v6421 = vunpack.c.l.b16 %v5857
      %v6422 = vunpack.c.h.b16 %v5857
      %v6423 = vunpack.c.l.b16 %v5858
      %v6424 = vunpack.c.h.b16 %v5858
      %v6425 = vunpack.c.l.b16 %v5859
      %v6426 = vunpack.c.h.b16 %v5859
      %v6427 = vunpack.c.l.b16 %v5860
      %v6428 = vunpack.c.h.b16 %v5860
      %v6429 = vunpack.c.l.b16 %v5861
      %v6430 = vunpack.c.h.b16 %v5861
      %v6431 = vunpack.c.l.b16 %v5862
      %v6432 = vunpack.c.h.b16 %v5862
      %v6433 = vunpack.c.l.b16 %v5863
      %v6434 = vunpack.c.h.b16 %v5863
      %v6435 = vunpack.c.l.b16 %v5864
      %v6436 = vunpack.c.h.b16 %v5864
      %v6437 = vunpack.c.l.b16 %v5865
      %v6438 = vunpack.c.h.b16 %v5865
      %v6439 = vunpack.c.l.b16 %v5866
      %v6440 = vunpack.c.h.b16 %v5866
      %v6441 = vunpack.c.l.b16 %v5867
      %v6442 = vunpack.c.h.b16 %v5867
      %v6443 = vunpack.c.l.b16 %v5868
      %v6444 = vunpack.c.h.b16 %v5868
      %v6445 = vunpack.c.l.b16 %v5869
      %v6446 = vunpack.c.h.b16 %v5869
      %v6447 = vunpack.c.l.b16 %v5870
      %v6448 = vunpack.c.h.b16 %v5870
      %v6449 = vunpack.c.l.b16 %v5871
      %v6450 = vunpack.c.h.b16 %v5871
      %v6451 = vunpack.c.l.b16 %v5872
      %v6452 = vunpack.c.h.b16 %v5872
      %v6453 = vunpack.c.l.b16 %v5873
      %v6454 = vunpack.c.h.b16 %v5873
      %v6455 = vunpack.c.l.b16 %v5874
      %v6456 = vunpack.c.h.b16 %v5874
      %v6457 = vunpack.c.l.b16 %v5875
      %v6458 = vunpack.c.h.b16 %v5875
      %v6459 = vunpack.c.l.b16 %v5876
      %v6460 = vunpack.c.h.b16 %v5876
      %v6461 = vunpack.c.l.b16 %v5877
      %v6462 = vunpack.c.h.b16 %v5877
      %v6463 = vunpack.c.l.b16 %v5878
      %v6464 = vunpack.c.h.b16 %v5878
      %v6465 = vunpack.c.l.b16 %v5879
      %v6466 = vunpack.c.h.b16 %v5879
      %v6467 = vunpack.c.l.b16 %v5880
      %v6468 = vunpack.c.h.b16 %v5880
      %v6469 = vunpack.c.l.b16 %v5881
      %v6470 = vunpack.c.h.b16 %v5881
      %v6471 = vunpack.c.l.b16 %v5882
      %v6472 = vunpack.c.h.b16 %v5882
      %v6473 = vunpack.c.l.b16 %v5883
      %v6474 = vunpack.c.h.b16 %v5883
      %v6475 = vunpack.c.l.b16 %v5884
      %v6476 = vunpack.c.h.b16 %v5884
      %v6477 = vunpack.c.l.b16 %v5885
      %v6478 = vunpack.c.h.b16 %v5885
      %v6479 = vunpack.c.l.b16 %v5886
      %v6480 = vunpack.c.h.b16 %v5886
      %v6481 = vunpack.c.l.b16 %v5887
      %v6482 = vunpack.c.h.b16 %v5887
      %v6483 = vunpack.c.l.b16 %v5888
      %v6484 = vunpack.c.h.b16 %v5888
      %v6485 = vunpack.c.l.b16 %v5889
      %v6486 = vunpack.c.h.b16 %v5889
      %v6487 = vunpack.c.l.b16 %v5890
      %v6488 = vunpack.c.h.b16 %v5890
      %v6489 = vunpack.c.l.b16 %v5891
      %v6490 = vunpack.c.h.b16 %v5891
      %v6491 = vunpack.c.l.b16 %v5892
      %v6492 = vunpack.c.h.b16 %v5892
      %v6493 = vunpack.c.l.b16 %v5893
      %v6494 = vunpack.c.h.b16 %v5893
      %v6495 = vunpack.c.l.b16 %v5894
      %v6496 = vunpack.c.h.b16 %v5894
      %v6497 = vunpack.c.l.b16 %v5895
      %v6498 = vunpack.c.h.b16 %v5895
      %v6499 = vunpack.c.l.b16 %v5896
      %v6500 = vunpack.c.h.b16 %v5896
      %v6501 = vunpack.c.l.b16 %v5897
      %v6502 = vunpack.c.h.b16 %v5897
      %v6503 = vunpack.c.l.b16 %v5898
      %v6504 = vunpack.c.h.b16 %v5898
      %v6505 = vunpack.c.l.b16 %v5899
      %v6506 = vunpack.c.h.b16 %v5899
      %v6507 = vunpack.c.l.b16 %v5900
      %v6508 = vunpack.c.h.b16 %v5900
      %v6509 = vpack.c.b16 %v6131, %v6125
      %v6510 = vpack.c.b16 %v6132, %v6126
      %v6511 = vpack.c.b16 %v6133, %v6127
      %v6512 = vpack.c.b16 %v6134, %v6128
      %v6513 = vpack.c.b16 %v6135, %v6129
      %v6514 = vpack.c.b16 %v6136, %v6130
      %v6515 = vpack.c.b16 %v6143, %v6137
      %v6516 = vpack.c.b16 %v6144, %v6138
      %v6517 = vpack.c.b16 %v6145, %v6139
      %v6518 = vpack.c.b16 %v6146, %v6140
      %v6519 = vpack.c.b16 %v6147, %v6141
      %v6520 = vpack.c.b16 %v6148, %v6142
      %v6521 = vpack.c.b16 %v6155, %v6149
      %v6522 = vpack.c.b16 %v6156, %v6150
      %v6523 = vpack.c.b16 %v6157, %v6151
      %v6524 = vpack.c.b16 %v6158, %v6152
      %v6525 = vpack.c.b16 %v6159, %v6153
      %v6526 = vpack.c.b16 %v6160, %v6154
      %v6527 = vpack.c.b16 %v6167, %v6161
      %v6528 = vpack.c.b16 %v6168, %v6162
      %v6529 = vpack.c.b16 %v6169, %v6163
      %v6530 = vpack.c.b16 %v6170, %v6164
      %v6531 = vpack.c.b16 %v6171, %v6165
      %v6532 = vpack.c.b16 %v6172, %v6166
      %v6533 = vpack.c.b16 %v6179, %v6173
      %v6534 = vpack.c.b16 %v6180, %v6174
      %v6535 = vpack.c.b16 %v6181, %v6175
      %v6536 = vpack.c.b16 %v6182, %v6176
      %v6537 = vpack.c.b16 %v6183, %v6177
      %v6538 = vpack.c.b16 %v6184, %v6178
      %v6539 = vpack.c.b16 %v6191, %v6185
      %v6540 = vpack.c.b16 %v6192, %v6186
      %v6541 = vpack.c.b16 %v6193, %v6187
      %v6542 = vpack.c.b16 %v6194, %v6188
      %v6543 = vpack.c.b16 %v6195, %v6189
      %v6544 = vpack.c.b16 %v6196, %v6190
      %v6545 = vpack.c.b16 %v6203, %v6197
      %v6546 = vpack.c.b16 %v6204, %v6198
      %v6547 = vpack.c.b16 %v6205, %v6199
      %v6548 = vpack.c.b16 %v6206, %v6200
      %v6549 = vpack.c.b16 %v6207, %v6201
      %v6550 = vpack.c.b16 %v6208, %v6202
      %v6551 = vpack.c.b16 %v6215, %v6209
      %v6552 = vpack.c.b16 %v6216, %v6210
      %v6553 = vpack.c.b16 %v6217, %v6211
      %v6554 = vpack.c.b16 %v6218, %v6212
      %v6555 = vpack.c.b16 %v6219, %v6213
      %v6556 = vpack.c.b16 %v6220, %v6214
      %v6557 = vpack.c.b16 %v6227, %v6221
      %v6558 = vpack.c.b16 %v6228, %v6222
      %v6559 = vpack.c.b16 %v6229, %v6223
      %v6560 = vpack.c.b16 %v6230, %v6224
      %v6561 = vpack.c.b16 %v6231, %v6225
      %v6562 = vpack.c.b16 %v6232, %v6226
      %v6563 = vpack.c.b16 %v6239, %v6233
      %v6564 = vpack.c.b16 %v6240, %v6234
      %v6565 = vpack.c.b16 %v6241, %v6235
      %v6566 = vpack.c.b16 %v6242, %v6236
      %v6567 = vpack.c.b16 %v6243, %v6237
      %v6568 = vpack.c.b16 %v6244, %v6238
      %v6569 = vpack.c.b16 %v6251, %v6245
      %v6570 = vpack.c.b16 %v6252, %v6246
      %v6571 = vpack.c.b16 %v6253, %v6247
      %v6572 = vpack.c.b16 %v6254, %v6248
      %v6573 = vpack.c.b16 %v6255, %v6249
      %v6574 = vpack.c.b16 %v6256, %v6250
      %v6575 = vpack.c.b16 %v6263, %v6257
      %v6576 = vpack.c.b16 %v6264, %v6258
      %v6577 = vpack.c.b16 %v6265, %v6259
      %v6578 = vpack.c.b16 %v6266, %v6260
      %v6579 = vpack.c.b16 %v6267, %v6261
      %v6580 = vpack.c.b16 %v6268, %v6262
      %v6581 = vpack.c.b16 %v6275, %v6269
      %v6582 = vpack.c.b16 %v6276, %v6270
      %v6583 = vpack.c.b16 %v6277, %v6271
      %v6584 = vpack.c.b16 %v6278, %v6272
      %v6585 = vpack.c.b16 %v6279, %v6273
      %v6586 = vpack.c.b16 %v6280, %v6274
      %v6587 = vpack.c.b16 %v6287, %v6281
      %v6588 = vpack.c.b16 %v6288, %v6282
      %v6589 = vpack.c.b16 %v6289, %v6283
      %v6590 = vpack.c.b16 %v6290, %v6284
      %v6591 = vpack.c.b16 %v6291, %v6285
      %v6592 = vpack.c.b16 %v6292, %v6286
      %v6593 = vpack.c.b16 %v6299, %v6293
      %v6594 = vpack.c.b16 %v6300, %v6294
      %v6595 = vpack.c.b16 %v6301, %v6295
      %v6596 = vpack.c.b16 %v6302, %v6296
      %v6597 = vpack.c.b16 %v6303, %v6297
      %v6598 = vpack.c.b16 %v6304, %v6298
      %v6599 = vpack.c.b16 %v6311, %v6305
      %v6600 = vpack.c.b16 %v6312, %v6306
      %v6601 = vpack.c.b16 %v6313, %v6307
      %v6602 = vpack.c.b16 %v6314, %v6308
      %v6603 = vpack.c.b16 %v6315, %v6309
      %v6604 = vpack.c.b16 %v6316, %v6310
      %v6605 = vpack.c.b16 %v6323, %v6317
      %v6606 = vpack.c.b16 %v6324, %v6318
      %v6607 = vpack.c.b16 %v6325, %v6319
      %v6608 = vpack.c.b16 %v6326, %v6320
      %v6609 = vpack.c.b16 %v6327, %v6321
      %v6610 = vpack.c.b16 %v6328, %v6322
      %v6611 = vpack.c.b16 %v6335, %v6329
      %v6612 = vpack.c.b16 %v6336, %v6330
      %v6613 = vpack.c.b16 %v6337, %v6331
      %v6614 = vpack.c.b16 %v6338, %v6332
      %v6615 = vpack.c.b16 %v6339, %v6333
      %v6616 = vpack.c.b16 %v6340, %v6334
      %v6617 = vpack.c.b16 %v6347, %v6341
      %v6618 = vpack.c.b16 %v6348, %v6342
      %v6619 = vpack.c.b16 %v6349, %v6343
      %v6620 = vpack.c.b16 %v6350, %v6344
      %v6621 = vpack.c.b16 %v6351, %v6345
      %v6622 = vpack.c.b16 %v6352, %v6346
      %v6623 = vpack.c.b16 %v6359, %v6353
      %v6624 = vpack.c.b16 %v6360, %v6354
      %v6625 = vpack.c.b16 %v6361, %v6355
      %v6626 = vpack.c.b16 %v6362, %v6356
      %v6627 = vpack.c.b16 %v6363, %v6357
      %v6628 = vpack.c.b16 %v6364, %v6358
      %v6629 = vpack.c.b16 %v6371, %v6365
      %v6630 = vpack.c.b16 %v6372, %v6366
      %v6631 = vpack.c.b16 %v6373, %v6367
      %v6632 = vpack.c.b16 %v6374, %v6368
      %v6633 = vpack.c.b16 %v6375, %v6369
      %v6634 = vpack.c.b16 %v6376, %v6370
      %v6635 = vpack.c.b16 %v6383, %v6377
      %v6636 = vpack.c.b16 %v6384, %v6378
      %v6637 = vpack.c.b16 %v6385, %v6379
      %v6638 = vpack.c.b16 %v6386, %v6380
      %v6639 = vpack.c.b16 %v6387, %v6381
      %v6640 = vpack.c.b16 %v6388, %v6382
      %v6641 = vpack.c.b16 %v6395, %v6389
      %v6642 = vpack.c.b16 %v6396, %v6390
      %v6643 = vpack.c.b16 %v6397, %v6391
      %v6644 = vpack.c.b16 %v6398, %v6392
      %v6645 = vpack.c.b16 %v6399, %v6393
      %v6646 = vpack.c.b16 %v6400, %v6394
      %v6647 = vpack.c.b16 %v6407, %v6401
      %v6648 = vpack.c.b16 %v6408, %v6402
      %v6649 = vpack.c.b16 %v6409, %v6403
      %v6650 = vpack.c.b16 %v6410, %v6404
      %v6651 = vpack.c.b16 %v6411, %v6405
      %v6652 = vpack.c.b16 %v6412, %v6406
      %v6653 = vpack.c.b16 %v6419, %v6413
      %v6654 = vpack.c.b16 %v6420, %v6414
      %v6655 = vpack.c.b16 %v6421, %v6415
      %v6656 = vpack.c.b16 %v6422, %v6416
      %v6657 = vpack.c.b16 %v6423, %v6417
      %v6658 = vpack.c.b16 %v6424, %v6418
      %v6659 = vpack.c.b16 %v6431, %v6425
      %v6660 = vpack.c.b16 %v6432, %v6426
      %v6661 = vpack.c.b16 %v6433, %v6427
      %v6662 = vpack.c.b16 %v6434, %v6428
      %v6663 = vpack.c.b16 %v6435, %v6429
      %v6664 = vpack.c.b16 %v6436, %v6430
      %v6665 = vpack.c.b16 %v6443, %v6437
      %v6666 = vpack.c.b16 %v6444, %v6438
      %v6667 = vpack.c.b16 %v6445, %v6439
      %v6668 = vpack.c.b16 %v6446, %v6440
      %v6669 = vpack.c.b16 %v6447, %v6441
      %v6670 = vpack.c.b16 %v6448, %v6442
      %v6671 = vpack.c.b16 %v6455, %v6449
      %v6672 = vpack.c.b16 %v6456, %v6450
      %v6673 = vpack.c.b16 %v6457, %v6451
      %v6674 = vpack.c.b16 %v6458, %v6452
      %v6675 = vpack.c.b16 %v6459, %v6453
      %v6676 = vpack.c.b16 %v6460, %v6454
      %v6677 = vpack.c.b16 %v6467, %v6461
      %v6678 = vpack.c.b16 %v6468, %v6462
      %v6679 = vpack.c.b16 %v6469, %v6463
      %v6680 = vpack.c.b16 %v6470, %v6464
      %v6681 = vpack.c.b16 %v6471, %v6465
      %v6682 = vpack.c.b16 %v6472, %v6466
      %v6683 = vpack.c.b16 %v6479, %v6473
      %v6684 = vpack.c.b16 %v6480, %v6474
      %v6685 = vpack.c.b16 %v6481, %v6475
      %v6686 = vpack.c.b16 %v6482, %v6476
      %v6687 = vpack.c.b16 %v6483, %v6477
      %v6688 = vpack.c.b16 %v6484, %v6478
      %v6689 = vpack.c.b16 %v6491, %v6485
      %v6690 = vpack.c.b16 %v6492, %v6486
      %v6691 = vpack.c.b16 %v6493, %v6487
      %v6692 = vpack.c.b16 %v6494, %v6488
      %v6693 = vpack.c.b16 %v6495, %v6489
      %v6694 = vpack.c.b16 %v6496, %v6490
      %v6695 = vpack.c.b16 %v6503, %v6497
      %v6696 = vpack.c.b16 %v6504, %v6498
      %v6697 = vpack.c.b16 %v6505, %v6499
      %v6698 = vpack.c.b16 %v6506, %v6500
      %v6699 = vpack.c.b16 %v6507, %v6501
      %v6700 = vpack.c.b16 %v6508, %v6502
      %6893 = vmatprep.subr.bf16.mxu0 %v6510
      %6894 = vmatpush1.bf16.msra.mxu0 %v6509
      %6895 = vmatprep.subr.bf16.mxu0 %v6516
      %6896 = vmatpush1.bf16.msra.mxu0 %v6515
      %6897 = vmatprep.subr.bf16.mxu0 %v6522
      %6898 = vmatpush1.bf16.msra.mxu0 %v6521
      %6899 = vmatprep.subr.bf16.mxu0 %v6528
      %6900 = vmatpush1.bf16.msra.mxu0 %v6527
      %6901 = vmatprep.subr.bf16.mxu0 %v6534
      %6902 = vmatpush1.bf16.msra.mxu0 %v6533
      %6903 = vmatprep.subr.bf16.mxu0 %v6540
      %6904 = vmatpush1.bf16.msra.mxu0 %v6539
      %6905 = vmatprep.subr.bf16.mxu0 %v6546
      %6906 = vmatpush1.bf16.msra.mxu0 %v6545
      %6907 = vmatprep.subr.bf16.mxu0 %v6552
      %6908 = vmatpush1.bf16.msra.mxu0 %v6551
      %6909 = vmatprep.subr.bf16.mxu0 %v6558
      %6910 = vmatpush1.bf16.msra.mxu0 %v6557
      %6911 = vmatprep.subr.bf16.mxu0 %v6564
      %6912 = vmatpush1.bf16.msra.mxu0 %v6563
      %6913 = vmatprep.subr.bf16.mxu0 %v6570
      %6914 = vmatpush1.bf16.msra.mxu0 %v6569
      %6915 = vmatprep.subr.bf16.mxu0 %v6576
      %6916 = vmatpush1.bf16.msra.mxu0 %v6575
      %6917 = vmatprep.subr.bf16.mxu0 %v6582
      %6918 = vmatpush1.bf16.msra.mxu0 %v6581
      %6919 = vmatprep.subr.bf16.mxu0 %v6588
      %6920 = vmatpush1.bf16.msra.mxu0 %v6587
      %6921 = vmatprep.subr.bf16.mxu0 %v6594
      %6922 = vmatpush1.bf16.msra.mxu0 %v6593
      %6923 = vmatprep.subr.bf16.mxu0 %v6600
      %6924 = vmatpush1.bf16.msra.mxu0 %v6599
      %6925 = vmatprep.mubr.bf16.mxu0 %v5693
      %6926 = vmatmul.mubr.bf16.gmra.mrb[0].mxu0 %v5692
      %v6927 = vpop.f32.mrb[0].mxu0
      %v6928 = vadd.f32 %v5906, %v6927
      %v6929 = vpop.f32.mrb[0].mxu0
      %v6930 = vadd.f32 %v5910, %v6929
      %v6931 = vpop.f32.mrb[0].mxu0
      %v6932 = vadd.f32 %v5906, %v6931
      %v6933 = vpop.f32.mrb[0].mxu0
      %v6934 = vadd.f32 %v5910, %v6933
      %6935 = vmatprep.mubr.bf16.mxu0 %v5697
      %6936 = vmatmul.mubr.bf16.gmra.mrb[0].mxu0 %v5696
      %v6937 = vpop.f32.mrb[0].mxu0
      %v6938 = vadd.f32 %v5906, %v6937
      %v6939 = vpop.f32.mrb[0].mxu0
      %v6940 = vadd.f32 %v5910, %v6939
      %v6941 = vpop.f32.mrb[0].mxu0
      %v6942 = vadd.f32 %v5906, %v6941
      %v6943 = vpop.f32.mrb[0].mxu0
      %v6944 = vadd.f32 %v5910, %v6943
      %6945 = vmatprep.mubr.bf16.mxu0 %v5701
      %6946 = vmatmul.mubr.bf16.gmra.mrb[0].mxu0 %v5700
      %v6947 = vpop.f32.mrb[0].mxu0
      %v6948 = vadd.f32 %v5906, %v6947
      %v6949 = vpop.f32.mrb[0].mxu0
      %v6950 = vadd.f32 %v5910, %v6949
      %v6951 = vpop.f32.mrb[0].mxu0
      %v6952 = vadd.f32 %v5906, %v6951
      %v6953 = vpop.f32.mrb[0].mxu0
      %v6954 = vadd.f32 %v5910, %v6953
      %6955 = vmatprep.mubr.bf16.mxu0 %v5705
      %6956 = vmatmul.mubr.bf16.gmra.mrb[0].mxu0 %v5704
      %v6957 = vpop.f32.mrb[0].mxu0
      %v6958 = vadd.f32 %v5906, %v6957
      %v6959 = vpop.f32.mrb[0].mxu0
      %v6960 = vadd.f32 %v5910, %v6959
      %v6961 = vpop.f32.mrb[0].mxu0
      %v6962 = vadd.f32 %v5906, %v6961
      %v6963 = vpop.f32.mrb[0].mxu0
      %v6964 = vadd.f32 %v5910, %v6963
      %6965 = vdwg.mxu0
      %6966 = vmatprep.subr.bf16.mxu0 %v6606
      %6967 = vmatpush1.bf16.msra.mxu0 %v6605
      %6968 = vmatprep.subr.bf16.mxu0 %v6612
      %6969 = vmatpush1.bf16.msra.mxu0 %v6611
      %6970 = vmatprep.subr.bf16.mxu0 %v6618
      %6971 = vmatpush1.bf16.msra.mxu0 %v6617
      %6972 = vmatprep.subr.bf16.mxu0 %v6624
      %6973 = vmatpush1.bf16.msra.mxu0 %v6623
      %6974 = vmatprep.subr.bf16.mxu0 %v6630
      %6975 = vmatpush1.bf16.msra.mxu0 %v6629
      %6976 = vmatprep.subr.bf16.mxu0 %v6636
      %6977 = vmatpush1.bf16.msra.mxu0 %v6635
      %6978 = vmatprep.subr.bf16.mxu0 %v6642
      %6979 = vmatpush1.bf16.msra.mxu0 %v6641
      %6980 = vmatprep.subr.bf16.mxu0 %v6648
      %6981 = vmatpush1.bf16.msra.mxu0 %v6647
      %6982 = vmatprep.subr.bf16.mxu0 %v6654
      %6983 = vmatpush1.bf16.msra.mxu0 %v6653
      %6984 = vmatprep.subr.bf16.mxu0 %v6660
      %6985 = vmatpush1.bf16.msra.mxu0 %v6659
      %6986 = vmatprep.subr.bf16.mxu0 %v6666
      %6987 = vmatpush1.bf16.msra.mxu0 %v6665
      %6988 = vmatprep.subr.bf16.mxu0 %v6672
      %6989 = vmatpush1.bf16.msra.mxu0 %v6671
      %6990 = vmatprep.subr.bf16.mxu0 %v6678
      %6991 = vmatpush1.bf16.msra.mxu0 %v6677
      %6992 = vmatprep.subr.bf16.mxu0 %v6684
      %6993 = vmatpush1.bf16.msra.mxu0 %v6683
      %6994 = vmatprep.subr.bf16.mxu0 %v6690
      %6995 = vmatpush1.bf16.msra.mxu0 %v6689
      %6996 = vmatprep.subr.bf16.mxu0 %v6696
      %6997 = vmatpush1.bf16.msra.mxu0 %v6695
      %6998 = vmatprep.mubr.bf16.mxu0 %v5695
      %6999 = vmatmul.mubr.bf16.gmra.mrb[0].mxu0 %v5694
      %v7000 = vpop.f32.mrb[0].mxu0
      %v7001 = vadd.f32 %v6928, %v7000
      %v7002 = vpop.f32.mrb[0].mxu0
      %v7003 = vadd.f32 %v6930, %v7002
      %v7004 = vpop.f32.mrb[0].mxu0
      %v7005 = vadd.f32 %v6932, %v7004
      %v7006 = vpop.f32.mrb[0].mxu0
      %v7007 = vadd.f32 %v6934, %v7006
      %7008 = vmatprep.mubr.bf16.mxu0 %v5699
      %7009 = vmatmul.mubr.bf16.gmra.mrb[0].mxu0 %v5698
      %v7010 = vpop.f32.mrb[0].mxu0
      %v7011 = vadd.f32 %v6938, %v7010
      %v7012 = vpop.f32.mrb[0].mxu0
      %v7013 = vadd.f32 %v6940, %v7012
      %v7014 = vpop.f32.mrb[0].mxu0
      %v7015 = vadd.f32 %v6942, %v7014
      %v7016 = vpop.f32.mrb[0].mxu0
      %v7017 = vadd.f32 %v6944, %v7016
      %7018 = vmatprep.mubr.bf16.mxu0 %v5703
      %7019 = vmatmul.mubr.bf16.gmra.mrb[0].mxu0 %v5702
      %v7020 = vpop.f32.mrb[0].mxu0
      %v7021 = vadd.f32 %v6948, %v7020
      %v7022 = vpop.f32.mrb[0].mxu0
      %v7023 = vadd.f32 %v6950, %v7022
      %v7024 = vpop.f32.mrb[0].mxu0
      %v7025 = vadd.f32 %v6952, %v7024
      %v7026 = vpop.f32.mrb[0].mxu0
      %v7027 = vadd.f32 %v6954, %v7026
      %7028 = vmatprep.mubr.bf16.mxu0 %v5707
      %7029 = vmatmul.mubr.bf16.gmra.mrb[0].mxu0 %v5706
      %v7030 = vpop.f32.mrb[0].mxu0
      %v7031 = vadd.f32 %v6958, %v7030
      %v7032 = vpop.f32.mrb[0].mxu0
      %v7033 = vadd.f32 %v6960, %v7032
      %v7034 = vpop.f32.mrb[0].mxu0
      %v7035 = vadd.f32 %v6962, %v7034
      %v7036 = vpop.f32.mrb[0].mxu0
      %v7037 = vadd.f32 %v6964, %v7036
      %7038 = vdwg.mxu0
      %7039 = vmatprep.subr.bf16.mxu0 %v6512
      %7040 = vmatpush1.bf16.msra.mxu0 %v6511
      %7041 = vmatprep.subr.bf16.mxu0 %v6518
      %7042 = vmatpush1.bf16.msra.mxu0 %v6517
      %7043 = vmatprep.subr.bf16.mxu0 %v6524
      %7044 = vmatpush1.bf16.msra.mxu0 %v6523
      %7045 = vmatprep.subr.bf16.mxu0 %v6530
      %7046 = vmatpush1.bf16.msra.mxu0 %v6529
      %7047 = vmatprep.subr.bf16.mxu0 %v6536
      %7048 = vmatpush1.bf16.msra.mxu0 %v6535
      %7049 = vmatprep.subr.bf16.mxu0 %v6542
      %7050 = vmatpush1.bf16.msra.mxu0 %v6541
      %7051 = vmatprep.subr.bf16.mxu0 %v6548
      %7052 = vmatpush1.bf16.msra.mxu0 %v6547
      %7053 = vmatprep.subr.bf16.mxu0 %v6554
      %7054 = vmatpush1.bf16.msra.mxu0 %v6553
      %7055 = vmatprep.subr.bf16.mxu0 %v6560
      %7056 = vmatpush1.bf16.msra.mxu0 %v6559
      %7057 = vmatprep.subr.bf16.mxu0 %v6566
      %7058 = vmatpush1.bf16.msra.mxu0 %v6565
      %7059 = vmatprep.subr.bf16.mxu0 %v6572
      %7060 = vmatpush1.bf16.msra.mxu0 %v6571
      %7061 = vmatprep.subr.bf16.mxu0 %v6578
      %7062 = vmatpush1.bf16.msra.mxu0 %v6577
      %7063 = vmatprep.subr.bf16.mxu0 %v6584
      %7064 = vmatpush1.bf16.msra.mxu0 %v6583
      %7065 = vmatprep.subr.bf16.mxu0 %v6590
      %7066 = vmatpush1.bf16.msra.mxu0 %v6589
      %7067 = vmatprep.subr.bf16.mxu0 %v6596
      %7068 = vmatpush1.bf16.msra.mxu0 %v6595
      %7069 = vmatprep.subr.bf16.mxu0 %v6602
      %7070 = vmatpush1.bf16.msra.mxu0 %v6601
      %7071 = vmatprep.mubr.bf16.mxu0 %v5693
      %7072 = vmatmul.mubr.bf16.gmra.mrb[0].mxu0 %v5692
      %v7073 = vpop.f32.mrb[0].mxu0
      %v7074 = vadd.f32 %v5914, %v7073
      %v7075 = vpop.f32.mrb[0].mxu0
      %v7076 = vadd.f32 %v5918, %v7075
      %v7077 = vpop.f32.mrb[0].mxu0
      %v7078 = vadd.f32 %v5914, %v7077
      %v7079 = vpop.f32.mrb[0].mxu0
      %v7080 = vadd.f32 %v5918, %v7079
      %7081 = vmatprep.mubr.bf16.mxu0 %v5697
      %7082 = vmatmul.mubr.bf16.gmra.mrb[0].mxu0 %v5696
      %v7083 = vpop.f32.mrb[0].mxu0
      %v7084 = vadd.f32 %v5914, %v7083
      %v7085 = vpop.f32.mrb[0].mxu0
      %v7086 = vadd.f32 %v5918, %v7085
      %v7087 = vpop.f32.mrb[0].mxu0
      %v7088 = vadd.f32 %v5914, %v7087
      %v7089 = vpop.f32.mrb[0].mxu0
      %v7090 = vadd.f32 %v5918, %v7089
      %7091 = vmatprep.mubr.bf16.mxu0 %v5701
      %7092 = vmatmul.mubr.bf16.gmra.mrb[0].mxu0 %v5700
      %v7093 = vpop.f32.mrb[0].mxu0
      %v7094 = vadd.f32 %v5914, %v7093
      %v7095 = vpop.f32.mrb[0].mxu0
      %v7096 = vadd.f32 %v5918, %v7095
      %v7097 = vpop.f32.mrb[0].mxu0
      %v7098 = vadd.f32 %v5914, %v7097
      %v7099 = vpop.f32.mrb[0].mxu0
      %v7100 = vadd.f32 %v5918, %v7099
      %7101 = vmatprep.mubr.bf16.mxu0 %v5705
      %7102 = vmatmul.mubr.bf16.gmra.mrb[0].mxu0 %v5704
      %v7103 = vpop.f32.mrb[0].mxu0
      %v7104 = vadd.f32 %v5914, %v7103
      %v7105 = vpop.f32.mrb[0].mxu0
      %v7106 = vadd.f32 %v5918, %v7105
      %v7107 = vpop.f32.mrb[0].mxu0
      %v7108 = vadd.f32 %v5914, %v7107
      %v7109 = vpop.f32.mrb[0].mxu0
      %v7110 = vadd.f32 %v5918, %v7109
      %7111 = vdwg.mxu0
      %7112 = vmatprep.subr.bf16.mxu0 %v6608
      %7113 = vmatpush1.bf16.msra.mxu0 %v6607
      %7114 = vmatprep.subr.bf16.mxu0 %v6614
      %7115 = vmatpush1.bf16.msra.mxu0 %v6613
      %7116 = vmatprep.subr.bf16.mxu0 %v6620
      %7117 = vmatpush1.bf16.msra.mxu0 %v6619
      %7118 = vmatprep.subr.bf16.mxu0 %v6626
      %7119 = vmatpush1.bf16.msra.mxu0 %v6625
      %7120 = vmatprep.subr.bf16.mxu0 %v6632
      %7121 = vmatpush1.bf16.msra.mxu0 %v6631
      %7122 = vmatprep.subr.bf16.mxu0 %v6638
      %7123 = vmatpush1.bf16.msra.mxu0 %v6637
      %7124 = vmatprep.subr.bf16.mxu0 %v6644
      %7125 = vmatpush1.bf16.msra.mxu0 %v6643
      %7126 = vmatprep.subr.bf16.mxu0 %v6650
      %7127 = vmatpush1.bf16.msra.mxu0 %v6649
      %7128 = vmatprep.subr.bf16.mxu0 %v6656
      %7129 = vmatpush1.bf16.msra.mxu0 %v6655
      %7130 = vmatprep.subr.bf16.mxu0 %v6662
      %7131 = vmatpush1.bf16.msra.mxu0 %v6661
      %7132 = vmatprep.subr.bf16.mxu0 %v6668
      %7133 = vmatpush1.bf16.msra.mxu0 %v6667
      %7134 = vmatprep.subr.bf16.mxu0 %v6674
      %7135 = vmatpush1.bf16.msra.mxu0 %v6673
      %7136 = vmatprep.subr.bf16.mxu0 %v6680
      %7137 = vmatpush1.bf16.msra.mxu0 %v6679
      %7138 = vmatprep.subr.bf16.mxu0 %v6686
      %7139 = vmatpush1.bf16.msra.mxu0 %v6685
      %7140 = vmatprep.subr.bf16.mxu0 %v6692
      %7141 = vmatpush1.bf16.msra.mxu0 %v6691
      %7142 = vmatprep.subr.bf16.mxu0 %v6698
      %7143 = vmatpush1.bf16.msra.mxu0 %v6697
      %7144 = vmatprep.mubr.bf16.mxu0 %v5695
      %7145 = vmatmul.mubr.bf16.gmra.mrb[0].mxu0 %v5694
      %v7146 = vpop.f32.mrb[0].mxu0
      %v7147 = vadd.f32 %v7074, %v7146
      %v7148 = vpop.f32.mrb[0].mxu0
      %v7149 = vadd.f32 %v7076, %v7148
      %v7150 = vpop.f32.mrb[0].mxu0
      %v7151 = vadd.f32 %v7078, %v7150
      %v7152 = vpop.f32.mrb[0].mxu0
      %v7153 = vadd.f32 %v7080, %v7152
      %7154 = vmatprep.mubr.bf16.mxu0 %v5699
      %7155 = vmatmul.mubr.bf16.gmra.mrb[0].mxu0 %v5698
      %v7156 = vpop.f32.mrb[0].mxu0
      %v7157 = vadd.f32 %v7084, %v7156
      %v7158 = vpop.f32.mrb[0].mxu0
      %v7159 = vadd.f32 %v7086, %v7158
      %v7160 = vpop.f32.mrb[0].mxu0
      %v7161 = vadd.f32 %v7088, %v7160
      %v7162 = vpop.f32.mrb[0].mxu0
      %v7163 = vadd.f32 %v7090, %v7162
      %7164 = vmatprep.mubr.bf16.mxu0 %v5703
      %7165 = vmatmul.mubr.bf16.gmra.mrb[0].mxu0 %v5702
      %v7166 = vpop.f32.mrb[0].mxu0
      %v7167 = vadd.f32 %v7094, %v7166
      %v7168 = vpop.f32.mrb[0].mxu0
      %v7169 = vadd.f32 %v7096, %v7168
      %v7170 = vpop.f32.mrb[0].mxu0
      %v7171 = vadd.f32 %v7098, %v7170
      %v7172 = vpop.f32.mrb[0].mxu0
      %v7173 = vadd.f32 %v7100, %v7172
      %7174 = vmatprep.mubr.bf16.mxu0 %v5707
      %7175 = vmatmul.mubr.bf16.gmra.mrb[0].mxu0 %v5706
      %v7176 = vpop.f32.mrb[0].mxu0
      %v7177 = vadd.f32 %v7104, %v7176
      %v7178 = vpop.f32.mrb[0].mxu0
      %v7179 = vadd.f32 %v7106, %v7178
      %v7180 = vpop.f32.mrb[0].mxu0
      %v7181 = vadd.f32 %v7108, %v7180
      %v7182 = vpop.f32.mrb[0].mxu0
      %v7183 = vadd.f32 %v7110, %v7182
      %7184 = vdwg.mxu0
      %7185 = vmatprep.subr.bf16.mxu0 %v6514
      %7186 = vmatpush1.bf16.msra.mxu0 %v6513
      %7187 = vmatprep.subr.bf16.mxu0 %v6520
      %7188 = vmatpush1.bf16.msra.mxu0 %v6519
      %7189 = vmatprep.subr.bf16.mxu0 %v6526
      %7190 = vmatpush1.bf16.msra.mxu0 %v6525
      %7191 = vmatprep.subr.bf16.mxu0 %v6532
      %7192 = vmatpush1.bf16.msra.mxu0 %v6531
      %7193 = vmatprep.subr.bf16.mxu0 %v6538
      %7194 = vmatpush1.bf16.msra.mxu0 %v6537
      %7195 = vmatprep.subr.bf16.mxu0 %v6544
      %7196 = vmatpush1.bf16.msra.mxu0 %v6543
      %7197 = vmatprep.subr.bf16.mxu0 %v6550
      %7198 = vmatpush1.bf16.msra.mxu0 %v6549
      %7199 = vmatprep.subr.bf16.mxu0 %v6556
      %7200 = vmatpush1.bf16.msra.mxu0 %v6555
      %7201 = vmatprep.subr.bf16.mxu0 %v6562
      %7202 = vmatpush1.bf16.msra.mxu0 %v6561
      %7203 = vmatprep.subr.bf16.mxu0 %v6568
      %7204 = vmatpush1.bf16.msra.mxu0 %v6567
      %7205 = vmatprep.subr.bf16.mxu0 %v6574
      %7206 = vmatpush1.bf16.msra.mxu0 %v6573
      %7207 = vmatprep.subr.bf16.mxu0 %v6580
      %7208 = vmatpush1.bf16.msra.mxu0 %v6579
      %7209 = vmatprep.subr.bf16.mxu0 %v6586
      %7210 = vmatpush1.bf16.msra.mxu0 %v6585
      %7211 = vmatprep.subr.bf16.mxu0 %v6592
      %7212 = vmatpush1.bf16.msra.mxu0 %v6591
      %7213 = vmatprep.subr.bf16.mxu0 %v6598
      %7214 = vmatpush1.bf16.msra.mxu0 %v6597
      %7215 = vmatprep.subr.bf16.mxu0 %v6604
      %7216 = vmatpush1.bf16.msra.mxu0 %v6603
      %7217 = vmatprep.mubr.bf16.mxu0 %v5693
      %7218 = vmatmul.mubr.bf16.gmra.mrb[0].mxu0 %v5692
      %v7219 = vpop.f32.mrb[0].mxu0
      %v7220 = vadd.f32 %v5922, %v7219
      %v7221 = vpop.f32.mrb[0].mxu0
      %v7222 = vadd.f32 %v5926, %v7221
      %v7223 = vpop.f32.mrb[0].mxu0
      %v7224 = vadd.f32 %v5922, %v7223
      %v7225 = vpop.f32.mrb[0].mxu0
      %v7226 = vadd.f32 %v5926, %v7225
      %7227 = vmatprep.mubr.bf16.mxu0 %v5697
      %7228 = vmatmul.mubr.bf16.gmra.mrb[0].mxu0 %v5696
      %v7229 = vpop.f32.mrb[0].mxu0
      %v7230 = vadd.f32 %v5922, %v7229
      %v7231 = vpop.f32.mrb[0].mxu0
      %v7232 = vadd.f32 %v5926, %v7231
      %v7233 = vpop.f32.mrb[0].mxu0
      %v7234 = vadd.f32 %v5922, %v7233
      %v7235 = vpop.f32.mrb[0].mxu0
      %v7236 = vadd.f32 %v5926, %v7235
      %7237 = vmatprep.mubr.bf16.mxu0 %v5701
      %7238 = vmatmul.mubr.bf16.gmra.mrb[0].mxu0 %v5700
      %v7239 = vpop.f32.mrb[0].mxu0
      %v7240 = vadd.f32 %v5922, %v7239
      %v7241 = vpop.f32.mrb[0].mxu0
      %v7242 = vadd.f32 %v5926, %v7241
      %v7243 = vpop.f32.mrb[0].mxu0
      %v7244 = vadd.f32 %v5922, %v7243
      %v7245 = vpop.f32.mrb[0].mxu0
      %v7246 = vadd.f32 %v5926, %v7245
      %7247 = vmatprep.mubr.bf16.mxu0 %v5705
      %7248 = vmatmul.mubr.bf16.gmra.mrb[0].mxu0 %v5704
      %v7249 = vpop.f32.mrb[0].mxu0
      %v7250 = vadd.f32 %v5922, %v7249
      %v7251 = vpop.f32.mrb[0].mxu0
      %v7252 = vadd.f32 %v5926, %v7251
      %v7253 = vpop.f32.mrb[0].mxu0
      %v7254 = vadd.f32 %v5922, %v7253
      %v7255 = vpop.f32.mrb[0].mxu0
      %v7256 = vadd.f32 %v5926, %v7255
      %7257 = vdwg.mxu0
      %7258 = vmatprep.subr.bf16.mxu0 %v6610
      %7259 = vmatpush1.bf16.msra.mxu0 %v6609
      %7260 = vmatprep.subr.bf16.mxu0 %v6616
      %7261 = vmatpush1.bf16.msra.mxu0 %v6615
      %7262 = vmatprep.subr.bf16.mxu0 %v6622
      %7263 = vmatpush1.bf16.msra.mxu0 %v6621
      %7264 = vmatprep.subr.bf16.mxu0 %v6628
      %7265 = vmatpush1.bf16.msra.mxu0 %v6627
      %7266 = vmatprep.subr.bf16.mxu0 %v6634
      %7267 = vmatpush1.bf16.msra.mxu0 %v6633
      %7268 = vmatprep.subr.bf16.mxu0 %v6640
      %7269 = vmatpush1.bf16.msra.mxu0 %v6639
      %7270 = vmatprep.subr.bf16.mxu0 %v6646
      %7271 = vmatpush1.bf16.msra.mxu0 %v6645
      %7272 = vmatprep.subr.bf16.mxu0 %v6652
      %7273 = vmatpush1.bf16.msra.mxu0 %v6651
      %7274 = vmatprep.subr.bf16.mxu0 %v6658
      %7275 = vmatpush1.bf16.msra.mxu0 %v6657
      %7276 = vmatprep.subr.bf16.mxu0 %v6664
      %7277 = vmatpush1.bf16.msra.mxu0 %v6663
      %7278 = vmatprep.subr.bf16.mxu0 %v6670
      %7279 = vmatpush1.bf16.msra.mxu0 %v6669
      %7280 = vmatprep.subr.bf16.mxu0 %v6676
      %7281 = vmatpush1.bf16.msra.mxu0 %v6675
      %7282 = vmatprep.subr.bf16.mxu0 %v6682
      %7283 = vmatpush1.bf16.msra.mxu0 %v6681
      %7284 = vmatprep.subr.bf16.mxu0 %v6688
      %7285 = vmatpush1.bf16.msra.mxu0 %v6687
      %7286 = vmatprep.subr.bf16.mxu0 %v6694
      %7287 = vmatpush1.bf16.msra.mxu0 %v6693
      %7288 = vmatprep.subr.bf16.mxu0 %v6700
      %7289 = vmatpush1.bf16.msra.mxu0 %v6699
      %7290 = vmatprep.mubr.bf16.mxu0 %v5695
      %7291 = vmatmul.mubr.bf16.gmra.mrb[0].mxu0 %v5694
      %v7292 = vpop.f32.mrb[0].mxu0
      %v7293 = vadd.f32 %v7220, %v7292
      %v7294 = vpop.f32.mrb[0].mxu0
      %v7295 = vadd.f32 %v7222, %v7294
      %v7296 = vpop.f32.mrb[0].mxu0
      %v7297 = vadd.f32 %v7224, %v7296
      %v7298 = vpop.f32.mrb[0].mxu0
      %v7299 = vadd.f32 %v7226, %v7298
      %7300 = vmatprep.mubr.bf16.mxu0 %v5699
      %7301 = vmatmul.mubr.bf16.gmra.mrb[0].mxu0 %v5698
      %v7302 = vpop.f32.mrb[0].mxu0
      %v7303 = vadd.f32 %v7230, %v7302
      %v7304 = vpop.f32.mrb[0].mxu0
      %v7305 = vadd.f32 %v7232, %v7304
      %v7306 = vpop.f32.mrb[0].mxu0
      %v7307 = vadd.f32 %v7234, %v7306
      %v7308 = vpop.f32.mrb[0].mxu0
      %v7309 = vadd.f32 %v7236, %v7308
      %7310 = vmatprep.mubr.bf16.mxu0 %v5703
      %7311 = vmatmul.mubr.bf16.gmra.mrb[0].mxu0 %v5702
      %v7312 = vpop.f32.mrb[0].mxu0
      %v7313 = vadd.f32 %v7240, %v7312
      %v7314 = vpop.f32.mrb[0].mxu0
      %v7315 = vadd.f32 %v7242, %v7314
      %v7316 = vpop.f32.mrb[0].mxu0
      %v7317 = vadd.f32 %v7244, %v7316
      %v7318 = vpop.f32.mrb[0].mxu0
      %v7319 = vadd.f32 %v7246, %v7318
      %7320 = vmatprep.mubr.bf16.mxu0 %v5707
      %7321 = vmatmul.mubr.bf16.gmra.mrb[0].mxu0 %v5706
      %v7322 = vpop.f32.mrb[0].mxu0
      %v7323 = vadd.f32 %v7250, %v7322
      %v7324 = vpop.f32.mrb[0].mxu0
      %v7325 = vadd.f32 %v7252, %v7324
      %v7326 = vpop.f32.mrb[0].mxu0
      %v7327 = vadd.f32 %v7254, %v7326
      %v7328 = vpop.f32.mrb[0].mxu0
      %v7329 = vadd.f32 %v7256, %v7328
      %7330 = vdwg.mxu0
      %s7331 = scalar_lea.vmem %s233, 1152
      %7332 = vst [vmem:[%s7331] sm:$0xff] %v7001
      %7333 = vst [vmem:[%s7331 + $0x8] sm:$0xff] %v7003
      %7334 = vst [vmem:[%s7331 + $0x10] sm:$0xff] %v7147
      %7335 = vst [vmem:[%s7331 + $0x18] sm:$0xff] %v7149
      %7336 = vst [vmem:[%s7331 + $0x20] sm:$0xff] %v7293
      %7337 = vst [vmem:[%s7331 + $0x28] sm:$0xff] %v7295
      %7338 = vst [vmem:[%s7331 + $0x30] sm:$0xff] %v7005
      %7339 = vst [vmem:[%s7331 + $0x38] sm:$0xff] %v7007
      %7340 = vst [vmem:[%s7331 + $0x40] sm:$0xff] %v7151
      %7341 = vst [vmem:[%s7331 + $0x48] sm:$0xff] %v7153
      %7342 = vst [vmem:[%s7331 + $0x50] sm:$0xff] %v7297
      %7343 = vst [vmem:[%s7331 + $0x58] sm:$0xff] %v7299
      %7344 = vst [vmem:[%s7331 + $0x60] sm:$0xff] %v7011
      %7345 = vst [vmem:[%s7331 + $0x68] sm:$0xff] %v7013
      %7346 = vst [vmem:[%s7331 + $0x70] sm:$0xff] %v7157
      %7347 = vst [vmem:[%s7331 + $0x78] sm:$0xff] %v7159
      %7348 = vst [vmem:[%s7331 + $0x80] sm:$0xff] %v7303
      %7349 = vst [vmem:[%s7331 + $0x88] sm:$0xff] %v7305
      %7350 = vst [vmem:[%s7331 + $0x90] sm:$0xff] %v7015
      %7351 = vst [vmem:[%s7331 + $0x98] sm:$0xff] %v7017
      %7352 = vst [vmem:[%s7331 + $0xa0] sm:$0xff] %v7161
      %7353 = vst [vmem:[%s7331 + $0xa8] sm:$0xff] %v7163
      %7354 = vst [vmem:[%s7331 + $0xb0] sm:$0xff] %v7307
      %7355 = vst [vmem:[%s7331 + $0xb8] sm:$0xff] %v7309
      %7356 = vst [vmem:[%s7331 + $0xc0] sm:$0xff] %v7021
      %7357 = vst [vmem:[%s7331 + $0xc8] sm:$0xff] %v7023
      %7358 = vst [vmem:[%s7331 + $0xd0] sm:$0xff] %v7167
      %7359 = vst [vmem:[%s7331 + $0xd8] sm:$0xff] %v7169
      %7360 = vst [vmem:[%s7331 + $0xe0] sm:$0xff] %v7313
      %7361 = vst [vmem:[%s7331 + $0xe8] sm:$0xff] %v7315
      %7362 = vst [vmem:[%s7331 + $0xf0] sm:$0xff] %v7025
      %7363 = vst [vmem:[%s7331 + $0xf8] sm:$0xff] %v7027
      %7364 = vst [vmem:[%s7331 + $0x100] sm:$0xff] %v7171
      %7365 = vst [vmem:[%s7331 + $0x108] sm:$0xff] %v7173
      %7366 = vst [vmem:[%s7331 + $0x110] sm:$0xff] %v7317
      %7367 = vst [vmem:[%s7331 + $0x118] sm:$0xff] %v7319
      %7368 = vst [vmem:[%s7331 + $0x120] sm:$0xff] %v7031
      %7369 = vst [vmem:[%s7331 + $0x128] sm:$0xff] %v7033
      %7370 = vst [vmem:[%s7331 + $0x130] sm:$0xff] %v7177
      %7371 = vst [vmem:[%s7331 + $0x138] sm:$0xff] %v7179
      %7372 = vst [vmem:[%s7331 + $0x140] sm:$0xff] %v7323
      %7373 = vst [vmem:[%s7331 + $0x148] sm:$0xff] %v7325
      %7374 = vst [vmem:[%s7331 + $0x150] sm:$0xff] %v7035
      %7375 = vst [vmem:[%s7331 + $0x158] sm:$0xff] %v7037
      %7376 = vst [vmem:[%s7331 + $0x160] sm:$0xff] %v7181
      %7377 = vst [vmem:[%s7331 + $0x168] sm:$0xff] %v7183
      %7378 = vst [vmem:[%s7331 + $0x170] sm:$0xff] %v7327
      %7379 = vst [vmem:[%s7331 + $0x178] sm:$0xff] %v7329
      %s7380 = smul.u32 6, %s19
      %p7381 = scmp.lt.s32.totalorder %s18, 1
      %s7382 = scalar_select %p7381, %s18, 1
      %p7383 = scmp.lt.s32.totalorder %s7380, 5
      %s7384 = scalar_select %p7383, %s7380, 5
      %s7385 = smul.addr %s7382, 192
      %s7386 = sadd.s32 %s7384, %s7385
      %s7387 = smul.addr %s7386, 8
      %s7388 = scalar_lea.vmem %s3, %s7387
      // Predicated region
      $region33: #{decoder_forward.7} parent=31 // pred_check
        %p7389 = pneg %p124
      $region34: #{decoder_forward.7} parent=31 // pred_check_branch
        %7391 = sbr.rel (%p7389) target = $region36
      $region35: #{decoder_forward.7} parent=31 // pred_region
        %s7392 = smul.u32 6, %s19
      $region36: #{decoder_forward.7} parent=31 // pred_fallthru
        _
    $region32: #{decoder_forward.7} parent=5 // pred_fallthru
      _
    %p7393 = scmp.le.s32.totalorder 2, %s9
    // Predicated region
    $region37: #{decoder_forward.7} parent=5 // pred_check
      %p7394 = pneg %p7393
    $region38: #{decoder_forward.7} parent=5 // pred_check_branch
      %7396 = sbr.rel (%p7394) target = $region40
    $region39: #{decoder_forward.7} parent=5 // pred_region
      %s7397 = ssub.s32 %s9, 2
      // Predicated region
      $region41: #{decoder_forward.7} parent=39 // pred_check
        %p7398 = pneg %p130
      $region42: #{decoder_forward.7} parent=39 // pred_check_branch
        %7400 = sbr.rel (%p7398) target = $region44
      $region43: #{decoder_forward.7} parent=39 // pred_region
        %s7401 = smul.u32 6, %s21
        %p7402 = scmp.lt.s32.totalorder %s20, 1
        %s7403 = scalar_select %p7402, %s20, 1
        %p7404 = scmp.lt.s32.totalorder %s7401, 5
        %s7405 = scalar_select %p7404, %s7401, 5
        %s7406 = smul.addr %s7403, 192
        %s7407 = sadd.s32 %s7405, %s7406
        %s7408 = smul.addr %s7407, 8
        %s7409 = scalar_lea.vmem %s3, %s7408
      $region44: #{decoder_forward.7} parent=39 // pred_fallthru
        _
    $region40: #{decoder_forward.7} parent=5 // pred_fallthru
      _
  $region6: #{decoder_forward.7} parent=0 // loop_footer
    %s13 = sadd.s32 1, %s9
  $region7: #{decoder_forward.7} parent=0 // loop_footer_branch
    %8 = sbr.rel target = $region3
  $region8: #{decoder_forward.7} parent=0 // loop_exit
    _

</llo_original>
